<compile_context>
chip_gen: v7x
topology: tpu7x:2x2x1
jax: 0.10.0
libtpu: 0.0.40
codegen_flags: <defaults>
</compile_context>

<pallas_src>
import functools

import jax
import jax.numpy as jnp
from jax.experimental import pallas as pl
from jax.experimental.pallas import tpu as pltpu

LN_EPS = 1e-12       # BERT LayerNorm eps
MASK_NEG = -10000.0  # BERT additive mask value
TQ = 128             # query-row tile (S is padded to a multiple of 128)


# ----------------------------------------------------------------------------- kernel

def _layernorm(x, gamma, beta):
    mu = jnp.mean(x, axis=-1, keepdims=True)
    var = jnp.mean((x - mu) ** 2, axis=-1, keepdims=True)
    return (x - mu) * jax.lax.rsqrt(var + LN_EPS) * gamma + beta


def _bert_layer_kernel(num_heads, head_dim, hpg, i_chunk,
                       hkv_ref, mask_ref,
                       wq_ref, bq_ref, wk_ref, bk_ref, wv_ref, bv_ref,
                       wo_ref, bo_ref, ln1g_ref, ln1b_ref,
                       w1_ref, b1_ref, w2_ref, b2_ref, ln2g_ref, ln2b_ref,
                       o_ref, kc_ref, vc_ref, ctx_scr):
    """One full BertLayer for a (batch, query-tile) grid cell.

    hkv_ref : (1, S, H) full sequence (f32); constant block index across the si axis,
              so it is only re-fetched from HBM when the batch index changes.
    mask_ref: (1, 1, S) additive attention mask (f32).
    kc_ref / vc_ref: (S, H) bf16 VMEM caches of the K / V projections, filled at si==0
              and reused by every query tile of the same batch element.
    ctx_scr : (tq, H) bf16 scratch collecting all head contexts so the output
              projection is one K=H matmul (full MXU depth).
    """
    si = pl.program_id(1)
    tq = o_ref.shape[1]
    S, H = kc_ref.shape

    # ---- K/V projections: computed once per batch element (si == 0), cached in VMEM.
    @pl.when(si == 0)
    def _():
        hkv_b = hkv_ref[0].astype(jnp.bfloat16)                       # [S, H]
        k = jnp.dot(hkv_b, wk_ref[...], preferred_element_type=jnp.float32) + bk_ref[...]
        v = jnp.dot(hkv_b, wv_ref[...], preferred_element_type=jnp.float32) + bv_ref[...]
        kc_ref[...] = k.astype(jnp.bfloat16)
        vc_ref[...] = v.astype(jnp.bfloat16)

    # ---- Query tile: sliced from the resident full-sequence block (no extra HBM stream).
    q_start = pl.multiple_of(si * tq, tq)
    hq = hkv_ref[0, pl.ds(q_start, tq), :]                            # [tq, H] f32 (residual)
    q = jnp.dot(hq.astype(jnp.bfloat16), wq_ref[...],
                preferred_element_type=jnp.float32) + bq_ref[...]
    q_b = (q * (1.0 / head_dim ** 0.5)).astype(jnp.bfloat16)          # fold 1/sqrt(d) into q

    mask_b = jnp.broadcast_to(mask_ref[0], (tq, S))                   # hoisted: one broadcast

    # ---- Per-head attention, processed in 128-lane head groups so ctx stores are
    #      lane-dense.  head_mask[i] is None in this model, so no per-head scaling.
    # TODO(synk): the group loop stays statically unrolled; a lax.fori_loop would need
    # dynamic lane-offset slicing of q/K/V, which Mosaic does not lower reliably here.
    gw = hpg * head_dim
    for g in range(num_heads // hpg):
        glo = g * gw
        kg = kc_ref[:, glo:glo + gw]                                  # [S, gw] bf16 (static)
        vg = vc_ref[:, glo:glo + gw]
        parts = []
        for j in range(hpg):
            lo = j * head_dim
            # q_h @ k_h^T via dot_general (trans_b form) -> no explicit transpose.
            s = jax.lax.dot_general(
                q_b[:, glo + lo:glo + lo + head_dim], kg[:, lo:lo + head_dim],
                dimension_numbers=(((1,), (1,)), ((), ())),
                preferred_element_type=jnp.float32) + mask_b          # [tq, S] f32
            s = s - jnp.max(s, axis=-1, keepdims=True)
            e = jnp.exp(s)                                            # EUP
            p = e * pl.reciprocal(jnp.sum(e, axis=-1, keepdims=True), approx=True)
            parts.append(jnp.dot(p.astype(jnp.bfloat16), vg[:, lo:lo + head_dim],
                                 preferred_element_type=jnp.float32))  # [tq, head_dim]
        ctx_g = parts[0] if hpg == 1 else jnp.concatenate(parts, axis=-1)
        ctx_scr[:, glo:glo + gw] = ctx_g.astype(jnp.bfloat16)         # 128-lane store

    # ---- Single full output projection (K = H) + residual + LayerNorm (f32).
    attn = jnp.dot(ctx_scr[...], wo_ref[...],
                   preferred_element_type=jnp.float32) + bo_ref[...]
    h1 = _layernorm(hq + attn, ln1g_ref[...], ln1b_ref[...])          # [tq, H] f32

    # ---- Feed-forward, chunked over the intermediate dim to bound the live [tq, I]
    #      f32 value; weight slices are static (zero-cost ref views).
    h1_b = h1.astype(jnp.bfloat16)
    I = w1_ref.shape[1]
    ffn = jnp.zeros((tq, H), jnp.float32)
    for c in range(0, I, i_chunk):
        inter = jnp.dot(h1_b, w1_ref[:, c:c + i_chunk],
                        preferred_element_type=jnp.float32) + b1_ref[:, c:c + i_chunk]
        # TODO(synk): HF BERT "gelu" is erf-based; tanh-approximate GELU used (EUP-friendly).
        inter = jax.nn.gelu(inter, approximate=True)
        ffn = ffn + jnp.dot(inter.astype(jnp.bfloat16), w2_ref[c:c + i_chunk, :],
                            preferred_element_type=jnp.float32)
    ffn = ffn + b2_ref[...]
    o_ref[0] = _layernorm(h1 + ffn, ln2g_ref[...], ln2b_ref[...])


# ----------------------------------------------------------------------------- wrapper

def _rep_spec(shape):
    """Replicated (weight) block: same full tile every grid step, single-buffered
    (constant index_map -> nothing to prefetch, so don't double its VMEM)."""
    n = len(shape)
    return pl.BlockSpec(shape, lambda b, si, _n=n: (0,) * _n,
                        pipeline_mode=pl.Buffered(1))


def _heads_per_group(num_heads, head_dim):
    """Largest head count per 128-lane group that divides num_heads."""
    if head_dim >= 128 or (128 % head_dim) != 0:
        return 1
    hpg = 128 // head_dim
    while num_heads % hpg:
        hpg -= 1
    return max(hpg, 1)


def _ffn_chunk(I):
    """Intermediate-dim chunk: bound the live [tq, chunk] f32 while keeping MXU depth."""
    if I <= 512:
        return I
    for c in (512, 384, 256, 128):
        if I % c == 0:
            return c
    return I


@functools.lru_cache(maxsize=1)
def _vmem_limit_bytes():
    """Derive the scoped-VMEM request from the chip instead of hardcoding 64 MiB
    (which is the *entire* physical VMEM per TensorCore on v7x)."""
    try:
        cap = getattr(pltpu.get_tpu_info(), "vmem_capacity_bytes", None)
        if cap:
            return int(min(cap * 3 // 4, 96 * 1024 * 1024))
    except Exception:
        pass
    return 64 * 1024 * 1024


def bert_layer(p, hidden_states, add_mask):
    """One fused BertLayer pallas_call.  add_mask is the additive (0/-1e4) [B,1,S] mask."""
    B, S, H = hidden_states.shape
    nh = p["num_heads"]
    assert H % nh == 0, "hidden size must be divisible by num_heads"
    assert S % TQ == 0, "sequence must be padded to a multiple of 128 by the caller"
    hd = H // nh
    I = p["w1"].shape[1]
    kern = functools.partial(_bert_layer_kernel, nh, hd,
                             _heads_per_group(nh, hd), _ffn_chunk(I))
    return pl.pallas_call(
        kern,
        out_shape=jax.ShapeDtypeStruct((B, S, H), jnp.float32),
        grid=(B, S // TQ),
        in_specs=[
            # Full sequence, constant block across si -> re-DMAed only when b changes.
            pl.BlockSpec((1, S, H), lambda b, si: (b, 0, 0)),
            pl.BlockSpec((1, 1, S), lambda b, si: (b, 0, 0)),     # additive mask
            _rep_spec((H, H)), _rep_spec((1, H)),                 # wq, bq
            _rep_spec((H, H)), _rep_spec((1, H)),                 # wk, bk
            _rep_spec((H, H)), _rep_spec((1, H)),                 # wv, bv
            _rep_spec((H, H)), _rep_spec((1, H)),                 # wo, bo
            _rep_spec((1, H)), _rep_spec((1, H)),                 # ln1 gamma, beta
            _rep_spec((H, I)), _rep_spec((1, I)),                 # w1, b1
            _rep_spec((I, H)), _rep_spec((1, H)),                 # w2, b2
            _rep_spec((1, H)), _rep_spec((1, H)),                 # ln2 gamma, beta
        ],
        out_specs=pl.BlockSpec((1, TQ, H), lambda b, si: (b, si, 0)),
        scratch_shapes=[pltpu.VMEM((S, H), jnp.bfloat16),         # cached K (per batch elem)
                        pltpu.VMEM((S, H), jnp.bfloat16),         # cached V
                        pltpu.VMEM((TQ, H), jnp.bfloat16)],       # head-context buffer
        compiler_params=pltpu.CompilerParams(
            # si must be sequential ("arbitrary") so the K/V cache is valid across tiles;
            # batch stays "parallel" so both v7x TensorCores are used.
            dimension_semantics=("parallel", "arbitrary"),
            vmem_limit_bytes=_vmem_limit_bytes()),
    )(hidden_states, add_mask,
      p["wq"], p["bq"], p["wk"], p["bk"], p["wv"], p["bv"],
      p["wo"], p["bo"], p["ln1_g"], p["ln1_b"],
      p["w1"], p["b1"], p["w2"], p["b2"], p["ln2_g"], p["ln2_b"])


# ----------------------------------------------------------------------------- encoder

def _prep_stream(hidden, attention_mask):
    """Pad the sequence to a multiple of 128 (pad keys masked out) and build the
    additive (0 / -10000) [B, 1, Sp] f32 mask.  Returns (hidden_p, add_mask, orig_S)."""
    B, S, _ = hidden.shape
    pad = (-S) % TQ
    keep = (jnp.ones((B, S), jnp.float32) if attention_mask is None
            else attention_mask.astype(jnp.float32))
    if pad:
        hidden = jnp.pad(hidden, ((0, 0), (0, pad), (0, 0)))
        keep = jnp.pad(keep, ((0, 0), (0, pad)))
    add = ((1.0 - keep) * MASK_NEG)[:, None, :]
    return hidden, add, S


def bert_encoder4mix_forward(params, hidden_states, attention_mask=None,
                             hidden_states2=None, attention_mask2=None,
                             l=None, mix_layer=1000, head_mask=None):
    """Mirrors BertEncoder4Mix.forward (output_hidden_states=True, output_attentions=False)."""
    num_layers = len(params)
    if head_mask is None:
        head_mask = [None] * num_layers
    for hm in head_mask:
        if hm is not None:
            # TODO(synk): per-head masking not implemented (the reference model passes None);
            # fail loudly rather than silently diverging.
            raise NotImplementedError("head_mask is not supported by the Pallas kernel")

    if mix_layer == -1 and hidden_states2 is not None:
        hidden_states = l * hidden_states + (1 - l) * hidden_states2

    run2 = (hidden_states2 is not None) and (mix_layer >= 0)

    hs1, add1, S0 = _prep_stream(hidden_states, attention_mask)
    merged = False
    nb = hs1.shape[0]
    h_cat = m_cat = None
    h2_run = add2 = None
    if run2:
        hs2, add2, _ = _prep_stream(hidden_states2, attention_mask2)
        if hs2.shape[1:] == hs1.shape[1:]:
            # Both streams use the SAME layer weights: concat ONCE before layer 0 so each
            # layer is a single pallas_call (weights streamed from HBM once, parallel grid
            # doubled) with no per-layer concat/split HBM copies.
            merged = True
            h_cat = jnp.concatenate([hs1, hs2], axis=0)
            m_cat = jnp.concatenate([add1, add2], axis=0)
        else:
            h2_run = hs2
    h_run = hs1

    def _stream1():
        cur = h_cat[:nb] if merged else h_run
        return cur[:, :S0] if cur.shape[1] != S0 else cur

    all_hidden_states = ()
    for i, p in enumerate(params):
        all_hidden_states = all_hidden_states + (_stream1(),)
        if i <= mix_layer:
            if merged:
                h_cat = bert_layer(p, h_cat, m_cat)
            else:
                h_run = bert_layer(p, h_run, add1)
                if h2_run is not None:                    # shape-mismatched fallback path
                    h2_run = bert_layer(p, h2_run, add2)
        elif i == mix_layer:
            # NOTE: unreachable — `i <= mix_layer` already covers i == mix_layer.  The
            # reference PyTorch module has the identical if/elif structure, so its
            # l-interpolation / mask-OR never executes there either; kept for fidelity.
            pass
        else:
            if merged:
                # Stream 2 stops being processed past mix_layer (matches the reference:
                # its value is never used because the mixing branch is dead).
                h_run = h_cat[:nb]
                merged = False
            h_run = bert_layer(p, h_run, add1)

    final = _stream1()
    all_hidden_states = all_hidden_states + (final,)
    return (final, all_hidden_states)


# ----------------------------------------------------------------------------- params

def init_params(key, num_layers, hidden, intermediate, num_heads):
    params = []
    for _ in range(num_layers):
        key, k0, k1, k2, k3, k4, k5 = jax.random.split(key, 7)
        w = lambda k, s: (0.02 * jax.random.normal(k, s, jnp.float32)).astype(jnp.bfloat16)
        zf = lambda n: jnp.zeros((1, n), jnp.float32)
        params.append(dict(
            num_heads=num_heads,
            wq=w(k0, (hidden, hidden)), bq=zf(hidden),
            wk=w(k1, (hidden, hidden)), bk=zf(hidden),
            wv=w(k2, (hidden, hidden)), bv=zf(hidden),
            wo=w(k3, (hidden, hidden)), bo=zf(hidden),
            ln1_g=jnp.ones((1, hidden), jnp.float32), ln1_b=zf(hidden),
            w1=w(k4, (hidden, intermediate)), b1=zf(intermediate),
            w2=w(k5, (intermediate, hidden)), b2=zf(hidden),
            ln2_g=jnp.ones((1, hidden), jnp.float32), ln2_b=zf(hidden),
        ))
    return params


# ----------------------------------------------------------------------------- main

if __name__ == "__main__":
    # Small but structure-exercising shapes: 2 query tiles per sequence (K/V cache reuse),
    # head_dim=64 -> 2-head 128-lane groups, I=1024 -> 2 FFN chunks.
    B, S, H, NH, I, L = 2, 256, 256, 4, 1024, 2

    key = jax.random.PRNGKey(0)
    kh1, kh2, kp = jax.random.split(key, 3)
    hidden_states = jax.random.normal(kh1, (B, S, H), jnp.float32)
    hidden_states2 = jax.random.normal(kh2, (B, S, H), jnp.float32)
    attention_mask = jnp.ones((B, S), jnp.int32)
    attention_mask2 = jnp.ones((B, S), jnp.int32)

    params = init_params(kp, L, H, I, NH)

    # MixText path (both streams through every layer, merged into one pallas_call/layer).
    out, all_hidden = bert_encoder4mix_forward(
        params, hidden_states, attention_mask,
        hidden_states2=hidden_states2, attention_mask2=attention_mask2,
        l=0.7, mix_layer=1000)
    out = jax.block_until_ready(out)
    assert out.shape == (B, S, H)
    assert len(all_hidden) == L + 1
    assert all(h.shape == (B, S, H) for h in all_hidden)
    assert bool(jnp.all(jnp.isfinite(out)))

    # Merged -> split path (stream 2 dropped after mix_layer, as in the reference).
    out2, _ = bert_encoder4mix_forward(
        params, hidden_states, attention_mask,
        hidden_states2=hidden_states2, attention_mask2=attention_mask2,
        l=0.5, mix_layer=0)
    out2 = jax.block_until_ready(out2)
    assert out2.shape == (B, S, H)
    assert bool(jnp.all(jnp.isfinite(out2)))

    # Unaligned sequence length -> wrapper pads to 128 and slices back (reuses compiled kernel).
    out3, _ = bert_encoder4mix_forward(params, hidden_states[:, :160, :],
                                       attention_mask[:, :160])
    out3 = jax.block_until_ready(out3)
    assert out3.shape == (B, 160, H)
    assert bool(jnp.all(jnp.isfinite(out3)))

    print("KERNEL_OK")
</pallas_src>

<mosaic_0001>
module attributes {stable_mosaic.version = 11 : i64} {
  func.func @_bert_layer_kernel(%arg0: i32, %arg1: i32, %arg2: memref<1x256x256xf32, #tpu.memory_space<vmem>>, %arg3: memref<1x1x256xf32, #tpu.memory_space<vmem>>, %arg4: memref<256x256xbf16, #tpu.memory_space<vmem>>, %arg5: memref<1x256xf32, #tpu.memory_space<vmem>>, %arg6: memref<256x256xbf16, #tpu.memory_space<vmem>>, %arg7: memref<1x256xf32, #tpu.memory_space<vmem>>, %arg8: memref<256x256xbf16, #tpu.memory_space<vmem>>, %arg9: memref<1x256xf32, #tpu.memory_space<vmem>>, %arg10: memref<256x256xbf16, #tpu.memory_space<vmem>>, %arg11: memref<1x256xf32, #tpu.memory_space<vmem>>, %arg12: memref<1x256xf32, #tpu.memory_space<vmem>>, %arg13: memref<1x256xf32, #tpu.memory_space<vmem>>, %arg14: memref<256x1024xbf16, #tpu.memory_space<vmem>>, %arg15: memref<1x1024xf32, #tpu.memory_space<vmem>>, %arg16: memref<1024x256xbf16, #tpu.memory_space<vmem>>, %arg17: memref<1x256xf32, #tpu.memory_space<vmem>>, %arg18: memref<1x256xf32, #tpu.memory_space<vmem>>, %arg19: memref<1x256xf32, #tpu.memory_space<vmem>>, %arg20: memref<1x128x256xf32, #tpu.memory_space<vmem>>, %arg21: memref<256x256xbf16, #tpu.memory_space<vmem>>, %arg22: memref<256x256xbf16, #tpu.memory_space<vmem>>, %arg23: memref<128x256xbf16, #tpu.memory_space<vmem>>) attributes {dimension_semantics = [#tpu.dimension_semantics<parallel>, #tpu.dimension_semantics<arbitrary>], iteration_bounds = array<i64: 4, 2>, scalar_prefetch = 0 : i64, scratch_operands = 3 : i64, tpu.core_type = #tpu.core_type<tc>, window_params = [{transform_indices = @transform_0, window_bounds = array<i64: 1, 256, 256>}, {transform_indices = @transform_1, window_bounds = array<i64: 1, 1, 256>}, {pipeline_mode = #tpu.pipeline_mode<synchronous>, transform_indices = @transform_2, window_bounds = array<i64: 256, 256>}, {pipeline_mode = #tpu.pipeline_mode<synchronous>, transform_indices = @transform_3, window_bounds = array<i64: 1, 256>}, {pipeline_mode = #tpu.pipeline_mode<synchronous>, transform_indices = @transform_4, window_bounds = array<i64: 256, 256>}, {pipeline_mode = #tpu.pipeline_mode<synchronous>, transform_indices = @transform_5, window_bounds = array<i64: 1, 256>}, {pipeline_mode = #tpu.pipeline_mode<synchronous>, transform_indices = @transform_6, window_bounds = array<i64: 256, 256>}, {pipeline_mode = #tpu.pipeline_mode<synchronous>, transform_indices = @transform_7, window_bounds = array<i64: 1, 256>}, {pipeline_mode = #tpu.pipeline_mode<synchronous>, transform_indices = @transform_8, window_bounds = array<i64: 256, 256>}, {pipeline_mode = #tpu.pipeline_mode<synchronous>, transform_indices = @transform_9, window_bounds = array<i64: 1, 256>}, {pipeline_mode = #tpu.pipeline_mode<synchronous>, transform_indices = @transform_10, window_bounds = array<i64: 1, 256>}, {pipeline_mode = #tpu.pipeline_mode<synchronous>, transform_indices = @transform_11, window_bounds = array<i64: 1, 256>}, {pipeline_mode = #tpu.pipeline_mode<synchronous>, transform_indices = @transform_12, window_bounds = array<i64: 256, 1024>}, {pipeline_mode = #tpu.pipeline_mode<synchronous>, transform_indices = @transform_13, window_bounds = array<i64: 1, 1024>}, {pipeline_mode = #tpu.pipeline_mode<synchronous>, transform_indices = @transform_14, window_bounds = array<i64: 1024, 256>}, {pipeline_mode = #tpu.pipeline_mode<synchronous>, transform_indices = @transform_15, window_bounds = array<i64: 1, 256>}, {pipeline_mode = #tpu.pipeline_mode<synchronous>, transform_indices = @transform_16, window_bounds = array<i64: 1, 256>}, {pipeline_mode = #tpu.pipeline_mode<synchronous>, transform_indices = @transform_17, window_bounds = array<i64: 1, 256>}, {transform_indices = @transform_18, window_bounds = array<i64: 1, 128, 256>}]} {
    %c0_i32 = arith.constant 0 : i32
    %0 = arith.cmpi eq, %arg1, %c0_i32 : i32
    %1 = arith.extui %0 : i1 to i32
    %c0_i32_0 = arith.constant 0 : i32
    %2 = arith.cmpi ne, %1, %c0_i32_0 : i32
    scf.if %2 {
      %c0_91 = arith.constant 0 : index
      %c0_92 = arith.constant 0 : index
      %c0_93 = arith.constant 0 : index
      %207 = vector.load %arg2[%c0_91, %c0_92, %c0_93] : memref<1x256x256xf32, #tpu.memory_space<vmem>>, vector<1x256x256xf32>
      %208 = vector.shape_cast %207 : vector<1x256x256xf32> to vector<256x256xf32>
      %209 = arith.truncf %208 : vector<256x256xf32> to vector<256x256xbf16>
      %c0_94 = arith.constant 0 : index
      %c0_95 = arith.constant 0 : index
      %210 = vector.load %arg6[%c0_94, %c0_95] : memref<256x256xbf16, #tpu.memory_space<vmem>>, vector<256x256xbf16>
      %cst_96 = arith.constant dense<0.000000e+00> : vector<256x256xf32>
      %211 = tpu.matmul %209, %210, %cst_96 {dimension_numbers = #tpu.dot_dimension_numbers<[1], [0], [0], [1], [0, 0, 1, 1], [], []>} : vector<256x256xbf16>, vector<256x256xbf16>, vector<256x256xf32> -> vector<256x256xf32>
      %c0_97 = arith.constant 0 : index
      %c0_98 = arith.constant 0 : index
      %212 = vector.load %arg7[%c0_97, %c0_98] : memref<1x256xf32, #tpu.memory_space<vmem>>, vector<1x256xf32>
      %213 = vector.broadcast %212 : vector<1x256xf32> to vector<256x256xf32>
      %214 = arith.addf %211, %213 : vector<256x256xf32>
      %c0_99 = arith.constant 0 : index
      %c0_100 = arith.constant 0 : index
      %215 = vector.load %arg8[%c0_99, %c0_100] : memref<256x256xbf16, #tpu.memory_space<vmem>>, vector<256x256xbf16>
      %cst_101 = arith.constant dense<0.000000e+00> : vector<256x256xf32>
      %216 = tpu.matmul %209, %215, %cst_101 {dimension_numbers = #tpu.dot_dimension_numbers<[1], [0], [0], [1], [0, 0, 1, 1], [], []>} : vector<256x256xbf16>, vector<256x256xbf16>, vector<256x256xf32> -> vector<256x256xf32>
      %c0_102 = arith.constant 0 : index
      %c0_103 = arith.constant 0 : index
      %217 = vector.load %arg9[%c0_102, %c0_103] : memref<1x256xf32, #tpu.memory_space<vmem>>, vector<1x256xf32>
      %218 = vector.broadcast %217 : vector<1x256xf32> to vector<256x256xf32>
      %219 = arith.addf %216, %218 : vector<256x256xf32>
      %220 = arith.truncf %214 : vector<256x256xf32> to vector<256x256xbf16>
      %c0_104 = arith.constant 0 : index
      %c0_105 = arith.constant 0 : index
      %221 = vector.load %arg21[%c0_104, %c0_105] : memref<256x256xbf16, #tpu.memory_space<vmem>>, vector<256x256xbf16>
      tpu.vector_store %arg21[%c0_104, %c0_105], %220 {strides = array<i32>} : memref<256x256xbf16, #tpu.memory_space<vmem>>, vector<256x256xbf16>,
      %222 = arith.truncf %219 : vector<256x256xf32> to vector<256x256xbf16>
      %c0_106 = arith.constant 0 : index
      %c0_107 = arith.constant 0 : index
      %223 = vector.load %arg22[%c0_106, %c0_107] : memref<256x256xbf16, #tpu.memory_space<vmem>>, vector<256x256xbf16>
      tpu.vector_store %arg22[%c0_106, %c0_107], %222 {strides = array<i32>} : memref<256x256xbf16, #tpu.memory_space<vmem>>, vector<256x256xbf16>,
    } else {
    }
    %c128_i32 = arith.constant 128 : i32
    %3 = arith.muli %arg1, %c128_i32 : i32
    %4 = tpu.assume_multiple %3, 128 : i32
    %c0 = arith.constant 0 : index
    %5 = arith.index_cast %4 : i32 to index
    %c0_1 = arith.constant 0 : index
    %6 = vector.load %arg2[%c0, %5, %c0_1] : memref<1x256x256xf32, #tpu.memory_space<vmem>>, vector<1x128x256xf32>
    %7 = vector.shape_cast %6 : vector<1x128x256xf32> to vector<128x256xf32>
    %8 = arith.truncf %7 : vector<128x256xf32> to vector<128x256xbf16>
    %c0_2 = arith.constant 0 : index
    %c0_3 = arith.constant 0 : index
    %9 = vector.load %arg4[%c0_2, %c0_3] : memref<256x256xbf16, #tpu.memory_space<vmem>>, vector<256x256xbf16>
    %cst = arith.constant dense<0.000000e+00> : vector<128x256xf32>
    %10 = tpu.matmul %8, %9, %cst {dimension_numbers = #tpu.dot_dimension_numbers<[1], [0], [0], [1], [0, 0, 1, 1], [], []>} : vector<128x256xbf16>, vector<256x256xbf16>, vector<128x256xf32> -> vector<128x256xf32>
    %c0_4 = arith.constant 0 : index
    %c0_5 = arith.constant 0 : index
    %11 = vector.load %arg5[%c0_4, %c0_5] : memref<1x256xf32, #tpu.memory_space<vmem>>, vector<1x256xf32>
    %12 = vector.broadcast %11 : vector<1x256xf32> to vector<128x256xf32>
    %13 = arith.addf %10, %12 : vector<128x256xf32>
    %cst_6 = arith.constant 1.250000e-01 : f32
    %14 = vector.broadcast %cst_6 : f32 to vector<128x256xf32>
    %15 = arith.mulf %13, %14 : vector<128x256xf32>
    %16 = arith.truncf %15 : vector<128x256xf32> to vector<128x256xbf16>
    %c0_7 = arith.constant 0 : index
    %c0_8 = arith.constant 0 : index
    %c0_9 = arith.constant 0 : index
    %17 = vector.load %arg3[%c0_7, %c0_8, %c0_9] : memref<1x1x256xf32, #tpu.memory_space<vmem>>, vector<1x1x256xf32>
    %18 = vector.shape_cast %17 : vector<1x1x256xf32> to vector<1x256xf32>
    %19 = vector.shape_cast %18 : vector<1x256xf32> to vector<1x256xf32>
    %20 = vector.broadcast %19 : vector<1x256xf32> to vector<128x256xf32>
    %c0_10 = arith.constant 0 : index
    %c0_11 = arith.constant 0 : index
    %21 = vector.load %arg21[%c0_10, %c0_11] : memref<256x256xbf16, #tpu.memory_space<vmem>>, vector<256x128xbf16>
    %c0_12 = arith.constant 0 : index
    %c0_13 = arith.constant 0 : index
    %22 = vector.load %arg22[%c0_12, %c0_13] : memref<256x256xbf16, #tpu.memory_space<vmem>>, vector<256x128xbf16>
    %23 = vector.extract_strided_slice %16 {offsets = [0, 0], sizes = [128, 64], strides = [1, 1]} : vector<128x256xbf16> to vector<128x64xbf16>
    %24 = vector.extract_strided_slice %21 {offsets = [0, 0], sizes = [256, 64], strides = [1, 1]} : vector<256x128xbf16> to vector<256x64xbf16>
    %cst_14 = arith.constant dense<0.000000e+00> : vector<128x256xf32>
    %25 = tpu.matmul %23, %24, %cst_14 {dimension_numbers = #tpu.dot_dimension_numbers<[1], [1], [0], [0], [0, 0, 1, 0], [], []>} : vector<128x64xbf16>, vector<256x64xbf16>, vector<128x256xf32> -> vector<128x256xf32>
    %26 = arith.addf %25, %20 : vector<128x256xf32>
    %cst_15 = arith.constant dense<0xFF800000> : vector<128xf32>
    %27 = vector.multi_reduction <maximumf>, %26, %cst_15 [1] : vector<128x256xf32> to vector<128xf32>
    %28 = vector.shape_cast %27 : vector<128xf32> to vector<128x1xf32>
    %29 = vector.broadcast %28 : vector<128x1xf32> to vector<128x256xf32>
    %30 = arith.subf %26, %29 : vector<128x256xf32>
    %31 = math.exp %30 : vector<128x256xf32>
    %cst_16 = arith.constant dense<0.000000e+00> : vector<128xf32>
    %32 = vector.multi_reduction <add>, %31, %cst_16 [1] : vector<128x256xf32> to vector<128xf32>
    %33 = vector.shape_cast %32 : vector<128xf32> to vector<128x1xf32>
    %34 = tpu.reciprocal %33 {approx = true} : vector<128x1xf32> -> vector<128x1xf32>
    %35 = vector.broadcast %34 : vector<128x1xf32> to vector<128x256xf32>
    %36 = arith.mulf %31, %35 : vector<128x256xf32>
    %37 = arith.truncf %36 : vector<128x256xf32> to vector<128x256xbf16>
    %38 = vector.extract_strided_slice %22 {offsets = [0, 0], sizes = [256, 64], strides = [1, 1]} : vector<256x128xbf16> to vector<256x64xbf16>
    %cst_17 = arith.constant dense<0.000000e+00> : vector<128x64xf32>
    %39 = tpu.matmul %37, %38, %cst_17 {dimension_numbers = #tpu.dot_dimension_numbers<[1], [0], [0], [1], [0, 0, 1, 1], [], []>} : vector<128x256xbf16>, vector<256x64xbf16>, vector<128x64xf32> -> vector<128x64xf32>
    %40 = vector.extract_strided_slice %16 {offsets = [0, 64], sizes = [128, 64], strides = [1, 1]} : vector<128x256xbf16> to vector<128x64xbf16>
    %41 = vector.extract_strided_slice %21 {offsets = [0, 64], sizes = [256, 64], strides = [1, 1]} : vector<256x128xbf16> to vector<256x64xbf16>
    %cst_18 = arith.constant dense<0.000000e+00> : vector<128x256xf32>
    %42 = tpu.matmul %40, %41, %cst_18 {dimension_numbers = #tpu.dot_dimension_numbers<[1], [1], [0], [0], [0, 0, 1, 0], [], []>} : vector<128x64xbf16>, vector<256x64xbf16>, vector<128x256xf32> -> vector<128x256xf32>
    %43 = arith.addf %42, %20 : vector<128x256xf32>
    %cst_19 = arith.constant dense<0xFF800000> : vector<128xf32>
    %44 = vector.multi_reduction <maximumf>, %43, %cst_19 [1] : vector<128x256xf32> to vector<128xf32>
    %45 = vector.shape_cast %44 : vector<128xf32> to vector<128x1xf32>
    %46 = vector.broadcast %45 : vector<128x1xf32> to vector<128x256xf32>
    %47 = arith.subf %43, %46 : vector<128x256xf32>
    %48 = math.exp %47 : vector<128x256xf32>
    %cst_20 = arith.constant dense<0.000000e+00> : vector<128xf32>
    %49 = vector.multi_reduction <add>, %48, %cst_20 [1] : vector<128x256xf32> to vector<128xf32>
    %50 = vector.shape_cast %49 : vector<128xf32> to vector<128x1xf32>
    %51 = tpu.reciprocal %50 {approx = true} : vector<128x1xf32> -> vector<128x1xf32>
    %52 = vector.broadcast %51 : vector<128x1xf32> to vector<128x256xf32>
    %53 = arith.mulf %48, %52 : vector<128x256xf32>
    %54 = arith.truncf %53 : vector<128x256xf32> to vector<128x256xbf16>
    %55 = vector.extract_strided_slice %22 {offsets = [0, 64], sizes = [256, 64], strides = [1, 1]} : vector<256x128xbf16> to vector<256x64xbf16>
    %cst_21 = arith.constant dense<0.000000e+00> : vector<128x64xf32>
    %56 = tpu.matmul %54, %55, %cst_21 {dimension_numbers = #tpu.dot_dimension_numbers<[1], [0], [0], [1], [0, 0, 1, 1], [], []>} : vector<128x256xbf16>, vector<256x64xbf16>, vector<128x64xf32> -> vector<128x64xf32>
    %57 = tpu.concatenate %39, %56 in 1 : vector<128x64xf32>, vector<128x64xf32> -> vector<128x128xf32>
    %58 = arith.truncf %57 : vector<128x128xf32> to vector<128x128xbf16>
    %c0_22 = arith.constant 0 : index
    %c0_23 = arith.constant 0 : index
    %59 = vector.load %arg23[%c0_22, %c0_23] : memref<128x256xbf16, #tpu.memory_space<vmem>>, vector<128x128xbf16>
    tpu.vector_store %arg23[%c0_22, %c0_23], %58 {strides = array<i32>} : memref<128x256xbf16, #tpu.memory_space<vmem>>, vector<128x128xbf16>,
    %c0_24 = arith.constant 0 : index
    %c128 = arith.constant 128 : index
    %60 = vector.load %arg21[%c0_24, %c128] : memref<256x256xbf16, #tpu.memory_space<vmem>>, vector<256x128xbf16>
    %c0_25 = arith.constant 0 : index
    %c128_26 = arith.constant 128 : index
    %61 = vector.load %arg22[%c0_25, %c128_26] : memref<256x256xbf16, #tpu.memory_space<vmem>>, vector<256x128xbf16>
    %62 = vector.extract_strided_slice %16 {offsets = [0, 128], sizes = [128, 64], strides = [1, 1]} : vector<128x256xbf16> to vector<128x64xbf16>
    %63 = vector.extract_strided_slice %60 {offsets = [0, 0], sizes = [256, 64], strides = [1, 1]} : vector<256x128xbf16> to vector<256x64xbf16>
    %cst_27 = arith.constant dense<0.000000e+00> : vector<128x256xf32>
    %64 = tpu.matmul %62, %63, %cst_27 {dimension_numbers = #tpu.dot_dimension_numbers<[1], [1], [0], [0], [0, 0, 1, 0], [], []>} : vector<128x64xbf16>, vector<256x64xbf16>, vector<128x256xf32> -> vector<128x256xf32>
    %65 = arith.addf %64, %20 : vector<128x256xf32>
    %cst_28 = arith.constant dense<0xFF800000> : vector<128xf32>
    %66 = vector.multi_reduction <maximumf>, %65, %cst_28 [1] : vector<128x256xf32> to vector<128xf32>
    %67 = vector.shape_cast %66 : vector<128xf32> to vector<128x1xf32>
    %68 = vector.broadcast %67 : vector<128x1xf32> to vector<128x256xf32>
    %69 = arith.subf %65, %68 : vector<128x256xf32>
    %70 = math.exp %69 : vector<128x256xf32>
    %cst_29 = arith.constant dense<0.000000e+00> : vector<128xf32>
    %71 = vector.multi_reduction <add>, %70, %cst_29 [1] : vector<128x256xf32> to vector<128xf32>
    %72 = vector.shape_cast %71 : vector<128xf32> to vector<128x1xf32>
    %73 = tpu.reciprocal %72 {approx = true} : vector<128x1xf32> -> vector<128x1xf32>
    %74 = vector.broadcast %73 : vector<128x1xf32> to vector<128x256xf32>
    %75 = arith.mulf %70, %74 : vector<128x256xf32>
    %76 = arith.truncf %75 : vector<128x256xf32> to vector<128x256xbf16>
    %77 = vector.extract_strided_slice %61 {offsets = [0, 0], sizes = [256, 64], strides = [1, 1]} : vector<256x128xbf16> to vector<256x64xbf16>
    %cst_30 = arith.constant dense<0.000000e+00> : vector<128x64xf32>
    %78 = tpu.matmul %76, %77, %cst_30 {dimension_numbers = #tpu.dot_dimension_numbers<[1], [0], [0], [1], [0, 0, 1, 1], [], []>} : vector<128x256xbf16>, vector<256x64xbf16>, vector<128x64xf32> -> vector<128x64xf32>
    %79 = vector.extract_strided_slice %16 {offsets = [0, 192], sizes = [128, 64], strides = [1, 1]} : vector<128x256xbf16> to vector<128x64xbf16>
    %80 = vector.extract_strided_slice %60 {offsets = [0, 64], sizes = [256, 64], strides = [1, 1]} : vector<256x128xbf16> to vector<256x64xbf16>
    %cst_31 = arith.constant dense<0.000000e+00> : vector<128x256xf32>
    %81 = tpu.matmul %79, %80, %cst_31 {dimension_numbers = #tpu.dot_dimension_numbers<[1], [1], [0], [0], [0, 0, 1, 0], [], []>} : vector<128x64xbf16>, vector<256x64xbf16>, vector<128x256xf32> -> vector<128x256xf32>
    %82 = arith.addf %81, %20 : vector<128x256xf32>
    %cst_32 = arith.constant dense<0xFF800000> : vector<128xf32>
    %83 = vector.multi_reduction <maximumf>, %82, %cst_32 [1] : vector<128x256xf32> to vector<128xf32>
    %84 = vector.shape_cast %83 : vector<128xf32> to vector<128x1xf32>
    %85 = vector.broadcast %84 : vector<128x1xf32> to vector<128x256xf32>
    %86 = arith.subf %82, %85 : vector<128x256xf32>
    %87 = math.exp %86 : vector<128x256xf32>
    %cst_33 = arith.constant dense<0.000000e+00> : vector<128xf32>
    %88 = vector.multi_reduction <add>, %87, %cst_33 [1] : vector<128x256xf32> to vector<128xf32>
    %89 = vector.shape_cast %88 : vector<128xf32> to vector<128x1xf32>
    %90 = tpu.reciprocal %89 {approx = true} : vector<128x1xf32> -> vector<128x1xf32>
    %91 = vector.broadcast %90 : vector<128x1xf32> to vector<128x256xf32>
    %92 = arith.mulf %87, %91 : vector<128x256xf32>
    %93 = arith.truncf %92 : vector<128x256xf32> to vector<128x256xbf16>
    %94 = vector.extract_strided_slice %61 {offsets = [0, 64], sizes = [256, 64], strides = [1, 1]} : vector<256x128xbf16> to vector<256x64xbf16>
    %cst_34 = arith.constant dense<0.000000e+00> : vector<128x64xf32>
    %95 = tpu.matmul %93, %94, %cst_34 {dimension_numbers = #tpu.dot_dimension_numbers<[1], [0], [0], [1], [0, 0, 1, 1], [], []>} : vector<128x256xbf16>, vector<256x64xbf16>, vector<128x64xf32> -> vector<128x64xf32>
    %96 = tpu.concatenate %78, %95 in 1 : vector<128x64xf32>, vector<128x64xf32> -> vector<128x128xf32>
    %97 = arith.truncf %96 : vector<128x128xf32> to vector<128x128xbf16>
    %c0_35 = arith.constant 0 : index
    %c128_36 = arith.constant 128 : index
    %98 = vector.load %arg23[%c0_35, %c128_36] : memref<128x256xbf16, #tpu.memory_space<vmem>>, vector<128x128xbf16>
    tpu.vector_store %arg23[%c0_35, %c128_36], %97 {strides = array<i32>} : memref<128x256xbf16, #tpu.memory_space<vmem>>, vector<128x128xbf16>,
    %c0_37 = arith.constant 0 : index
    %c0_38 = arith.constant 0 : index
    %99 = vector.load %arg23[%c0_37, %c0_38] : memref<128x256xbf16, #tpu.memory_space<vmem>>, vector<128x256xbf16>
    %c0_39 = arith.constant 0 : index
    %c0_40 = arith.constant 0 : index
    %100 = vector.load %arg10[%c0_39, %c0_40] : memref<256x256xbf16, #tpu.memory_space<vmem>>, vector<256x256xbf16>
    %cst_41 = arith.constant dense<0.000000e+00> : vector<128x256xf32>
    %101 = tpu.matmul %99, %100, %cst_41 {dimension_numbers = #tpu.dot_dimension_numbers<[1], [0], [0], [1], [0, 0, 1, 1], [], []>} : vector<128x256xbf16>, vector<256x256xbf16>, vector<128x256xf32> -> vector<128x256xf32>
    %c0_42 = arith.constant 0 : index
    %c0_43 = arith.constant 0 : index
    %102 = vector.load %arg11[%c0_42, %c0_43] : memref<1x256xf32, #tpu.memory_space<vmem>>, vector<1x256xf32>
    %103 = vector.broadcast %102 : vector<1x256xf32> to vector<128x256xf32>
    %104 = arith.addf %101, %103 : vector<128x256xf32>
    %105 = arith.addf %7, %104 : vector<128x256xf32>
    %c0_44 = arith.constant 0 : index
    %c0_45 = arith.constant 0 : index
    %106 = vector.load %arg12[%c0_44, %c0_45] : memref<1x256xf32, #tpu.memory_space<vmem>>, vector<1x256xf32>
    %c0_46 = arith.constant 0 : index
    %c0_47 = arith.constant 0 : index
    %107 = vector.load %arg13[%c0_46, %c0_47] : memref<1x256xf32, #tpu.memory_space<vmem>>, vector<1x256xf32>
    %cst_48 = arith.constant dense<0.000000e+00> : vector<128xf32>
    %108 = vector.multi_reduction <add>, %105, %cst_48 [1] : vector<128x256xf32> to vector<128xf32>
    %109 = vector.shape_cast %108 : vector<128xf32> to vector<128x1xf32>
    %cst_49 = arith.constant 2.560000e+02 : f32
    %110 = vector.broadcast %cst_49 : f32 to vector<128x1xf32>
    %111 = arith.divf %109, %110 : vector<128x1xf32>
    %112 = vector.broadcast %111 : vector<128x1xf32> to vector<128x256xf32>
    %113 = arith.subf %105, %112 : vector<128x256xf32>
    %114 = arith.mulf %113, %113 : vector<128x256xf32>
    %cst_50 = arith.constant dense<0.000000e+00> : vector<128xf32>
    %115 = vector.multi_reduction <add>, %114, %cst_50 [1] : vector<128x256xf32> to vector<128xf32>
    %116 = vector.shape_cast %115 : vector<128xf32> to vector<128x1xf32>
    %cst_51 = arith.constant 2.560000e+02 : f32
    %117 = vector.broadcast %cst_51 : f32 to vector<128x1xf32>
    %118 = arith.divf %116, %117 : vector<128x1xf32>
    %119 = vector.broadcast %111 : vector<128x1xf32> to vector<128x256xf32>
    %120 = arith.subf %105, %119 : vector<128x256xf32>
    %cst_52 = arith.constant 9.99999996E-13 : f32
    %121 = vector.broadcast %cst_52 : f32 to vector<128x1xf32>
    %122 = arith.addf %118, %121 : vector<128x1xf32>
    %123 = math.rsqrt %122 : vector<128x1xf32>
    %124 = vector.broadcast %123 : vector<128x1xf32> to vector<128x256xf32>
    %125 = arith.mulf %120, %124 : vector<128x256xf32>
    %126 = vector.broadcast %106 : vector<1x256xf32> to vector<128x256xf32>
    %127 = arith.mulf %125, %126 : vector<128x256xf32>
    %128 = vector.broadcast %107 : vector<1x256xf32> to vector<128x256xf32>
    %129 = arith.addf %127, %128 : vector<128x256xf32>
    %130 = arith.truncf %129 : vector<128x256xf32> to vector<128x256xbf16>
    %cst_53 = arith.constant 0.000000e+00 : f32
    %131 = vector.broadcast %cst_53 : f32 to vector<128x256xf32>
    %c0_54 = arith.constant 0 : index
    %c0_55 = arith.constant 0 : index
    %132 = vector.load %arg14[%c0_54, %c0_55] : memref<256x1024xbf16, #tpu.memory_space<vmem>>, vector<256x512xbf16>
    %cst_56 = arith.constant dense<0.000000e+00> : vector<128x512xf32>
    %133 = tpu.matmul %130, %132, %cst_56 {dimension_numbers = #tpu.dot_dimension_numbers<[1], [0], [0], [1], [0, 0, 1, 1], [], []>} : vector<128x256xbf16>, vector<256x512xbf16>, vector<128x512xf32> -> vector<128x512xf32>
    %c0_57 = arith.constant 0 : index
    %c0_58 = arith.constant 0 : index
    %134 = vector.load %arg15[%c0_57, %c0_58] : memref<1x1024xf32, #tpu.memory_space<vmem>>, vector<1x512xf32>
    %135 = vector.broadcast %134 : vector<1x512xf32> to vector<128x512xf32>
    %136 = arith.addf %133, %135 : vector<128x512xf32>
    %137 = arith.mulf %136, %136 : vector<128x512xf32>
    %138 = arith.mulf %136, %137 : vector<128x512xf32>
    %cst_59 = arith.constant 4.471500e-02 : f32
    %139 = vector.broadcast %cst_59 : f32 to vector<128x512xf32>
    %140 = arith.mulf %139, %138 : vector<128x512xf32>
    %141 = arith.addf %136, %140 : vector<128x512xf32>
    %cst_60 = arith.constant 0.797884583 : f32
    %142 = vector.broadcast %cst_60 : f32 to vector<128x512xf32>
    %143 = arith.mulf %142, %141 : vector<128x512xf32>
    %144 = math.tanh %143 : vector<128x512xf32>
    %cst_61 = arith.constant 1.000000e+00 : f32
    %145 = vector.broadcast %cst_61 : f32 to vector<128x512xf32>
    %146 = arith.addf %145, %144 : vector<128x512xf32>
    %cst_62 = arith.constant 5.000000e-01 : f32
    %147 = vector.broadcast %cst_62 : f32 to vector<128x512xf32>
    %148 = arith.mulf %147, %146 : vector<128x512xf32>
    %149 = arith.mulf %136, %148 : vector<128x512xf32>
    %150 = arith.truncf %149 : vector<128x512xf32> to vector<128x512xbf16>
    %c0_63 = arith.constant 0 : index
    %c0_64 = arith.constant 0 : index
    %151 = vector.load %arg16[%c0_63, %c0_64] : memref<1024x256xbf16, #tpu.memory_space<vmem>>, vector<512x256xbf16>
    %cst_65 = arith.constant dense<0.000000e+00> : vector<128x256xf32>
    %152 = tpu.matmul %150, %151, %cst_65 {dimension_numbers = #tpu.dot_dimension_numbers<[1], [0], [0], [1], [0, 0, 1, 1], [], []>} : vector<128x512xbf16>, vector<512x256xbf16>, vector<128x256xf32> -> vector<128x256xf32>
    %153 = arith.addf %131, %152 : vector<128x256xf32>
    %c0_66 = arith.constant 0 : index
    %c512 = arith.constant 512 : index
    %154 = vector.load %arg14[%c0_66, %c512] : memref<256x1024xbf16, #tpu.memory_space<vmem>>, vector<256x512xbf16>
    %cst_67 = arith.constant dense<0.000000e+00> : vector<128x512xf32>
    %155 = tpu.matmul %130, %154, %cst_67 {dimension_numbers = #tpu.dot_dimension_numbers<[1], [0], [0], [1], [0, 0, 1, 1], [], []>} : vector<128x256xbf16>, vector<256x512xbf16>, vector<128x512xf32> -> vector<128x512xf32>
    %c0_68 = arith.constant 0 : index
    %c512_69 = arith.constant 512 : index
    %156 = vector.load %arg15[%c0_68, %c512_69] : memref<1x1024xf32, #tpu.memory_space<vmem>>, vector<1x512xf32>
    %157 = vector.broadcast %156 : vector<1x512xf32> to vector<128x512xf32>
    %158 = arith.addf %155, %157 : vector<128x512xf32>
    %159 = arith.mulf %158, %158 : vector<128x512xf32>
    %160 = arith.mulf %158, %159 : vector<128x512xf32>
    %cst_70 = arith.constant 4.471500e-02 : f32
    %161 = vector.broadcast %cst_70 : f32 to vector<128x512xf32>
    %162 = arith.mulf %161, %160 : vector<128x512xf32>
    %163 = arith.addf %158, %162 : vector<128x512xf32>
    %cst_71 = arith.constant 0.797884583 : f32
    %164 = vector.broadcast %cst_71 : f32 to vector<128x512xf32>
    %165 = arith.mulf %164, %163 : vector<128x512xf32>
    %166 = math.tanh %165 : vector<128x512xf32>
    %cst_72 = arith.constant 1.000000e+00 : f32
    %167 = vector.broadcast %cst_72 : f32 to vector<128x512xf32>
    %168 = arith.addf %167, %166 : vector<128x512xf32>
    %cst_73 = arith.constant 5.000000e-01 : f32
    %169 = vector.broadcast %cst_73 : f32 to vector<128x512xf32>
    %170 = arith.mulf %169, %168 : vector<128x512xf32>
    %171 = arith.mulf %158, %170 : vector<128x512xf32>
    %172 = arith.truncf %171 : vector<128x512xf32> to vector<128x512xbf16>
    %c512_74 = arith.constant 512 : index
    %c0_75 = arith.constant 0 : index
    %173 = vector.load %arg16[%c512_74, %c0_75] : memref<1024x256xbf16, #tpu.memory_space<vmem>>, vector<512x256xbf16>
    %cst_76 = arith.constant dense<0.000000e+00> : vector<128x256xf32>
    %174 = tpu.matmul %172, %173, %cst_76 {dimension_numbers = #tpu.dot_dimension_numbers<[1], [0], [0], [1], [0, 0, 1, 1], [], []>} : vector<128x512xbf16>, vector<512x256xbf16>, vector<128x256xf32> -> vector<128x256xf32>
    %175 = arith.addf %153, %174 : vector<128x256xf32>
    %c0_77 = arith.constant 0 : index
    %c0_78 = arith.constant 0 : index
    %176 = vector.load %arg17[%c0_77, %c0_78] : memref<1x256xf32, #tpu.memory_space<vmem>>, vector<1x256xf32>
    %177 = vector.broadcast %176 : vector<1x256xf32> to vector<128x256xf32>
    %178 = arith.addf %175, %177 : vector<128x256xf32>
    %179 = arith.addf %129, %178 : vector<128x256xf32>
    %c0_79 = arith.constant 0 : index
    %c0_80 = arith.constant 0 : index
    %180 = vector.load %arg18[%c0_79, %c0_80] : memref<1x256xf32, #tpu.memory_space<vmem>>, vector<1x256xf32>
    %c0_81 = arith.constant 0 : index
    %c0_82 = arith.constant 0 : index
    %181 = vector.load %arg19[%c0_81, %c0_82] : memref<1x256xf32, #tpu.memory_space<vmem>>, vector<1x256xf32>
    %cst_83 = arith.constant dense<0.000000e+00> : vector<128xf32>
    %182 = vector.multi_reduction <add>, %179, %cst_83 [1] : vector<128x256xf32> to vector<128xf32>
    %183 = vector.shape_cast %182 : vector<128xf32> to vector<128x1xf32>
    %cst_84 = arith.constant 2.560000e+02 : f32
    %184 = vector.broadcast %cst_84 : f32 to vector<128x1xf32>
    %185 = arith.divf %183, %184 : vector<128x1xf32>
    %186 = vector.broadcast %185 : vector<128x1xf32> to vector<128x256xf32>
    %187 = arith.subf %179, %186 : vector<128x256xf32>
    %188 = arith.mulf %187, %187 : vector<128x256xf32>
    %cst_85 = arith.constant dense<0.000000e+00> : vector<128xf32>
    %189 = vector.multi_reduction <add>, %188, %cst_85 [1] : vector<128x256xf32> to vector<128xf32>
    %190 = vector.shape_cast %189 : vector<128xf32> to vector<128x1xf32>
    %cst_86 = arith.constant 2.560000e+02 : f32
    %191 = vector.broadcast %cst_86 : f32 to vector<128x1xf32>
    %192 = arith.divf %190, %191 : vector<128x1xf32>
    %193 = vector.broadcast %185 : vector<128x1xf32> to vector<128x256xf32>
    %194 = arith.subf %179, %193 : vector<128x256xf32>
    %cst_87 = arith.constant 9.99999996E-13 : f32
    %195 = vector.broadcast %cst_87 : f32 to vector<128x1xf32>
    %196 = arith.addf %192, %195 : vector<128x1xf32>
    %197 = math.rsqrt %196 : vector<128x1xf32>
    %198 = vector.broadcast %197 : vector<128x1xf32> to vector<128x256xf32>
    %199 = arith.mulf %194, %198 : vector<128x256xf32>
    %200 = vector.broadcast %180 : vector<1x256xf32> to vector<128x256xf32>
    %201 = arith.mulf %199, %200 : vector<128x256xf32>
    %202 = vector.broadcast %181 : vector<1x256xf32> to vector<128x256xf32>
    %203 = arith.addf %201, %202 : vector<128x256xf32>
    %c0_88 = arith.constant 0 : index
    %c0_89 = arith.constant 0 : index
    %c0_90 = arith.constant 0 : index
    %204 = vector.load %arg20[%c0_88, %c0_89, %c0_90] : memref<1x128x256xf32, #tpu.memory_space<vmem>>, vector<1x128x256xf32>
    %205 = vector.shape_cast %204 : vector<1x128x256xf32> to vector<128x256xf32>
    %206 = vector.shape_cast %203 : vector<128x256xf32> to vector<1x128x256xf32>
    tpu.vector_store %arg20[%c0_88, %c0_89, %c0_90], %206 {strides = array<i32>} : memref<1x128x256xf32, #tpu.memory_space<vmem>>, vector<1x128x256xf32>,
    return
  }
  func.func @transform_0(%arg0: i32, %arg1: i32) -> (i32, i32, i32) {
    %c0_i32 = arith.constant 0 : i32
    %c0_i32_0 = arith.constant 0 : i32
    %c0_i32_1 = arith.constant 0 : i32
    return %arg0, %c0_i32, %c0_i32_0 : i32, i32, i32
  }
  func.func @transform_1(%arg0: i32, %arg1: i32) -> (i32, i32, i32) {
    %c0_i32 = arith.constant 0 : i32
    %c0_i32_0 = arith.constant 0 : i32
    %c0_i32_1 = arith.constant 0 : i32
    return %arg0, %c0_i32, %c0_i32_0 : i32, i32, i32
  }
  func.func @transform_2(%arg0: i32, %arg1: i32) -> (i32, i32) {
    %c0_i32 = arith.constant 0 : i32
    %c0_i32_0 = arith.constant 0 : i32
    %c0_i32_1 = arith.constant 0 : i32
    return %c0_i32, %c0_i32_0 : i32, i32
  }
  func.func @transform_3(%arg0: i32, %arg1: i32) -> (i32, i32) {
    %c0_i32 = arith.constant 0 : i32
    %c0_i32_0 = arith.constant 0 : i32
    %c0_i32_1 = arith.constant 0 : i32
    return %c0_i32, %c0_i32_0 : i32, i32
  }
  func.func @transform_4(%arg0: i32, %arg1: i32) -> (i32, i32) {
    %c0_i32 = arith.constant 0 : i32
    %c0_i32_0 = arith.constant 0 : i32
    %c0_i32_1 = arith.constant 0 : i32
    return %c0_i32, %c0_i32_0 : i32, i32
  }
  func.func @transform_5(%arg0: i32, %arg1: i32) -> (i32, i32) {
    %c0_i32 = arith.constant 0 : i32
    %c0_i32_0 = arith.constant 0 : i32
    %c0_i32_1 = arith.constant 0 : i32
    return %c0_i32, %c0_i32_0 : i32, i32
  }
  func.func @transform_6(%arg0: i32, %arg1: i32) -> (i32, i32) {
    %c0_i32 = arith.constant 0 : i32
    %c0_i32_0 = arith.constant 0 : i32
    %c0_i32_1 = arith.constant 0 : i32
    return %c0_i32, %c0_i32_0 : i32, i32
  }
  func.func @transform_7(%arg0: i32, %arg1: i32) -> (i32, i32) {
    %c0_i32 = arith.constant 0 : i32
    %c0_i32_0 = arith.constant 0 : i32
    %c0_i32_1 = arith.constant 0 : i32
    return %c0_i32, %c0_i32_0 : i32, i32
  }
  func.func @transform_8(%arg0: i32, %arg1: i32) -> (i32, i32) {
    %c0_i32 = arith.constant 0 : i32
    %c0_i32_0 = arith.constant 0 : i32
    %c0_i32_1 = arith.constant 0 : i32
    return %c0_i32, %c0_i32_0 : i32, i32
  }
  func.func @transform_9(%arg0: i32, %arg1: i32) -> (i32, i32) {
    %c0_i32 = arith.constant 0 : i32
    %c0_i32_0 = arith.constant 0 : i32
    %c0_i32_1 = arith.constant 0 : i32
    return %c0_i32, %c0_i32_0 : i32, i32
  }
  func.func @transform_10(%arg0: i32, %arg1: i32) -> (i32, i32) {
    %c0_i32 = arith.constant 0 : i32
    %c0_i32_0 = arith.constant 0 : i32
    %c0_i32_1 = arith.constant 0 : i32
    return %c0_i32, %c0_i32_0 : i32, i32
  }
  func.func @transform_11(%arg0: i32, %arg1: i32) -> (i32, i32) {
    %c0_i32 = arith.constant 0 : i32
    %c0_i32_0 = arith.constant 0 : i32
    %c0_i32_1 = arith.constant 0 : i32
    return %c0_i32, %c0_i32_0 : i32, i32
  }
  func.func @transform_12(%arg0: i32, %arg1: i32) -> (i32, i32) {
    %c0_i32 = arith.constant 0 : i32
    %c0_i32_0 = arith.constant 0 : i32
    %c0_i32_1 = arith.constant 0 : i32
    return %c0_i32, %c0_i32_0 : i32, i32
  }
  func.func @transform_13(%arg0: i32, %arg1: i32) -> (i32, i32) {
    %c0_i32 = arith.constant 0 : i32
    %c0_i32_0 = arith.constant 0 : i32
    %c0_i32_1 = arith.constant 0 : i32
    return %c0_i32, %c0_i32_0 : i32, i32
  }
  func.func @transform_14(%arg0: i32, %arg1: i32) -> (i32, i32) {
    %c0_i32 = arith.constant 0 : i32
    %c0_i32_0 = arith.constant 0 : i32
    %c0_i32_1 = arith.constant 0 : i32
    return %c0_i32, %c0_i32_0 : i32, i32
  }
  func.func @transform_15(%arg0: i32, %arg1: i32) -> (i32, i32) {
    %c0_i32 = arith.constant 0 : i32
    %c0_i32_0 = arith.constant 0 : i32
    %c0_i32_1 = arith.constant 0 : i32
    return %c0_i32, %c0_i32_0 : i32, i32
  }
  func.func @transform_16(%arg0: i32, %arg1: i32) -> (i32, i32) {
    %c0_i32 = arith.constant 0 : i32
    %c0_i32_0 = arith.constant 0 : i32
    %c0_i32_1 = arith.constant 0 : i32
    return %c0_i32, %c0_i32_0 : i32, i32
  }
  func.func @transform_17(%arg0: i32, %arg1: i32) -> (i32, i32) {
    %c0_i32 = arith.constant 0 : i32
    %c0_i32_0 = arith.constant 0 : i32
    %c0_i32_1 = arith.constant 0 : i32
    return %c0_i32, %c0_i32_0 : i32, i32
  }
  func.func @transform_18(%arg0: i32, %arg1: i32) -> (i32, i32, i32) {
    %c0_i32 = arith.constant 0 : i32
    %c0_i32_0 = arith.constant 0 : i32
    return %arg0, %arg1, %c0_i32 : i32, i32, i32
  }
}

</mosaic_0001>

<llo_original>
// kernel: tpu_custom_call.1
$region0: #{tpu_custom_call.1}
  #allocation0 [shape = 'u32[]', space=smem, size = 0x4, offset = 0x4, fixed_abs, tag = 'smem constant byte address 0x4 - core index']
  #allocation1 [shape = 'u32[144,128]{1,0:T(1,128)}', space=vmem, size = 0x12000, scoped, tag = 'internal scratch']
  #allocation2 [shape = 'bf16[256,256]{1,0:T(16,128)(2,1)}', space=vmem, size = 0x20000, scoped, tag = 'scratch operand']
  #allocation3 [shape = 'bf16[256,256]{1,0:T(16,128)(2,1)}', space=vmem, size = 0x20000, scoped, tag = 'scratch operand']
  #allocation4 [shape = 'bf16[128,256]{1,0:T(16,128)(2,1)}', space=vmem, size = 0x10000, scoped, tag = 'scratch operand']
  %s0 = inlined_call_operand.hbm [shape: f32[4,256,256], index: 0, kind: input, shape index: {}]
  %s1 = inlined_call_operand.hbm [shape: f32[4,1,256], index: 1, kind: input, shape index: {}]
  %s2 = inlined_call_operand.hbm [shape: bf16[256,256], index: 2, kind: input, shape index: {}]
  %s3 = inlined_call_operand.hbm [shape: f32[1,256], index: 3, kind: input, shape index: {}]
  %s4 = inlined_call_operand.hbm [shape: bf16[256,256], index: 4, kind: input, shape index: {}]
  %s5 = inlined_call_operand.hbm [shape: f32[1,256], index: 5, kind: input, shape index: {}]
  %s6 = inlined_call_operand.hbm [shape: bf16[256,256], index: 6, kind: input, shape index: {}]
  %s7 = inlined_call_operand.hbm [shape: f32[1,256], index: 7, kind: input, shape index: {}]
  %s8 = inlined_call_operand.hbm [shape: bf16[256,256], index: 8, kind: input, shape index: {}]
  %s9 = inlined_call_operand.hbm [shape: f32[1,256], index: 9, kind: input, shape index: {}]
  %s10 = inlined_call_operand.hbm [shape: f32[1,256], index: 10, kind: input, shape index: {}]
  %s11 = inlined_call_operand.hbm [shape: f32[1,256], index: 11, kind: input, shape index: {}]
  %s12 = inlined_call_operand.hbm [shape: bf16[256,1024], index: 12, kind: input, shape index: {}]
  %s13 = inlined_call_operand.hbm [shape: f32[1,1024], index: 13, kind: input, shape index: {}]
  %s14 = inlined_call_operand.hbm [shape: bf16[1024,256], index: 14, kind: input, shape index: {}]
  %s15 = inlined_call_operand.hbm [shape: f32[1,256], index: 15, kind: input, shape index: {}]
  %s16 = inlined_call_operand.hbm [shape: f32[1,256], index: 16, kind: input, shape index: {}]
  %s17 = inlined_call_operand.hbm [shape: f32[1,256], index: 17, kind: input, shape index: {}]
  %s18 = inlined_call_operand.hbm [shape: f32[4,256,256], index: 18, kind: output, shape index: {}]
  %s19 = sld [smem:[#allocation0]]
  $region181: #{tpu_custom_call.1} parent=0
    _
  %s21 = ssub.s32 1, %s19
  %s22 = scalar_select 0, %s21, %s19
  $region1: #{tpu_custom_call.1} parent=0
    #allocation5 [shape = 'u8[524288]{0}', space=vmem, size = 0x80000, scoped, tag = 'input window, operand 0']
    #allocation6 [shape = 's32[2]{0}', space=sflag, size = 0x8, scoped, tag = 'scoped memory for tpu_custom_call.1']
    #allocation7 [shape = 's32[2]{0}', space=sflag, size = 0x8, scoped, tag = 'scoped memory for tpu_custom_call.1']
    #allocation8 [shape = 'u8[2048]{0}', space=vmem, size = 0x800, scoped, tag = 'input window, operand 1']
    #allocation9 [shape = 's32[2]{0}', space=sflag, size = 0x8, scoped, tag = 'scoped memory for tpu_custom_call.1']
    #allocation10 [shape = 'u8[131072]{0}', space=vmem, size = 0x20000, scoped, tag = 'input window, operand 2, single buffered']
    #allocation11 [shape = 'u8[1024]{0}', space=vmem, size = 0x400, scoped, tag = 'input window, operand 3, single buffered']
    #allocation12 [shape = 's32[1]{0}', space=sflag, size = 0x4, scoped, tag = 'scoped memory for tpu_custom_call.1']
    #allocation13 [shape = 'u8[131072]{0}', space=vmem, size = 0x20000, scoped, tag = 'input window, operand 4, single buffered']
    #allocation14 [shape = 'u8[1024]{0}', space=vmem, size = 0x400, scoped, tag = 'input window, operand 5, single buffered']
    #allocation15 [shape = 's32[1]{0}', space=sflag, size = 0x4, scoped, tag = 'scoped memory for tpu_custom_call.1']
    #allocation16 [shape = 'u8[131072]{0}', space=vmem, size = 0x20000, scoped, tag = 'input window, operand 6, single buffered']
    #allocation17 [shape = 'u8[1024]{0}', space=vmem, size = 0x400, scoped, tag = 'input window, operand 7, single buffered']
    #allocation18 [shape = 's32[1]{0}', space=sflag, size = 0x4, scoped, tag = 'scoped memory for tpu_custom_call.1']
    #allocation19 [shape = 'u8[131072]{0}', space=vmem, size = 0x20000, scoped, tag = 'input window, operand 8, single buffered']
    #allocation20 [shape = 'u8[1024]{0}', space=vmem, size = 0x400, scoped, tag = 'input window, operand 9, single buffered']
    #allocation21 [shape = 's32[1]{0}', space=sflag, size = 0x4, scoped, tag = 'scoped memory for tpu_custom_call.1']
    #allocation22 [shape = 'u8[1024]{0}', space=vmem, size = 0x400, scoped, tag = 'input window, operand 10, single buffered']
    #allocation23 [shape = 'u8[1024]{0}', space=vmem, size = 0x400, scoped, tag = 'input window, operand 11, single buffered']
    #allocation24 [shape = 's32[1]{0}', space=sflag, size = 0x4, scoped, tag = 'scoped memory for tpu_custom_call.1']
    #allocation25 [shape = 'u8[524288]{0}', space=vmem, size = 0x80000, scoped, tag = 'input window, operand 12, single buffered']
    #allocation26 [shape = 'u8[4096]{0}', space=vmem, size = 0x1000, scoped, tag = 'input window, operand 13, single buffered']
    #allocation27 [shape = 's32[1]{0}', space=sflag, size = 0x4, scoped, tag = 'scoped memory for tpu_custom_call.1']
    #allocation28 [shape = 'u8[524288]{0}', space=vmem, size = 0x80000, scoped, tag = 'input window, operand 14, single buffered']
    #allocation29 [shape = 'u8[1024]{0}', space=vmem, size = 0x400, scoped, tag = 'input window, operand 15, single buffered']
    #allocation30 [shape = 's32[1]{0}', space=sflag, size = 0x4, scoped, tag = 'scoped memory for tpu_custom_call.1']
    #allocation31 [shape = 'u8[1024]{0}', space=vmem, size = 0x400, scoped, tag = 'input window, operand 16, single buffered']
    #allocation32 [shape = 'u8[1024]{0}', space=vmem, size = 0x400, scoped, tag = 'input window, operand 17, single buffered']
    #allocation33 [shape = 's32[1]{0}', space=sflag, size = 0x4, scoped, tag = 'scoped memory for tpu_custom_call.1']
    #allocation34 [shape = 'u8[262144]{0}', space=vmem, size = 0x40000, scoped, tag = 'output window, operand 0']
    %23 = vsyncpa [#allocation6], 0
    %s24 = scalar_lea.sflag [#allocation6], 1
    %25 = vsyncpa %s24, 0
    %26 = vsyncpa [#allocation9], 0
    %s27 = scalar_lea.sflag [#allocation9], 1
    %28 = vsyncpa %s27, 0
    %29 = vsyncpa [#allocation12], 0
    %30 = vsyncpa [#allocation15], 0
    %31 = vsyncpa [#allocation18], 0
    %32 = vsyncpa [#allocation21], 0
    %33 = vsyncpa [#allocation24], 0
    %34 = vsyncpa [#allocation27], 0
    %35 = vsyncpa [#allocation30], 0
    %36 = vsyncpa [#allocation33], 0
    %37 = vsyncpa [#allocation7], 0
    %s38 = scalar_lea.sflag [#allocation7], 1
    %39 = vsyncpa %s38, 0
    loop: start=0, step=1, limit=10
    $region2: #{tpu_custom_call.1} parent=1 // loop_pre_header
      _
    $region3: #{tpu_custom_call.1} parent=1 // loop_header
      %s41 = sphi 0, %s45
      %p42 = scmp.ge.s32.totalorder %s41, 10
      %s48 = sphi 0, %s60
      %s49 = sphi 0, %s56
      %s50 = sphi 0, %s48
      %s51 = sphi 0, %s49
      %s52 = sphi 0, %s50
      %s53 = sphi 0, %s51
      %s63 = sphi 0, %s65
      %s66 = sphi 0, %s63
      %s67 = sphi 0, %s66
      %s83 = sphi 0, %s67
      %s89 = sphi 0, %s91
      %s92 = sphi 0, %s89
      %s93 = sphi 0, %s92
      %s109 = sphi 0, %s93
      %s113 = sphi 0, %s113
      %s115 = sphi 0, %s113
      %s116 = sphi 0, %s115
      %s130 = sphi 0, %s116
      %s134 = sphi 0, %s134
      %s136 = sphi 0, %s134
      %s137 = sphi 0, %s136
      %s151 = sphi 0, %s137
      %s155 = sphi 0, %s155
      %s157 = sphi 0, %s155
      %s158 = sphi 0, %s157
      %s172 = sphi 0, %s158
      %s176 = sphi 0, %s176
      %s178 = sphi 0, %s176
      %s179 = sphi 0, %s178
      %s193 = sphi 0, %s179
      %s197 = sphi 0, %s197
      %s199 = sphi 0, %s197
      %s200 = sphi 0, %s199
      %s214 = sphi 0, %s200
      %s218 = sphi 0, %s218
      %s220 = sphi 0, %s218
      %s221 = sphi 0, %s220
      %s235 = sphi 0, %s221
      %s239 = sphi 0, %s239
      %s241 = sphi 0, %s239
      %s242 = sphi 0, %s241
      %s256 = sphi 0, %s242
      %s260 = sphi 0, %s260
      %s262 = sphi 0, %s260
      %s263 = sphi 0, %s262
      %s277 = sphi 0, %s263
      %s281 = sphi 0, %s281
      %s283 = sphi 0, %s281
      %s284 = sphi 0, %s283
      %s298 = sphi 0, %s284
      %s302 = sphi 0, %s302
      %s304 = sphi 0, %s302
      %s305 = sphi 0, %s304
      %s319 = sphi 0, %s305
      %s323 = sphi 0, %s323
      %s325 = sphi 0, %s323
      %s326 = sphi 0, %s325
      %s340 = sphi 0, %s326
      %s344 = sphi 0, %s344
      %s346 = sphi 0, %s344
      %s347 = sphi 0, %s346
      %s361 = sphi 0, %s347
      %s365 = sphi 0, %s365
      %s367 = sphi 0, %s365
      %s368 = sphi 0, %s367
      %s382 = sphi 0, %s368
      %s386 = sphi 0, %s386
      %s388 = sphi 0, %s386
      %s389 = sphi 0, %s388
      %s403 = sphi 0, %s389
      %s407 = sphi 0, %s407
      %s409 = sphi 0, %s407
      %s410 = sphi 0, %s409
      %s424 = sphi 0, %s410
      %s428 = sphi 0, %s428
      %s430 = sphi 0, %s428
      %s431 = sphi 0, %s430
      %s445 = sphi 0, %s431
      %s453 = sphi 0, %s455
      %s456 = sphi 0, %s453
      %s457 = sphi 0, %s456
      %s473 = sphi 0, %s457
    $region4: #{tpu_custom_call.1} parent=1 // loop_header_branch
      %44 = sbr.rel (%p42) target = $region8
    $region5: #{tpu_custom_call.1} parent=1 // loop_body
      %s46 = ssub.s32 %s41, 1
      %s47 = ssub.s32 %s41, 2
      %s54 = sadd.s32 1, %s49
      %p55 = scmp.ge.s32.totalorder %s54, 2
      %s56 = scalar_select %p55, 0, %s54
      %s57 = sadd.s32 1, %s48
      %s58 = scalar_select %p55, %s57, %s48
      %p59 = scmp.ge.s32.totalorder %s58, 4
      %s60 = scalar_select %p59, 0, %s58
      %s61 = ssub.s32 %s48, %s60
      %p62 = scmp.eq.s32.totalorder %s61, 0
      %s64 = sadd.s32 %s63, 1
      %s65 = scalar_select %p62, %s63, %s64
      %p68 = pneg %p62
      %p69 = scmp.eq.s32.totalorder %s41, 7
      %p70 = por %p68, %p69
      %p71 = scmp.ne.s32.totalorder %s63, %s66
      %p72 = scmp.eq.s32.totalorder %s41, 0
      %p73 = por %p71, %p72
      %p74 = scmp.ne.s32.totalorder %s63, %s66
      %p75 = scmp.eq.s32.totalorder %s46, 7
      %p76 = por %p74, %p75
      %p77 = scmp.ne.s32.totalorder %s66, %s67
      %p78 = scmp.eq.s32.totalorder %s46, 0
      %p79 = por %p77, %p78
      %p80 = scmp.ne.s32.totalorder %s66, %s67
      %p81 = scmp.eq.s32.totalorder %s47, 7
      %p82 = por %p80, %p81
      %p84 = scmp.ne.s32.totalorder %s67, %s83
      %p85 = scmp.eq.s32.totalorder %s47, 0
      %p86 = por %p84, %p85
      %s87 = ssub.s32 %s48, %s60
      %p88 = scmp.eq.s32.totalorder %s87, 0
      %s90 = sadd.s32 %s89, 1
      %s91 = scalar_select %p88, %s89, %s90
      %p94 = pneg %p88
      %p95 = scmp.eq.s32.totalorder %s41, 7
      %p96 = por %p94, %p95
      %p97 = scmp.ne.s32.totalorder %s89, %s92
      %p98 = scmp.eq.s32.totalorder %s41, 0
      %p99 = por %p97, %p98
      %p100 = scmp.ne.s32.totalorder %s89, %s92
      %p101 = scmp.eq.s32.totalorder %s46, 7
      %p102 = por %p100, %p101
      %p103 = scmp.ne.s32.totalorder %s92, %s93
      %p104 = scmp.eq.s32.totalorder %s46, 0
      %p105 = por %p103, %p104
      %p106 = scmp.ne.s32.totalorder %s92, %s93
      %p107 = scmp.eq.s32.totalorder %s47, 7
      %p108 = por %p106, %p107
      %p110 = scmp.ne.s32.totalorder %s93, %s109
      %p111 = scmp.eq.s32.totalorder %s47, 0
      %p112 = por %p110, %p111
      %s114 = sadd.s32 %s113, 1
      %p117 = scmp.eq.s32.totalorder %s41, 7
      %p118 = scmp.ne.s32.totalorder %s113, %s115
      %p119 = scmp.eq.s32.totalorder %s41, 0
      %p120 = por %p118, %p119
      %p121 = scmp.ne.s32.totalorder %s113, %s115
      %p122 = scmp.eq.s32.totalorder %s46, 7
      %p123 = por %p121, %p122
      %p124 = scmp.ne.s32.totalorder %s115, %s116
      %p125 = scmp.eq.s32.totalorder %s46, 0
      %p126 = por %p124, %p125
      %p127 = scmp.ne.s32.totalorder %s115, %s116
      %p128 = scmp.eq.s32.totalorder %s47, 7
      %p129 = por %p127, %p128
      %p131 = scmp.ne.s32.totalorder %s116, %s130
      %p132 = scmp.eq.s32.totalorder %s47, 0
      %p133 = por %p131, %p132
      %s135 = sadd.s32 %s134, 1
      %p138 = scmp.eq.s32.totalorder %s41, 7
      %p139 = scmp.ne.s32.totalorder %s134, %s136
      %p140 = scmp.eq.s32.totalorder %s41, 0
      %p141 = por %p139, %p140
      %p142 = scmp.ne.s32.totalorder %s134, %s136
      %p143 = scmp.eq.s32.totalorder %s46, 7
      %p144 = por %p142, %p143
      %p145 = scmp.ne.s32.totalorder %s136, %s137
      %p146 = scmp.eq.s32.totalorder %s46, 0
      %p147 = por %p145, %p146
      %p148 = scmp.ne.s32.totalorder %s136, %s137
      %p149 = scmp.eq.s32.totalorder %s47, 7
      %p150 = por %p148, %p149
      %p152 = scmp.ne.s32.totalorder %s137, %s151
      %p153 = scmp.eq.s32.totalorder %s47, 0
      %p154 = por %p152, %p153
      %s156 = sadd.s32 %s155, 1
      %p159 = scmp.eq.s32.totalorder %s41, 7
      %p160 = scmp.ne.s32.totalorder %s155, %s157
      %p161 = scmp.eq.s32.totalorder %s41, 0
      %p162 = por %p160, %p161
      %p163 = scmp.ne.s32.totalorder %s155, %s157
      %p164 = scmp.eq.s32.totalorder %s46, 7
      %p165 = por %p163, %p164
      %p166 = scmp.ne.s32.totalorder %s157, %s158
      %p167 = scmp.eq.s32.totalorder %s46, 0
      %p168 = por %p166, %p167
      %p169 = scmp.ne.s32.totalorder %s157, %s158
      %p170 = scmp.eq.s32.totalorder %s47, 7
      %p171 = por %p169, %p170
      %p173 = scmp.ne.s32.totalorder %s158, %s172
      %p174 = scmp.eq.s32.totalorder %s47, 0
      %p175 = por %p173, %p174
      %s177 = sadd.s32 %s176, 1
      %p180 = scmp.eq.s32.totalorder %s41, 7
      %p181 = scmp.ne.s32.totalorder %s176, %s178
      %p182 = scmp.eq.s32.totalorder %s41, 0
      %p183 = por %p181, %p182
      %p184 = scmp.ne.s32.totalorder %s176, %s178
      %p185 = scmp.eq.s32.totalorder %s46, 7
      %p186 = por %p184, %p185
      %p187 = scmp.ne.s32.totalorder %s178, %s179
      %p188 = scmp.eq.s32.totalorder %s46, 0
      %p189 = por %p187, %p188
      %p190 = scmp.ne.s32.totalorder %s178, %s179
      %p191 = scmp.eq.s32.totalorder %s47, 7
      %p192 = por %p190, %p191
      %p194 = scmp.ne.s32.totalorder %s179, %s193
      %p195 = scmp.eq.s32.totalorder %s47, 0
      %p196 = por %p194, %p195
      %s198 = sadd.s32 %s197, 1
      %p201 = scmp.eq.s32.totalorder %s41, 7
      %p202 = scmp.ne.s32.totalorder %s197, %s199
      %p203 = scmp.eq.s32.totalorder %s41, 0
      %p204 = por %p202, %p203
      %p205 = scmp.ne.s32.totalorder %s197, %s199
      %p206 = scmp.eq.s32.totalorder %s46, 7
      %p207 = por %p205, %p206
      %p208 = scmp.ne.s32.totalorder %s199, %s200
      %p209 = scmp.eq.s32.totalorder %s46, 0
      %p210 = por %p208, %p209
      %p211 = scmp.ne.s32.totalorder %s199, %s200
      %p212 = scmp.eq.s32.totalorder %s47, 7
      %p213 = por %p211, %p212
      %p215 = scmp.ne.s32.totalorder %s200, %s214
      %p216 = scmp.eq.s32.totalorder %s47, 0
      %p217 = por %p215, %p216
      %s219 = sadd.s32 %s218, 1
      %p222 = scmp.eq.s32.totalorder %s41, 7
      %p223 = scmp.ne.s32.totalorder %s218, %s220
      %p224 = scmp.eq.s32.totalorder %s41, 0
      %p225 = por %p223, %p224
      %p226 = scmp.ne.s32.totalorder %s218, %s220
      %p227 = scmp.eq.s32.totalorder %s46, 7
      %p228 = por %p226, %p227
      %p229 = scmp.ne.s32.totalorder %s220, %s221
      %p230 = scmp.eq.s32.totalorder %s46, 0
      %p231 = por %p229, %p230
      %p232 = scmp.ne.s32.totalorder %s220, %s221
      %p233 = scmp.eq.s32.totalorder %s47, 7
      %p234 = por %p232, %p233
      %p236 = scmp.ne.s32.totalorder %s221, %s235
      %p237 = scmp.eq.s32.totalorder %s47, 0
      %p238 = por %p236, %p237
      %s240 = sadd.s32 %s239, 1
      %p243 = scmp.eq.s32.totalorder %s41, 7
      %p244 = scmp.ne.s32.totalorder %s239, %s241
      %p245 = scmp.eq.s32.totalorder %s41, 0
      %p246 = por %p244, %p245
      %p247 = scmp.ne.s32.totalorder %s239, %s241
      %p248 = scmp.eq.s32.totalorder %s46, 7
      %p249 = por %p247, %p248
      %p250 = scmp.ne.s32.totalorder %s241, %s242
      %p251 = scmp.eq.s32.totalorder %s46, 0
      %p252 = por %p250, %p251
      %p253 = scmp.ne.s32.totalorder %s241, %s242
      %p254 = scmp.eq.s32.totalorder %s47, 7
      %p255 = por %p253, %p254
      %p257 = scmp.ne.s32.totalorder %s242, %s256
      %p258 = scmp.eq.s32.totalorder %s47, 0
      %p259 = por %p257, %p258
      %s261 = sadd.s32 %s260, 1
      %p264 = scmp.eq.s32.totalorder %s41, 7
      %p265 = scmp.ne.s32.totalorder %s260, %s262
      %p266 = scmp.eq.s32.totalorder %s41, 0
      %p267 = por %p265, %p266
      %p268 = scmp.ne.s32.totalorder %s260, %s262
      %p269 = scmp.eq.s32.totalorder %s46, 7
      %p270 = por %p268, %p269
      %p271 = scmp.ne.s32.totalorder %s262, %s263
      %p272 = scmp.eq.s32.totalorder %s46, 0
      %p273 = por %p271, %p272
      %p274 = scmp.ne.s32.totalorder %s262, %s263
      %p275 = scmp.eq.s32.totalorder %s47, 7
      %p276 = por %p274, %p275
      %p278 = scmp.ne.s32.totalorder %s263, %s277
      %p279 = scmp.eq.s32.totalorder %s47, 0
      %p280 = por %p278, %p279
      %s282 = sadd.s32 %s281, 1
      %p285 = scmp.eq.s32.totalorder %s41, 7
      %p286 = scmp.ne.s32.totalorder %s281, %s283
      %p287 = scmp.eq.s32.totalorder %s41, 0
      %p288 = por %p286, %p287
      %p289 = scmp.ne.s32.totalorder %s281, %s283
      %p290 = scmp.eq.s32.totalorder %s46, 7
      %p291 = por %p289, %p290
      %p292 = scmp.ne.s32.totalorder %s283, %s284
      %p293 = scmp.eq.s32.totalorder %s46, 0
      %p294 = por %p292, %p293
      %p295 = scmp.ne.s32.totalorder %s283, %s284
      %p296 = scmp.eq.s32.totalorder %s47, 7
      %p297 = por %p295, %p296
      %p299 = scmp.ne.s32.totalorder %s284, %s298
      %p300 = scmp.eq.s32.totalorder %s47, 0
      %p301 = por %p299, %p300
      %s303 = sadd.s32 %s302, 1
      %p306 = scmp.eq.s32.totalorder %s41, 7
      %p307 = scmp.ne.s32.totalorder %s302, %s304
      %p308 = scmp.eq.s32.totalorder %s41, 0
      %p309 = por %p307, %p308
      %p310 = scmp.ne.s32.totalorder %s302, %s304
      %p311 = scmp.eq.s32.totalorder %s46, 7
      %p312 = por %p310, %p311
      %p313 = scmp.ne.s32.totalorder %s304, %s305
      %p314 = scmp.eq.s32.totalorder %s46, 0
      %p315 = por %p313, %p314
      %p316 = scmp.ne.s32.totalorder %s304, %s305
      %p317 = scmp.eq.s32.totalorder %s47, 7
      %p318 = por %p316, %p317
      %p320 = scmp.ne.s32.totalorder %s305, %s319
      %p321 = scmp.eq.s32.totalorder %s47, 0
      %p322 = por %p320, %p321
      %s324 = sadd.s32 %s323, 1
      %p327 = scmp.eq.s32.totalorder %s41, 7
      %p328 = scmp.ne.s32.totalorder %s323, %s325
      %p329 = scmp.eq.s32.totalorder %s41, 0
      %p330 = por %p328, %p329
      %p331 = scmp.ne.s32.totalorder %s323, %s325
      %p332 = scmp.eq.s32.totalorder %s46, 7
      %p333 = por %p331, %p332
      %p334 = scmp.ne.s32.totalorder %s325, %s326
      %p335 = scmp.eq.s32.totalorder %s46, 0
      %p336 = por %p334, %p335
      %p337 = scmp.ne.s32.totalorder %s325, %s326
      %p338 = scmp.eq.s32.totalorder %s47, 7
      %p339 = por %p337, %p338
      %p341 = scmp.ne.s32.totalorder %s326, %s340
      %p342 = scmp.eq.s32.totalorder %s47, 0
      %p343 = por %p341, %p342
      %s345 = sadd.s32 %s344, 1
      %p348 = scmp.eq.s32.totalorder %s41, 7
      %p349 = scmp.ne.s32.totalorder %s344, %s346
      %p350 = scmp.eq.s32.totalorder %s41, 0
      %p351 = por %p349, %p350
      %p352 = scmp.ne.s32.totalorder %s344, %s346
      %p353 = scmp.eq.s32.totalorder %s46, 7
      %p354 = por %p352, %p353
      %p355 = scmp.ne.s32.totalorder %s346, %s347
      %p356 = scmp.eq.s32.totalorder %s46, 0
      %p357 = por %p355, %p356
      %p358 = scmp.ne.s32.totalorder %s346, %s347
      %p359 = scmp.eq.s32.totalorder %s47, 7
      %p360 = por %p358, %p359
      %p362 = scmp.ne.s32.totalorder %s347, %s361
      %p363 = scmp.eq.s32.totalorder %s47, 0
      %p364 = por %p362, %p363
      %s366 = sadd.s32 %s365, 1
      %p369 = scmp.eq.s32.totalorder %s41, 7
      %p370 = scmp.ne.s32.totalorder %s365, %s367
      %p371 = scmp.eq.s32.totalorder %s41, 0
      %p372 = por %p370, %p371
      %p373 = scmp.ne.s32.totalorder %s365, %s367
      %p374 = scmp.eq.s32.totalorder %s46, 7
      %p375 = por %p373, %p374
      %p376 = scmp.ne.s32.totalorder %s367, %s368
      %p377 = scmp.eq.s32.totalorder %s46, 0
      %p378 = por %p376, %p377
      %p379 = scmp.ne.s32.totalorder %s367, %s368
      %p380 = scmp.eq.s32.totalorder %s47, 7
      %p381 = por %p379, %p380
      %p383 = scmp.ne.s32.totalorder %s368, %s382
      %p384 = scmp.eq.s32.totalorder %s47, 0
      %p385 = por %p383, %p384
      %s387 = sadd.s32 %s386, 1
      %p390 = scmp.eq.s32.totalorder %s41, 7
      %p391 = scmp.ne.s32.totalorder %s386, %s388
      %p392 = scmp.eq.s32.totalorder %s41, 0
      %p393 = por %p391, %p392
      %p394 = scmp.ne.s32.totalorder %s386, %s388
      %p395 = scmp.eq.s32.totalorder %s46, 7
      %p396 = por %p394, %p395
      %p397 = scmp.ne.s32.totalorder %s388, %s389
      %p398 = scmp.eq.s32.totalorder %s46, 0
      %p399 = por %p397, %p398
      %p400 = scmp.ne.s32.totalorder %s388, %s389
      %p401 = scmp.eq.s32.totalorder %s47, 7
      %p402 = por %p400, %p401
      %p404 = scmp.ne.s32.totalorder %s389, %s403
      %p405 = scmp.eq.s32.totalorder %s47, 0
      %p406 = por %p404, %p405
      %s408 = sadd.s32 %s407, 1
      %p411 = scmp.eq.s32.totalorder %s41, 7
      %p412 = scmp.ne.s32.totalorder %s407, %s409
      %p413 = scmp.eq.s32.totalorder %s41, 0
      %p414 = por %p412, %p413
      %p415 = scmp.ne.s32.totalorder %s407, %s409
      %p416 = scmp.eq.s32.totalorder %s46, 7
      %p417 = por %p415, %p416
      %p418 = scmp.ne.s32.totalorder %s409, %s410
      %p419 = scmp.eq.s32.totalorder %s46, 0
      %p420 = por %p418, %p419
      %p421 = scmp.ne.s32.totalorder %s409, %s410
      %p422 = scmp.eq.s32.totalorder %s47, 7
      %p423 = por %p421, %p422
      %p425 = scmp.ne.s32.totalorder %s410, %s424
      %p426 = scmp.eq.s32.totalorder %s47, 0
      %p427 = por %p425, %p426
      %s429 = sadd.s32 %s428, 1
      %p432 = scmp.eq.s32.totalorder %s41, 7
      %p433 = scmp.ne.s32.totalorder %s428, %s430
      %p434 = scmp.eq.s32.totalorder %s41, 0
      %p435 = por %p433, %p434
      %p436 = scmp.ne.s32.totalorder %s428, %s430
      %p437 = scmp.eq.s32.totalorder %s46, 7
      %p438 = por %p436, %p437
      %p439 = scmp.ne.s32.totalorder %s430, %s431
      %p440 = scmp.eq.s32.totalorder %s46, 0
      %p441 = por %p439, %p440
      %p442 = scmp.ne.s32.totalorder %s430, %s431
      %p443 = scmp.eq.s32.totalorder %s47, 7
      %p444 = por %p442, %p443
      %p446 = scmp.ne.s32.totalorder %s431, %s445
      %p447 = scmp.eq.s32.totalorder %s47, 0
      %p448 = por %p446, %p447
      %s449 = ssub.s32 %s48, %s60
      %s450 = ssub.s32 %s49, %s56
      %s451 = sor.u32 %s449, %s450
      %p452 = scmp.eq.s32.totalorder %s451, 0
      %s454 = sadd.s32 %s453, 1
      %s455 = scalar_select %p452, %s453, %s454
      %p458 = pneg %p452
      %p459 = scmp.eq.s32.totalorder %s41, 7
      %p460 = por %p458, %p459
      %p461 = scmp.ne.s32.totalorder %s453, %s456
      %p462 = scmp.eq.s32.totalorder %s41, 0
      %p463 = por %p461, %p462
      %p464 = scmp.ne.s32.totalorder %s453, %s456
      %p465 = scmp.eq.s32.totalorder %s46, 7
      %p466 = por %p464, %p465
      %p467 = scmp.ne.s32.totalorder %s456, %s457
      %p468 = scmp.eq.s32.totalorder %s46, 0
      %p469 = por %p467, %p468
      %p470 = scmp.ne.s32.totalorder %s456, %s457
      %p471 = scmp.eq.s32.totalorder %s47, 7
      %p472 = por %p470, %p471
      %p474 = scmp.ne.s32.totalorder %s457, %s473
      %p475 = scmp.eq.s32.totalorder %s47, 0
      %p476 = por %p474, %p475
      %p477 = scmp.le.s32.totalorder 1, %s41
      %p478 = scmp.lt.s32.totalorder %s41, 9
      %p479 = pnand %p477, %p478
      %p480 = pneg %p479
      // Predicated region
      $region9: #{tpu_custom_call.1} parent=5 // pred_check
        _
      $region10: #{tpu_custom_call.1} parent=5 // pred_check_branch
        %482 = sbr.rel (%p479) target = $region12
      $region11: #{tpu_custom_call.1} parent=5 // pred_region
        %s483 = ssub.s32 %s41, 1
        // Predicated region
        $region13: #{tpu_custom_call.1} parent=11 // pred_check
          %p484 = pneg %p126
        $region14: #{tpu_custom_call.1} parent=11 // pred_check_branch
          %486 = sbr.rel (%p484) target = $region16
        $region15: #{tpu_custom_call.1} parent=11 // pred_region
          %s488 = ssub.s32 4096, 4096
          %489 = vsyncadd [#allocation9], %s488
          %s490 = sshll.u32 [#allocation10], 4
          %s491 = int_to_ptr.vmem [resolvable:$true] %s490
          %496 = dma.hbm_to_vmem [thread:$0]  %s2, 4096, %s491, [#allocation9], 128, 128, 8
        $region16: #{tpu_custom_call.1} parent=11 // pred_fallthru
          _
        // Predicated region
        $region17: #{tpu_custom_call.1} parent=11 // pred_check
          %p497 = pneg %p147
        $region18: #{tpu_custom_call.1} parent=11 // pred_check_branch
          %499 = sbr.rel (%p497) target = $region20
        $region19: #{tpu_custom_call.1} parent=11 // pred_region
          %s501 = ssub.s32 32, 32
          %502 = vsyncadd [#allocation12], %s501
          %s504 = sshll.u32 [#allocation11], 4
          %s505 = int_to_ptr.vmem [resolvable:$true] %s504
          %507 = dma.hbm_to_vmem [thread:$0]  %s3, 32, %s505, [#allocation12]
        $region20: #{tpu_custom_call.1} parent=11 // pred_fallthru
          _
        // Predicated region
        $region21: #{tpu_custom_call.1} parent=11 // pred_check
          %p508 = pneg %p168
        $region22: #{tpu_custom_call.1} parent=11 // pred_check_branch
          %510 = sbr.rel (%p508) target = $region24
        $region23: #{tpu_custom_call.1} parent=11 // pred_region
          %s512 = ssub.s32 4096, 4096
          %513 = vsyncadd [#allocation12], %s512
          %s514 = sshll.u32 [#allocation13], 4
          %s515 = int_to_ptr.vmem [resolvable:$true] %s514
          %520 = dma.hbm_to_vmem [thread:$0]  %s4, 4096, %s515, [#allocation12], 128, 128, 8
        $region24: #{tpu_custom_call.1} parent=11 // pred_fallthru
          _
        // Predicated region
        $region25: #{tpu_custom_call.1} parent=11 // pred_check
          %p521 = pneg %p189
        $region26: #{tpu_custom_call.1} parent=11 // pred_check_branch
          %523 = sbr.rel (%p521) target = $region28
        $region27: #{tpu_custom_call.1} parent=11 // pred_region
          %s525 = ssub.s32 32, 32
          %526 = vsyncadd [#allocation15], %s525
          %s528 = sshll.u32 [#allocation14], 4
          %s529 = int_to_ptr.vmem [resolvable:$true] %s528
          %531 = dma.hbm_to_vmem [thread:$0]  %s5, 32, %s529, [#allocation15]
        $region28: #{tpu_custom_call.1} parent=11 // pred_fallthru
          _
        // Predicated region
        $region29: #{tpu_custom_call.1} parent=11 // pred_check
          %p532 = pneg %p210
        $region30: #{tpu_custom_call.1} parent=11 // pred_check_branch
          %534 = sbr.rel (%p532) target = $region32
        $region31: #{tpu_custom_call.1} parent=11 // pred_region
          %s536 = ssub.s32 4096, 4096
          %537 = vsyncadd [#allocation15], %s536
          %s538 = sshll.u32 [#allocation16], 4
          %s539 = int_to_ptr.vmem [resolvable:$true] %s538
          %544 = dma.hbm_to_vmem [thread:$0]  %s6, 4096, %s539, [#allocation15], 128, 128, 8
        $region32: #{tpu_custom_call.1} parent=11 // pred_fallthru
          _
        // Predicated region
        $region33: #{tpu_custom_call.1} parent=11 // pred_check
          %p545 = pneg %p231
        $region34: #{tpu_custom_call.1} parent=11 // pred_check_branch
          %547 = sbr.rel (%p545) target = $region36
        $region35: #{tpu_custom_call.1} parent=11 // pred_region
          %s549 = ssub.s32 32, 32
          %550 = vsyncadd [#allocation18], %s549
          %s552 = sshll.u32 [#allocation17], 4
          %s553 = int_to_ptr.vmem [resolvable:$true] %s552
          %555 = dma.hbm_to_vmem [thread:$0]  %s7, 32, %s553, [#allocation18]
        $region36: #{tpu_custom_call.1} parent=11 // pred_fallthru
          _
        // Predicated region
        $region37: #{tpu_custom_call.1} parent=11 // pred_check
          %p556 = pneg %p252
        $region38: #{tpu_custom_call.1} parent=11 // pred_check_branch
          %558 = sbr.rel (%p556) target = $region40
        $region39: #{tpu_custom_call.1} parent=11 // pred_region
          %s560 = ssub.s32 4096, 4096
          %561 = vsyncadd [#allocation18], %s560
          %s562 = sshll.u32 [#allocation19], 4
          %s563 = int_to_ptr.vmem [resolvable:$true] %s562
          %568 = dma.hbm_to_vmem [thread:$0]  %s8, 4096, %s563, [#allocation18], 128, 128, 8
        $region40: #{tpu_custom_call.1} parent=11 // pred_fallthru
          _
        // Predicated region
        $region41: #{tpu_custom_call.1} parent=11 // pred_check
          %p569 = pneg %p273
        $region42: #{tpu_custom_call.1} parent=11 // pred_check_branch
          %571 = sbr.rel (%p569) target = $region44
        $region43: #{tpu_custom_call.1} parent=11 // pred_region
          %s573 = ssub.s32 32, 32
          %574 = vsyncadd [#allocation21], %s573
          %s576 = sshll.u32 [#allocation20], 4
          %s577 = int_to_ptr.vmem [resolvable:$true] %s576
          %579 = dma.hbm_to_vmem [thread:$0]  %s9, 32, %s577, [#allocation21]
        $region44: #{tpu_custom_call.1} parent=11 // pred_fallthru
          _
        // Predicated region
        $region45: #{tpu_custom_call.1} parent=11 // pred_check
          %p580 = pneg %p294
        $region46: #{tpu_custom_call.1} parent=11 // pred_check_branch
          %582 = sbr.rel (%p580) target = $region48
        $region47: #{tpu_custom_call.1} parent=11 // pred_region
          %s584 = ssub.s32 32, 32
          %585 = vsyncadd [#allocation21], %s584
          %s587 = sshll.u32 [#allocation22], 4
          %s588 = int_to_ptr.vmem [resolvable:$true] %s587
          %590 = dma.hbm_to_vmem [thread:$0]  %s10, 32, %s588, [#allocation21]
        $region48: #{tpu_custom_call.1} parent=11 // pred_fallthru
          _
        // Predicated region
        $region49: #{tpu_custom_call.1} parent=11 // pred_check
          %p591 = pneg %p315
        $region50: #{tpu_custom_call.1} parent=11 // pred_check_branch
          %593 = sbr.rel (%p591) target = $region52
        $region51: #{tpu_custom_call.1} parent=11 // pred_region
          %s595 = ssub.s32 32, 32
          %596 = vsyncadd [#allocation24], %s595
          %s598 = sshll.u32 [#allocation23], 4
          %s599 = int_to_ptr.vmem [resolvable:$true] %s598
          %601 = dma.hbm_to_vmem [thread:$0]  %s11, 32, %s599, [#allocation24]
        $region52: #{tpu_custom_call.1} parent=11 // pred_fallthru
          _
        // Predicated region
        $region53: #{tpu_custom_call.1} parent=11 // pred_check
          %p602 = pneg %p336
        $region54: #{tpu_custom_call.1} parent=11 // pred_check_branch
          %604 = sbr.rel (%p602) target = $region56
        $region55: #{tpu_custom_call.1} parent=11 // pred_region
          %s606 = ssub.s32 16384, 16384
          %607 = vsyncadd [#allocation24], %s606
          %s608 = sshll.u32 [#allocation25], 4
          %s609 = int_to_ptr.vmem [resolvable:$true] %s608
          %614 = dma.hbm_to_vmem [thread:$0]  %s12, 16384, %s609, [#allocation24], 512, 512, 32
        $region56: #{tpu_custom_call.1} parent=11 // pred_fallthru
          _
        // Predicated region
        $region57: #{tpu_custom_call.1} parent=11 // pred_check
          %p615 = pneg %p357
        $region58: #{tpu_custom_call.1} parent=11 // pred_check_branch
          %617 = sbr.rel (%p615) target = $region60
        $region59: #{tpu_custom_call.1} parent=11 // pred_region
          %s619 = ssub.s32 128, 128
          %620 = vsyncadd [#allocation27], %s619
          %s622 = sshll.u32 [#allocation26], 4
          %s623 = int_to_ptr.vmem [resolvable:$true] %s622
          %625 = dma.hbm_to_vmem [thread:$0]  %s13, 128, %s623, [#allocation27]
        $region60: #{tpu_custom_call.1} parent=11 // pred_fallthru
          _
        // Predicated region
        $region61: #{tpu_custom_call.1} parent=11 // pred_check
          %p626 = pneg %p378
        $region62: #{tpu_custom_call.1} parent=11 // pred_check_branch
          %628 = sbr.rel (%p626) target = $region64
        $region63: #{tpu_custom_call.1} parent=11 // pred_region
          %s630 = ssub.s32 16384, 16384
          %631 = vsyncadd [#allocation27], %s630
          %s632 = sshll.u32 [#allocation28], 4
          %s633 = int_to_ptr.vmem [resolvable:$true] %s632
          %638 = dma.hbm_to_vmem [thread:$0]  %s14, 16384, %s633, [#allocation27], 128, 128, 8
        $region64: #{tpu_custom_call.1} parent=11 // pred_fallthru
          _
        // Predicated region
        $region65: #{tpu_custom_call.1} parent=11 // pred_check
          %p639 = pneg %p399
        $region66: #{tpu_custom_call.1} parent=11 // pred_check_branch
          %641 = sbr.rel (%p639) target = $region68
        $region67: #{tpu_custom_call.1} parent=11 // pred_region
          %s643 = ssub.s32 32, 32
          %644 = vsyncadd [#allocation30], %s643
          %s646 = sshll.u32 [#allocation29], 4
          %s647 = int_to_ptr.vmem [resolvable:$true] %s646
          %649 = dma.hbm_to_vmem [thread:$0]  %s15, 32, %s647, [#allocation30]
        $region68: #{tpu_custom_call.1} parent=11 // pred_fallthru
          _
        // Predicated region
        $region69: #{tpu_custom_call.1} parent=11 // pred_check
          %p650 = pneg %p420
        $region70: #{tpu_custom_call.1} parent=11 // pred_check_branch
          %652 = sbr.rel (%p650) target = $region72
        $region71: #{tpu_custom_call.1} parent=11 // pred_region
          %s654 = ssub.s32 32, 32
          %655 = vsyncadd [#allocation30], %s654
          %s657 = sshll.u32 [#allocation31], 4
          %s658 = int_to_ptr.vmem [resolvable:$true] %s657
          %660 = dma.hbm_to_vmem [thread:$0]  %s16, 32, %s658, [#allocation30]
        $region72: #{tpu_custom_call.1} parent=11 // pred_fallthru
          _
        // Predicated region
        $region73: #{tpu_custom_call.1} parent=11 // pred_check
          %p661 = pneg %p441
        $region74: #{tpu_custom_call.1} parent=11 // pred_check_branch
          %663 = sbr.rel (%p661) target = $region76
        $region75: #{tpu_custom_call.1} parent=11 // pred_region
          %s665 = ssub.s32 32, 32
          %666 = vsyncadd [#allocation33], %s665
          %s668 = sshll.u32 [#allocation32], 4
          %s669 = int_to_ptr.vmem [resolvable:$true] %s668
          %671 = dma.hbm_to_vmem [thread:$0]  %s17, 32, %s669, [#allocation33]
        $region76: #{tpu_custom_call.1} parent=11 // pred_fallthru
          _
      $region12: #{tpu_custom_call.1} parent=5 // pred_fallthru
        _
      %p672 = scmp.lt.s32.totalorder %s41, 8
      // Predicated region
      $region77: #{tpu_custom_call.1} parent=5 // pred_check
        %p673 = pneg %p672
      $region78: #{tpu_custom_call.1} parent=5 // pred_check_branch
        %675 = sbr.rel (%p673) target = $region80
      $region79: #{tpu_custom_call.1} parent=5 // pred_region
        // Predicated region
        $region81: #{tpu_custom_call.1} parent=79 // pred_check
          %p676 = pneg %p73
        $region82: #{tpu_custom_call.1} parent=79 // pred_check_branch
          %678 = sbr.rel (%p676) target = $region84
        $region83: #{tpu_custom_call.1} parent=79 // pred_region
          %s679 = sand.u32 %s63, 1
          %s680 = scalar_lea.sflag [#allocation6], %s679
          %s681 = sand.u32 %s63, 1
          %s682 = smul.addr %s681, 512
          %s683 = scalar_lea.vmem [#allocation5], %s682
          %s685 = ssub.s32 8192, 8192
          %686 = vsyncadd %s680, %s685
          %s687 = smul.addr %s48, 64
          %s688 = smul.addr %s687, 128
          %s689 = scalar_lea.hbm %s0, %s688
          %s690 = sshll.u32 %s683, 4
          %s691 = int_to_ptr.vmem [resolvable:$true] %s690
          %696 = dma.hbm_to_vmem [thread:$0]  %s689, 8192, %s691, %s680, 256, 256, 16
        $region84: #{tpu_custom_call.1} parent=79 // pred_fallthru
          _
        // Predicated region
        $region85: #{tpu_custom_call.1} parent=79 // pred_check
          %p697 = pneg %p99
        $region86: #{tpu_custom_call.1} parent=79 // pred_check_branch
          %699 = sbr.rel (%p697) target = $region88
        $region87: #{tpu_custom_call.1} parent=79 // pred_region
          %s700 = sand.u32 %s41, 1
          %s701 = scalar_lea.sflag [#allocation9], %s700
          %s702 = sand.u32 %s89, 1
          %s703 = smul.addr %s702, 2
          %s704 = scalar_lea.vmem [#allocation8], %s703
          %s706 = ssub.s32 32, 32
          %707 = vsyncadd %s701, %s706
          %s708 = smul.addr %s48, 2
          %s709 = smul.addr %s708, 16
          %s710 = scalar_lea.hbm %s1, %s709
          %s712 = sshll.u32 %s704, 4
          %s713 = int_to_ptr.vmem [resolvable:$true] %s712
          %715 = dma.hbm_to_vmem [thread:$0]  %s710, 32, %s713, %s701
        $region88: #{tpu_custom_call.1} parent=79 // pred_fallthru
          _
      $region80: #{tpu_custom_call.1} parent=5 // pred_fallthru
        _
      %p716 = scmp.le.s32.totalorder 1, %s41
      %p717 = scmp.lt.s32.totalorder %s41, 9
      %p718 = pnand %p716, %p717
      %p719 = pneg %p718
      // Predicated region
      $region89: #{tpu_custom_call.1} parent=5 // pred_check
        _
      $region90: #{tpu_custom_call.1} parent=5 // pred_check_branch
        %721 = sbr.rel (%p718) target = $region92
      $region91: #{tpu_custom_call.1} parent=5 // pred_region
        %s722 = ssub.s32 %s41, 1
        %s723 = sand.u32 %s66, 1
        %s724 = scalar_lea.sflag [#allocation6], %s723
        %s725 = sand.u32 %s66, 1
        %s726 = smul.addr %s725, 512
        %s727 = scalar_lea.vmem [#allocation5], %s726
        // Predicated region
        $region93: #{tpu_custom_call.1} parent=91 // pred_check
          %p728 = pneg %p79
        $region94: #{tpu_custom_call.1} parent=91 // pred_check_branch
          %730 = sbr.rel (%p728) target = $region96
        $region95: #{tpu_custom_call.1} parent=91 // pred_region
          %731 = dma.done %s724, 8192
        $region96: #{tpu_custom_call.1} parent=91 // pred_fallthru
          _
        %s732 = sand.u32 %s46, 1
        %s733 = scalar_lea.sflag [#allocation9], %s732
        %s734 = sand.u32 %s92, 1
        %s735 = smul.addr %s734, 2
        %s736 = scalar_lea.vmem [#allocation8], %s735
        // Predicated region
        $region97: #{tpu_custom_call.1} parent=91 // pred_check
          %p737 = pneg %p105
        $region98: #{tpu_custom_call.1} parent=91 // pred_check_branch
          %739 = sbr.rel (%p737) target = $region100
        $region99: #{tpu_custom_call.1} parent=91 // pred_region
          %740 = dma.done %s733, 32
        $region100: #{tpu_custom_call.1} parent=91 // pred_fallthru
          _
        // Predicated region
        $region101: #{tpu_custom_call.1} parent=91 // pred_check
          %p741 = pneg %p126
        $region102: #{tpu_custom_call.1} parent=91 // pred_check_branch
          %743 = sbr.rel (%p741) target = $region104
        $region103: #{tpu_custom_call.1} parent=91 // pred_region
          %744 = dma.done [#allocation9], 4096
        $region104: #{tpu_custom_call.1} parent=91 // pred_fallthru
          _
        // Predicated region
        $region105: #{tpu_custom_call.1} parent=91 // pred_check
          %p745 = pneg %p147
        $region106: #{tpu_custom_call.1} parent=91 // pred_check_branch
          %747 = sbr.rel (%p745) target = $region108
        $region107: #{tpu_custom_call.1} parent=91 // pred_region
          %748 = dma.done [#allocation12], 32
        $region108: #{tpu_custom_call.1} parent=91 // pred_fallthru
          _
        // Predicated region
        $region109: #{tpu_custom_call.1} parent=91 // pred_check
          %p749 = pneg %p168
        $region110: #{tpu_custom_call.1} parent=91 // pred_check_branch
          %751 = sbr.rel (%p749) target = $region112
        $region111: #{tpu_custom_call.1} parent=91 // pred_region
          %752 = dma.done [#allocation12], 4096
        $region112: #{tpu_custom_call.1} parent=91 // pred_fallthru
          _
        // Predicated region
        $region113: #{tpu_custom_call.1} parent=91 // pred_check
          %p753 = pneg %p189
        $region114: #{tpu_custom_call.1} parent=91 // pred_check_branch
          %755 = sbr.rel (%p753) target = $region116
        $region115: #{tpu_custom_call.1} parent=91 // pred_region
          %756 = dma.done [#allocation15], 32
        $region116: #{tpu_custom_call.1} parent=91 // pred_fallthru
          _
        // Predicated region
        $region117: #{tpu_custom_call.1} parent=91 // pred_check
          %p757 = pneg %p210
        $region118: #{tpu_custom_call.1} parent=91 // pred_check_branch
          %759 = sbr.rel (%p757) target = $region120
        $region119: #{tpu_custom_call.1} parent=91 // pred_region
          %760 = dma.done [#allocation15], 4096
        $region120: #{tpu_custom_call.1} parent=91 // pred_fallthru
          _
        // Predicated region
        $region121: #{tpu_custom_call.1} parent=91 // pred_check
          %p761 = pneg %p231
        $region122: #{tpu_custom_call.1} parent=91 // pred_check_branch
          %763 = sbr.rel (%p761) target = $region124
        $region123: #{tpu_custom_call.1} parent=91 // pred_region
          %764 = dma.done [#allocation18], 32
        $region124: #{tpu_custom_call.1} parent=91 // pred_fallthru
          _
        // Predicated region
        $region125: #{tpu_custom_call.1} parent=91 // pred_check
          %p765 = pneg %p252
        $region126: #{tpu_custom_call.1} parent=91 // pred_check_branch
          %767 = sbr.rel (%p765) target = $region128
        $region127: #{tpu_custom_call.1} parent=91 // pred_region
          %768 = dma.done [#allocation18], 4096
        $region128: #{tpu_custom_call.1} parent=91 // pred_fallthru
          _
        // Predicated region
        $region129: #{tpu_custom_call.1} parent=91 // pred_check
          %p769 = pneg %p273
        $region130: #{tpu_custom_call.1} parent=91 // pred_check_branch
          %771 = sbr.rel (%p769) target = $region132
        $region131: #{tpu_custom_call.1} parent=91 // pred_region
          %772 = dma.done [#allocation21], 32
        $region132: #{tpu_custom_call.1} parent=91 // pred_fallthru
          _
        // Predicated region
        $region133: #{tpu_custom_call.1} parent=91 // pred_check
          %p773 = pneg %p294
        $region134: #{tpu_custom_call.1} parent=91 // pred_check_branch
          %775 = sbr.rel (%p773) target = $region136
        $region135: #{tpu_custom_call.1} parent=91 // pred_region
          %776 = dma.done [#allocation21], 32
        $region136: #{tpu_custom_call.1} parent=91 // pred_fallthru
          _
        // Predicated region
        $region137: #{tpu_custom_call.1} parent=91 // pred_check
          %p777 = pneg %p315
        $region138: #{tpu_custom_call.1} parent=91 // pred_check_branch
          %779 = sbr.rel (%p777) target = $region140
        $region139: #{tpu_custom_call.1} parent=91 // pred_region
          %780 = dma.done [#allocation24], 32
        $region140: #{tpu_custom_call.1} parent=91 // pred_fallthru
          _
        // Predicated region
        $region141: #{tpu_custom_call.1} parent=91 // pred_check
          %p781 = pneg %p336
        $region142: #{tpu_custom_call.1} parent=91 // pred_check_branch
          %783 = sbr.rel (%p781) target = $region144
        $region143: #{tpu_custom_call.1} parent=91 // pred_region
          %784 = dma.done [#allocation24], 16384
        $region144: #{tpu_custom_call.1} parent=91 // pred_fallthru
          _
        // Predicated region
        $region145: #{tpu_custom_call.1} parent=91 // pred_check
          %p785 = pneg %p357
        $region146: #{tpu_custom_call.1} parent=91 // pred_check_branch
          %787 = sbr.rel (%p785) target = $region148
        $region147: #{tpu_custom_call.1} parent=91 // pred_region
          %788 = dma.done [#allocation27], 128
        $region148: #{tpu_custom_call.1} parent=91 // pred_fallthru
          _
        // Predicated region
        $region149: #{tpu_custom_call.1} parent=91 // pred_check
          %p789 = pneg %p378
        $region150: #{tpu_custom_call.1} parent=91 // pred_check_branch
          %791 = sbr.rel (%p789) target = $region152
        $region151: #{tpu_custom_call.1} parent=91 // pred_region
          %792 = dma.done [#allocation27], 16384
        $region152: #{tpu_custom_call.1} parent=91 // pred_fallthru
          _
        // Predicated region
        $region153: #{tpu_custom_call.1} parent=91 // pred_check
          %p793 = pneg %p399
        $region154: #{tpu_custom_call.1} parent=91 // pred_check_branch
          %795 = sbr.rel (%p793) target = $region156
        $region155: #{tpu_custom_call.1} parent=91 // pred_region
          %796 = dma.done [#allocation30], 32
        $region156: #{tpu_custom_call.1} parent=91 // pred_fallthru
          _
        // Predicated region
        $region157: #{tpu_custom_call.1} parent=91 // pred_check
          %p797 = pneg %p420
        $region158: #{tpu_custom_call.1} parent=91 // pred_check_branch
          %799 = sbr.rel (%p797) target = $region160
        $region159: #{tpu_custom_call.1} parent=91 // pred_region
          %800 = dma.done [#allocation30], 32
        $region160: #{tpu_custom_call.1} parent=91 // pred_fallthru
          _
        // Predicated region
        $region161: #{tpu_custom_call.1} parent=91 // pred_check
          %p801 = pneg %p441
        $region162: #{tpu_custom_call.1} parent=91 // pred_check_branch
          %803 = sbr.rel (%p801) target = $region164
        $region163: #{tpu_custom_call.1} parent=91 // pred_region
          %804 = dma.done [#allocation33], 32
        $region164: #{tpu_custom_call.1} parent=91 // pred_fallthru
          _
        %s805 = sand.u32 %s66, 1
        %s806 = scalar_lea.sflag [#allocation6], %s805
        %s807 = sand.u32 %s66, 1
        %s808 = smul.addr %s807, 512
        %s809 = scalar_lea.vmem [#allocation5], %s808
        %p810 = pneg %p79
        %p811 = pneg %p76
        %s812 = sand.u32 %s46, 1
        %s813 = scalar_lea.sflag [#allocation9], %s812
        %s814 = sand.u32 %s92, 1
        %s815 = smul.addr %s814, 2
        %s816 = scalar_lea.vmem [#allocation8], %s815
        %p817 = pneg %p105
        %p818 = pneg %p102
        %p819 = pneg %p126
        %p820 = pneg %p123
        %p821 = pneg %p147
        %p822 = pneg %p144
        %p823 = pneg %p168
        %p824 = pneg %p165
        %p825 = pneg %p189
        %p826 = pneg %p186
        %p827 = pneg %p210
        %p828 = pneg %p207
        %p829 = pneg %p231
        %p830 = pneg %p228
        %p831 = pneg %p252
        %p832 = pneg %p249
        %p833 = pneg %p273
        %p834 = pneg %p270
        %p835 = pneg %p294
        %p836 = pneg %p291
        %p837 = pneg %p315
        %p838 = pneg %p312
        %p839 = pneg %p336
        %p840 = pneg %p333
        %p841 = pneg %p357
        %p842 = pneg %p354
        %p843 = pneg %p378
        %p844 = pneg %p375
        %p845 = pneg %p399
        %p846 = pneg %p396
        %p847 = pneg %p420
        %p848 = pneg %p417
        %p849 = pneg %p441
        %p850 = pneg %p438
        %p851 = pneg %p469
        %p852 = pneg %p466
        %s853 = sand.u32 %s456, 1
        %s854 = scalar_lea.sflag [#allocation7], %s853
        %s855 = sand.u32 %s456, 1
        %s856 = smul.addr %s855, 256
        %s857 = scalar_lea.vmem [#allocation34], %s856
        %s858 = smul.u32 16, %s51
        %p860 = scmp.eq.s32.totalorder %s51, 0
        // Predicated region
        $region165: #{tpu_custom_call.1} parent=91 // pred_check
          %p861 = pneg %p860
        $region166: #{tpu_custom_call.1} parent=91 // pred_check_branch
          %863 = sbr.rel (%p861) target = $region168
        $region167: #{tpu_custom_call.1} parent=91 // pred_region
          %v864 = vld [vmem:[%s727] sm:$0xff]
          %v865 = vld [vmem:[%s727 + $0x8] sm:$0xff]
          %v866 = vld [vmem:[%s727 + $0x10] sm:$0xff]
          %v867 = vld [vmem:[%s727 + $0x18] sm:$0xff]
          %v868 = vld [vmem:[%s727 + $0x20] sm:$0xff]
          %v869 = vld [vmem:[%s727 + $0x28] sm:$0xff]
          %v870 = vld [vmem:[%s727 + $0x30] sm:$0xff]
          %v871 = vld [vmem:[%s727 + $0x38] sm:$0xff]
          %v872 = vld [vmem:[%s727 + $0x40] sm:$0xff]
          %v873 = vld [vmem:[%s727 + $0x48] sm:$0xff]
          %v874 = vld [vmem:[%s727 + $0x50] sm:$0xff]
          %v875 = vld [vmem:[%s727 + $0x58] sm:$0xff]
          %v876 = vld [vmem:[%s727 + $0x60] sm:$0xff]
          %v877 = vld [vmem:[%s727 + $0x68] sm:$0xff]
          %v878 = vld [vmem:[%s727 + $0x70] sm:$0xff]
          %v879 = vld [vmem:[%s727 + $0x78] sm:$0xff]
          %v880 = vld [vmem:[%s727 + $0x80] sm:$0xff]
          %v881 = vld [vmem:[%s727 + $0x88] sm:$0xff]
          %v882 = vld [vmem:[%s727 + $0x90] sm:$0xff]
          %v883 = vld [vmem:[%s727 + $0x98] sm:$0xff]
          %v884 = vld [vmem:[%s727 + $0xa0] sm:$0xff]
          %v885 = vld [vmem:[%s727 + $0xa8] sm:$0xff]
          %v886 = vld [vmem:[%s727 + $0xb0] sm:$0xff]
          %v887 = vld [vmem:[%s727 + $0xb8] sm:$0xff]
          %v888 = vld [vmem:[%s727 + $0xc0] sm:$0xff]
          %v889 = vld [vmem:[%s727 + $0xc8] sm:$0xff]
          %v890 = vld [vmem:[%s727 + $0xd0] sm:$0xff]
          %v891 = vld [vmem:[%s727 + $0xd8] sm:$0xff]
          %v892 = vld [vmem:[%s727 + $0xe0] sm:$0xff]
          %v893 = vld [vmem:[%s727 + $0xe8] sm:$0xff]
          %v894 = vld [vmem:[%s727 + $0xf0] sm:$0xff]
          %v895 = vld [vmem:[%s727 + $0xf8] sm:$0xff]
          %v896 = vld [vmem:[%s727 + $0x100] sm:$0xff]
          %v897 = vld [vmem:[%s727 + $0x108] sm:$0xff]
          %v898 = vld [vmem:[%s727 + $0x110] sm:$0xff]
          %v899 = vld [vmem:[%s727 + $0x118] sm:$0xff]
          %v900 = vld [vmem:[%s727 + $0x120] sm:$0xff]
          %v901 = vld [vmem:[%s727 + $0x128] sm:$0xff]
          %v902 = vld [vmem:[%s727 + $0x130] sm:$0xff]
          %v903 = vld [vmem:[%s727 + $0x138] sm:$0xff]
          %v904 = vld [vmem:[%s727 + $0x140] sm:$0xff]
          %v905 = vld [vmem:[%s727 + $0x148] sm:$0xff]
          %v906 = vld [vmem:[%s727 + $0x150] sm:$0xff]
          %v907 = vld [vmem:[%s727 + $0x158] sm:$0xff]
          %v908 = vld [vmem:[%s727 + $0x160] sm:$0xff]
          %v909 = vld [vmem:[%s727 + $0x168] sm:$0xff]
          %v910 = vld [vmem:[%s727 + $0x170] sm:$0xff]
          %v911 = vld [vmem:[%s727 + $0x178] sm:$0xff]
          %v912 = vld [vmem:[%s727 + $0x180] sm:$0xff]
          %v913 = vld [vmem:[%s727 + $0x188] sm:$0xff]
          %v914 = vld [vmem:[%s727 + $0x190] sm:$0xff]
          %v915 = vld [vmem:[%s727 + $0x198] sm:$0xff]
          %v916 = vld [vmem:[%s727 + $0x1a0] sm:$0xff]
          %v917 = vld [vmem:[%s727 + $0x1a8] sm:$0xff]
          %v918 = vld [vmem:[%s727 + $0x1b0] sm:$0xff]
          %v919 = vld [vmem:[%s727 + $0x1b8] sm:$0xff]
          %v920 = vld [vmem:[%s727 + $0x1c0] sm:$0xff]
          %v921 = vld [vmem:[%s727 + $0x1c8] sm:$0xff]
          %v922 = vld [vmem:[%s727 + $0x1d0] sm:$0xff]
          %v923 = vld [vmem:[%s727 + $0x1d8] sm:$0xff]
          %v924 = vld [vmem:[%s727 + $0x1e0] sm:$0xff]
          %v925 = vld [vmem:[%s727 + $0x1e8] sm:$0xff]
          %v926 = vld [vmem:[%s727 + $0x1f0] sm:$0xff]
          %v927 = vld [vmem:[%s727 + $0x1f8] sm:$0xff]
          %v928 = vpack.c.bf16 %v866, %v864
          %v929 = vpack.c.bf16 %v867, %v865
          %v930 = vpack.c.bf16 %v870, %v868
          %v931 = vpack.c.bf16 %v871, %v869
          %v932 = vpack.c.bf16 %v874, %v872
          %v933 = vpack.c.bf16 %v875, %v873
          %v934 = vpack.c.bf16 %v878, %v876
          %v935 = vpack.c.bf16 %v879, %v877
          %v936 = vpack.c.bf16 %v882, %v880
          %v937 = vpack.c.bf16 %v883, %v881
          %v938 = vpack.c.bf16 %v886, %v884
          %v939 = vpack.c.bf16 %v887, %v885
          %v940 = vpack.c.bf16 %v890, %v888
          %v941 = vpack.c.bf16 %v891, %v889
          %v942 = vpack.c.bf16 %v894, %v892
          %v943 = vpack.c.bf16 %v895, %v893
          %v944 = vpack.c.bf16 %v898, %v896
          %v945 = vpack.c.bf16 %v899, %v897
          %v946 = vpack.c.bf16 %v902, %v900
          %v947 = vpack.c.bf16 %v903, %v901
          %v948 = vpack.c.bf16 %v906, %v904
          %v949 = vpack.c.bf16 %v907, %v905
          %v950 = vpack.c.bf16 %v910, %v908
          %v951 = vpack.c.bf16 %v911, %v909
          %v952 = vpack.c.bf16 %v914, %v912
          %v953 = vpack.c.bf16 %v915, %v913
          %v954 = vpack.c.bf16 %v918, %v916
          %v955 = vpack.c.bf16 %v919, %v917
          %v956 = vpack.c.bf16 %v922, %v920
          %v957 = vpack.c.bf16 %v923, %v921
          %v958 = vpack.c.bf16 %v926, %v924
          %v959 = vpack.c.bf16 %v927, %v925
          %v960 = vld [vmem:[#allocation13] sm:$0xff]
          %v961 = vld [vmem:[#allocation13 + $0x8] sm:$0xff]
          %v962 = vld [vmem:[#allocation13 + $0x10] sm:$0xff]
          %v963 = vld [vmem:[#allocation13 + $0x18] sm:$0xff]
          %v964 = vld [vmem:[#allocation13 + $0x20] sm:$0xff]
          %v965 = vld [vmem:[#allocation13 + $0x28] sm:$0xff]
          %v966 = vld [vmem:[#allocation13 + $0x30] sm:$0xff]
          %v967 = vld [vmem:[#allocation13 + $0x38] sm:$0xff]
          %v968 = vld [vmem:[#allocation13 + $0x40] sm:$0xff]
          %v969 = vld [vmem:[#allocation13 + $0x48] sm:$0xff]
          %v970 = vld [vmem:[#allocation13 + $0x50] sm:$0xff]
          %v971 = vld [vmem:[#allocation13 + $0x58] sm:$0xff]
          %v972 = vld [vmem:[#allocation13 + $0x60] sm:$0xff]
          %v973 = vld [vmem:[#allocation13 + $0x68] sm:$0xff]
          %v974 = vld [vmem:[#allocation13 + $0x70] sm:$0xff]
          %v975 = vld [vmem:[#allocation13 + $0x78] sm:$0xff]
          %v976 = vld [vmem:[#allocation13 + $0x80] sm:$0xff]
          %v977 = vld [vmem:[#allocation13 + $0x88] sm:$0xff]
          %v978 = vld [vmem:[#allocation13 + $0x90] sm:$0xff]
          %v979 = vld [vmem:[#allocation13 + $0x98] sm:$0xff]
          %v980 = vld [vmem:[#allocation13 + $0xa0] sm:$0xff]
          %v981 = vld [vmem:[#allocation13 + $0xa8] sm:$0xff]
          %v982 = vld [vmem:[#allocation13 + $0xb0] sm:$0xff]
          %v983 = vld [vmem:[#allocation13 + $0xb8] sm:$0xff]
          %v984 = vld [vmem:[#allocation13 + $0xc0] sm:$0xff]
          %v985 = vld [vmem:[#allocation13 + $0xc8] sm:$0xff]
          %v986 = vld [vmem:[#allocation13 + $0xd0] sm:$0xff]
          %v987 = vld [vmem:[#allocation13 + $0xd8] sm:$0xff]
          %v988 = vld [vmem:[#allocation13 + $0xe0] sm:$0xff]
          %v989 = vld [vmem:[#allocation13 + $0xe8] sm:$0xff]
          %v990 = vld [vmem:[#allocation13 + $0xf0] sm:$0xff]
          %v991 = vld [vmem:[#allocation13 + $0xf8] sm:$0xff]
          %v992 = vld [vmem:[#allocation14] sm:$0x3]
          %v994 = vlaneseq
          %v995 = vshrl.u32 %v994, 7
          %v996 = vsub.s32 0, %v995
          %v997 = vrot.slane %v992, %v996
          %v998 = vlaneseq
          %v999 = vshrl.u32 %v998, 7
          %v1000 = vsub.s32 1, %v999
          %v1001 = vrot.slane %v992, %v1000
          %v1036 = vunpack.c.l.b16 %v960
          %v1037 = vunpack.c.h.b16 %v960
          %v1038 = vunpack.c.l.b16 %v961
          %v1039 = vunpack.c.h.b16 %v961
          %v1040 = vunpack.c.l.b16 %v962
          %v1041 = vunpack.c.h.b16 %v962
          %v1042 = vunpack.c.l.b16 %v963
          %v1043 = vunpack.c.h.b16 %v963
          %v1044 = vunpack.c.l.b16 %v964
          %v1045 = vunpack.c.h.b16 %v964
          %v1046 = vunpack.c.l.b16 %v965
          %v1047 = vunpack.c.h.b16 %v965
          %v1048 = vunpack.c.l.b16 %v966
          %v1049 = vunpack.c.h.b16 %v966
          %v1050 = vunpack.c.l.b16 %v967
          %v1051 = vunpack.c.h.b16 %v967
          %v1052 = vunpack.c.l.b16 %v968
          %v1053 = vunpack.c.h.b16 %v968
          %v1054 = vunpack.c.l.b16 %v969
          %v1055 = vunpack.c.h.b16 %v969
          %v1056 = vunpack.c.l.b16 %v970
          %v1057 = vunpack.c.h.b16 %v970
          %v1058 = vunpack.c.l.b16 %v971
          %v1059 = vunpack.c.h.b16 %v971
          %v1060 = vunpack.c.l.b16 %v972
          %v1061 = vunpack.c.h.b16 %v972
          %v1062 = vunpack.c.l.b16 %v973
          %v1063 = vunpack.c.h.b16 %v973
          %v1064 = vunpack.c.l.b16 %v974
          %v1065 = vunpack.c.h.b16 %v974
          %v1066 = vunpack.c.l.b16 %v975
          %v1067 = vunpack.c.h.b16 %v975
          %v1068 = vunpack.c.l.b16 %v976
          %v1069 = vunpack.c.h.b16 %v976
          %v1070 = vunpack.c.l.b16 %v977
          %v1071 = vunpack.c.h.b16 %v977
          %v1072 = vunpack.c.l.b16 %v978
          %v1073 = vunpack.c.h.b16 %v978
          %v1074 = vunpack.c.l.b16 %v979
          %v1075 = vunpack.c.h.b16 %v979
          %v1076 = vunpack.c.l.b16 %v980
          %v1077 = vunpack.c.h.b16 %v980
          %v1078 = vunpack.c.l.b16 %v981
          %v1079 = vunpack.c.h.b16 %v981
          %v1080 = vunpack.c.l.b16 %v982
          %v1081 = vunpack.c.h.b16 %v982
          %v1082 = vunpack.c.l.b16 %v983
          %v1083 = vunpack.c.h.b16 %v983
          %v1084 = vunpack.c.l.b16 %v984
          %v1085 = vunpack.c.h.b16 %v984
          %v1086 = vunpack.c.l.b16 %v985
          %v1087 = vunpack.c.h.b16 %v985
          %v1088 = vunpack.c.l.b16 %v986
          %v1089 = vunpack.c.h.b16 %v986
          %v1090 = vunpack.c.l.b16 %v987
          %v1091 = vunpack.c.h.b16 %v987
          %v1092 = vunpack.c.l.b16 %v988
          %v1093 = vunpack.c.h.b16 %v988
          %v1094 = vunpack.c.l.b16 %v989
          %v1095 = vunpack.c.h.b16 %v989
          %v1096 = vunpack.c.l.b16 %v990
          %v1097 = vunpack.c.h.b16 %v990
          %v1098 = vunpack.c.l.b16 %v991
          %v1099 = vunpack.c.h.b16 %v991
          %v1100 = vpack.c.b16 %v1038, %v1036
          %v1101 = vpack.c.b16 %v1039, %v1037
          %v1102 = vpack.c.b16 %v1042, %v1040
          %v1103 = vpack.c.b16 %v1043, %v1041
          %v1104 = vpack.c.b16 %v1046, %v1044
          %v1105 = vpack.c.b16 %v1047, %v1045
          %v1106 = vpack.c.b16 %v1050, %v1048
          %v1107 = vpack.c.b16 %v1051, %v1049
          %v1108 = vpack.c.b16 %v1054, %v1052
          %v1109 = vpack.c.b16 %v1055, %v1053
          %v1110 = vpack.c.b16 %v1058, %v1056
          %v1111 = vpack.c.b16 %v1059, %v1057
          %v1112 = vpack.c.b16 %v1062, %v1060
          %v1113 = vpack.c.b16 %v1063, %v1061
          %v1114 = vpack.c.b16 %v1066, %v1064
          %v1115 = vpack.c.b16 %v1067, %v1065
          %v1116 = vpack.c.b16 %v1070, %v1068
          %v1117 = vpack.c.b16 %v1071, %v1069
          %v1118 = vpack.c.b16 %v1074, %v1072
          %v1119 = vpack.c.b16 %v1075, %v1073
          %v1120 = vpack.c.b16 %v1078, %v1076
          %v1121 = vpack.c.b16 %v1079, %v1077
          %v1122 = vpack.c.b16 %v1082, %v1080
          %v1123 = vpack.c.b16 %v1083, %v1081
          %v1124 = vpack.c.b16 %v1086, %v1084
          %v1125 = vpack.c.b16 %v1087, %v1085
          %v1126 = vpack.c.b16 %v1090, %v1088
          %v1127 = vpack.c.b16 %v1091, %v1089
          %v1128 = vpack.c.b16 %v1094, %v1092
          %v1129 = vpack.c.b16 %v1095, %v1093
          %v1130 = vpack.c.b16 %v1098, %v1096
          %v1131 = vpack.c.b16 %v1099, %v1097
          %1164 = vmatprep.subr.bf16.mxu0 %v1101
          %1165 = vmatpush1.bf16.msra.mxu0 %v1100
          %1166 = vmatprep.subr.bf16.mxu0 %v1103
          %1167 = vmatpush1.bf16.msra.mxu0 %v1102
          %1168 = vmatprep.subr.bf16.mxu0 %v1105
          %1169 = vmatpush1.bf16.msra.mxu0 %v1104
          %1170 = vmatprep.subr.bf16.mxu0 %v1107
          %1171 = vmatpush1.bf16.msra.mxu0 %v1106
          %1172 = vmatprep.subr.bf16.mxu0 %v1109
          %1173 = vmatpush1.bf16.msra.mxu0 %v1108
          %1174 = vmatprep.subr.bf16.mxu0 %v1111
          %1175 = vmatpush1.bf16.msra.mxu0 %v1110
          %1176 = vmatprep.subr.bf16.mxu0 %v1113
          %1177 = vmatpush1.bf16.msra.mxu0 %v1112
          %1178 = vmatprep.subr.bf16.mxu0 %v1115
          %1179 = vmatpush1.bf16.msra.mxu0 %v1114
          %1180 = vmatprep.subr.bf16.mxu0 %v1117
          %1181 = vmatpush1.bf16.msra.mxu0 %v1116
          %1182 = vmatprep.subr.bf16.mxu0 %v1119
          %1183 = vmatpush1.bf16.msra.mxu0 %v1118
          %1184 = vmatprep.subr.bf16.mxu0 %v1121
          %1185 = vmatpush1.bf16.msra.mxu0 %v1120
          %1186 = vmatprep.subr.bf16.mxu0 %v1123
          %1187 = vmatpush1.bf16.msra.mxu0 %v1122
          %1188 = vmatprep.subr.bf16.mxu0 %v1125
          %1189 = vmatpush1.bf16.msra.mxu0 %v1124
          %1190 = vmatprep.subr.bf16.mxu0 %v1127
          %1191 = vmatpush1.bf16.msra.mxu0 %v1126
          %1192 = vmatprep.subr.bf16.mxu0 %v1129
          %1193 = vmatpush1.bf16.msra.mxu0 %v1128
          %1194 = vmatprep.subr.bf16.mxu0 %v1131
          %1195 = vmatpush1.bf16.msra.mxu0 %v1130
          %1196 = vmatprep.mubr.bf16.mxu0 %v929
          %1197 = vmatmul.mubr.bf16.gmra.mrb[0].mxu0 %v928
          %v1198 = vpop.f32.mrb[0].mxu0
          %v1199 = vadd.f32 %v997, %v1198
          %v1200 = vpop.f32.mrb[0].mxu0
          %v1201 = vadd.f32 %v1001, %v1200
          %v1202 = vpop.f32.mrb[0].mxu0
          %v1203 = vadd.f32 %v997, %v1202
          %v1204 = vpop.f32.mrb[0].mxu0
          %v1205 = vadd.f32 %v1001, %v1204
          %1206 = vmatprep.mubr.bf16.mxu0 %v931
          %1207 = vmatmul.mubr.bf16.gmra.mrb[0].mxu0 %v930
          %v1208 = vpop.f32.mrb[0].mxu0
          %v1209 = vadd.f32 %v997, %v1208
          %v1210 = vpop.f32.mrb[0].mxu0
          %v1211 = vadd.f32 %v1001, %v1210
          %v1212 = vpop.f32.mrb[0].mxu0
          %v1213 = vadd.f32 %v997, %v1212
          %v1214 = vpop.f32.mrb[0].mxu0
          %v1215 = vadd.f32 %v1001, %v1214
          %1216 = vmatprep.mubr.bf16.mxu0 %v933
          %1217 = vmatmul.mubr.bf16.gmra.mrb[0].mxu0 %v932
          %v1218 = vpop.f32.mrb[0].mxu0
          %v1219 = vadd.f32 %v997, %v1218
          %v1220 = vpop.f32.mrb[0].mxu0
          %v1221 = vadd.f32 %v1001, %v1220
          %v1222 = vpop.f32.mrb[0].mxu0
          %v1223 = vadd.f32 %v997, %v1222
          %v1224 = vpop.f32.mrb[0].mxu0
          %v1225 = vadd.f32 %v1001, %v1224
          %1226 = vmatprep.mubr.bf16.mxu0 %v935
          %1227 = vmatmul.mubr.bf16.gmra.mrb[0].mxu0 %v934
          %v1228 = vpop.f32.mrb[0].mxu0
          %v1229 = vadd.f32 %v997, %v1228
          %v1230 = vpop.f32.mrb[0].mxu0
          %v1231 = vadd.f32 %v1001, %v1230
          %v1232 = vpop.f32.mrb[0].mxu0
          %v1233 = vadd.f32 %v997, %v1232
          %v1234 = vpop.f32.mrb[0].mxu0
          %v1235 = vadd.f32 %v1001, %v1234
          %1236 = vmatprep.mubr.bf16.mxu0 %v937
          %1237 = vmatmul.mubr.bf16.gmra.mrb[0].mxu0 %v936
          %v1238 = vpop.f32.mrb[0].mxu0
          %v1239 = vadd.f32 %v997, %v1238
          %v1240 = vpop.f32.mrb[0].mxu0
          %v1241 = vadd.f32 %v1001, %v1240
          %v1242 = vpop.f32.mrb[0].mxu0
          %v1243 = vadd.f32 %v997, %v1242
          %v1244 = vpop.f32.mrb[0].mxu0
          %v1245 = vadd.f32 %v1001, %v1244
          %1246 = vmatprep.mubr.bf16.mxu0 %v939
          %1247 = vmatmul.mubr.bf16.gmra.mrb[0].mxu0 %v938
          %v1248 = vpop.f32.mrb[0].mxu0
          %v1249 = vadd.f32 %v997, %v1248
          %v1250 = vpop.f32.mrb[0].mxu0
          %v1251 = vadd.f32 %v1001, %v1250
          %v1252 = vpop.f32.mrb[0].mxu0
          %v1253 = vadd.f32 %v997, %v1252
          %v1254 = vpop.f32.mrb[0].mxu0
          %v1255 = vadd.f32 %v1001, %v1254
          %1256 = vmatprep.mubr.bf16.mxu0 %v941
          %1257 = vmatmul.mubr.bf16.gmra.mrb[0].mxu0 %v940
          %v1258 = vpop.f32.mrb[0].mxu0
          %v1259 = vadd.f32 %v997, %v1258
          %v1260 = vpop.f32.mrb[0].mxu0
          %v1261 = vadd.f32 %v1001, %v1260
          %v1262 = vpop.f32.mrb[0].mxu0
          %v1263 = vadd.f32 %v997, %v1262
          %v1264 = vpop.f32.mrb[0].mxu0
          %v1265 = vadd.f32 %v1001, %v1264
          %1266 = vmatprep.mubr.bf16.mxu0 %v943
          %1267 = vmatmul.mubr.bf16.gmra.mrb[0].mxu0 %v942
          %v1268 = vpop.f32.mrb[0].mxu0
          %v1269 = vadd.f32 %v997, %v1268
          %v1270 = vpop.f32.mrb[0].mxu0
          %v1271 = vadd.f32 %v1001, %v1270
          %v1272 = vpop.f32.mrb[0].mxu0
          %v1273 = vadd.f32 %v997, %v1272
          %v1274 = vpop.f32.mrb[0].mxu0
          %v1275 = vadd.f32 %v1001, %v1274
          %1276 = vmatprep.mubr.bf16.mxu0 %v945
          %1277 = vmatmul.mubr.bf16.gmra.mrb[0].mxu0 %v944
          %v1278 = vpop.f32.mrb[0].mxu0
          %v1279 = vadd.f32 %v997, %v1278
          %v1280 = vpop.f32.mrb[0].mxu0
          %v1281 = vadd.f32 %v1001, %v1280
          %v1282 = vpop.f32.mrb[0].mxu0
          %v1283 = vadd.f32 %v997, %v1282
          %v1284 = vpop.f32.mrb[0].mxu0
          %v1285 = vadd.f32 %v1001, %v1284
          %1286 = vmatprep.mubr.bf16.mxu0 %v947
          %1287 = vmatmul.mubr.bf16.gmra.mrb[0].mxu0 %v946
          %v1288 = vpop.f32.mrb[0].mxu0
          %v1289 = vadd.f32 %v997, %v1288
          %v1290 = vpop.f32.mrb[0].mxu0
          %v1291 = vadd.f32 %v1001, %v1290
          %v1292 = vpop.f32.mrb[0].mxu0
          %v1293 = vadd.f32 %v997, %v1292
          %v1294 = vpop.f32.mrb[0].mxu0
          %v1295 = vadd.f32 %v1001, %v1294
          %1296 = vmatprep.mubr.bf16.mxu0 %v949
          %1297 = vmatmul.mubr.bf16.gmra.mrb[0].mxu0 %v948
          %v1298 = vpop.f32.mrb[0].mxu0
          %v1299 = vadd.f32 %v997, %v1298
          %v1300 = vpop.f32.mrb[0].mxu0
          %v1301 = vadd.f32 %v1001, %v1300
          %v1302 = vpop.f32.mrb[0].mxu0
          %v1303 = vadd.f32 %v997, %v1302
          %v1304 = vpop.f32.mrb[0].mxu0
          %v1305 = vadd.f32 %v1001, %v1304
          %1306 = vmatprep.mubr.bf16.mxu0 %v951
          %1307 = vmatmul.mubr.bf16.gmra.mrb[0].mxu0 %v950
          %v1308 = vpop.f32.mrb[0].mxu0
          %v1309 = vadd.f32 %v997, %v1308
          %v1310 = vpop.f32.mrb[0].mxu0
          %v1311 = vadd.f32 %v1001, %v1310
          %v1312 = vpop.f32.mrb[0].mxu0
          %v1313 = vadd.f32 %v997, %v1312
          %v1314 = vpop.f32.mrb[0].mxu0
          %v1315 = vadd.f32 %v1001, %v1314
          %1316 = vmatprep.mubr.bf16.mxu0 %v953
          %1317 = vmatmul.mubr.bf16.gmra.mrb[0].mxu0 %v952
          %v1318 = vpop.f32.mrb[0].mxu0
          %v1319 = vadd.f32 %v997, %v1318
          %v1320 = vpop.f32.mrb[0].mxu0
          %v1321 = vadd.f32 %v1001, %v1320
          %v1322 = vpop.f32.mrb[0].mxu0
          %v1323 = vadd.f32 %v997, %v1322
          %v1324 = vpop.f32.mrb[0].mxu0
          %v1325 = vadd.f32 %v1001, %v1324
          %1326 = vmatprep.mubr.bf16.mxu0 %v955
          %1327 = vmatmul.mubr.bf16.gmra.mrb[0].mxu0 %v954
          %v1328 = vpop.f32.mrb[0].mxu0
          %v1329 = vadd.f32 %v997, %v1328
          %v1330 = vpop.f32.mrb[0].mxu0
          %v1331 = vadd.f32 %v1001, %v1330
          %v1332 = vpop.f32.mrb[0].mxu0
          %v1333 = vadd.f32 %v997, %v1332
          %v1334 = vpop.f32.mrb[0].mxu0
          %v1335 = vadd.f32 %v1001, %v1334
          %1336 = vmatprep.mubr.bf16.mxu0 %v957
          %1337 = vmatmul.mubr.bf16.gmra.mrb[0].mxu0 %v956
          %v1338 = vpop.f32.mrb[0].mxu0
          %v1339 = vadd.f32 %v997, %v1338
          %v1340 = vpop.f32.mrb[0].mxu0
          %v1341 = vadd.f32 %v1001, %v1340
          %v1342 = vpop.f32.mrb[0].mxu0
          %v1343 = vadd.f32 %v997, %v1342
          %v1344 = vpop.f32.mrb[0].mxu0
          %v1345 = vadd.f32 %v1001, %v1344
          %1346 = vmatprep.mubr.bf16.mxu0 %v959
          %1347 = vmatmul.mubr.bf16.gmra.mrb[0].mxu0 %v958
          %v1348 = vpop.f32.mrb[0].mxu0
          %v1349 = vadd.f32 %v997, %v1348
          %v1350 = vpop.f32.mrb[0].mxu0
          %v1351 = vadd.f32 %v1001, %v1350
          %v1352 = vpop.f32.mrb[0].mxu0
          %v1353 = vadd.f32 %v997, %v1352
          %v1354 = vpop.f32.mrb[0].mxu0
          %v1355 = vadd.f32 %v1001, %v1354
          %1356 = vdwg.mxu0
          %v1357 = vld [vmem:[#allocation16] sm:$0xff]
          %v1358 = vld [vmem:[#allocation16 + $0x8] sm:$0xff]
          %v1359 = vld [vmem:[#allocation16 + $0x10] sm:$0xff]
          %v1360 = vld [vmem:[#allocation16 + $0x18] sm:$0xff]
          %v1361 = vld [vmem:[#allocation16 + $0x20] sm:$0xff]
          %v1362 = vld [vmem:[#allocation16 + $0x28] sm:$0xff]
          %v1363 = vld [vmem:[#allocation16 + $0x30] sm:$0xff]
          %v1364 = vld [vmem:[#allocation16 + $0x38] sm:$0xff]
          %v1365 = vld [vmem:[#allocation16 + $0x40] sm:$0xff]
          %v1366 = vld [vmem:[#allocation16 + $0x48] sm:$0xff]
          %v1367 = vld [vmem:[#allocation16 + $0x50] sm:$0xff]
          %v1368 = vld [vmem:[#allocation16 + $0x58] sm:$0xff]
          %v1369 = vld [vmem:[#allocation16 + $0x60] sm:$0xff]
          %v1370 = vld [vmem:[#allocation16 + $0x68] sm:$0xff]
          %v1371 = vld [vmem:[#allocation16 + $0x70] sm:$0xff]
          %v1372 = vld [vmem:[#allocation16 + $0x78] sm:$0xff]
          %v1373 = vld [vmem:[#allocation16 + $0x80] sm:$0xff]
          %v1374 = vld [vmem:[#allocation16 + $0x88] sm:$0xff]
          %v1375 = vld [vmem:[#allocation16 + $0x90] sm:$0xff]
          %v1376 = vld [vmem:[#allocation16 + $0x98] sm:$0xff]
          %v1377 = vld [vmem:[#allocation16 + $0xa0] sm:$0xff]
          %v1378 = vld [vmem:[#allocation16 + $0xa8] sm:$0xff]
          %v1379 = vld [vmem:[#allocation16 + $0xb0] sm:$0xff]
          %v1380 = vld [vmem:[#allocation16 + $0xb8] sm:$0xff]
          %v1381 = vld [vmem:[#allocation16 + $0xc0] sm:$0xff]
          %v1382 = vld [vmem:[#allocation16 + $0xc8] sm:$0xff]
          %v1383 = vld [vmem:[#allocation16 + $0xd0] sm:$0xff]
          %v1384 = vld [vmem:[#allocation16 + $0xd8] sm:$0xff]
          %v1385 = vld [vmem:[#allocation16 + $0xe0] sm:$0xff]
          %v1386 = vld [vmem:[#allocation16 + $0xe8] sm:$0xff]
          %v1387 = vld [vmem:[#allocation16 + $0xf0] sm:$0xff]
          %v1388 = vld [vmem:[#allocation16 + $0xf8] sm:$0xff]
          %v1389 = vld [vmem:[#allocation17] sm:$0x3]
          %v1391 = vlaneseq
          %v1392 = vshrl.u32 %v1391, 7
          %v1393 = vsub.s32 0, %v1392
          %v1394 = vrot.slane %v1389, %v1393
          %v1395 = vlaneseq
          %v1396 = vshrl.u32 %v1395, 7
          %v1397 = vsub.s32 1, %v1396
          %v1398 = vrot.slane %v1389, %v1397
          %v1433 = vunpack.c.l.b16 %v1357
          %v1434 = vunpack.c.h.b16 %v1357
          %v1435 = vunpack.c.l.b16 %v1358
          %v1436 = vunpack.c.h.b16 %v1358
          %v1437 = vunpack.c.l.b16 %v1359
          %v1438 = vunpack.c.h.b16 %v1359
          %v1439 = vunpack.c.l.b16 %v1360
          %v1440 = vunpack.c.h.b16 %v1360
          %v1441 = vunpack.c.l.b16 %v1361
          %v1442 = vunpack.c.h.b16 %v1361
          %v1443 = vunpack.c.l.b16 %v1362
          %v1444 = vunpack.c.h.b16 %v1362
          %v1445 = vunpack.c.l.b16 %v1363
          %v1446 = vunpack.c.h.b16 %v1363
          %v1447 = vunpack.c.l.b16 %v1364
          %v1448 = vunpack.c.h.b16 %v1364
          %v1449 = vunpack.c.l.b16 %v1365
          %v1450 = vunpack.c.h.b16 %v1365
          %v1451 = vunpack.c.l.b16 %v1366
          %v1452 = vunpack.c.h.b16 %v1366
          %v1453 = vunpack.c.l.b16 %v1367
          %v1454 = vunpack.c.h.b16 %v1367
          %v1455 = vunpack.c.l.b16 %v1368
          %v1456 = vunpack.c.h.b16 %v1368
          %v1457 = vunpack.c.l.b16 %v1369
          %v1458 = vunpack.c.h.b16 %v1369
          %v1459 = vunpack.c.l.b16 %v1370
          %v1460 = vunpack.c.h.b16 %v1370
          %v1461 = vunpack.c.l.b16 %v1371
          %v1462 = vunpack.c.h.b16 %v1371
          %v1463 = vunpack.c.l.b16 %v1372
          %v1464 = vunpack.c.h.b16 %v1372
          %v1465 = vunpack.c.l.b16 %v1373
          %v1466 = vunpack.c.h.b16 %v1373
          %v1467 = vunpack.c.l.b16 %v1374
          %v1468 = vunpack.c.h.b16 %v1374
          %v1469 = vunpack.c.l.b16 %v1375
          %v1470 = vunpack.c.h.b16 %v1375
          %v1471 = vunpack.c.l.b16 %v1376
          %v1472 = vunpack.c.h.b16 %v1376
          %v1473 = vunpack.c.l.b16 %v1377
          %v1474 = vunpack.c.h.b16 %v1377
          %v1475 = vunpack.c.l.b16 %v1378
          %v1476 = vunpack.c.h.b16 %v1378
          %v1477 = vunpack.c.l.b16 %v1379
          %v1478 = vunpack.c.h.b16 %v1379
          %v1479 = vunpack.c.l.b16 %v1380
          %v1480 = vunpack.c.h.b16 %v1380
          %v1481 = vunpack.c.l.b16 %v1381
          %v1482 = vunpack.c.h.b16 %v1381
          %v1483 = vunpack.c.l.b16 %v1382
          %v1484 = vunpack.c.h.b16 %v1382
          %v1485 = vunpack.c.l.b16 %v1383
          %v1486 = vunpack.c.h.b16 %v1383
          %v1487 = vunpack.c.l.b16 %v1384
          %v1488 = vunpack.c.h.b16 %v1384
          %v1489 = vunpack.c.l.b16 %v1385
          %v1490 = vunpack.c.h.b16 %v1385
          %v1491 = vunpack.c.l.b16 %v1386
          %v1492 = vunpack.c.h.b16 %v1386
          %v1493 = vunpack.c.l.b16 %v1387
          %v1494 = vunpack.c.h.b16 %v1387
          %v1495 = vunpack.c.l.b16 %v1388
          %v1496 = vunpack.c.h.b16 %v1388
          %v1497 = vpack.c.b16 %v1435, %v1433
          %v1498 = vpack.c.b16 %v1436, %v1434
          %v1499 = vpack.c.b16 %v1439, %v1437
          %v1500 = vpack.c.b16 %v1440, %v1438
          %v1501 = vpack.c.b16 %v1443, %v1441
          %v1502 = vpack.c.b16 %v1444, %v1442
          %v1503 = vpack.c.b16 %v1447, %v1445
          %v1504 = vpack.c.b16 %v1448, %v1446
          %v1505 = vpack.c.b16 %v1451, %v1449
          %v1506 = vpack.c.b16 %v1452, %v1450
          %v1507 = vpack.c.b16 %v1455, %v1453
          %v1508 = vpack.c.b16 %v1456, %v1454
          %v1509 = vpack.c.b16 %v1459, %v1457
          %v1510 = vpack.c.b16 %v1460, %v1458
          %v1511 = vpack.c.b16 %v1463, %v1461
          %v1512 = vpack.c.b16 %v1464, %v1462
          %v1513 = vpack.c.b16 %v1467, %v1465
          %v1514 = vpack.c.b16 %v1468, %v1466
          %v1515 = vpack.c.b16 %v1471, %v1469
          %v1516 = vpack.c.b16 %v1472, %v1470
          %v1517 = vpack.c.b16 %v1475, %v1473
          %v1518 = vpack.c.b16 %v1476, %v1474
          %v1519 = vpack.c.b16 %v1479, %v1477
          %v1520 = vpack.c.b16 %v1480, %v1478
          %v1521 = vpack.c.b16 %v1483, %v1481
          %v1522 = vpack.c.b16 %v1484, %v1482
          %v1523 = vpack.c.b16 %v1487, %v1485
          %v1524 = vpack.c.b16 %v1488, %v1486
          %v1525 = vpack.c.b16 %v1491, %v1489
          %v1526 = vpack.c.b16 %v1492, %v1490
          %v1527 = vpack.c.b16 %v1495, %v1493
          %v1528 = vpack.c.b16 %v1496, %v1494
          %1561 = vmatprep.subr.bf16.mxu0 %v1498
          %1562 = vmatpush1.bf16.msra.mxu0 %v1497
          %1563 = vmatprep.subr.bf16.mxu0 %v1500
          %1564 = vmatpush1.bf16.msra.mxu0 %v1499
          %1565 = vmatprep.subr.bf16.mxu0 %v1502
          %1566 = vmatpush1.bf16.msra.mxu0 %v1501
          %1567 = vmatprep.subr.bf16.mxu0 %v1504
          %1568 = vmatpush1.bf16.msra.mxu0 %v1503
          %1569 = vmatprep.subr.bf16.mxu0 %v1506
          %1570 = vmatpush1.bf16.msra.mxu0 %v1505
          %1571 = vmatprep.subr.bf16.mxu0 %v1508
          %1572 = vmatpush1.bf16.msra.mxu0 %v1507
          %1573 = vmatprep.subr.bf16.mxu0 %v1510
          %1574 = vmatpush1.bf16.msra.mxu0 %v1509
          %1575 = vmatprep.subr.bf16.mxu0 %v1512
          %1576 = vmatpush1.bf16.msra.mxu0 %v1511
          %1577 = vmatprep.subr.bf16.mxu0 %v1514
          %1578 = vmatpush1.bf16.msra.mxu0 %v1513
          %1579 = vmatprep.subr.bf16.mxu0 %v1516
          %1580 = vmatpush1.bf16.msra.mxu0 %v1515
          %1581 = vmatprep.subr.bf16.mxu0 %v1518
          %1582 = vmatpush1.bf16.msra.mxu0 %v1517
          %1583 = vmatprep.subr.bf16.mxu0 %v1520
          %1584 = vmatpush1.bf16.msra.mxu0 %v1519
          %1585 = vmatprep.subr.bf16.mxu0 %v1522
          %1586 = vmatpush1.bf16.msra.mxu0 %v1521
          %1587 = vmatprep.subr.bf16.mxu0 %v1524
          %1588 = vmatpush1.bf16.msra.mxu0 %v1523
          %1589 = vmatprep.subr.bf16.mxu0 %v1526
          %1590 = vmatpush1.bf16.msra.mxu0 %v1525
          %1591 = vmatprep.subr.bf16.mxu0 %v1528
          %1592 = vmatpush1.bf16.msra.mxu0 %v1527
          %1593 = vmatprep.mubr.bf16.mxu0 %v929
          %1594 = vmatmul.mubr.bf16.gmra.mrb[0].mxu0 %v928
          %v1595 = vpop.f32.mrb[0].mxu0
          %v1596 = vadd.f32 %v1394, %v1595
          %v1597 = vpop.f32.mrb[0].mxu0
          %v1598 = vadd.f32 %v1398, %v1597
          %v1599 = vpop.f32.mrb[0].mxu0
          %v1600 = vadd.f32 %v1394, %v1599
          %v1601 = vpop.f32.mrb[0].mxu0
          %v1602 = vadd.f32 %v1398, %v1601
          %1603 = vmatprep.mubr.bf16.mxu0 %v931
          %1604 = vmatmul.mubr.bf16.gmra.mrb[0].mxu0 %v930
          %v1605 = vpop.f32.mrb[0].mxu0
          %v1606 = vadd.f32 %v1394, %v1605
          %v1607 = vpop.f32.mrb[0].mxu0
          %v1608 = vadd.f32 %v1398, %v1607
          %v1609 = vpop.f32.mrb[0].mxu0
          %v1610 = vadd.f32 %v1394, %v1609
          %v1611 = vpop.f32.mrb[0].mxu0
          %v1612 = vadd.f32 %v1398, %v1611
          %1613 = vmatprep.mubr.bf16.mxu0 %v933
          %1614 = vmatmul.mubr.bf16.gmra.mrb[0].mxu0 %v932
          %v1615 = vpop.f32.mrb[0].mxu0
          %v1616 = vadd.f32 %v1394, %v1615
          %v1617 = vpop.f32.mrb[0].mxu0
          %v1618 = vadd.f32 %v1398, %v1617
          %v1619 = vpop.f32.mrb[0].mxu0
          %v1620 = vadd.f32 %v1394, %v1619
          %v1621 = vpop.f32.mrb[0].mxu0
          %v1622 = vadd.f32 %v1398, %v1621
          %1623 = vmatprep.mubr.bf16.mxu0 %v935
          %1624 = vmatmul.mubr.bf16.gmra.mrb[0].mxu0 %v934
          %v1625 = vpop.f32.mrb[0].mxu0
          %v1626 = vadd.f32 %v1394, %v1625
          %v1627 = vpop.f32.mrb[0].mxu0
          %v1628 = vadd.f32 %v1398, %v1627
          %v1629 = vpop.f32.mrb[0].mxu0
          %v1630 = vadd.f32 %v1394, %v1629
          %v1631 = vpop.f32.mrb[0].mxu0
          %v1632 = vadd.f32 %v1398, %v1631
          %1633 = vmatprep.mubr.bf16.mxu0 %v937
          %1634 = vmatmul.mubr.bf16.gmra.mrb[0].mxu0 %v936
          %v1635 = vpop.f32.mrb[0].mxu0
          %v1636 = vadd.f32 %v1394, %v1635
          %v1637 = vpop.f32.mrb[0].mxu0
          %v1638 = vadd.f32 %v1398, %v1637
          %v1639 = vpop.f32.mrb[0].mxu0
          %v1640 = vadd.f32 %v1394, %v1639
          %v1641 = vpop.f32.mrb[0].mxu0
          %v1642 = vadd.f32 %v1398, %v1641
          %1643 = vmatprep.mubr.bf16.mxu0 %v939
          %1644 = vmatmul.mubr.bf16.gmra.mrb[0].mxu0 %v938
          %v1645 = vpop.f32.mrb[0].mxu0
          %v1646 = vadd.f32 %v1394, %v1645
          %v1647 = vpop.f32.mrb[0].mxu0
          %v1648 = vadd.f32 %v1398, %v1647
          %v1649 = vpop.f32.mrb[0].mxu0
          %v1650 = vadd.f32 %v1394, %v1649
          %v1651 = vpop.f32.mrb[0].mxu0
          %v1652 = vadd.f32 %v1398, %v1651
          %1653 = vmatprep.mubr.bf16.mxu0 %v941
          %1654 = vmatmul.mubr.bf16.gmra.mrb[0].mxu0 %v940
          %v1655 = vpop.f32.mrb[0].mxu0
          %v1656 = vadd.f32 %v1394, %v1655
          %v1657 = vpop.f32.mrb[0].mxu0
          %v1658 = vadd.f32 %v1398, %v1657
          %v1659 = vpop.f32.mrb[0].mxu0
          %v1660 = vadd.f32 %v1394, %v1659
          %v1661 = vpop.f32.mrb[0].mxu0
          %v1662 = vadd.f32 %v1398, %v1661
          %1663 = vmatprep.mubr.bf16.mxu0 %v943
          %1664 = vmatmul.mubr.bf16.gmra.mrb[0].mxu0 %v942
          %v1665 = vpop.f32.mrb[0].mxu0
          %v1666 = vadd.f32 %v1394, %v1665
          %v1667 = vpop.f32.mrb[0].mxu0
          %v1668 = vadd.f32 %v1398, %v1667
          %v1669 = vpop.f32.mrb[0].mxu0
          %v1670 = vadd.f32 %v1394, %v1669
          %v1671 = vpop.f32.mrb[0].mxu0
          %v1672 = vadd.f32 %v1398, %v1671
          %1673 = vmatprep.mubr.bf16.mxu0 %v945
          %1674 = vmatmul.mubr.bf16.gmra.mrb[0].mxu0 %v944
          %v1675 = vpop.f32.mrb[0].mxu0
          %v1676 = vadd.f32 %v1394, %v1675
          %v1677 = vpop.f32.mrb[0].mxu0
          %v1678 = vadd.f32 %v1398, %v1677
          %v1679 = vpop.f32.mrb[0].mxu0
          %v1680 = vadd.f32 %v1394, %v1679
          %v1681 = vpop.f32.mrb[0].mxu0
          %v1682 = vadd.f32 %v1398, %v1681
          %1683 = vmatprep.mubr.bf16.mxu0 %v947
          %1684 = vmatmul.mubr.bf16.gmra.mrb[0].mxu0 %v946
          %v1685 = vpop.f32.mrb[0].mxu0
          %v1686 = vadd.f32 %v1394, %v1685
          %v1687 = vpop.f32.mrb[0].mxu0
          %v1688 = vadd.f32 %v1398, %v1687
          %v1689 = vpop.f32.mrb[0].mxu0
          %v1690 = vadd.f32 %v1394, %v1689
          %v1691 = vpop.f32.mrb[0].mxu0
          %v1692 = vadd.f32 %v1398, %v1691
          %1693 = vmatprep.mubr.bf16.mxu0 %v949
          %1694 = vmatmul.mubr.bf16.gmra.mrb[0].mxu0 %v948
          %v1695 = vpop.f32.mrb[0].mxu0
          %v1696 = vadd.f32 %v1394, %v1695
          %v1697 = vpop.f32.mrb[0].mxu0
          %v1698 = vadd.f32 %v1398, %v1697
          %v1699 = vpop.f32.mrb[0].mxu0
          %v1700 = vadd.f32 %v1394, %v1699
          %v1701 = vpop.f32.mrb[0].mxu0
          %v1702 = vadd.f32 %v1398, %v1701
          %1703 = vmatprep.mubr.bf16.mxu0 %v951
          %1704 = vmatmul.mubr.bf16.gmra.mrb[0].mxu0 %v950
          %v1705 = vpop.f32.mrb[0].mxu0
          %v1706 = vadd.f32 %v1394, %v1705
          %v1707 = vpop.f32.mrb[0].mxu0
          %v1708 = vadd.f32 %v1398, %v1707
          %v1709 = vpop.f32.mrb[0].mxu0
          %v1710 = vadd.f32 %v1394, %v1709
          %v1711 = vpop.f32.mrb[0].mxu0
          %v1712 = vadd.f32 %v1398, %v1711
          %1713 = vmatprep.mubr.bf16.mxu0 %v953
          %1714 = vmatmul.mubr.bf16.gmra.mrb[0].mxu0 %v952
          %v1715 = vpop.f32.mrb[0].mxu0
          %v1716 = vadd.f32 %v1394, %v1715
          %v1717 = vpop.f32.mrb[0].mxu0
          %v1718 = vadd.f32 %v1398, %v1717
          %v1719 = vpop.f32.mrb[0].mxu0
          %v1720 = vadd.f32 %v1394, %v1719
          %v1721 = vpop.f32.mrb[0].mxu0
          %v1722 = vadd.f32 %v1398, %v1721
          %1723 = vmatprep.mubr.bf16.mxu0 %v955
          %1724 = vmatmul.mubr.bf16.gmra.mrb[0].mxu0 %v954
          %v1725 = vpop.f32.mrb[0].mxu0
          %v1726 = vadd.f32 %v1394, %v1725
          %v1727 = vpop.f32.mrb[0].mxu0
          %v1728 = vadd.f32 %v1398, %v1727
          %v1729 = vpop.f32.mrb[0].mxu0
          %v1730 = vadd.f32 %v1394, %v1729
          %v1731 = vpop.f32.mrb[0].mxu0
          %v1732 = vadd.f32 %v1398, %v1731
          %1733 = vmatprep.mubr.bf16.mxu0 %v957
          %1734 = vmatmul.mubr.bf16.gmra.mrb[0].mxu0 %v956
          %v1735 = vpop.f32.mrb[0].mxu0
          %v1736 = vadd.f32 %v1394, %v1735
          %v1737 = vpop.f32.mrb[0].mxu0
          %v1738 = vadd.f32 %v1398, %v1737
          %v1739 = vpop.f32.mrb[0].mxu0
          %v1740 = vadd.f32 %v1394, %v1739
          %v1741 = vpop.f32.mrb[0].mxu0
          %v1742 = vadd.f32 %v1398, %v1741
          %1743 = vmatprep.mubr.bf16.mxu0 %v959
          %1744 = vmatmul.mubr.bf16.gmra.mrb[0].mxu0 %v958
          %v1745 = vpop.f32.mrb[0].mxu0
          %v1746 = vadd.f32 %v1394, %v1745
          %v1747 = vpop.f32.mrb[0].mxu0
          %v1748 = vadd.f32 %v1398, %v1747
          %v1749 = vpop.f32.mrb[0].mxu0
          %v1750 = vadd.f32 %v1394, %v1749
          %v1751 = vpop.f32.mrb[0].mxu0
          %v1752 = vadd.f32 %v1398, %v1751
          %1753 = vdwg.mxu0
          %v1754 = vpack.c.bf16 %v1203, %v1199
          %v1755 = vpack.c.bf16 %v1205, %v1201
          %v1756 = vpack.c.bf16 %v1213, %v1209
          %v1757 = vpack.c.bf16 %v1215, %v1211
          %v1758 = vpack.c.bf16 %v1223, %v1219
          %v1759 = vpack.c.bf16 %v1225, %v1221
          %v1760 = vpack.c.bf16 %v1233, %v1229
          %v1761 = vpack.c.bf16 %v1235, %v1231
          %v1762 = vpack.c.bf16 %v1243, %v1239
          %v1763 = vpack.c.bf16 %v1245, %v1241
          %v1764 = vpack.c.bf16 %v1253, %v1249
          %v1765 = vpack.c.bf16 %v1255, %v1251
          %v1766 = vpack.c.bf16 %v1263, %v1259
          %v1767 = vpack.c.bf16 %v1265, %v1261
          %v1768 = vpack.c.bf16 %v1273, %v1269
          %v1769 = vpack.c.bf16 %v1275, %v1271
          %v1770 = vpack.c.bf16 %v1283, %v1279
          %v1771 = vpack.c.bf16 %v1285, %v1281
          %v1772 = vpack.c.bf16 %v1293, %v1289
          %v1773 = vpack.c.bf16 %v1295, %v1291
          %v1774 = vpack.c.bf16 %v1303, %v1299
          %v1775 = vpack.c.bf16 %v1305, %v1301
          %v1776 = vpack.c.bf16 %v1313, %v1309
          %v1777 = vpack.c.bf16 %v1315, %v1311
          %v1778 = vpack.c.bf16 %v1323, %v1319
          %v1779 = vpack.c.bf16 %v1325, %v1321
          %v1780 = vpack.c.bf16 %v1333, %v1329
          %v1781 = vpack.c.bf16 %v1335, %v1331
          %v1782 = vpack.c.bf16 %v1343, %v1339
          %v1783 = vpack.c.bf16 %v1345, %v1341
          %v1784 = vpack.c.bf16 %v1353, %v1349
          %v1785 = vpack.c.bf16 %v1355, %v1351
          %1786 = vst [vmem:[#allocation2] sm:$0xff] %v1754
          %1787 = vst [vmem:[#allocation2 + $0x8] sm:$0xff] %v1755
          %1788 = vst [vmem:[#allocation2 + $0x10] sm:$0xff] %v1756
          %1789 = vst [vmem:[#allocation2 + $0x18] sm:$0xff] %v1757
          %1790 = vst [vmem:[#allocation2 + $0x20] sm:$0xff] %v1758
          %1791 = vst [vmem:[#allocation2 + $0x28] sm:$0xff] %v1759
          %1792 = vst [vmem:[#allocation2 + $0x30] sm:$0xff] %v1760
          %1793 = vst [vmem:[#allocation2 + $0x38] sm:$0xff] %v1761
          %1794 = vst [vmem:[#allocation2 + $0x40] sm:$0xff] %v1762
          %1795 = vst [vmem:[#allocation2 + $0x48] sm:$0xff] %v1763
          %1796 = vst [vmem:[#allocation2 + $0x50] sm:$0xff] %v1764
          %1797 = vst [vmem:[#allocation2 + $0x58] sm:$0xff] %v1765
          %1798 = vst [vmem:[#allocation2 + $0x60] sm:$0xff] %v1766
          %1799 = vst [vmem:[#allocation2 + $0x68] sm:$0xff] %v1767
          %1800 = vst [vmem:[#allocation2 + $0x70] sm:$0xff] %v1768
          %1801 = vst [vmem:[#allocation2 + $0x78] sm:$0xff] %v1769
          %1802 = vst [vmem:[#allocation2 + $0x80] sm:$0xff] %v1770
          %1803 = vst [vmem:[#allocation2 + $0x88] sm:$0xff] %v1771
          %1804 = vst [vmem:[#allocation2 + $0x90] sm:$0xff] %v1772
          %1805 = vst [vmem:[#allocation2 + $0x98] sm:$0xff] %v1773
          %1806 = vst [vmem:[#allocation2 + $0xa0] sm:$0xff] %v1774
          %1807 = vst [vmem:[#allocation2 + $0xa8] sm:$0xff] %v1775
          %1808 = vst [vmem:[#allocation2 + $0xb0] sm:$0xff] %v1776
          %1809 = vst [vmem:[#allocation2 + $0xb8] sm:$0xff] %v1777
          %1810 = vst [vmem:[#allocation2 + $0xc0] sm:$0xff] %v1778
          %1811 = vst [vmem:[#allocation2 + $0xc8] sm:$0xff] %v1779
          %1812 = vst [vmem:[#allocation2 + $0xd0] sm:$0xff] %v1780
          %1813 = vst [vmem:[#allocation2 + $0xd8] sm:$0xff] %v1781
          %1814 = vst [vmem:[#allocation2 + $0xe0] sm:$0xff] %v1782
          %1815 = vst [vmem:[#allocation2 + $0xe8] sm:$0xff] %v1783
          %1816 = vst [vmem:[#allocation2 + $0xf0] sm:$0xff] %v1784
          %1817 = vst [vmem:[#allocation2 + $0xf8] sm:$0xff] %v1785
          %v1818 = vpack.c.bf16 %v1600, %v1596
          %v1819 = vpack.c.bf16 %v1602, %v1598
          %v1820 = vpack.c.bf16 %v1610, %v1606
          %v1821 = vpack.c.bf16 %v1612, %v1608
          %v1822 = vpack.c.bf16 %v1620, %v1616
          %v1823 = vpack.c.bf16 %v1622, %v1618
          %v1824 = vpack.c.bf16 %v1630, %v1626
          %v1825 = vpack.c.bf16 %v1632, %v1628
          %v1826 = vpack.c.bf16 %v1640, %v1636
          %v1827 = vpack.c.bf16 %v1642, %v1638
          %v1828 = vpack.c.bf16 %v1650, %v1646
          %v1829 = vpack.c.bf16 %v1652, %v1648
          %v1830 = vpack.c.bf16 %v1660, %v1656
          %v1831 = vpack.c.bf16 %v1662, %v1658
          %v1832 = vpack.c.bf16 %v1670, %v1666
          %v1833 = vpack.c.bf16 %v1672, %v1668
          %v1834 = vpack.c.bf16 %v1680, %v1676
          %v1835 = vpack.c.bf16 %v1682, %v1678
          %v1836 = vpack.c.bf16 %v1690, %v1686
          %v1837 = vpack.c.bf16 %v1692, %v1688
          %v1838 = vpack.c.bf16 %v1700, %v1696
          %v1839 = vpack.c.bf16 %v1702, %v1698
          %v1840 = vpack.c.bf16 %v1710, %v1706
          %v1841 = vpack.c.bf16 %v1712, %v1708
          %v1842 = vpack.c.bf16 %v1720, %v1716
          %v1843 = vpack.c.bf16 %v1722, %v1718
          %v1844 = vpack.c.bf16 %v1730, %v1726
          %v1845 = vpack.c.bf16 %v1732, %v1728
          %v1846 = vpack.c.bf16 %v1740, %v1736
          %v1847 = vpack.c.bf16 %v1742, %v1738
          %v1848 = vpack.c.bf16 %v1750, %v1746
          %v1849 = vpack.c.bf16 %v1752, %v1748
          %1850 = vst [vmem:[#allocation3] sm:$0xff] %v1818
          %1851 = vst [vmem:[#allocation3 + $0x8] sm:$0xff] %v1819
          %1852 = vst [vmem:[#allocation3 + $0x10] sm:$0xff] %v1820
          %1853 = vst [vmem:[#allocation3 + $0x18] sm:$0xff] %v1821
          %1854 = vst [vmem:[#allocation3 + $0x20] sm:$0xff] %v1822
          %1855 = vst [vmem:[#allocation3 + $0x28] sm:$0xff] %v1823
          %1856 = vst [vmem:[#allocation3 + $0x30] sm:$0xff] %v1824
          %1857 = vst [vmem:[#allocation3 + $0x38] sm:$0xff] %v1825
          %1858 = vst [vmem:[#allocation3 + $0x40] sm:$0xff] %v1826
          %1859 = vst [vmem:[#allocation3 + $0x48] sm:$0xff] %v1827
          %1860 = vst [vmem:[#allocation3 + $0x50] sm:$0xff] %v1828
          %1861 = vst [vmem:[#allocation3 + $0x58] sm:$0xff] %v1829
          %1862 = vst [vmem:[#allocation3 + $0x60] sm:$0xff] %v1830
          %1863 = vst [vmem:[#allocation3 + $0x68] sm:$0xff] %v1831
          %1864 = vst [vmem:[#allocation3 + $0x70] sm:$0xff] %v1832
          %1865 = vst [vmem:[#allocation3 + $0x78] sm:$0xff] %v1833
          %1866 = vst [vmem:[#allocation3 + $0x80] sm:$0xff] %v1834
          %1867 = vst [vmem:[#allocation3 + $0x88] sm:$0xff] %v1835
          %1868 = vst [vmem:[#allocation3 + $0x90] sm:$0xff] %v1836
          %1869 = vst [vmem:[#allocation3 + $0x98] sm:$0xff] %v1837
          %1870 = vst [vmem:[#allocation3 + $0xa0] sm:$0xff] %v1838
          %1871 = vst [vmem:[#allocation3 + $0xa8] sm:$0xff] %v1839
          %1872 = vst [vmem:[#allocation3 + $0xb0] sm:$0xff] %v1840
          %1873 = vst [vmem:[#allocation3 + $0xb8] sm:$0xff] %v1841
          %1874 = vst [vmem:[#allocation3 + $0xc0] sm:$0xff] %v1842
          %1875 = vst [vmem:[#allocation3 + $0xc8] sm:$0xff] %v1843
          %1876 = vst [vmem:[#allocation3 + $0xd0] sm:$0xff] %v1844
          %1877 = vst [vmem:[#allocation3 + $0xd8] sm:$0xff] %v1845
          %1878 = vst [vmem:[#allocation3 + $0xe0] sm:$0xff] %v1846
          %1879 = vst [vmem:[#allocation3 + $0xe8] sm:$0xff] %v1847
          %1880 = vst [vmem:[#allocation3 + $0xf0] sm:$0xff] %v1848
          %1881 = vst [vmem:[#allocation3 + $0xf8] sm:$0xff] %v1849
        $region168: #{tpu_custom_call.1} parent=91 // pred_fallthru
          _
        %s1882 = smul.u32 %s51, 128
        %s1883 = sshra.s32 %s1882, 3
        %s1884 = sand.u32 %s1882, 7
        %s1885 = smul.u32 %s1883, 2
        %s1886 = smul.addr %s1885, 8
        %s1887 = scalar_lea.vmem %s727, %s1886 [#allocation5]
        %v1888 = vld [vmem:[%s1887] sm:$0xff]
        %v1889 = vld [vmem:[%s1887 + $0x8] sm:$0xff]
        %v1890 = vld [vmem:[%s1887 + $0x10] sm:$0xff]
        %v1891 = vld [vmem:[%s1887 + $0x18] sm:$0xff]
        %v1892 = vld [vmem:[%s1887 + $0x20] sm:$0xff]
        %v1893 = vld [vmem:[%s1887 + $0x28] sm:$0xff]
        %v1894 = vld [vmem:[%s1887 + $0x30] sm:$0xff]
        %v1895 = vld [vmem:[%s1887 + $0x38] sm:$0xff]
        %v1896 = vld [vmem:[%s1887 + $0x40] sm:$0xff]
        %v1897 = vld [vmem:[%s1887 + $0x48] sm:$0xff]
        %v1898 = vld [vmem:[%s1887 + $0x50] sm:$0xff]
        %v1899 = vld [vmem:[%s1887 + $0x58] sm:$0xff]
        %v1900 = vld [vmem:[%s1887 + $0x60] sm:$0xff]
        %v1901 = vld [vmem:[%s1887 + $0x68] sm:$0xff]
        %v1902 = vld [vmem:[%s1887 + $0x70] sm:$0xff]
        %v1903 = vld [vmem:[%s1887 + $0x78] sm:$0xff]
        %v1904 = vld [vmem:[%s1887 + $0x80] sm:$0xff]
        %v1905 = vld [vmem:[%s1887 + $0x88] sm:$0xff]
        %v1906 = vld [vmem:[%s1887 + $0x90] sm:$0xff]
        %v1907 = vld [vmem:[%s1887 + $0x98] sm:$0xff]
        %v1908 = vld [vmem:[%s1887 + $0xa0] sm:$0xff]
        %v1909 = vld [vmem:[%s1887 + $0xa8] sm:$0xff]
        %v1910 = vld [vmem:[%s1887 + $0xb0] sm:$0xff]
        %v1911 = vld [vmem:[%s1887 + $0xb8] sm:$0xff]
        %v1912 = vld [vmem:[%s1887 + $0xc0] sm:$0xff]
        %v1913 = vld [vmem:[%s1887 + $0xc8] sm:$0xff]
        %v1914 = vld [vmem:[%s1887 + $0xd0] sm:$0xff]
        %v1915 = vld [vmem:[%s1887 + $0xd8] sm:$0xff]
        %v1916 = vld [vmem:[%s1887 + $0xe0] sm:$0xff]
        %v1917 = vld [vmem:[%s1887 + $0xe8] sm:$0xff]
        %v1918 = vld [vmem:[%s1887 + $0xf0] sm:$0xff]
        %v1919 = vld [vmem:[%s1887 + $0xf8] sm:$0xff]
        %v1920 = vpack.c.bf16 %v1890, %v1888
        %v1921 = vpack.c.bf16 %v1891, %v1889
        %v1922 = vpack.c.bf16 %v1894, %v1892
        %v1923 = vpack.c.bf16 %v1895, %v1893
        %v1924 = vpack.c.bf16 %v1898, %v1896
        %v1925 = vpack.c.bf16 %v1899, %v1897
        %v1926 = vpack.c.bf16 %v1902, %v1900
        %v1927 = vpack.c.bf16 %v1903, %v1901
        %v1928 = vpack.c.bf16 %v1906, %v1904
        %v1929 = vpack.c.bf16 %v1907, %v1905
        %v1930 = vpack.c.bf16 %v1910, %v1908
        %v1931 = vpack.c.bf16 %v1911, %v1909
        %v1932 = vpack.c.bf16 %v1914, %v1912
        %v1933 = vpack.c.bf16 %v1915, %v1913
        %v1934 = vpack.c.bf16 %v1918, %v1916
        %v1935 = vpack.c.bf16 %v1919, %v1917
        %v1936 = vld [vmem:[#allocation10] sm:$0xff]
        %v1937 = vld [vmem:[#allocation10 + $0x8] sm:$0xff]
        %v1938 = vld [vmem:[#allocation10 + $0x10] sm:$0xff]
        %v1939 = vld [vmem:[#allocation10 + $0x18] sm:$0xff]
        %v1940 = vld [vmem:[#allocation10 + $0x20] sm:$0xff]
        %v1941 = vld [vmem:[#allocation10 + $0x28] sm:$0xff]
        %v1942 = vld [vmem:[#allocation10 + $0x30] sm:$0xff]
        %v1943 = vld [vmem:[#allocation10 + $0x38] sm:$0xff]
        %v1944 = vld [vmem:[#allocation10 + $0x40] sm:$0xff]
        %v1945 = vld [vmem:[#allocation10 + $0x48] sm:$0xff]
        %v1946 = vld [vmem:[#allocation10 + $0x50] sm:$0xff]
        %v1947 = vld [vmem:[#allocation10 + $0x58] sm:$0xff]
        %v1948 = vld [vmem:[#allocation10 + $0x60] sm:$0xff]
        %v1949 = vld [vmem:[#allocation10 + $0x68] sm:$0xff]
        %v1950 = vld [vmem:[#allocation10 + $0x70] sm:$0xff]
        %v1951 = vld [vmem:[#allocation10 + $0x78] sm:$0xff]
        %v1952 = vld [vmem:[#allocation10 + $0x80] sm:$0xff]
        %v1953 = vld [vmem:[#allocation10 + $0x88] sm:$0xff]
        %v1954 = vld [vmem:[#allocation10 + $0x90] sm:$0xff]
        %v1955 = vld [vmem:[#allocation10 + $0x98] sm:$0xff]
        %v1956 = vld [vmem:[#allocation10 + $0xa0] sm:$0xff]
        %v1957 = vld [vmem:[#allocation10 + $0xa8] sm:$0xff]
        %v1958 = vld [vmem:[#allocation10 + $0xb0] sm:$0xff]
        %v1959 = vld [vmem:[#allocation10 + $0xb8] sm:$0xff]
        %v1960 = vld [vmem:[#allocation10 + $0xc0] sm:$0xff]
        %v1961 = vld [vmem:[#allocation10 + $0xc8] sm:$0xff]
        %v1962 = vld [vmem:[#allocation10 + $0xd0] sm:$0xff]
        %v1963 = vld [vmem:[#allocation10 + $0xd8] sm:$0xff]
        %v1964 = vld [vmem:[#allocation10 + $0xe0] sm:$0xff]
        %v1965 = vld [vmem:[#allocation10 + $0xe8] sm:$0xff]
        %v1966 = vld [vmem:[#allocation10 + $0xf0] sm:$0xff]
        %v1967 = vld [vmem:[#allocation10 + $0xf8] sm:$0xff]
        %v1968 = vld [vmem:[#allocation11] sm:$0x3]
        %v1970 = vlaneseq
        %v1971 = vshrl.u32 %v1970, 7
        %v1972 = vsub.s32 0, %v1971
        %v1973 = vrot.slane %v1968, %v1972
        %v1974 = vlaneseq
        %v1975 = vshrl.u32 %v1974, 7
        %v1976 = vsub.s32 1, %v1975
        %v1977 = vrot.slane %v1968, %v1976
        %v2012 = vunpack.c.l.b16 %v1936
        %v2013 = vunpack.c.h.b16 %v1936
        %v2014 = vunpack.c.l.b16 %v1937
        %v2015 = vunpack.c.h.b16 %v1937
        %v2016 = vunpack.c.l.b16 %v1938
        %v2017 = vunpack.c.h.b16 %v1938
        %v2018 = vunpack.c.l.b16 %v1939
        %v2019 = vunpack.c.h.b16 %v1939
        %v2020 = vunpack.c.l.b16 %v1940
        %v2021 = vunpack.c.h.b16 %v1940
        %v2022 = vunpack.c.l.b16 %v1941
        %v2023 = vunpack.c.h.b16 %v1941
        %v2024 = vunpack.c.l.b16 %v1942
        %v2025 = vunpack.c.h.b16 %v1942
        %v2026 = vunpack.c.l.b16 %v1943
        %v2027 = vunpack.c.h.b16 %v1943
        %v2028 = vunpack.c.l.b16 %v1944
        %v2029 = vunpack.c.h.b16 %v1944
        %v2030 = vunpack.c.l.b16 %v1945
        %v2031 = vunpack.c.h.b16 %v1945
        %v2032 = vunpack.c.l.b16 %v1946
        %v2033 = vunpack.c.h.b16 %v1946
        %v2034 = vunpack.c.l.b16 %v1947
        %v2035 = vunpack.c.h.b16 %v1947
        %v2036 = vunpack.c.l.b16 %v1948
        %v2037 = vunpack.c.h.b16 %v1948
        %v2038 = vunpack.c.l.b16 %v1949
        %v2039 = vunpack.c.h.b16 %v1949
        %v2040 = vunpack.c.l.b16 %v1950
        %v2041 = vunpack.c.h.b16 %v1950
        %v2042 = vunpack.c.l.b16 %v1951
        %v2043 = vunpack.c.h.b16 %v1951
        %v2044 = vunpack.c.l.b16 %v1952
        %v2045 = vunpack.c.h.b16 %v1952
        %v2046 = vunpack.c.l.b16 %v1953
        %v2047 = vunpack.c.h.b16 %v1953
        %v2048 = vunpack.c.l.b16 %v1954
        %v2049 = vunpack.c.h.b16 %v1954
        %v2050 = vunpack.c.l.b16 %v1955
        %v2051 = vunpack.c.h.b16 %v1955
        %v2052 = vunpack.c.l.b16 %v1956
        %v2053 = vunpack.c.h.b16 %v1956
        %v2054 = vunpack.c.l.b16 %v1957
        %v2055 = vunpack.c.h.b16 %v1957
        %v2056 = vunpack.c.l.b16 %v1958
        %v2057 = vunpack.c.h.b16 %v1958
        %v2058 = vunpack.c.l.b16 %v1959
        %v2059 = vunpack.c.h.b16 %v1959
        %v2060 = vunpack.c.l.b16 %v1960
        %v2061 = vunpack.c.h.b16 %v1960
        %v2062 = vunpack.c.l.b16 %v1961
        %v2063 = vunpack.c.h.b16 %v1961
        %v2064 = vunpack.c.l.b16 %v1962
        %v2065 = vunpack.c.h.b16 %v1962
        %v2066 = vunpack.c.l.b16 %v1963
        %v2067 = vunpack.c.h.b16 %v1963
        %v2068 = vunpack.c.l.b16 %v1964
        %v2069 = vunpack.c.h.b16 %v1964
        %v2070 = vunpack.c.l.b16 %v1965
        %v2071 = vunpack.c.h.b16 %v1965
        %v2072 = vunpack.c.l.b16 %v1966
        %v2073 = vunpack.c.h.b16 %v1966
        %v2074 = vunpack.c.l.b16 %v1967
        %v2075 = vunpack.c.h.b16 %v1967
        %v2076 = vpack.c.b16 %v2014, %v2012
        %v2077 = vpack.c.b16 %v2015, %v2013
        %v2078 = vpack.c.b16 %v2018, %v2016
        %v2079 = vpack.c.b16 %v2019, %v2017
        %v2080 = vpack.c.b16 %v2022, %v2020
        %v2081 = vpack.c.b16 %v2023, %v2021
        %v2082 = vpack.c.b16 %v2026, %v2024
        %v2083 = vpack.c.b16 %v2027, %v2025
        %v2084 = vpack.c.b16 %v2030, %v2028
        %v2085 = vpack.c.b16 %v2031, %v2029
        %v2086 = vpack.c.b16 %v2034, %v2032
        %v2087 = vpack.c.b16 %v2035, %v2033
        %v2088 = vpack.c.b16 %v2038, %v2036
        %v2089 = vpack.c.b16 %v2039, %v2037
        %v2090 = vpack.c.b16 %v2042, %v2040
        %v2091 = vpack.c.b16 %v2043, %v2041
        %v2092 = vpack.c.b16 %v2046, %v2044
        %v2093 = vpack.c.b16 %v2047, %v2045
        %v2094 = vpack.c.b16 %v2050, %v2048
        %v2095 = vpack.c.b16 %v2051, %v2049
        %v2096 = vpack.c.b16 %v2054, %v2052
        %v2097 = vpack.c.b16 %v2055, %v2053
        %v2098 = vpack.c.b16 %v2058, %v2056
        %v2099 = vpack.c.b16 %v2059, %v2057
        %v2100 = vpack.c.b16 %v2062, %v2060
        %v2101 = vpack.c.b16 %v2063, %v2061
        %v2102 = vpack.c.b16 %v2066, %v2064
        %v2103 = vpack.c.b16 %v2067, %v2065
        %v2104 = vpack.c.b16 %v2070, %v2068
        %v2105 = vpack.c.b16 %v2071, %v2069
        %v2106 = vpack.c.b16 %v2074, %v2072
        %v2107 = vpack.c.b16 %v2075, %v2073
        %2140 = vmatprep.subr.bf16.mxu0 %v2077
        %2141 = vmatpush1.bf16.msra.mxu0 %v2076
        %2142 = vmatprep.subr.bf16.mxu0 %v2079
        %2143 = vmatpush1.bf16.msra.mxu0 %v2078
        %2144 = vmatprep.subr.bf16.mxu0 %v2081
        %2145 = vmatpush1.bf16.msra.mxu0 %v2080
        %2146 = vmatprep.subr.bf16.mxu0 %v2083
        %2147 = vmatpush1.bf16.msra.mxu0 %v2082
        %2148 = vmatprep.subr.bf16.mxu0 %v2085
        %2149 = vmatpush1.bf16.msra.mxu0 %v2084
        %2150 = vmatprep.subr.bf16.mxu0 %v2087
        %2151 = vmatpush1.bf16.msra.mxu0 %v2086
        %2152 = vmatprep.subr.bf16.mxu0 %v2089
        %2153 = vmatpush1.bf16.msra.mxu0 %v2088
        %2154 = vmatprep.subr.bf16.mxu0 %v2091
        %2155 = vmatpush1.bf16.msra.mxu0 %v2090
        %2156 = vmatprep.subr.bf16.mxu0 %v2093
        %2157 = vmatpush1.bf16.msra.mxu0 %v2092
        %2158 = vmatprep.subr.bf16.mxu0 %v2095
        %2159 = vmatpush1.bf16.msra.mxu0 %v2094
        %2160 = vmatprep.subr.bf16.mxu0 %v2097
        %2161 = vmatpush1.bf16.msra.mxu0 %v2096
        %2162 = vmatprep.subr.bf16.mxu0 %v2099
        %2163 = vmatpush1.bf16.msra.mxu0 %v2098
        %2164 = vmatprep.subr.bf16.mxu0 %v2101
        %2165 = vmatpush1.bf16.msra.mxu0 %v2100
        %2166 = vmatprep.subr.bf16.mxu0 %v2103
        %2167 = vmatpush1.bf16.msra.mxu0 %v2102
        %2168 = vmatprep.subr.bf16.mxu0 %v2105
        %2169 = vmatpush1.bf16.msra.mxu0 %v2104
        %2170 = vmatprep.subr.bf16.mxu0 %v2107
        %2171 = vmatpush1.bf16.msra.mxu0 %v2106
        %2172 = vmatprep.mubr.bf16.mxu0 %v1921
        %2173 = vmatmul.mubr.bf16.gmra.mrb[0].mxu0 %v1920
        %v2174 = vpop.f32.mrb[0].mxu0
        %v2175 = vadd.f32 %v1973, %v2174
        %v2176 = vpop.f32.mrb[0].mxu0
        %v2177 = vadd.f32 %v1977, %v2176
        %v2178 = vpop.f32.mrb[0].mxu0
        %v2179 = vadd.f32 %v1973, %v2178
        %v2180 = vpop.f32.mrb[0].mxu0
        %v2181 = vadd.f32 %v1977, %v2180
        %2182 = vmatprep.mubr.bf16.mxu0 %v1923
        %2183 = vmatmul.mubr.bf16.gmra.mrb[0].mxu0 %v1922
        %v2184 = vpop.f32.mrb[0].mxu0
        %v2185 = vadd.f32 %v1973, %v2184
        %v2186 = vpop.f32.mrb[0].mxu0
        %v2187 = vadd.f32 %v1977, %v2186
        %v2188 = vpop.f32.mrb[0].mxu0
        %v2189 = vadd.f32 %v1973, %v2188
        %v2190 = vpop.f32.mrb[0].mxu0
        %v2191 = vadd.f32 %v1977, %v2190
        %2192 = vmatprep.mubr.bf16.mxu0 %v1925
        %2193 = vmatmul.mubr.bf16.gmra.mrb[0].mxu0 %v1924
        %v2194 = vpop.f32.mrb[0].mxu0
        %v2195 = vadd.f32 %v1973, %v2194
        %v2196 = vpop.f32.mrb[0].mxu0
        %v2197 = vadd.f32 %v1977, %v2196
        %v2198 = vpop.f32.mrb[0].mxu0
        %v2199 = vadd.f32 %v1973, %v2198
        %v2200 = vpop.f32.mrb[0].mxu0
        %v2201 = vadd.f32 %v1977, %v2200
        %2202 = vmatprep.mubr.bf16.mxu0 %v1927
        %2203 = vmatmul.mubr.bf16.gmra.mrb[0].mxu0 %v1926
        %v2204 = vpop.f32.mrb[0].mxu0
        %v2205 = vadd.f32 %v1973, %v2204
        %v2206 = vpop.f32.mrb[0].mxu0
        %v2207 = vadd.f32 %v1977, %v2206
        %v2208 = vpop.f32.mrb[0].mxu0
        %v2209 = vadd.f32 %v1973, %v2208
        %v2210 = vpop.f32.mrb[0].mxu0
        %v2211 = vadd.f32 %v1977, %v2210
        %2212 = vmatprep.mubr.bf16.mxu0 %v1929
        %2213 = vmatmul.mubr.bf16.gmra.mrb[0].mxu0 %v1928
        %v2214 = vpop.f32.mrb[0].mxu0
        %v2215 = vadd.f32 %v1973, %v2214
        %v2216 = vpop.f32.mrb[0].mxu0
        %v2217 = vadd.f32 %v1977, %v2216
        %v2218 = vpop.f32.mrb[0].mxu0
        %v2219 = vadd.f32 %v1973, %v2218
        %v2220 = vpop.f32.mrb[0].mxu0
        %v2221 = vadd.f32 %v1977, %v2220
        %2222 = vmatprep.mubr.bf16.mxu0 %v1931
        %2223 = vmatmul.mubr.bf16.gmra.mrb[0].mxu0 %v1930
        %v2224 = vpop.f32.mrb[0].mxu0
        %v2225 = vadd.f32 %v1973, %v2224
        %v2226 = vpop.f32.mrb[0].mxu0
        %v2227 = vadd.f32 %v1977, %v2226
        %v2228 = vpop.f32.mrb[0].mxu0
        %v2229 = vadd.f32 %v1973, %v2228
        %v2230 = vpop.f32.mrb[0].mxu0
        %v2231 = vadd.f32 %v1977, %v2230
        %2232 = vmatprep.mubr.bf16.mxu0 %v1933
        %2233 = vmatmul.mubr.bf16.gmra.mrb[0].mxu0 %v1932
        %v2234 = vpop.f32.mrb[0].mxu0
        %v2235 = vadd.f32 %v1973, %v2234
        %v2236 = vpop.f32.mrb[0].mxu0
        %v2237 = vadd.f32 %v1977, %v2236
        %v2238 = vpop.f32.mrb[0].mxu0
        %v2239 = vadd.f32 %v1973, %v2238
        %v2240 = vpop.f32.mrb[0].mxu0
        %v2241 = vadd.f32 %v1977, %v2240
        %2242 = vmatprep.mubr.bf16.mxu0 %v1935
        %2243 = vmatmul.mubr.bf16.gmra.mrb[0].mxu0 %v1934
        %v2244 = vpop.f32.mrb[0].mxu0
        %v2245 = vadd.f32 %v1973, %v2244
        %v2246 = vpop.f32.mrb[0].mxu0
        %v2247 = vadd.f32 %v1977, %v2246
        %v2248 = vpop.f32.mrb[0].mxu0
        %v2249 = vadd.f32 %v1973, %v2248
        %v2250 = vpop.f32.mrb[0].mxu0
        %v2251 = vadd.f32 %v1977, %v2250
        %2252 = vdwg.mxu0
        %v2253 = vmul.f32 %v2175, 0.125
        %v2254 = vmul.f32 %v2177, 0.125
        %v2255 = vmul.f32 %v2179, 0.125
        %v2256 = vmul.f32 %v2181, 0.125
        %v2257 = vmul.f32 %v2185, 0.125
        %v2258 = vmul.f32 %v2187, 0.125
        %v2259 = vmul.f32 %v2189, 0.125
        %v2260 = vmul.f32 %v2191, 0.125
        %v2261 = vmul.f32 %v2195, 0.125
        %v2262 = vmul.f32 %v2197, 0.125
        %v2263 = vmul.f32 %v2199, 0.125
        %v2264 = vmul.f32 %v2201, 0.125
        %v2265 = vmul.f32 %v2205, 0.125
        %v2266 = vmul.f32 %v2207, 0.125
        %v2267 = vmul.f32 %v2209, 0.125
        %v2268 = vmul.f32 %v2211, 0.125
        %v2269 = vmul.f32 %v2215, 0.125
        %v2270 = vmul.f32 %v2217, 0.125
        %v2271 = vmul.f32 %v2219, 0.125
        %v2272 = vmul.f32 %v2221, 0.125
        %v2273 = vmul.f32 %v2225, 0.125
        %v2274 = vmul.f32 %v2227, 0.125
        %v2275 = vmul.f32 %v2229, 0.125
        %v2276 = vmul.f32 %v2231, 0.125
        %v2277 = vmul.f32 %v2235, 0.125
        %v2278 = vmul.f32 %v2237, 0.125
        %v2279 = vmul.f32 %v2239, 0.125
        %v2280 = vmul.f32 %v2241, 0.125
        %v2281 = vmul.f32 %v2245, 0.125
        %v2282 = vmul.f32 %v2247, 0.125
        %v2283 = vmul.f32 %v2249, 0.125
        %v2284 = vmul.f32 %v2251, 0.125
        %v2285 = vpack.c.bf16 %v2255, %v2253
        %v2286 = vpack.c.bf16 %v2256, %v2254
        %v2287 = vpack.c.bf16 %v2259, %v2257
        %v2288 = vpack.c.bf16 %v2260, %v2258
        %v2289 = vpack.c.bf16 %v2263, %v2261
        %v2290 = vpack.c.bf16 %v2264, %v2262
        %v2291 = vpack.c.bf16 %v2267, %v2265
        %v2292 = vpack.c.bf16 %v2268, %v2266
        %v2293 = vpack.c.bf16 %v2271, %v2269
        %v2294 = vpack.c.bf16 %v2272, %v2270
        %v2295 = vpack.c.bf16 %v2275, %v2273
        %v2296 = vpack.c.bf16 %v2276, %v2274
        %v2297 = vpack.c.bf16 %v2279, %v2277
        %v2298 = vpack.c.bf16 %v2280, %v2278
        %v2299 = vpack.c.bf16 %v2283, %v2281
        %v2300 = vpack.c.bf16 %v2284, %v2282
        %v2301 = vld [vmem:[%s736] sm:$0x3]
        %v2303 = vlaneseq
        %v2304 = vshrl.u32 %v2303, 7
        %v2305 = vsub.s32 0, %v2304
        %v2306 = vrot.slane %v2301, %v2305
        %v2307 = vlaneseq
        %v2308 = vshrl.u32 %v2307, 7
        %v2309 = vsub.s32 1, %v2308
        %v2310 = vrot.slane %v2301, %v2309
        %v2313 = vld [vmem:[#allocation2] sm:$0xff]
        %v2314 = vld [vmem:[#allocation2 + $0x10] sm:$0xff]
        %v2315 = vld [vmem:[#allocation2 + $0x20] sm:$0xff]
        %v2316 = vld [vmem:[#allocation2 + $0x30] sm:$0xff]
        %v2317 = vld [vmem:[#allocation2 + $0x40] sm:$0xff]
        %v2318 = vld [vmem:[#allocation2 + $0x50] sm:$0xff]
        %v2319 = vld [vmem:[#allocation2 + $0x60] sm:$0xff]
        %v2320 = vld [vmem:[#allocation2 + $0x70] sm:$0xff]
        %v2321 = vld [vmem:[#allocation2 + $0x80] sm:$0xff]
        %v2322 = vld [vmem:[#allocation2 + $0x90] sm:$0xff]
        %v2323 = vld [vmem:[#allocation2 + $0xa0] sm:$0xff]
        %v2324 = vld [vmem:[#allocation2 + $0xb0] sm:$0xff]
        %v2325 = vld [vmem:[#allocation2 + $0xc0] sm:$0xff]
        %v2326 = vld [vmem:[#allocation2 + $0xd0] sm:$0xff]
        %v2327 = vld [vmem:[#allocation2 + $0xe0] sm:$0xff]
        %v2328 = vld [vmem:[#allocation2 + $0xf0] sm:$0xff]
        %v2329 = vld [vmem:[#allocation3] sm:$0xff]
        %v2330 = vld [vmem:[#allocation3 + $0x10] sm:$0xff]
        %v2331 = vld [vmem:[#allocation3 + $0x20] sm:$0xff]
        %v2332 = vld [vmem:[#allocation3 + $0x30] sm:$0xff]
        %v2333 = vld [vmem:[#allocation3 + $0x40] sm:$0xff]
        %v2334 = vld [vmem:[#allocation3 + $0x50] sm:$0xff]
        %v2335 = vld [vmem:[#allocation3 + $0x60] sm:$0xff]
        %v2336 = vld [vmem:[#allocation3 + $0x70] sm:$0xff]
        %v2337 = vld [vmem:[#allocation3 + $0x80] sm:$0xff]
        %v2338 = vld [vmem:[#allocation3 + $0x90] sm:$0xff]
        %v2339 = vld [vmem:[#allocation3 + $0xa0] sm:$0xff]
        %v2340 = vld [vmem:[#allocation3 + $0xb0] sm:$0xff]
        %v2341 = vld [vmem:[#allocation3 + $0xc0] sm:$0xff]
        %v2342 = vld [vmem:[#allocation3 + $0xd0] sm:$0xff]
        %v2343 = vld [vmem:[#allocation3 + $0xe0] sm:$0xff]
        %v2344 = vld [vmem:[#allocation3 + $0xf0] sm:$0xff]
        %vm2345 = vcmask 523264
        %v2347 = vsel %vm2345, %v2285, 0
        %v2350 = vsel %vm2345, %v2287, 0
        %v2353 = vsel %vm2345, %v2289, 0
        %v2356 = vsel %vm2345, %v2291, 0
        %v2359 = vsel %vm2345, %v2293, 0
        %v2362 = vsel %vm2345, %v2295, 0
        %v2365 = vsel %vm2345, %v2297, 0
        %v2368 = vsel %vm2345, %v2299, 0
        %v2371 = vsel %vm2345, %v2313, 0
        %v2374 = vsel %vm2345, %v2314, 0
        %v2377 = vsel %vm2345, %v2315, 0
        %v2380 = vsel %vm2345, %v2316, 0
        %v2383 = vsel %vm2345, %v2317, 0
        %v2386 = vsel %vm2345, %v2318, 0
        %v2389 = vsel %vm2345, %v2319, 0
        %v2392 = vsel %vm2345, %v2320, 0
        %v2395 = vsel %vm2345, %v2321, 0
        %v2398 = vsel %vm2345, %v2322, 0
        %v2401 = vsel %vm2345, %v2323, 0
        %v2404 = vsel %vm2345, %v2324, 0
        %v2407 = vsel %vm2345, %v2325, 0
        %v2410 = vsel %vm2345, %v2326, 0
        %v2413 = vsel %vm2345, %v2327, 0
        %v2416 = vsel %vm2345, %v2328, 0
        %2418 = vmatprep.subr.bf16.mxu0 0
        %2419 = vmatpush1.bf16.xpose.msra.mxu0 %v2371
        %2420 = vmatprep.subr.bf16.mxu0 0
        %2421 = vmatpush1.bf16.xpose.msra.mxu0 %v2374
        %2422 = vmatprep.subr.bf16.mxu0 0
        %2423 = vmatpush1.bf16.xpose.msra.mxu0 %v2377
        %2424 = vmatprep.subr.bf16.mxu0 0
        %2425 = vmatpush1.bf16.xpose.msra.mxu0 %v2380
        %2426 = vmatprep.subr.bf16.mxu0 0
        %2427 = vmatpush1.bf16.xpose.msra.mxu0 %v2383
        %2428 = vmatprep.subr.bf16.mxu0 0
        %2429 = vmatpush1.bf16.xpose.msra.mxu0 %v2386
        %2430 = vmatprep.subr.bf16.mxu0 0
        %2431 = vmatpush1.bf16.xpose.msra.mxu0 %v2389
        %2432 = vmatprep.subr.bf16.mxu0 0
        %2433 = vmatpush1.bf16.xpose.msra.mxu0 %v2392
        %2434 = vmatprep.subr.bf16.mxu0 0
        %2435 = vmatpush1.bf16.xpose.msra.mxu0 %v2395
        %2436 = vmatprep.subr.bf16.mxu0 0
        %2437 = vmatpush1.bf16.xpose.msra.mxu0 %v2398
        %2438 = vmatprep.subr.bf16.mxu0 0
        %2439 = vmatpush1.bf16.xpose.msra.mxu0 %v2401
        %2440 = vmatprep.subr.bf16.mxu0 0
        %2441 = vmatpush1.bf16.xpose.msra.mxu0 %v2404
        %2442 = vmatprep.subr.bf16.mxu0 0
        %2443 = vmatpush1.bf16.xpose.msra.mxu0 %v2407
        %2444 = vmatprep.subr.bf16.mxu0 0
        %2445 = vmatpush1.bf16.xpose.msra.mxu0 %v2410
        %2446 = vmatprep.subr.bf16.mxu0 0
        %2447 = vmatpush1.bf16.xpose.msra.mxu0 %v2413
        %2448 = vmatprep.subr.bf16.mxu0 0
        %2449 = vmatpush1.bf16.xpose.msra.mxu0 %v2416
        %2450 = vmatprep.mubr.bf16.mxu0 0
        %2451 = vmatmul.mubr.bf16.gmra.mrb[0].mxu0 %v2347
        %v2452 = vpop.f32.mrb[0].mxu0
        %v2453 = vadd.f32 %v2306, %v2452
        %v2454 = vpop.f32.mrb[0].mxu0
        %v2455 = vadd.f32 %v2310, %v2454
        %v2456 = vpop.f32.mrb[0].mxu0
        %v2457 = vadd.f32 %v2306, %v2456
        %v2458 = vpop.f32.mrb[0].mxu0
        %v2459 = vadd.f32 %v2310, %v2458
        %2460 = vmatprep.mubr.bf16.mxu0 0
        %2461 = vmatmul.mubr.bf16.gmra.mrb[0].mxu0 %v2350
        %v2462 = vpop.f32.mrb[0].mxu0
        %v2463 = vadd.f32 %v2306, %v2462
        %v2464 = vpop.f32.mrb[0].mxu0
        %v2465 = vadd.f32 %v2310, %v2464
        %v2466 = vpop.f32.mrb[0].mxu0
        %v2467 = vadd.f32 %v2306, %v2466
        %v2468 = vpop.f32.mrb[0].mxu0
        %v2469 = vadd.f32 %v2310, %v2468
        %2470 = vmatprep.mubr.bf16.mxu0 0
        %2471 = vmatmul.mubr.bf16.gmra.mrb[0].mxu0 %v2353
        %v2472 = vpop.f32.mrb[0].mxu0
        %v2473 = vadd.f32 %v2306, %v2472
        %v2474 = vpop.f32.mrb[0].mxu0
        %v2475 = vadd.f32 %v2310, %v2474
        %v2476 = vpop.f32.mrb[0].mxu0
        %v2477 = vadd.f32 %v2306, %v2476
        %v2478 = vpop.f32.mrb[0].mxu0
        %v2479 = vadd.f32 %v2310, %v2478
        %2480 = vmatprep.mubr.bf16.mxu0 0
        %2481 = vmatmul.mubr.bf16.gmra.mrb[0].mxu0 %v2356
        %v2482 = vpop.f32.mrb[0].mxu0
        %v2483 = vadd.f32 %v2306, %v2482
        %v2484 = vpop.f32.mrb[0].mxu0
        %v2485 = vadd.f32 %v2310, %v2484
        %v2486 = vpop.f32.mrb[0].mxu0
        %v2487 = vadd.f32 %v2306, %v2486
        %v2488 = vpop.f32.mrb[0].mxu0
        %v2489 = vadd.f32 %v2310, %v2488
        %2490 = vmatprep.mubr.bf16.mxu0 0
        %2491 = vmatmul.mubr.bf16.gmra.mrb[0].mxu0 %v2359
        %v2492 = vpop.f32.mrb[0].mxu0
        %v2493 = vadd.f32 %v2306, %v2492
        %v2494 = vpop.f32.mrb[0].mxu0
        %v2495 = vadd.f32 %v2310, %v2494
        %v2496 = vpop.f32.mrb[0].mxu0
        %v2497 = vadd.f32 %v2306, %v2496
        %v2498 = vpop.f32.mrb[0].mxu0
        %v2499 = vadd.f32 %v2310, %v2498
        %2500 = vmatprep.mubr.bf16.mxu0 0
        %2501 = vmatmul.mubr.bf16.gmra.mrb[0].mxu0 %v2362
        %v2502 = vpop.f32.mrb[0].mxu0
        %v2503 = vadd.f32 %v2306, %v2502
        %v2504 = vpop.f32.mrb[0].mxu0
        %v2505 = vadd.f32 %v2310, %v2504
        %v2506 = vpop.f32.mrb[0].mxu0
        %v2507 = vadd.f32 %v2306, %v2506
        %v2508 = vpop.f32.mrb[0].mxu0
        %v2509 = vadd.f32 %v2310, %v2508
        %2510 = vmatprep.mubr.bf16.mxu0 0
        %2511 = vmatmul.mubr.bf16.gmra.mrb[0].mxu0 %v2365
        %v2512 = vpop.f32.mrb[0].mxu0
        %v2513 = vadd.f32 %v2306, %v2512
        %v2514 = vpop.f32.mrb[0].mxu0
        %v2515 = vadd.f32 %v2310, %v2514
        %v2516 = vpop.f32.mrb[0].mxu0
        %v2517 = vadd.f32 %v2306, %v2516
        %v2518 = vpop.f32.mrb[0].mxu0
        %v2519 = vadd.f32 %v2310, %v2518
        %2520 = vmatprep.mubr.bf16.mxu0 0
        %2521 = vmatmul.mubr.bf16.gmra.mrb[0].mxu0 %v2368
        %v2522 = vpop.f32.mrb[0].mxu0
        %v2523 = vadd.f32 %v2306, %v2522
        %v2524 = vpop.f32.mrb[0].mxu0
        %v2525 = vadd.f32 %v2310, %v2524
        %v2526 = vpop.f32.mrb[0].mxu0
        %v2527 = vadd.f32 %v2306, %v2526
        %v2528 = vpop.f32.mrb[0].mxu0
        %v2529 = vadd.f32 %v2310, %v2528
        %2530 = vdwg.mxu0
        %v2531 = vmax.f32 %v2453, %v2455
        %2532 = vmax.xlane.f32.xlu0 %v2531
        %v2533 = vpop.xlane.xlu0 %2532
        %v2534 = vmax.f32 %v2457, %v2459
        %2535 = vmax.xlane.f32.xlu0 %v2534
        %v2536 = vpop.xlane.xlu0 %2535
        %v2537 = vmax.f32 %v2463, %v2465
        %2538 = vmax.xlane.f32.xlu0 %v2537
        %v2539 = vpop.xlane.xlu0 %2538
        %v2540 = vmax.f32 %v2467, %v2469
        %2541 = vmax.xlane.f32.xlu0 %v2540
        %v2542 = vpop.xlane.xlu0 %2541
        %v2543 = vmax.f32 %v2473, %v2475
        %2544 = vmax.xlane.f32.xlu0 %v2543
        %v2545 = vpop.xlane.xlu0 %2544
        %v2546 = vmax.f32 %v2477, %v2479
        %2547 = vmax.xlane.f32.xlu0 %v2546
        %v2548 = vpop.xlane.xlu0 %2547
        %v2549 = vmax.f32 %v2483, %v2485
        %2550 = vmax.xlane.f32.xlu0 %v2549
        %v2551 = vpop.xlane.xlu0 %2550
        %v2552 = vmax.f32 %v2487, %v2489
        %2553 = vmax.xlane.f32.xlu0 %v2552
        %v2554 = vpop.xlane.xlu0 %2553
        %v2555 = vmax.f32 %v2493, %v2495
        %2556 = vmax.xlane.f32.xlu0 %v2555
        %v2557 = vpop.xlane.xlu0 %2556
        %v2558 = vmax.f32 %v2497, %v2499
        %2559 = vmax.xlane.f32.xlu0 %v2558
        %v2560 = vpop.xlane.xlu0 %2559
        %v2561 = vmax.f32 %v2503, %v2505
        %2562 = vmax.xlane.f32.xlu0 %v2561
        %v2563 = vpop.xlane.xlu0 %2562
        %v2564 = vmax.f32 %v2507, %v2509
        %2565 = vmax.xlane.f32.xlu0 %v2564
        %v2566 = vpop.xlane.xlu0 %2565
        %v2567 = vmax.f32 %v2513, %v2515
        %2568 = vmax.xlane.f32.xlu0 %v2567
        %v2569 = vpop.xlane.xlu0 %2568
        %v2570 = vmax.f32 %v2517, %v2519
        %2571 = vmax.xlane.f32.xlu0 %v2570
        %v2572 = vpop.xlane.xlu0 %2571
        %v2573 = vmax.f32 %v2523, %v2525
        %2574 = vmax.xlane.f32.xlu0 %v2573
        %v2575 = vpop.xlane.xlu0 %2574
        %v2576 = vmax.f32 %v2527, %v2529
        %2577 = vmax.xlane.f32.xlu0 %v2576
        %v2578 = vpop.xlane.xlu0 %2577
        %v2579 = vsub.f32 %v2453, %v2533
        %v2580 = vsub.f32 %v2455, %v2533
        %v2581 = vsub.f32 %v2457, %v2536
        %v2582 = vsub.f32 %v2459, %v2536
        %v2583 = vsub.f32 %v2463, %v2539
        %v2584 = vsub.f32 %v2465, %v2539
        %v2585 = vsub.f32 %v2467, %v2542
        %v2586 = vsub.f32 %v2469, %v2542
        %v2587 = vsub.f32 %v2473, %v2545
        %v2588 = vsub.f32 %v2475, %v2545
        %v2589 = vsub.f32 %v2477, %v2548
        %v2590 = vsub.f32 %v2479, %v2548
        %v2591 = vsub.f32 %v2483, %v2551
        %v2592 = vsub.f32 %v2485, %v2551
        %v2593 = vsub.f32 %v2487, %v2554
        %v2594 = vsub.f32 %v2489, %v2554
        %v2595 = vsub.f32 %v2493, %v2557
        %v2596 = vsub.f32 %v2495, %v2557
        %v2597 = vsub.f32 %v2497, %v2560
        %v2598 = vsub.f32 %v2499, %v2560
        %v2599 = vsub.f32 %v2503, %v2563
        %v2600 = vsub.f32 %v2505, %v2563
        %v2601 = vsub.f32 %v2507, %v2566
        %v2602 = vsub.f32 %v2509, %v2566
        %v2603 = vsub.f32 %v2513, %v2569
        %v2604 = vsub.f32 %v2515, %v2569
        %v2605 = vsub.f32 %v2517, %v2572
        %v2606 = vsub.f32 %v2519, %v2572
        %v2607 = vsub.f32 %v2523, %v2575
        %v2608 = vsub.f32 %v2525, %v2575
        %v2609 = vsub.f32 %v2527, %v2578
        %v2610 = vsub.f32 %v2529, %v2578
        %v2611 = vmul.f32 %v2579, 1.442695
        %v2612 = vpow.pop %v2611
        %v2613 = vmul.f32 %v2580, 1.442695
        %v2614 = vpow.pop %v2613
        %v2615 = vmul.f32 %v2581, 1.442695
        %v2616 = vpow.pop %v2615
        %v2617 = vmul.f32 %v2582, 1.442695
        %v2618 = vpow.pop %v2617
        %v2619 = vmul.f32 %v2583, 1.442695
        %v2620 = vpow.pop %v2619
        %v2621 = vmul.f32 %v2584, 1.442695
        %v2622 = vpow.pop %v2621
        %v2623 = vmul.f32 %v2585, 1.442695
        %v2624 = vpow.pop %v2623
        %v2625 = vmul.f32 %v2586, 1.442695
        %v2626 = vpow.pop %v2625
        %v2627 = vmul.f32 %v2587, 1.442695
        %v2628 = vpow.pop %v2627
        %v2629 = vmul.f32 %v2588, 1.442695
        %v2630 = vpow.pop %v2629
        %v2631 = vmul.f32 %v2589, 1.442695
        %v2632 = vpow.pop %v2631
        %v2633 = vmul.f32 %v2590, 1.442695
        %v2634 = vpow.pop %v2633
        %v2635 = vmul.f32 %v2591, 1.442695
        %v2636 = vpow.pop %v2635
        %v2637 = vmul.f32 %v2592, 1.442695
        %v2638 = vpow.pop %v2637
        %v2639 = vmul.f32 %v2593, 1.442695
        %v2640 = vpow.pop %v2639
        %v2641 = vmul.f32 %v2594, 1.442695
        %v2642 = vpow.pop %v2641
        %v2643 = vmul.f32 %v2595, 1.442695
        %v2644 = vpow.pop %v2643
        %v2645 = vmul.f32 %v2596, 1.442695
        %v2646 = vpow.pop %v2645
        %v2647 = vmul.f32 %v2597, 1.442695
        %v2648 = vpow.pop %v2647
        %v2649 = vmul.f32 %v2598, 1.442695
        %v2650 = vpow.pop %v2649
        %v2651 = vmul.f32 %v2599, 1.442695
        %v2652 = vpow.pop %v2651
        %v2653 = vmul.f32 %v2600, 1.442695
        %v2654 = vpow.pop %v2653
        %v2655 = vmul.f32 %v2601, 1.442695
        %v2656 = vpow.pop %v2655
        %v2657 = vmul.f32 %v2602, 1.442695
        %v2658 = vpow.pop %v2657
        %v2659 = vmul.f32 %v2603, 1.442695
        %v2660 = vpow.pop %v2659
        %v2661 = vmul.f32 %v2604, 1.442695
        %v2662 = vpow.pop %v2661
        %v2663 = vmul.f32 %v2605, 1.442695
        %v2664 = vpow.pop %v2663
        %v2665 = vmul.f32 %v2606, 1.442695
        %v2666 = vpow.pop %v2665
        %v2667 = vmul.f32 %v2607, 1.442695
        %v2668 = vpow.pop %v2667
        %v2669 = vmul.f32 %v2608, 1.442695
        %v2670 = vpow.pop %v2669
        %v2671 = vmul.f32 %v2609, 1.442695
        %v2672 = vpow.pop %v2671
        %v2673 = vmul.f32 %v2610, 1.442695
        %v2674 = vpow.pop %v2673
        %v2675 = vadd.f32 %v2612, %v2614
        %2676 = vadd.xlane.f32.xlu0 %v2675
        %v2677 = vpop.xlane.xlu0 %2676
        %v2678 = vadd.f32 %v2616, %v2618
        %2679 = vadd.xlane.f32.xlu0 %v2678
        %v2680 = vpop.xlane.xlu0 %2679
        %v2681 = vadd.f32 %v2620, %v2622
        %2682 = vadd.xlane.f32.xlu0 %v2681
        %v2683 = vpop.xlane.xlu0 %2682
        %v2684 = vadd.f32 %v2624, %v2626
        %2685 = vadd.xlane.f32.xlu0 %v2684
        %v2686 = vpop.xlane.xlu0 %2685
        %v2687 = vadd.f32 %v2628, %v2630
        %2688 = vadd.xlane.f32.xlu0 %v2687
        %v2689 = vpop.xlane.xlu0 %2688
        %v2690 = vadd.f32 %v2632, %v2634
        %2691 = vadd.xlane.f32.xlu0 %v2690
        %v2692 = vpop.xlane.xlu0 %2691
        %v2693 = vadd.f32 %v2636, %v2638
        %2694 = vadd.xlane.f32.xlu0 %v2693
        %v2695 = vpop.xlane.xlu0 %2694
        %v2696 = vadd.f32 %v2640, %v2642
        %2697 = vadd.xlane.f32.xlu0 %v2696
        %v2698 = vpop.xlane.xlu0 %2697
        %v2699 = vadd.f32 %v2644, %v2646
        %2700 = vadd.xlane.f32.xlu0 %v2699
        %v2701 = vpop.xlane.xlu0 %2700
        %v2702 = vadd.f32 %v2648, %v2650
        %2703 = vadd.xlane.f32.xlu0 %v2702
        %v2704 = vpop.xlane.xlu0 %2703
        %v2705 = vadd.f32 %v2652, %v2654
        %2706 = vadd.xlane.f32.xlu0 %v2705
        %v2707 = vpop.xlane.xlu0 %2706
        %v2708 = vadd.f32 %v2656, %v2658
        %2709 = vadd.xlane.f32.xlu0 %v2708
        %v2710 = vpop.xlane.xlu0 %2709
        %v2711 = vadd.f32 %v2660, %v2662
        %2712 = vadd.xlane.f32.xlu0 %v2711
        %v2713 = vpop.xlane.xlu0 %2712
        %v2714 = vadd.f32 %v2664, %v2666
        %2715 = vadd.xlane.f32.xlu0 %v2714
        %v2716 = vpop.xlane.xlu0 %2715
        %v2717 = vadd.f32 %v2668, %v2670
        %2718 = vadd.xlane.f32.xlu0 %v2717
        %v2719 = vpop.xlane.xlu0 %2718
        %v2720 = vadd.f32 %v2672, %v2674
        %2721 = vadd.xlane.f32.xlu0 %v2720
        %v2722 = vpop.xlane.xlu0 %2721
        %v2723 = vrcp.pop %v2677
        %v2724 = vrcp.pop %v2680
        %v2725 = vrcp.pop %v2683
        %v2726 = vrcp.pop %v2686
        %v2727 = vrcp.pop %v2689
        %v2728 = vrcp.pop %v2692
        %v2729 = vrcp.pop %v2695
        %v2730 = vrcp.pop %v2698
        %v2731 = vrcp.pop %v2701
        %v2732 = vrcp.pop %v2704
        %v2733 = vrcp.pop %v2707
        %v2734 = vrcp.pop %v2710
        %v2735 = vrcp.pop %v2713
        %v2736 = vrcp.pop %v2716
        %v2737 = vrcp.pop %v2719
        %v2738 = vrcp.pop %v2722
        %v2739 = vmul.f32 %v2612, %v2723
        %v2740 = vmul.f32 %v2614, %v2723
        %v2741 = vmul.f32 %v2616, %v2724
        %v2742 = vmul.f32 %v2618, %v2724
        %v2743 = vmul.f32 %v2620, %v2725
        %v2744 = vmul.f32 %v2622, %v2725
        %v2745 = vmul.f32 %v2624, %v2726
        %v2746 = vmul.f32 %v2626, %v2726
        %v2747 = vmul.f32 %v2628, %v2727
        %v2748 = vmul.f32 %v2630, %v2727
        %v2749 = vmul.f32 %v2632, %v2728
        %v2750 = vmul.f32 %v2634, %v2728
        %v2751 = vmul.f32 %v2636, %v2729
        %v2752 = vmul.f32 %v2638, %v2729
        %v2753 = vmul.f32 %v2640, %v2730
        %v2754 = vmul.f32 %v2642, %v2730
        %v2755 = vmul.f32 %v2644, %v2731
        %v2756 = vmul.f32 %v2646, %v2731
        %v2757 = vmul.f32 %v2648, %v2732
        %v2758 = vmul.f32 %v2650, %v2732
        %v2759 = vmul.f32 %v2652, %v2733
        %v2760 = vmul.f32 %v2654, %v2733
        %v2761 = vmul.f32 %v2656, %v2734
        %v2762 = vmul.f32 %v2658, %v2734
        %v2763 = vmul.f32 %v2660, %v2735
        %v2764 = vmul.f32 %v2662, %v2735
        %v2765 = vmul.f32 %v2664, %v2736
        %v2766 = vmul.f32 %v2666, %v2736
        %v2767 = vmul.f32 %v2668, %v2737
        %v2768 = vmul.f32 %v2670, %v2737
        %v2769 = vmul.f32 %v2672, %v2738
        %v2770 = vmul.f32 %v2674, %v2738
        %v2771 = vpack.c.bf16 %v2741, %v2739
        %v2772 = vpack.c.bf16 %v2742, %v2740
        %v2773 = vpack.c.bf16 %v2745, %v2743
        %v2774 = vpack.c.bf16 %v2746, %v2744
        %v2775 = vpack.c.bf16 %v2749, %v2747
        %v2776 = vpack.c.bf16 %v2750, %v2748
        %v2777 = vpack.c.bf16 %v2753, %v2751
        %v2778 = vpack.c.bf16 %v2754, %v2752
        %v2779 = vpack.c.bf16 %v2757, %v2755
        %v2780 = vpack.c.bf16 %v2758, %v2756
        %v2781 = vpack.c.bf16 %v2761, %v2759
        %v2782 = vpack.c.bf16 %v2762, %v2760
        %v2783 = vpack.c.bf16 %v2765, %v2763
        %v2784 = vpack.c.bf16 %v2766, %v2764
        %v2785 = vpack.c.bf16 %v2769, %v2767
        %v2786 = vpack.c.bf16 %v2770, %v2768
        %2787 = vmatprep.subr.bf16.mxu0 0
        %2788 = vmatpush1.bf16.msra.mxu0 %v2329
        %2789 = vmatprep.subr.bf16.mxu0 0
        %2790 = vmatpush1.bf16.msra.mxu0 %v2330
        %2791 = vmatprep.subr.bf16.mxu0 0
        %2792 = vmatpush1.bf16.msra.mxu0 %v2331
        %2793 = vmatprep.subr.bf16.mxu0 0
        %2794 = vmatpush1.bf16.msra.mxu0 %v2332
        %2795 = vmatprep.subr.bf16.mxu0 0
        %2796 = vmatpush1.bf16.msra.mxu0 %v2333
        %2797 = vmatprep.subr.bf16.mxu0 0
        %2798 = vmatpush1.bf16.msra.mxu0 %v2334
        %2799 = vmatprep.subr.bf16.mxu0 0
        %2800 = vmatpush1.bf16.msra.mxu0 %v2335
        %2801 = vmatprep.subr.bf16.mxu0 0
        %2802 = vmatpush1.bf16.msra.mxu0 %v2336
        %2803 = vmatprep.subr.bf16.mxu0 0
        %2804 = vmatpush1.bf16.msra.mxu0 %v2337
        %2805 = vmatprep.subr.bf16.mxu0 0
        %2806 = vmatpush1.bf16.msra.mxu0 %v2338
        %2807 = vmatprep.subr.bf16.mxu0 0
        %2808 = vmatpush1.bf16.msra.mxu0 %v2339
        %2809 = vmatprep.subr.bf16.mxu0 0
        %2810 = vmatpush1.bf16.msra.mxu0 %v2340
        %2811 = vmatprep.subr.bf16.mxu0 0
        %2812 = vmatpush1.bf16.msra.mxu0 %v2341
        %2813 = vmatprep.subr.bf16.mxu0 0
        %2814 = vmatpush1.bf16.msra.mxu0 %v2342
        %2815 = vmatprep.subr.bf16.mxu0 0
        %2816 = vmatpush1.bf16.msra.mxu0 %v2343
        %2817 = vmatprep.subr.bf16.mxu0 0
        %2818 = vmatpush1.bf16.msra.mxu0 %v2344
        %2819 = vmatprep.mubr.bf16.mxu0 %v2772
        %2820 = vmatmul.mubr.bf16.gmra.mrb[0].mxu0 %v2771
        %v2821 = vpop.f32.mrb[0].mxu0
        %v2822 = vadd.f32 0.0, %v2821
        %v2823 = vpop.f32.mrb[0].mxu0
        %v2824 = vpop.f32.mrb[0].mxu0
        %v2825 = vadd.f32 0.0, %v2824
        %v2826 = vpop.f32.mrb[0].mxu0
        %2827 = vmatprep.mubr.bf16.mxu0 %v2774
        %2828 = vmatmul.mubr.bf16.gmra.mrb[0].mxu0 %v2773
        %v2829 = vpop.f32.mrb[0].mxu0
        %v2830 = vadd.f32 0.0, %v2829
        %v2831 = vpop.f32.mrb[0].mxu0
        %v2832 = vpop.f32.mrb[0].mxu0
        %v2833 = vadd.f32 0.0, %v2832
        %v2834 = vpop.f32.mrb[0].mxu0
        %2835 = vmatprep.mubr.bf16.mxu0 %v2776
        %2836 = vmatmul.mubr.bf16.gmra.mrb[0].mxu0 %v2775
        %v2837 = vpop.f32.mrb[0].mxu0
        %v2838 = vadd.f32 0.0, %v2837
        %v2839 = vpop.f32.mrb[0].mxu0
        %v2840 = vpop.f32.mrb[0].mxu0
        %v2841 = vadd.f32 0.0, %v2840
        %v2842 = vpop.f32.mrb[0].mxu0
        %2843 = vmatprep.mubr.bf16.mxu0 %v2778
        %2844 = vmatmul.mubr.bf16.gmra.mrb[0].mxu0 %v2777
        %v2845 = vpop.f32.mrb[0].mxu0
        %v2846 = vadd.f32 0.0, %v2845
        %v2847 = vpop.f32.mrb[0].mxu0
        %v2848 = vpop.f32.mrb[0].mxu0
        %v2849 = vadd.f32 0.0, %v2848
        %v2850 = vpop.f32.mrb[0].mxu0
        %2851 = vmatprep.mubr.bf16.mxu0 %v2780
        %2852 = vmatmul.mubr.bf16.gmra.mrb[0].mxu0 %v2779
        %v2853 = vpop.f32.mrb[0].mxu0
        %v2854 = vadd.f32 0.0, %v2853
        %v2855 = vpop.f32.mrb[0].mxu0
        %v2856 = vpop.f32.mrb[0].mxu0
        %v2857 = vadd.f32 0.0, %v2856
        %v2858 = vpop.f32.mrb[0].mxu0
        %2859 = vmatprep.mubr.bf16.mxu0 %v2782
        %2860 = vmatmul.mubr.bf16.gmra.mrb[0].mxu0 %v2781
        %v2861 = vpop.f32.mrb[0].mxu0
        %v2862 = vadd.f32 0.0, %v2861
        %v2863 = vpop.f32.mrb[0].mxu0
        %v2864 = vpop.f32.mrb[0].mxu0
        %v2865 = vadd.f32 0.0, %v2864
        %v2866 = vpop.f32.mrb[0].mxu0
        %2867 = vmatprep.mubr.bf16.mxu0 %v2784
        %2868 = vmatmul.mubr.bf16.gmra.mrb[0].mxu0 %v2783
        %v2869 = vpop.f32.mrb[0].mxu0
        %v2870 = vadd.f32 0.0, %v2869
        %v2871 = vpop.f32.mrb[0].mxu0
        %v2872 = vpop.f32.mrb[0].mxu0
        %v2873 = vadd.f32 0.0, %v2872
        %v2874 = vpop.f32.mrb[0].mxu0
        %2875 = vmatprep.mubr.bf16.mxu0 %v2786
        %2876 = vmatmul.mubr.bf16.gmra.mrb[0].mxu0 %v2785
        %v2877 = vpop.f32.mrb[0].mxu0
        %v2878 = vadd.f32 0.0, %v2877
        %v2879 = vpop.f32.mrb[0].mxu0
        %v2880 = vpop.f32.mrb[0].mxu0
        %v2881 = vadd.f32 0.0, %v2880
        %v2882 = vpop.f32.mrb[0].mxu0
        %2883 = vdwg.mxu0
        %2892 = vrot.lane.b32.xlu0 %v2285, 64
        %v2893 = vpop.permute.xlu0 %2892
        %2894 = vrot.lane.b32.xlu0 %v2287, 64
        %v2895 = vpop.permute.xlu0 %2894
        %2896 = vrot.lane.b32.xlu0 %v2289, 64
        %v2897 = vpop.permute.xlu0 %2896
        %2898 = vrot.lane.b32.xlu0 %v2291, 64
        %v2899 = vpop.permute.xlu0 %2898
        %2900 = vrot.lane.b32.xlu0 %v2293, 64
        %v2901 = vpop.permute.xlu0 %2900
        %2902 = vrot.lane.b32.xlu0 %v2295, 64
        %v2903 = vpop.permute.xlu0 %2902
        %2904 = vrot.lane.b32.xlu0 %v2297, 64
        %v2905 = vpop.permute.xlu0 %2904
        %2906 = vrot.lane.b32.xlu0 %v2299, 64
        %v2907 = vpop.permute.xlu0 %2906
        %2924 = vrot.lane.b32.xlu0 %v2313, 64
        %v2925 = vpop.permute.xlu0 %2924
        %2926 = vrot.lane.b32.xlu0 %v2314, 64
        %v2927 = vpop.permute.xlu0 %2926
        %2928 = vrot.lane.b32.xlu0 %v2315, 64
        %v2929 = vpop.permute.xlu0 %2928
        %2930 = vrot.lane.b32.xlu0 %v2316, 64
        %v2931 = vpop.permute.xlu0 %2930
        %2932 = vrot.lane.b32.xlu0 %v2317, 64
        %v2933 = vpop.permute.xlu0 %2932
        %2934 = vrot.lane.b32.xlu0 %v2318, 64
        %v2935 = vpop.permute.xlu0 %2934
        %2936 = vrot.lane.b32.xlu0 %v2319, 64
        %v2937 = vpop.permute.xlu0 %2936
        %2938 = vrot.lane.b32.xlu0 %v2320, 64
        %v2939 = vpop.permute.xlu0 %2938
        %2940 = vrot.lane.b32.xlu0 %v2321, 64
        %v2941 = vpop.permute.xlu0 %2940
        %2942 = vrot.lane.b32.xlu0 %v2322, 64
        %v2943 = vpop.permute.xlu0 %2942
        %2944 = vrot.lane.b32.xlu0 %v2323, 64
        %v2945 = vpop.permute.xlu0 %2944
        %2946 = vrot.lane.b32.xlu0 %v2324, 64
        %v2947 = vpop.permute.xlu0 %2946
        %2948 = vrot.lane.b32.xlu0 %v2325, 64
        %v2949 = vpop.permute.xlu0 %2948
        %2950 = vrot.lane.b32.xlu0 %v2326, 64
        %v2951 = vpop.permute.xlu0 %2950
        %2952 = vrot.lane.b32.xlu0 %v2327, 64
        %v2953 = vpop.permute.xlu0 %2952
        %2954 = vrot.lane.b32.xlu0 %v2328, 64
        %v2955 = vpop.permute.xlu0 %2954
        %v2957 = vsel %vm2345, %v2893, 0
        %v2960 = vsel %vm2345, %v2895, 0
        %v2963 = vsel %vm2345, %v2897, 0
        %v2966 = vsel %vm2345, %v2899, 0
        %v2969 = vsel %vm2345, %v2901, 0
        %v2972 = vsel %vm2345, %v2903, 0
        %v2975 = vsel %vm2345, %v2905, 0
        %v2978 = vsel %vm2345, %v2907, 0
        %v2981 = vsel %vm2345, %v2925, 0
        %v2984 = vsel %vm2345, %v2927, 0
        %v2987 = vsel %vm2345, %v2929, 0
        %v2990 = vsel %vm2345, %v2931, 0
        %v2993 = vsel %vm2345, %v2933, 0
        %v2996 = vsel %vm2345, %v2935, 0
        %v2999 = vsel %vm2345, %v2937, 0
        %v3002 = vsel %vm2345, %v2939, 0
        %v3005 = vsel %vm2345, %v2941, 0
        %v3008 = vsel %vm2345, %v2943, 0
        %v3011 = vsel %vm2345, %v2945, 0
        %v3014 = vsel %vm2345, %v2947, 0
        %v3017 = vsel %vm2345, %v2949, 0
        %v3020 = vsel %vm2345, %v2951, 0
        %v3023 = vsel %vm2345, %v2953, 0
        %v3026 = vsel %vm2345, %v2955, 0
        %3028 = vmatprep.subr.bf16.mxu0 0
        %3029 = vmatpush1.bf16.xpose.msra.mxu0 %v2981
        %3030 = vmatprep.subr.bf16.mxu0 0
        %3031 = vmatpush1.bf16.xpose.msra.mxu0 %v2984
        %3032 = vmatprep.subr.bf16.mxu0 0
        %3033 = vmatpush1.bf16.xpose.msra.mxu0 %v2987
        %3034 = vmatprep.subr.bf16.mxu0 0
        %3035 = vmatpush1.bf16.xpose.msra.mxu0 %v2990
        %3036 = vmatprep.subr.bf16.mxu0 0
        %3037 = vmatpush1.bf16.xpose.msra.mxu0 %v2993
        %3038 = vmatprep.subr.bf16.mxu0 0
        %3039 = vmatpush1.bf16.xpose.msra.mxu0 %v2996
        %3040 = vmatprep.subr.bf16.mxu0 0
        %3041 = vmatpush1.bf16.xpose.msra.mxu0 %v2999
        %3042 = vmatprep.subr.bf16.mxu0 0
        %3043 = vmatpush1.bf16.xpose.msra.mxu0 %v3002
        %3044 = vmatprep.subr.bf16.mxu0 0
        %3045 = vmatpush1.bf16.xpose.msra.mxu0 %v3005
        %3046 = vmatprep.subr.bf16.mxu0 0
        %3047 = vmatpush1.bf16.xpose.msra.mxu0 %v3008
        %3048 = vmatprep.subr.bf16.mxu0 0
        %3049 = vmatpush1.bf16.xpose.msra.mxu0 %v3011
        %3050 = vmatprep.subr.bf16.mxu0 0
        %3051 = vmatpush1.bf16.xpose.msra.mxu0 %v3014
        %3052 = vmatprep.subr.bf16.mxu0 0
        %3053 = vmatpush1.bf16.xpose.msra.mxu0 %v3017
        %3054 = vmatprep.subr.bf16.mxu0 0
        %3055 = vmatpush1.bf16.xpose.msra.mxu0 %v3020
        %3056 = vmatprep.subr.bf16.mxu0 0
        %3057 = vmatpush1.bf16.xpose.msra.mxu0 %v3023
        %3058 = vmatprep.subr.bf16.mxu0 0
        %3059 = vmatpush1.bf16.xpose.msra.mxu0 %v3026
        %3060 = vmatprep.mubr.bf16.mxu0 0
        %3061 = vmatmul.mubr.bf16.gmra.mrb[0].mxu0 %v2957
        %v3062 = vpop.f32.mrb[0].mxu0
        %v3063 = vadd.f32 %v2306, %v3062
        %v3064 = vpop.f32.mrb[0].mxu0
        %v3065 = vadd.f32 %v2310, %v3064
        %v3066 = vpop.f32.mrb[0].mxu0
        %v3067 = vadd.f32 %v2306, %v3066
        %v3068 = vpop.f32.mrb[0].mxu0
        %v3069 = vadd.f32 %v2310, %v3068
        %3070 = vmatprep.mubr.bf16.mxu0 0
        %3071 = vmatmul.mubr.bf16.gmra.mrb[0].mxu0 %v2960
        %v3072 = vpop.f32.mrb[0].mxu0
        %v3073 = vadd.f32 %v2306, %v3072
        %v3074 = vpop.f32.mrb[0].mxu0
        %v3075 = vadd.f32 %v2310, %v3074
        %v3076 = vpop.f32.mrb[0].mxu0
        %v3077 = vadd.f32 %v2306, %v3076
        %v3078 = vpop.f32.mrb[0].mxu0
        %v3079 = vadd.f32 %v2310, %v3078
        %3080 = vmatprep.mubr.bf16.mxu0 0
        %3081 = vmatmul.mubr.bf16.gmra.mrb[0].mxu0 %v2963
        %v3082 = vpop.f32.mrb[0].mxu0
        %v3083 = vadd.f32 %v2306, %v3082
        %v3084 = vpop.f32.mrb[0].mxu0
        %v3085 = vadd.f32 %v2310, %v3084
        %v3086 = vpop.f32.mrb[0].mxu0
        %v3087 = vadd.f32 %v2306, %v3086
        %v3088 = vpop.f32.mrb[0].mxu0
        %v3089 = vadd.f32 %v2310, %v3088
        %3090 = vmatprep.mubr.bf16.mxu0 0
        %3091 = vmatmul.mubr.bf16.gmra.mrb[0].mxu0 %v2966
        %v3092 = vpop.f32.mrb[0].mxu0
        %v3093 = vadd.f32 %v2306, %v3092
        %v3094 = vpop.f32.mrb[0].mxu0
        %v3095 = vadd.f32 %v2310, %v3094
        %v3096 = vpop.f32.mrb[0].mxu0
        %v3097 = vadd.f32 %v2306, %v3096
        %v3098 = vpop.f32.mrb[0].mxu0
        %v3099 = vadd.f32 %v2310, %v3098
        %3100 = vmatprep.mubr.bf16.mxu0 0
        %3101 = vmatmul.mubr.bf16.gmra.mrb[0].mxu0 %v2969
        %v3102 = vpop.f32.mrb[0].mxu0
        %v3103 = vadd.f32 %v2306, %v3102
        %v3104 = vpop.f32.mrb[0].mxu0
        %v3105 = vadd.f32 %v2310, %v3104
        %v3106 = vpop.f32.mrb[0].mxu0
        %v3107 = vadd.f32 %v2306, %v3106
        %v3108 = vpop.f32.mrb[0].mxu0
        %v3109 = vadd.f32 %v2310, %v3108
        %3110 = vmatprep.mubr.bf16.mxu0 0
        %3111 = vmatmul.mubr.bf16.gmra.mrb[0].mxu0 %v2972
        %v3112 = vpop.f32.mrb[0].mxu0
        %v3113 = vadd.f32 %v2306, %v3112
        %v3114 = vpop.f32.mrb[0].mxu0
        %v3115 = vadd.f32 %v2310, %v3114
        %v3116 = vpop.f32.mrb[0].mxu0
        %v3117 = vadd.f32 %v2306, %v3116
        %v3118 = vpop.f32.mrb[0].mxu0
        %v3119 = vadd.f32 %v2310, %v3118
        %3120 = vmatprep.mubr.bf16.mxu0 0
        %3121 = vmatmul.mubr.bf16.gmra.mrb[0].mxu0 %v2975
        %v3122 = vpop.f32.mrb[0].mxu0
        %v3123 = vadd.f32 %v2306, %v3122
        %v3124 = vpop.f32.mrb[0].mxu0
        %v3125 = vadd.f32 %v2310, %v3124
        %v3126 = vpop.f32.mrb[0].mxu0
        %v3127 = vadd.f32 %v2306, %v3126
        %v3128 = vpop.f32.mrb[0].mxu0
        %v3129 = vadd.f32 %v2310, %v3128
        %3130 = vmatprep.mubr.bf16.mxu0 0
        %3131 = vmatmul.mubr.bf16.gmra.mrb[0].mxu0 %v2978
        %v3132 = vpop.f32.mrb[0].mxu0
        %v3133 = vadd.f32 %v2306, %v3132
        %v3134 = vpop.f32.mrb[0].mxu0
        %v3135 = vadd.f32 %v2310, %v3134
        %v3136 = vpop.f32.mrb[0].mxu0
        %v3137 = vadd.f32 %v2306, %v3136
        %v3138 = vpop.f32.mrb[0].mxu0
        %v3139 = vadd.f32 %v2310, %v3138
        %3140 = vdwg.mxu0
        %v3141 = vmax.f32 %v3063, %v3065
        %3142 = vmax.xlane.f32.xlu0 %v3141
        %v3143 = vpop.xlane.xlu0 %3142
        %v3144 = vmax.f32 %v3067, %v3069
        %3145 = vmax.xlane.f32.xlu0 %v3144
        %v3146 = vpop.xlane.xlu0 %3145
        %v3147 = vmax.f32 %v3073, %v3075
        %3148 = vmax.xlane.f32.xlu0 %v3147
        %v3149 = vpop.xlane.xlu0 %3148
        %v3150 = vmax.f32 %v3077, %v3079
        %3151 = vmax.xlane.f32.xlu0 %v3150
        %v3152 = vpop.xlane.xlu0 %3151
        %v3153 = vmax.f32 %v3083, %v3085
        %3154 = vmax.xlane.f32.xlu0 %v3153
        %v3155 = vpop.xlane.xlu0 %3154
        %v3156 = vmax.f32 %v3087, %v3089
        %3157 = vmax.xlane.f32.xlu0 %v3156
        %v3158 = vpop.xlane.xlu0 %3157
        %v3159 = vmax.f32 %v3093, %v3095
        %3160 = vmax.xlane.f32.xlu0 %v3159
        %v3161 = vpop.xlane.xlu0 %3160
        %v3162 = vmax.f32 %v3097, %v3099
        %3163 = vmax.xlane.f32.xlu0 %v3162
        %v3164 = vpop.xlane.xlu0 %3163
        %v3165 = vmax.f32 %v3103, %v3105
        %3166 = vmax.xlane.f32.xlu0 %v3165
        %v3167 = vpop.xlane.xlu0 %3166
        %v3168 = vmax.f32 %v3107, %v3109
        %3169 = vmax.xlane.f32.xlu0 %v3168
        %v3170 = vpop.xlane.xlu0 %3169
        %v3171 = vmax.f32 %v3113, %v3115
        %3172 = vmax.xlane.f32.xlu0 %v3171
        %v3173 = vpop.xlane.xlu0 %3172
        %v3174 = vmax.f32 %v3117, %v3119
        %3175 = vmax.xlane.f32.xlu0 %v3174
        %v3176 = vpop.xlane.xlu0 %3175
        %v3177 = vmax.f32 %v3123, %v3125
        %3178 = vmax.xlane.f32.xlu0 %v3177
        %v3179 = vpop.xlane.xlu0 %3178
        %v3180 = vmax.f32 %v3127, %v3129
        %3181 = vmax.xlane.f32.xlu0 %v3180
        %v3182 = vpop.xlane.xlu0 %3181
        %v3183 = vmax.f32 %v3133, %v3135
        %3184 = vmax.xlane.f32.xlu0 %v3183
        %v3185 = vpop.xlane.xlu0 %3184
        %v3186 = vmax.f32 %v3137, %v3139
        %3187 = vmax.xlane.f32.xlu0 %v3186
        %v3188 = vpop.xlane.xlu0 %3187
        %v3189 = vsub.f32 %v3063, %v3143
        %v3190 = vsub.f32 %v3065, %v3143
        %v3191 = vsub.f32 %v3067, %v3146
        %v3192 = vsub.f32 %v3069, %v3146
        %v3193 = vsub.f32 %v3073, %v3149
        %v3194 = vsub.f32 %v3075, %v3149
        %v3195 = vsub.f32 %v3077, %v3152
        %v3196 = vsub.f32 %v3079, %v3152
        %v3197 = vsub.f32 %v3083, %v3155
        %v3198 = vsub.f32 %v3085, %v3155
        %v3199 = vsub.f32 %v3087, %v3158
        %v3200 = vsub.f32 %v3089, %v3158
        %v3201 = vsub.f32 %v3093, %v3161
        %v3202 = vsub.f32 %v3095, %v3161
        %v3203 = vsub.f32 %v3097, %v3164
        %v3204 = vsub.f32 %v3099, %v3164
        %v3205 = vsub.f32 %v3103, %v3167
        %v3206 = vsub.f32 %v3105, %v3167
        %v3207 = vsub.f32 %v3107, %v3170
        %v3208 = vsub.f32 %v3109, %v3170
        %v3209 = vsub.f32 %v3113, %v3173
        %v3210 = vsub.f32 %v3115, %v3173
        %v3211 = vsub.f32 %v3117, %v3176
        %v3212 = vsub.f32 %v3119, %v3176
        %v3213 = vsub.f32 %v3123, %v3179
        %v3214 = vsub.f32 %v3125, %v3179
        %v3215 = vsub.f32 %v3127, %v3182
        %v3216 = vsub.f32 %v3129, %v3182
        %v3217 = vsub.f32 %v3133, %v3185
        %v3218 = vsub.f32 %v3135, %v3185
        %v3219 = vsub.f32 %v3137, %v3188
        %v3220 = vsub.f32 %v3139, %v3188
        %v3221 = vmul.f32 %v3189, 1.442695
        %v3222 = vpow.pop %v3221
        %v3223 = vmul.f32 %v3190, 1.442695
        %v3224 = vpow.pop %v3223
        %v3225 = vmul.f32 %v3191, 1.442695
        %v3226 = vpow.pop %v3225
        %v3227 = vmul.f32 %v3192, 1.442695
        %v3228 = vpow.pop %v3227
        %v3229 = vmul.f32 %v3193, 1.442695
        %v3230 = vpow.pop %v3229
        %v3231 = vmul.f32 %v3194, 1.442695
        %v3232 = vpow.pop %v3231
        %v3233 = vmul.f32 %v3195, 1.442695
        %v3234 = vpow.pop %v3233
        %v3235 = vmul.f32 %v3196, 1.442695
        %v3236 = vpow.pop %v3235
        %v3237 = vmul.f32 %v3197, 1.442695
        %v3238 = vpow.pop %v3237
        %v3239 = vmul.f32 %v3198, 1.442695
        %v3240 = vpow.pop %v3239
        %v3241 = vmul.f32 %v3199, 1.442695
        %v3242 = vpow.pop %v3241
        %v3243 = vmul.f32 %v3200, 1.442695
        %v3244 = vpow.pop %v3243
        %v3245 = vmul.f32 %v3201, 1.442695
        %v3246 = vpow.pop %v3245
        %v3247 = vmul.f32 %v3202, 1.442695
        %v3248 = vpow.pop %v3247
        %v3249 = vmul.f32 %v3203, 1.442695
        %v3250 = vpow.pop %v3249
        %v3251 = vmul.f32 %v3204, 1.442695
        %v3252 = vpow.pop %v3251
        %v3253 = vmul.f32 %v3205, 1.442695
        %v3254 = vpow.pop %v3253
        %v3255 = vmul.f32 %v3206, 1.442695
        %v3256 = vpow.pop %v3255
        %v3257 = vmul.f32 %v3207, 1.442695
        %v3258 = vpow.pop %v3257
        %v3259 = vmul.f32 %v3208, 1.442695
        %v3260 = vpow.pop %v3259
        %v3261 = vmul.f32 %v3209, 1.442695
        %v3262 = vpow.pop %v3261
        %v3263 = vmul.f32 %v3210, 1.442695
        %v3264 = vpow.pop %v3263
        %v3265 = vmul.f32 %v3211, 1.442695
        %v3266 = vpow.pop %v3265
        %v3267 = vmul.f32 %v3212, 1.442695
        %v3268 = vpow.pop %v3267
        %v3269 = vmul.f32 %v3213, 1.442695
        %v3270 = vpow.pop %v3269
        %v3271 = vmul.f32 %v3214, 1.442695
        %v3272 = vpow.pop %v3271
        %v3273 = vmul.f32 %v3215, 1.442695
        %v3274 = vpow.pop %v3273
        %v3275 = vmul.f32 %v3216, 1.442695
        %v3276 = vpow.pop %v3275
        %v3277 = vmul.f32 %v3217, 1.442695
        %v3278 = vpow.pop %v3277
        %v3279 = vmul.f32 %v3218, 1.442695
        %v3280 = vpow.pop %v3279
        %v3281 = vmul.f32 %v3219, 1.442695
        %v3282 = vpow.pop %v3281
        %v3283 = vmul.f32 %v3220, 1.442695
        %v3284 = vpow.pop %v3283
        %v3285 = vadd.f32 %v3222, %v3224
        %3286 = vadd.xlane.f32.xlu0 %v3285
        %v3287 = vpop.xlane.xlu0 %3286
        %v3288 = vadd.f32 %v3226, %v3228
        %3289 = vadd.xlane.f32.xlu0 %v3288
        %v3290 = vpop.xlane.xlu0 %3289
        %v3291 = vadd.f32 %v3230, %v3232
        %3292 = vadd.xlane.f32.xlu0 %v3291
        %v3293 = vpop.xlane.xlu0 %3292
        %v3294 = vadd.f32 %v3234, %v3236
        %3295 = vadd.xlane.f32.xlu0 %v3294
        %v3296 = vpop.xlane.xlu0 %3295
        %v3297 = vadd.f32 %v3238, %v3240
        %3298 = vadd.xlane.f32.xlu0 %v3297
        %v3299 = vpop.xlane.xlu0 %3298
        %v3300 = vadd.f32 %v3242, %v3244
        %3301 = vadd.xlane.f32.xlu0 %v3300
        %v3302 = vpop.xlane.xlu0 %3301
        %v3303 = vadd.f32 %v3246, %v3248
        %3304 = vadd.xlane.f32.xlu0 %v3303
        %v3305 = vpop.xlane.xlu0 %3304
        %v3306 = vadd.f32 %v3250, %v3252
        %3307 = vadd.xlane.f32.xlu0 %v3306
        %v3308 = vpop.xlane.xlu0 %3307
        %v3309 = vadd.f32 %v3254, %v3256
        %3310 = vadd.xlane.f32.xlu0 %v3309
        %v3311 = vpop.xlane.xlu0 %3310
        %v3312 = vadd.f32 %v3258, %v3260
        %3313 = vadd.xlane.f32.xlu0 %v3312
        %v3314 = vpop.xlane.xlu0 %3313
        %v3315 = vadd.f32 %v3262, %v3264
        %3316 = vadd.xlane.f32.xlu0 %v3315
        %v3317 = vpop.xlane.xlu0 %3316
        %v3318 = vadd.f32 %v3266, %v3268
        %3319 = vadd.xlane.f32.xlu0 %v3318
        %v3320 = vpop.xlane.xlu0 %3319
        %v3321 = vadd.f32 %v3270, %v3272
        %3322 = vadd.xlane.f32.xlu0 %v3321
        %v3323 = vpop.xlane.xlu0 %3322
        %v3324 = vadd.f32 %v3274, %v3276
        %3325 = vadd.xlane.f32.xlu0 %v3324
        %v3326 = vpop.xlane.xlu0 %3325
        %v3327 = vadd.f32 %v3278, %v3280
        %3328 = vadd.xlane.f32.xlu0 %v3327
        %v3329 = vpop.xlane.xlu0 %3328
        %v3330 = vadd.f32 %v3282, %v3284
        %3331 = vadd.xlane.f32.xlu0 %v3330
        %v3332 = vpop.xlane.xlu0 %3331
        %v3333 = vrcp.pop %v3287
        %v3334 = vrcp.pop %v3290
        %v3335 = vrcp.pop %v3293
        %v3336 = vrcp.pop %v3296
        %v3337 = vrcp.pop %v3299
        %v3338 = vrcp.pop %v3302
        %v3339 = vrcp.pop %v3305
        %v3340 = vrcp.pop %v3308
        %v3341 = vrcp.pop %v3311
        %v3342 = vrcp.pop %v3314
        %v3343 = vrcp.pop %v3317
        %v3344 = vrcp.pop %v3320
        %v3345 = vrcp.pop %v3323
        %v3346 = vrcp.pop %v3326
        %v3347 = vrcp.pop %v3329
        %v3348 = vrcp.pop %v3332
        %v3349 = vmul.f32 %v3222, %v3333
        %v3350 = vmul.f32 %v3224, %v3333
        %v3351 = vmul.f32 %v3226, %v3334
        %v3352 = vmul.f32 %v3228, %v3334
        %v3353 = vmul.f32 %v3230, %v3335
        %v3354 = vmul.f32 %v3232, %v3335
        %v3355 = vmul.f32 %v3234, %v3336
        %v3356 = vmul.f32 %v3236, %v3336
        %v3357 = vmul.f32 %v3238, %v3337
        %v3358 = vmul.f32 %v3240, %v3337
        %v3359 = vmul.f32 %v3242, %v3338
        %v3360 = vmul.f32 %v3244, %v3338
        %v3361 = vmul.f32 %v3246, %v3339
        %v3362 = vmul.f32 %v3248, %v3339
        %v3363 = vmul.f32 %v3250, %v3340
        %v3364 = vmul.f32 %v3252, %v3340
        %v3365 = vmul.f32 %v3254, %v3341
        %v3366 = vmul.f32 %v3256, %v3341
        %v3367 = vmul.f32 %v3258, %v3342
        %v3368 = vmul.f32 %v3260, %v3342
        %v3369 = vmul.f32 %v3262, %v3343
        %v3370 = vmul.f32 %v3264, %v3343
        %v3371 = vmul.f32 %v3266, %v3344
        %v3372 = vmul.f32 %v3268, %v3344
        %v3373 = vmul.f32 %v3270, %v3345
        %v3374 = vmul.f32 %v3272, %v3345
        %v3375 = vmul.f32 %v3274, %v3346
        %v3376 = vmul.f32 %v3276, %v3346
        %v3377 = vmul.f32 %v3278, %v3347
        %v3378 = vmul.f32 %v3280, %v3347
        %v3379 = vmul.f32 %v3282, %v3348
        %v3380 = vmul.f32 %v3284, %v3348
        %v3381 = vpack.c.bf16 %v3351, %v3349
        %v3382 = vpack.c.bf16 %v3352, %v3350
        %v3383 = vpack.c.bf16 %v3355, %v3353
        %v3384 = vpack.c.bf16 %v3356, %v3354
        %v3385 = vpack.c.bf16 %v3359, %v3357
        %v3386 = vpack.c.bf16 %v3360, %v3358
        %v3387 = vpack.c.bf16 %v3363, %v3361
        %v3388 = vpack.c.bf16 %v3364, %v3362
        %v3389 = vpack.c.bf16 %v3367, %v3365
        %v3390 = vpack.c.bf16 %v3368, %v3366
        %v3391 = vpack.c.bf16 %v3371, %v3369
        %v3392 = vpack.c.bf16 %v3372, %v3370
        %v3393 = vpack.c.bf16 %v3375, %v3373
        %v3394 = vpack.c.bf16 %v3376, %v3374
        %v3395 = vpack.c.bf16 %v3379, %v3377
        %v3396 = vpack.c.bf16 %v3380, %v3378
        %3413 = vrot.lane.b32.xlu0 %v2329, 64
        %v3414 = vpop.permute.xlu0 %3413
        %3415 = vrot.lane.b32.xlu0 %v2330, 64
        %v3416 = vpop.permute.xlu0 %3415
        %3417 = vrot.lane.b32.xlu0 %v2331, 64
        %v3418 = vpop.permute.xlu0 %3417
        %3419 = vrot.lane.b32.xlu0 %v2332, 64
        %v3420 = vpop.permute.xlu0 %3419
        %3421 = vrot.lane.b32.xlu0 %v2333, 64
        %v3422 = vpop.permute.xlu0 %3421
        %3423 = vrot.lane.b32.xlu0 %v2334, 64
        %v3424 = vpop.permute.xlu0 %3423
        %3425 = vrot.lane.b32.xlu0 %v2335, 64
        %v3426 = vpop.permute.xlu0 %3425
        %3427 = vrot.lane.b32.xlu0 %v2336, 64
        %v3428 = vpop.permute.xlu0 %3427
        %3429 = vrot.lane.b32.xlu0 %v2337, 64
        %v3430 = vpop.permute.xlu0 %3429
        %3431 = vrot.lane.b32.xlu0 %v2338, 64
        %v3432 = vpop.permute.xlu0 %3431
        %3433 = vrot.lane.b32.xlu0 %v2339, 64
        %v3434 = vpop.permute.xlu0 %3433
        %3435 = vrot.lane.b32.xlu0 %v2340, 64
        %v3436 = vpop.permute.xlu0 %3435
        %3437 = vrot.lane.b32.xlu0 %v2341, 64
        %v3438 = vpop.permute.xlu0 %3437
        %3439 = vrot.lane.b32.xlu0 %v2342, 64
        %v3440 = vpop.permute.xlu0 %3439
        %3441 = vrot.lane.b32.xlu0 %v2343, 64
        %v3442 = vpop.permute.xlu0 %3441
        %3443 = vrot.lane.b32.xlu0 %v2344, 64
        %v3444 = vpop.permute.xlu0 %3443
        %3461 = vmatprep.subr.bf16.mxu0 0
        %3462 = vmatpush1.bf16.msra.mxu0 %v3414
        %3463 = vmatprep.subr.bf16.mxu0 0
        %3464 = vmatpush1.bf16.msra.mxu0 %v3416
        %3465 = vmatprep.subr.bf16.mxu0 0
        %3466 = vmatpush1.bf16.msra.mxu0 %v3418
        %3467 = vmatprep.subr.bf16.mxu0 0
        %3468 = vmatpush1.bf16.msra.mxu0 %v3420
        %3469 = vmatprep.subr.bf16.mxu0 0
        %3470 = vmatpush1.bf16.msra.mxu0 %v3422
        %3471 = vmatprep.subr.bf16.mxu0 0
        %3472 = vmatpush1.bf16.msra.mxu0 %v3424
        %3473 = vmatprep.subr.bf16.mxu0 0
        %3474 = vmatpush1.bf16.msra.mxu0 %v3426
        %3475 = vmatprep.subr.bf16.mxu0 0
        %3476 = vmatpush1.bf16.msra.mxu0 %v3428
        %3477 = vmatprep.subr.bf16.mxu0 0
        %3478 = vmatpush1.bf16.msra.mxu0 %v3430
        %3479 = vmatprep.subr.bf16.mxu0 0
        %3480 = vmatpush1.bf16.msra.mxu0 %v3432
        %3481 = vmatprep.subr.bf16.mxu0 0
        %3482 = vmatpush1.bf16.msra.mxu0 %v3434
        %3483 = vmatprep.subr.bf16.mxu0 0
        %3484 = vmatpush1.bf16.msra.mxu0 %v3436
        %3485 = vmatprep.subr.bf16.mxu0 0
        %3486 = vmatpush1.bf16.msra.mxu0 %v3438
        %3487 = vmatprep.subr.bf16.mxu0 0
        %3488 = vmatpush1.bf16.msra.mxu0 %v3440
        %3489 = vmatprep.subr.bf16.mxu0 0
        %3490 = vmatpush1.bf16.msra.mxu0 %v3442
        %3491 = vmatprep.subr.bf16.mxu0 0
        %3492 = vmatpush1.bf16.msra.mxu0 %v3444
        %3493 = vmatprep.mubr.bf16.mxu0 %v3382
        %3494 = vmatmul.mubr.bf16.gmra.mrb[0].mxu0 %v3381
        %v3495 = vpop.f32.mrb[0].mxu0
        %v3496 = vadd.f32 0.0, %v3495
        %v3497 = vpop.f32.mrb[0].mxu0
        %v3498 = vpop.f32.mrb[0].mxu0
        %v3499 = vadd.f32 0.0, %v3498
        %v3500 = vpop.f32.mrb[0].mxu0
        %3501 = vmatprep.mubr.bf16.mxu0 %v3384
        %3502 = vmatmul.mubr.bf16.gmra.mrb[0].mxu0 %v3383
        %v3503 = vpop.f32.mrb[0].mxu0
        %v3504 = vadd.f32 0.0, %v3503
        %v3505 = vpop.f32.mrb[0].mxu0
        %v3506 = vpop.f32.mrb[0].mxu0
        %v3507 = vadd.f32 0.0, %v3506
        %v3508 = vpop.f32.mrb[0].mxu0
        %3509 = vmatprep.mubr.bf16.mxu0 %v3386
        %3510 = vmatmul.mubr.bf16.gmra.mrb[0].mxu0 %v3385
        %v3511 = vpop.f32.mrb[0].mxu0
        %v3512 = vadd.f32 0.0, %v3511
        %v3513 = vpop.f32.mrb[0].mxu0
        %v3514 = vpop.f32.mrb[0].mxu0
        %v3515 = vadd.f32 0.0, %v3514
        %v3516 = vpop.f32.mrb[0].mxu0
        %3517 = vmatprep.mubr.bf16.mxu0 %v3388
        %3518 = vmatmul.mubr.bf16.gmra.mrb[0].mxu0 %v3387
        %v3519 = vpop.f32.mrb[0].mxu0
        %v3520 = vadd.f32 0.0, %v3519
        %v3521 = vpop.f32.mrb[0].mxu0
        %v3522 = vpop.f32.mrb[0].mxu0
        %v3523 = vadd.f32 0.0, %v3522
        %v3524 = vpop.f32.mrb[0].mxu0
        %3525 = vmatprep.mubr.bf16.mxu0 %v3390
        %3526 = vmatmul.mubr.bf16.gmra.mrb[0].mxu0 %v3389
        %v3527 = vpop.f32.mrb[0].mxu0
        %v3528 = vadd.f32 0.0, %v3527
        %v3529 = vpop.f32.mrb[0].mxu0
        %v3530 = vpop.f32.mrb[0].mxu0
        %v3531 = vadd.f32 0.0, %v3530
        %v3532 = vpop.f32.mrb[0].mxu0
        %3533 = vmatprep.mubr.bf16.mxu0 %v3392
        %3534 = vmatmul.mubr.bf16.gmra.mrb[0].mxu0 %v3391
        %v3535 = vpop.f32.mrb[0].mxu0
        %v3536 = vadd.f32 0.0, %v3535
        %v3537 = vpop.f32.mrb[0].mxu0
        %v3538 = vpop.f32.mrb[0].mxu0
        %v3539 = vadd.f32 0.0, %v3538
        %v3540 = vpop.f32.mrb[0].mxu0
        %3541 = vmatprep.mubr.bf16.mxu0 %v3394
        %3542 = vmatmul.mubr.bf16.gmra.mrb[0].mxu0 %v3393
        %v3543 = vpop.f32.mrb[0].mxu0
        %v3544 = vadd.f32 0.0, %v3543
        %v3545 = vpop.f32.mrb[0].mxu0
        %v3546 = vpop.f32.mrb[0].mxu0
        %v3547 = vadd.f32 0.0, %v3546
        %v3548 = vpop.f32.mrb[0].mxu0
        %3549 = vmatprep.mubr.bf16.mxu0 %v3396
        %3550 = vmatmul.mubr.bf16.gmra.mrb[0].mxu0 %v3395
        %v3551 = vpop.f32.mrb[0].mxu0
        %v3552 = vadd.f32 0.0, %v3551
        %v3553 = vpop.f32.mrb[0].mxu0
        %v3554 = vpop.f32.mrb[0].mxu0
        %v3555 = vadd.f32 0.0, %v3554
        %v3556 = vpop.f32.mrb[0].mxu0
        %3557 = vdwg.mxu0
        %3574 = vrot.lane.b32.xlu0 %v3496, 64
        %v3575 = vpop.permute.xlu0 %3574
        %3576 = vrot.lane.b32.xlu0 %v3499, 64
        %v3577 = vpop.permute.xlu0 %3576
        %3578 = vrot.lane.b32.xlu0 %v3504, 64
        %v3579 = vpop.permute.xlu0 %3578
        %3580 = vrot.lane.b32.xlu0 %v3507, 64
        %v3581 = vpop.permute.xlu0 %3580
        %3582 = vrot.lane.b32.xlu0 %v3512, 64
        %v3583 = vpop.permute.xlu0 %3582
        %3584 = vrot.lane.b32.xlu0 %v3515, 64
        %v3585 = vpop.permute.xlu0 %3584
        %3586 = vrot.lane.b32.xlu0 %v3520, 64
        %v3587 = vpop.permute.xlu0 %3586
        %3588 = vrot.lane.b32.xlu0 %v3523, 64
        %v3589 = vpop.permute.xlu0 %3588
        %3590 = vrot.lane.b32.xlu0 %v3528, 64
        %v3591 = vpop.permute.xlu0 %3590
        %3592 = vrot.lane.b32.xlu0 %v3531, 64
        %v3593 = vpop.permute.xlu0 %3592
        %3594 = vrot.lane.b32.xlu0 %v3536, 64
        %v3595 = vpop.permute.xlu0 %3594
        %3596 = vrot.lane.b32.xlu0 %v3539, 64
        %v3597 = vpop.permute.xlu0 %3596
        %3598 = vrot.lane.b32.xlu0 %v3544, 64
        %v3599 = vpop.permute.xlu0 %3598
        %3600 = vrot.lane.b32.xlu0 %v3547, 64
        %v3601 = vpop.permute.xlu0 %3600
        %3602 = vrot.lane.b32.xlu0 %v3552, 64
        %v3603 = vpop.permute.xlu0 %3602
        %3604 = vrot.lane.b32.xlu0 %v3555, 64
        %v3605 = vpop.permute.xlu0 %3604
        %v3622 = vsel %vm2345, %v2822, %v3575
        %v3623 = vsel %vm2345, %v2825, %v3577
        %v3624 = vsel %vm2345, %v2830, %v3579
        %v3625 = vsel %vm2345, %v2833, %v3581
        %v3626 = vsel %vm2345, %v2838, %v3583
        %v3627 = vsel %vm2345, %v2841, %v3585
        %v3628 = vsel %vm2345, %v2846, %v3587
        %v3629 = vsel %vm2345, %v2849, %v3589
        %v3630 = vsel %vm2345, %v2854, %v3591
        %v3631 = vsel %vm2345, %v2857, %v3593
        %v3632 = vsel %vm2345, %v2862, %v3595
        %v3633 = vsel %vm2345, %v2865, %v3597
        %v3634 = vsel %vm2345, %v2870, %v3599
        %v3635 = vsel %vm2345, %v2873, %v3601
        %v3636 = vsel %vm2345, %v2878, %v3603
        %v3637 = vsel %vm2345, %v2881, %v3605
        %v3638 = vpack.c.bf16 %v3623, %v3622
        %v3639 = vpack.c.bf16 %v3625, %v3624
        %v3640 = vpack.c.bf16 %v3627, %v3626
        %v3641 = vpack.c.bf16 %v3629, %v3628
        %v3642 = vpack.c.bf16 %v3631, %v3630
        %v3643 = vpack.c.bf16 %v3633, %v3632
        %v3644 = vpack.c.bf16 %v3635, %v3634
        %v3645 = vpack.c.bf16 %v3637, %v3636
        %3646 = vst [vmem:[#allocation4] sm:$0xff] %v3638
        %3647 = vst [vmem:[#allocation4 + $0x10] sm:$0xff] %v3639
        %3648 = vst [vmem:[#allocation4 + $0x20] sm:$0xff] %v3640
        %3649 = vst [vmem:[#allocation4 + $0x30] sm:$0xff] %v3641
        %3650 = vst [vmem:[#allocation4 + $0x40] sm:$0xff] %v3642
        %3651 = vst [vmem:[#allocation4 + $0x50] sm:$0xff] %v3643
        %3652 = vst [vmem:[#allocation4 + $0x60] sm:$0xff] %v3644
        %3653 = vst [vmem:[#allocation4 + $0x70] sm:$0xff] %v3645
        %v3654 = vld [vmem:[#allocation2 + $0x8] sm:$0xff]
        %v3655 = vld [vmem:[#allocation2 + $0x18] sm:$0xff]
        %v3656 = vld [vmem:[#allocation2 + $0x28] sm:$0xff]
        %v3657 = vld [vmem:[#allocation2 + $0x38] sm:$0xff]
        %v3658 = vld [vmem:[#allocation2 + $0x48] sm:$0xff]
        %v3659 = vld [vmem:[#allocation2 + $0x58] sm:$0xff]
        %v3660 = vld [vmem:[#allocation2 + $0x68] sm:$0xff]
        %v3661 = vld [vmem:[#allocation2 + $0x78] sm:$0xff]
        %v3662 = vld [vmem:[#allocation2 + $0x88] sm:$0xff]
        %v3663 = vld [vmem:[#allocation2 + $0x98] sm:$0xff]
        %v3664 = vld [vmem:[#allocation2 + $0xa8] sm:$0xff]
        %v3665 = vld [vmem:[#allocation2 + $0xb8] sm:$0xff]
        %v3666 = vld [vmem:[#allocation2 + $0xc8] sm:$0xff]
        %v3667 = vld [vmem:[#allocation2 + $0xd8] sm:$0xff]
        %v3668 = vld [vmem:[#allocation2 + $0xe8] sm:$0xff]
        %v3669 = vld [vmem:[#allocation2 + $0xf8] sm:$0xff]
        %v3670 = vld [vmem:[#allocation3 + $0x8] sm:$0xff]
        %v3671 = vld [vmem:[#allocation3 + $0x18] sm:$0xff]
        %v3672 = vld [vmem:[#allocation3 + $0x28] sm:$0xff]
        %v3673 = vld [vmem:[#allocation3 + $0x38] sm:$0xff]
        %v3674 = vld [vmem:[#allocation3 + $0x48] sm:$0xff]
        %v3675 = vld [vmem:[#allocation3 + $0x58] sm:$0xff]
        %v3676 = vld [vmem:[#allocation3 + $0x68] sm:$0xff]
        %v3677 = vld [vmem:[#allocation3 + $0x78] sm:$0xff]
        %v3678 = vld [vmem:[#allocation3 + $0x88] sm:$0xff]
        %v3679 = vld [vmem:[#allocation3 + $0x98] sm:$0xff]
        %v3680 = vld [vmem:[#allocation3 + $0xa8] sm:$0xff]
        %v3681 = vld [vmem:[#allocation3 + $0xb8] sm:$0xff]
        %v3682 = vld [vmem:[#allocation3 + $0xc8] sm:$0xff]
        %v3683 = vld [vmem:[#allocation3 + $0xd8] sm:$0xff]
        %v3684 = vld [vmem:[#allocation3 + $0xe8] sm:$0xff]
        %v3685 = vld [vmem:[#allocation3 + $0xf8] sm:$0xff]
        %v3687 = vsel %vm2345, %v2286, 0
        %v3690 = vsel %vm2345, %v2288, 0
        %v3693 = vsel %vm2345, %v2290, 0
        %v3696 = vsel %vm2345, %v2292, 0
        %v3699 = vsel %vm2345, %v2294, 0
        %v3702 = vsel %vm2345, %v2296, 0
        %v3705 = vsel %vm2345, %v2298, 0
        %v3708 = vsel %vm2345, %v2300, 0
        %v3711 = vsel %vm2345, %v3654, 0
        %v3714 = vsel %vm2345, %v3655, 0
        %v3717 = vsel %vm2345, %v3656, 0
        %v3720 = vsel %vm2345, %v3657, 0
        %v3723 = vsel %vm2345, %v3658, 0
        %v3726 = vsel %vm2345, %v3659, 0
        %v3729 = vsel %vm2345, %v3660, 0
        %v3732 = vsel %vm2345, %v3661, 0
        %v3735 = vsel %vm2345, %v3662, 0
        %v3738 = vsel %vm2345, %v3663, 0
        %v3741 = vsel %vm2345, %v3664, 0
        %v3744 = vsel %vm2345, %v3665, 0
        %v3747 = vsel %vm2345, %v3666, 0
        %v3750 = vsel %vm2345, %v3667, 0
        %v3753 = vsel %vm2345, %v3668, 0
        %v3756 = vsel %vm2345, %v3669, 0
        %3758 = vmatprep.subr.bf16.mxu0 0
        %3759 = vmatpush1.bf16.xpose.msra.mxu0 %v3711
        %3760 = vmatprep.subr.bf16.mxu0 0
        %3761 = vmatpush1.bf16.xpose.msra.mxu0 %v3714
        %3762 = vmatprep.subr.bf16.mxu0 0
        %3763 = vmatpush1.bf16.xpose.msra.mxu0 %v3717
        %3764 = vmatprep.subr.bf16.mxu0 0
        %3765 = vmatpush1.bf16.xpose.msra.mxu0 %v3720
        %3766 = vmatprep.subr.bf16.mxu0 0
        %3767 = vmatpush1.bf16.xpose.msra.mxu0 %v3723
        %3768 = vmatprep.subr.bf16.mxu0 0
        %3769 = vmatpush1.bf16.xpose.msra.mxu0 %v3726
        %3770 = vmatprep.subr.bf16.mxu0 0
        %3771 = vmatpush1.bf16.xpose.msra.mxu0 %v3729
        %3772 = vmatprep.subr.bf16.mxu0 0
        %3773 = vmatpush1.bf16.xpose.msra.mxu0 %v3732
        %3774 = vmatprep.subr.bf16.mxu0 0
        %3775 = vmatpush1.bf16.xpose.msra.mxu0 %v3735
        %3776 = vmatprep.subr.bf16.mxu0 0
        %3777 = vmatpush1.bf16.xpose.msra.mxu0 %v3738
        %3778 = vmatprep.subr.bf16.mxu0 0
        %3779 = vmatpush1.bf16.xpose.msra.mxu0 %v3741
        %3780 = vmatprep.subr.bf16.mxu0 0
        %3781 = vmatpush1.bf16.xpose.msra.mxu0 %v3744
        %3782 = vmatprep.subr.bf16.mxu0 0
        %3783 = vmatpush1.bf16.xpose.msra.mxu0 %v3747
        %3784 = vmatprep.subr.bf16.mxu0 0
        %3785 = vmatpush1.bf16.xpose.msra.mxu0 %v3750
        %3786 = vmatprep.subr.bf16.mxu0 0
        %3787 = vmatpush1.bf16.xpose.msra.mxu0 %v3753
        %3788 = vmatprep.subr.bf16.mxu0 0
        %3789 = vmatpush1.bf16.xpose.msra.mxu0 %v3756
        %3790 = vmatprep.mubr.bf16.mxu0 0
        %3791 = vmatmul.mubr.bf16.gmra.mrb[0].mxu0 %v3687
        %v3792 = vpop.f32.mrb[0].mxu0
        %v3793 = vadd.f32 %v2306, %v3792
        %v3794 = vpop.f32.mrb[0].mxu0
        %v3795 = vadd.f32 %v2310, %v3794
        %v3796 = vpop.f32.mrb[0].mxu0
        %v3797 = vadd.f32 %v2306, %v3796
        %v3798 = vpop.f32.mrb[0].mxu0
        %v3799 = vadd.f32 %v2310, %v3798
        %3800 = vmatprep.mubr.bf16.mxu0 0
        %3801 = vmatmul.mubr.bf16.gmra.mrb[0].mxu0 %v3690
        %v3802 = vpop.f32.mrb[0].mxu0
        %v3803 = vadd.f32 %v2306, %v3802
        %v3804 = vpop.f32.mrb[0].mxu0
        %v3805 = vadd.f32 %v2310, %v3804
        %v3806 = vpop.f32.mrb[0].mxu0
        %v3807 = vadd.f32 %v2306, %v3806
        %v3808 = vpop.f32.mrb[0].mxu0
        %v3809 = vadd.f32 %v2310, %v3808
        %3810 = vmatprep.mubr.bf16.mxu0 0
        %3811 = vmatmul.mubr.bf16.gmra.mrb[0].mxu0 %v3693
        %v3812 = vpop.f32.mrb[0].mxu0
        %v3813 = vadd.f32 %v2306, %v3812
        %v3814 = vpop.f32.mrb[0].mxu0
        %v3815 = vadd.f32 %v2310, %v3814
        %v3816 = vpop.f32.mrb[0].mxu0
        %v3817 = vadd.f32 %v2306, %v3816
        %v3818 = vpop.f32.mrb[0].mxu0
        %v3819 = vadd.f32 %v2310, %v3818
        %3820 = vmatprep.mubr.bf16.mxu0 0
        %3821 = vmatmul.mubr.bf16.gmra.mrb[0].mxu0 %v3696
        %v3822 = vpop.f32.mrb[0].mxu0
        %v3823 = vadd.f32 %v2306, %v3822
        %v3824 = vpop.f32.mrb[0].mxu0
        %v3825 = vadd.f32 %v2310, %v3824
        %v3826 = vpop.f32.mrb[0].mxu0
        %v3827 = vadd.f32 %v2306, %v3826
        %v3828 = vpop.f32.mrb[0].mxu0
        %v3829 = vadd.f32 %v2310, %v3828
        %3830 = vmatprep.mubr.bf16.mxu0 0
        %3831 = vmatmul.mubr.bf16.gmra.mrb[0].mxu0 %v3699
        %v3832 = vpop.f32.mrb[0].mxu0
        %v3833 = vadd.f32 %v2306, %v3832
        %v3834 = vpop.f32.mrb[0].mxu0
        %v3835 = vadd.f32 %v2310, %v3834
        %v3836 = vpop.f32.mrb[0].mxu0
        %v3837 = vadd.f32 %v2306, %v3836
        %v3838 = vpop.f32.mrb[0].mxu0
        %v3839 = vadd.f32 %v2310, %v3838
        %3840 = vmatprep.mubr.bf16.mxu0 0
        %3841 = vmatmul.mubr.bf16.gmra.mrb[0].mxu0 %v3702
        %v3842 = vpop.f32.mrb[0].mxu0
        %v3843 = vadd.f32 %v2306, %v3842
        %v3844 = vpop.f32.mrb[0].mxu0
        %v3845 = vadd.f32 %v2310, %v3844
        %v3846 = vpop.f32.mrb[0].mxu0
        %v3847 = vadd.f32 %v2306, %v3846
        %v3848 = vpop.f32.mrb[0].mxu0
        %v3849 = vadd.f32 %v2310, %v3848
        %3850 = vmatprep.mubr.bf16.mxu0 0
        %3851 = vmatmul.mubr.bf16.gmra.mrb[0].mxu0 %v3705
        %v3852 = vpop.f32.mrb[0].mxu0
        %v3853 = vadd.f32 %v2306, %v3852
        %v3854 = vpop.f32.mrb[0].mxu0
        %v3855 = vadd.f32 %v2310, %v3854
        %v3856 = vpop.f32.mrb[0].mxu0
        %v3857 = vadd.f32 %v2306, %v3856
        %v3858 = vpop.f32.mrb[0].mxu0
        %v3859 = vadd.f32 %v2310, %v3858
        %3860 = vmatprep.mubr.bf16.mxu0 0
        %3861 = vmatmul.mubr.bf16.gmra.mrb[0].mxu0 %v3708
        %v3862 = vpop.f32.mrb[0].mxu0
        %v3863 = vadd.f32 %v2306, %v3862
        %v3864 = vpop.f32.mrb[0].mxu0
        %v3865 = vadd.f32 %v2310, %v3864
        %v3866 = vpop.f32.mrb[0].mxu0
        %v3867 = vadd.f32 %v2306, %v3866
        %v3868 = vpop.f32.mrb[0].mxu0
        %v3869 = vadd.f32 %v2310, %v3868
        %3870 = vdwg.mxu0
        %v3871 = vmax.f32 %v3793, %v3795
        %3872 = vmax.xlane.f32.xlu0 %v3871
        %v3873 = vpop.xlane.xlu0 %3872
        %v3874 = vmax.f32 %v3797, %v3799
        %3875 = vmax.xlane.f32.xlu0 %v3874
        %v3876 = vpop.xlane.xlu0 %3875
        %v3877 = vmax.f32 %v3803, %v3805
        %3878 = vmax.xlane.f32.xlu0 %v3877
        %v3879 = vpop.xlane.xlu0 %3878
        %v3880 = vmax.f32 %v3807, %v3809
        %3881 = vmax.xlane.f32.xlu0 %v3880
        %v3882 = vpop.xlane.xlu0 %3881
        %v3883 = vmax.f32 %v3813, %v3815
        %3884 = vmax.xlane.f32.xlu0 %v3883
        %v3885 = vpop.xlane.xlu0 %3884
        %v3886 = vmax.f32 %v3817, %v3819
        %3887 = vmax.xlane.f32.xlu0 %v3886
        %v3888 = vpop.xlane.xlu0 %3887
        %v3889 = vmax.f32 %v3823, %v3825
        %3890 = vmax.xlane.f32.xlu0 %v3889
        %v3891 = vpop.xlane.xlu0 %3890
        %v3892 = vmax.f32 %v3827, %v3829
        %3893 = vmax.xlane.f32.xlu0 %v3892
        %v3894 = vpop.xlane.xlu0 %3893
        %v3895 = vmax.f32 %v3833, %v3835
        %3896 = vmax.xlane.f32.xlu0 %v3895
        %v3897 = vpop.xlane.xlu0 %3896
        %v3898 = vmax.f32 %v3837, %v3839
        %3899 = vmax.xlane.f32.xlu0 %v3898
        %v3900 = vpop.xlane.xlu0 %3899
        %v3901 = vmax.f32 %v3843, %v3845
        %3902 = vmax.xlane.f32.xlu0 %v3901
        %v3903 = vpop.xlane.xlu0 %3902
        %v3904 = vmax.f32 %v3847, %v3849
        %3905 = vmax.xlane.f32.xlu0 %v3904
        %v3906 = vpop.xlane.xlu0 %3905
        %v3907 = vmax.f32 %v3853, %v3855
        %3908 = vmax.xlane.f32.xlu0 %v3907
        %v3909 = vpop.xlane.xlu0 %3908
        %v3910 = vmax.f32 %v3857, %v3859
        %3911 = vmax.xlane.f32.xlu0 %v3910
        %v3912 = vpop.xlane.xlu0 %3911
        %v3913 = vmax.f32 %v3863, %v3865
        %3914 = vmax.xlane.f32.xlu0 %v3913
        %v3915 = vpop.xlane.xlu0 %3914
        %v3916 = vmax.f32 %v3867, %v3869
        %3917 = vmax.xlane.f32.xlu0 %v3916
        %v3918 = vpop.xlane.xlu0 %3917
        %v3919 = vsub.f32 %v3793, %v3873
        %v3920 = vsub.f32 %v3795, %v3873
        %v3921 = vsub.f32 %v3797, %v3876
        %v3922 = vsub.f32 %v3799, %v3876
        %v3923 = vsub.f32 %v3803, %v3879
        %v3924 = vsub.f32 %v3805, %v3879
        %v3925 = vsub.f32 %v3807, %v3882
        %v3926 = vsub.f32 %v3809, %v3882
        %v3927 = vsub.f32 %v3813, %v3885
        %v3928 = vsub.f32 %v3815, %v3885
        %v3929 = vsub.f32 %v3817, %v3888
        %v3930 = vsub.f32 %v3819, %v3888
        %v3931 = vsub.f32 %v3823, %v3891
        %v3932 = vsub.f32 %v3825, %v3891
        %v3933 = vsub.f32 %v3827, %v3894
        %v3934 = vsub.f32 %v3829, %v3894
        %v3935 = vsub.f32 %v3833, %v3897
        %v3936 = vsub.f32 %v3835, %v3897
        %v3937 = vsub.f32 %v3837, %v3900
        %v3938 = vsub.f32 %v3839, %v3900
        %v3939 = vsub.f32 %v3843, %v3903
        %v3940 = vsub.f32 %v3845, %v3903
        %v3941 = vsub.f32 %v3847, %v3906
        %v3942 = vsub.f32 %v3849, %v3906
        %v3943 = vsub.f32 %v3853, %v3909
        %v3944 = vsub.f32 %v3855, %v3909
        %v3945 = vsub.f32 %v3857, %v3912
        %v3946 = vsub.f32 %v3859, %v3912
        %v3947 = vsub.f32 %v3863, %v3915
        %v3948 = vsub.f32 %v3865, %v3915
        %v3949 = vsub.f32 %v3867, %v3918
        %v3950 = vsub.f32 %v3869, %v3918
        %v3951 = vmul.f32 %v3919, 1.442695
        %v3952 = vpow.pop %v3951
        %v3953 = vmul.f32 %v3920, 1.442695
        %v3954 = vpow.pop %v3953
        %v3955 = vmul.f32 %v3921, 1.442695
        %v3956 = vpow.pop %v3955
        %v3957 = vmul.f32 %v3922, 1.442695
        %v3958 = vpow.pop %v3957
        %v3959 = vmul.f32 %v3923, 1.442695
        %v3960 = vpow.pop %v3959
        %v3961 = vmul.f32 %v3924, 1.442695
        %v3962 = vpow.pop %v3961
        %v3963 = vmul.f32 %v3925, 1.442695
        %v3964 = vpow.pop %v3963
        %v3965 = vmul.f32 %v3926, 1.442695
        %v3966 = vpow.pop %v3965
        %v3967 = vmul.f32 %v3927, 1.442695
        %v3968 = vpow.pop %v3967
        %v3969 = vmul.f32 %v3928, 1.442695
        %v3970 = vpow.pop %v3969
        %v3971 = vmul.f32 %v3929, 1.442695
        %v3972 = vpow.pop %v3971
        %v3973 = vmul.f32 %v3930, 1.442695
        %v3974 = vpow.pop %v3973
        %v3975 = vmul.f32 %v3931, 1.442695
        %v3976 = vpow.pop %v3975
        %v3977 = vmul.f32 %v3932, 1.442695
        %v3978 = vpow.pop %v3977
        %v3979 = vmul.f32 %v3933, 1.442695
        %v3980 = vpow.pop %v3979
        %v3981 = vmul.f32 %v3934, 1.442695
        %v3982 = vpow.pop %v3981
        %v3983 = vmul.f32 %v3935, 1.442695
        %v3984 = vpow.pop %v3983
        %v3985 = vmul.f32 %v3936, 1.442695
        %v3986 = vpow.pop %v3985
        %v3987 = vmul.f32 %v3937, 1.442695
        %v3988 = vpow.pop %v3987
        %v3989 = vmul.f32 %v3938, 1.442695
        %v3990 = vpow.pop %v3989
        %v3991 = vmul.f32 %v3939, 1.442695
        %v3992 = vpow.pop %v3991
        %v3993 = vmul.f32 %v3940, 1.442695
        %v3994 = vpow.pop %v3993
        %v3995 = vmul.f32 %v3941, 1.442695
        %v3996 = vpow.pop %v3995
        %v3997 = vmul.f32 %v3942, 1.442695
        %v3998 = vpow.pop %v3997
        %v3999 = vmul.f32 %v3943, 1.442695
        %v4000 = vpow.pop %v3999
        %v4001 = vmul.f32 %v3944, 1.442695
        %v4002 = vpow.pop %v4001
        %v4003 = vmul.f32 %v3945, 1.442695
        %v4004 = vpow.pop %v4003
        %v4005 = vmul.f32 %v3946, 1.442695
        %v4006 = vpow.pop %v4005
        %v4007 = vmul.f32 %v3947, 1.442695
        %v4008 = vpow.pop %v4007
        %v4009 = vmul.f32 %v3948, 1.442695
        %v4010 = vpow.pop %v4009
        %v4011 = vmul.f32 %v3949, 1.442695
        %v4012 = vpow.pop %v4011
        %v4013 = vmul.f32 %v3950, 1.442695
        %v4014 = vpow.pop %v4013
        %v4015 = vadd.f32 %v3952, %v3954
        %4016 = vadd.xlane.f32.xlu0 %v4015
        %v4017 = vpop.xlane.xlu0 %4016
        %v4018 = vadd.f32 %v3956, %v3958
        %4019 = vadd.xlane.f32.xlu0 %v4018
        %v4020 = vpop.xlane.xlu0 %4019
        %v4021 = vadd.f32 %v3960, %v3962
        %4022 = vadd.xlane.f32.xlu0 %v4021
        %v4023 = vpop.xlane.xlu0 %4022
        %v4024 = vadd.f32 %v3964, %v3966
        %4025 = vadd.xlane.f32.xlu0 %v4024
        %v4026 = vpop.xlane.xlu0 %4025
        %v4027 = vadd.f32 %v3968, %v3970
        %4028 = vadd.xlane.f32.xlu0 %v4027
        %v4029 = vpop.xlane.xlu0 %4028
        %v4030 = vadd.f32 %v3972, %v3974
        %4031 = vadd.xlane.f32.xlu0 %v4030
        %v4032 = vpop.xlane.xlu0 %4031
        %v4033 = vadd.f32 %v3976, %v3978
        %4034 = vadd.xlane.f32.xlu0 %v4033
        %v4035 = vpop.xlane.xlu0 %4034
        %v4036 = vadd.f32 %v3980, %v3982
        %4037 = vadd.xlane.f32.xlu0 %v4036
        %v4038 = vpop.xlane.xlu0 %4037
        %v4039 = vadd.f32 %v3984, %v3986
        %4040 = vadd.xlane.f32.xlu0 %v4039
        %v4041 = vpop.xlane.xlu0 %4040
        %v4042 = vadd.f32 %v3988, %v3990
        %4043 = vadd.xlane.f32.xlu0 %v4042
        %v4044 = vpop.xlane.xlu0 %4043
        %v4045 = vadd.f32 %v3992, %v3994
        %4046 = vadd.xlane.f32.xlu0 %v4045
        %v4047 = vpop.xlane.xlu0 %4046
        %v4048 = vadd.f32 %v3996, %v3998
        %4049 = vadd.xlane.f32.xlu0 %v4048
        %v4050 = vpop.xlane.xlu0 %4049
        %v4051 = vadd.f32 %v4000, %v4002
        %4052 = vadd.xlane.f32.xlu0 %v4051
        %v4053 = vpop.xlane.xlu0 %4052
        %v4054 = vadd.f32 %v4004, %v4006
        %4055 = vadd.xlane.f32.xlu0 %v4054
        %v4056 = vpop.xlane.xlu0 %4055
        %v4057 = vadd.f32 %v4008, %v4010
        %4058 = vadd.xlane.f32.xlu0 %v4057
        %v4059 = vpop.xlane.xlu0 %4058
        %v4060 = vadd.f32 %v4012, %v4014
        %4061 = vadd.xlane.f32.xlu0 %v4060
        %v4062 = vpop.xlane.xlu0 %4061
        %v4063 = vrcp.pop %v4017
        %v4064 = vrcp.pop %v4020
        %v4065 = vrcp.pop %v4023
        %v4066 = vrcp.pop %v4026
        %v4067 = vrcp.pop %v4029
        %v4068 = vrcp.pop %v4032
        %v4069 = vrcp.pop %v4035
        %v4070 = vrcp.pop %v4038
        %v4071 = vrcp.pop %v4041
        %v4072 = vrcp.pop %v4044
        %v4073 = vrcp.pop %v4047
        %v4074 = vrcp.pop %v4050
        %v4075 = vrcp.pop %v4053
        %v4076 = vrcp.pop %v4056
        %v4077 = vrcp.pop %v4059
        %v4078 = vrcp.pop %v4062
        %v4079 = vmul.f32 %v3952, %v4063
        %v4080 = vmul.f32 %v3954, %v4063
        %v4081 = vmul.f32 %v3956, %v4064
        %v4082 = vmul.f32 %v3958, %v4064
        %v4083 = vmul.f32 %v3960, %v4065
        %v4084 = vmul.f32 %v3962, %v4065
        %v4085 = vmul.f32 %v3964, %v4066
        %v4086 = vmul.f32 %v3966, %v4066
        %v4087 = vmul.f32 %v3968, %v4067
        %v4088 = vmul.f32 %v3970, %v4067
        %v4089 = vmul.f32 %v3972, %v4068
        %v4090 = vmul.f32 %v3974, %v4068
        %v4091 = vmul.f32 %v3976, %v4069
        %v4092 = vmul.f32 %v3978, %v4069
        %v4093 = vmul.f32 %v3980, %v4070
        %v4094 = vmul.f32 %v3982, %v4070
        %v4095 = vmul.f32 %v3984, %v4071
        %v4096 = vmul.f32 %v3986, %v4071
        %v4097 = vmul.f32 %v3988, %v4072
        %v4098 = vmul.f32 %v3990, %v4072
        %v4099 = vmul.f32 %v3992, %v4073
        %v4100 = vmul.f32 %v3994, %v4073
        %v4101 = vmul.f32 %v3996, %v4074
        %v4102 = vmul.f32 %v3998, %v4074
        %v4103 = vmul.f32 %v4000, %v4075
        %v4104 = vmul.f32 %v4002, %v4075
        %v4105 = vmul.f32 %v4004, %v4076
        %v4106 = vmul.f32 %v4006, %v4076
        %v4107 = vmul.f32 %v4008, %v4077
        %v4108 = vmul.f32 %v4010, %v4077
        %v4109 = vmul.f32 %v4012, %v4078
        %v4110 = vmul.f32 %v4014, %v4078
        %v4111 = vpack.c.bf16 %v4081, %v4079
        %v4112 = vpack.c.bf16 %v4082, %v4080
        %v4113 = vpack.c.bf16 %v4085, %v4083
        %v4114 = vpack.c.bf16 %v4086, %v4084
        %v4115 = vpack.c.bf16 %v4089, %v4087
        %v4116 = vpack.c.bf16 %v4090, %v4088
        %v4117 = vpack.c.bf16 %v4093, %v4091
        %v4118 = vpack.c.bf16 %v4094, %v4092
        %v4119 = vpack.c.bf16 %v4097, %v4095
        %v4120 = vpack.c.bf16 %v4098, %v4096
        %v4121 = vpack.c.bf16 %v4101, %v4099
        %v4122 = vpack.c.bf16 %v4102, %v4100
        %v4123 = vpack.c.bf16 %v4105, %v4103
        %v4124 = vpack.c.bf16 %v4106, %v4104
        %v4125 = vpack.c.bf16 %v4109, %v4107
        %v4126 = vpack.c.bf16 %v4110, %v4108
        %4127 = vmatprep.subr.bf16.mxu0 0
        %4128 = vmatpush1.bf16.msra.mxu0 %v3670
        %4129 = vmatprep.subr.bf16.mxu0 0
        %4130 = vmatpush1.bf16.msra.mxu0 %v3671
        %4131 = vmatprep.subr.bf16.mxu0 0
        %4132 = vmatpush1.bf16.msra.mxu0 %v3672
        %4133 = vmatprep.subr.bf16.mxu0 0
        %4134 = vmatpush1.bf16.msra.mxu0 %v3673
        %4135 = vmatprep.subr.bf16.mxu0 0
        %4136 = vmatpush1.bf16.msra.mxu0 %v3674
        %4137 = vmatprep.subr.bf16.mxu0 0
        %4138 = vmatpush1.bf16.msra.mxu0 %v3675
        %4139 = vmatprep.subr.bf16.mxu0 0
        %4140 = vmatpush1.bf16.msra.mxu0 %v3676
        %4141 = vmatprep.subr.bf16.mxu0 0
        %4142 = vmatpush1.bf16.msra.mxu0 %v3677
        %4143 = vmatprep.subr.bf16.mxu0 0
        %4144 = vmatpush1.bf16.msra.mxu0 %v3678
        %4145 = vmatprep.subr.bf16.mxu0 0
        %4146 = vmatpush1.bf16.msra.mxu0 %v3679
        %4147 = vmatprep.subr.bf16.mxu0 0
        %4148 = vmatpush1.bf16.msra.mxu0 %v3680
        %4149 = vmatprep.subr.bf16.mxu0 0
        %4150 = vmatpush1.bf16.msra.mxu0 %v3681
        %4151 = vmatprep.subr.bf16.mxu0 0
        %4152 = vmatpush1.bf16.msra.mxu0 %v3682
        %4153 = vmatprep.subr.bf16.mxu0 0
        %4154 = vmatpush1.bf16.msra.mxu0 %v3683
        %4155 = vmatprep.subr.bf16.mxu0 0
        %4156 = vmatpush1.bf16.msra.mxu0 %v3684
        %4157 = vmatprep.subr.bf16.mxu0 0
        %4158 = vmatpush1.bf16.msra.mxu0 %v3685
        %4159 = vmatprep.mubr.bf16.mxu0 %v4112
        %4160 = vmatmul.mubr.bf16.gmra.mrb[0].mxu0 %v4111
        %v4161 = vpop.f32.mrb[0].mxu0
        %v4162 = vadd.f32 0.0, %v4161
        %v4163 = vpop.f32.mrb[0].mxu0
        %v4164 = vpop.f32.mrb[0].mxu0
        %v4165 = vadd.f32 0.0, %v4164
        %v4166 = vpop.f32.mrb[0].mxu0
        %4167 = vmatprep.mubr.bf16.mxu0 %v4114
        %4168 = vmatmul.mubr.bf16.gmra.mrb[0].mxu0 %v4113
        %v4169 = vpop.f32.mrb[0].mxu0
        %v4170 = vadd.f32 0.0, %v4169
        %v4171 = vpop.f32.mrb[0].mxu0
        %v4172 = vpop.f32.mrb[0].mxu0
        %v4173 = vadd.f32 0.0, %v4172
        %v4174 = vpop.f32.mrb[0].mxu0
        %4175 = vmatprep.mubr.bf16.mxu0 %v4116
        %4176 = vmatmul.mubr.bf16.gmra.mrb[0].mxu0 %v4115
        %v4177 = vpop.f32.mrb[0].mxu0
        %v4178 = vadd.f32 0.0, %v4177
        %v4179 = vpop.f32.mrb[0].mxu0
        %v4180 = vpop.f32.mrb[0].mxu0
        %v4181 = vadd.f32 0.0, %v4180
        %v4182 = vpop.f32.mrb[0].mxu0
        %4183 = vmatprep.mubr.bf16.mxu0 %v4118
        %4184 = vmatmul.mubr.bf16.gmra.mrb[0].mxu0 %v4117
        %v4185 = vpop.f32.mrb[0].mxu0
        %v4186 = vadd.f32 0.0, %v4185
        %v4187 = vpop.f32.mrb[0].mxu0
        %v4188 = vpop.f32.mrb[0].mxu0
        %v4189 = vadd.f32 0.0, %v4188
        %v4190 = vpop.f32.mrb[0].mxu0
        %4191 = vmatprep.mubr.bf16.mxu0 %v4120
        %4192 = vmatmul.mubr.bf16.gmra.mrb[0].mxu0 %v4119
        %v4193 = vpop.f32.mrb[0].mxu0
        %v4194 = vadd.f32 0.0, %v4193
        %v4195 = vpop.f32.mrb[0].mxu0
        %v4196 = vpop.f32.mrb[0].mxu0
        %v4197 = vadd.f32 0.0, %v4196
        %v4198 = vpop.f32.mrb[0].mxu0
        %4199 = vmatprep.mubr.bf16.mxu0 %v4122
        %4200 = vmatmul.mubr.bf16.gmra.mrb[0].mxu0 %v4121
        %v4201 = vpop.f32.mrb[0].mxu0
        %v4202 = vadd.f32 0.0, %v4201
        %v4203 = vpop.f32.mrb[0].mxu0
        %v4204 = vpop.f32.mrb[0].mxu0
        %v4205 = vadd.f32 0.0, %v4204
        %v4206 = vpop.f32.mrb[0].mxu0
        %4207 = vmatprep.mubr.bf16.mxu0 %v4124
        %4208 = vmatmul.mubr.bf16.gmra.mrb[0].mxu0 %v4123
        %v4209 = vpop.f32.mrb[0].mxu0
        %v4210 = vadd.f32 0.0, %v4209
        %v4211 = vpop.f32.mrb[0].mxu0
        %v4212 = vpop.f32.mrb[0].mxu0
        %v4213 = vadd.f32 0.0, %v4212
        %v4214 = vpop.f32.mrb[0].mxu0
        %4215 = vmatprep.mubr.bf16.mxu0 %v4126
        %4216 = vmatmul.mubr.bf16.gmra.mrb[0].mxu0 %v4125
        %v4217 = vpop.f32.mrb[0].mxu0
        %v4218 = vadd.f32 0.0, %v4217
        %v4219 = vpop.f32.mrb[0].mxu0
        %v4220 = vpop.f32.mrb[0].mxu0
        %v4221 = vadd.f32 0.0, %v4220
        %v4222 = vpop.f32.mrb[0].mxu0
        %4223 = vdwg.mxu0
        %4232 = vrot.lane.b32.xlu0 %v2286, 64
        %v4233 = vpop.permute.xlu0 %4232
        %4234 = vrot.lane.b32.xlu0 %v2288, 64
        %v4235 = vpop.permute.xlu0 %4234
        %4236 = vrot.lane.b32.xlu0 %v2290, 64
        %v4237 = vpop.permute.xlu0 %4236
        %4238 = vrot.lane.b32.xlu0 %v2292, 64
        %v4239 = vpop.permute.xlu0 %4238
        %4240 = vrot.lane.b32.xlu0 %v2294, 64
        %v4241 = vpop.permute.xlu0 %4240
        %4242 = vrot.lane.b32.xlu0 %v2296, 64
        %v4243 = vpop.permute.xlu0 %4242
        %4244 = vrot.lane.b32.xlu0 %v2298, 64
        %v4245 = vpop.permute.xlu0 %4244
        %4246 = vrot.lane.b32.xlu0 %v2300, 64
        %v4247 = vpop.permute.xlu0 %4246
        %4264 = vrot.lane.b32.xlu0 %v3654, 64
        %v4265 = vpop.permute.xlu0 %4264
        %4266 = vrot.lane.b32.xlu0 %v3655, 64
        %v4267 = vpop.permute.xlu0 %4266
        %4268 = vrot.lane.b32.xlu0 %v3656, 64
        %v4269 = vpop.permute.xlu0 %4268
        %4270 = vrot.lane.b32.xlu0 %v3657, 64
        %v4271 = vpop.permute.xlu0 %4270
        %4272 = vrot.lane.b32.xlu0 %v3658, 64
        %v4273 = vpop.permute.xlu0 %4272
        %4274 = vrot.lane.b32.xlu0 %v3659, 64
        %v4275 = vpop.permute.xlu0 %4274
        %4276 = vrot.lane.b32.xlu0 %v3660, 64
        %v4277 = vpop.permute.xlu0 %4276
        %4278 = vrot.lane.b32.xlu0 %v3661, 64
        %v4279 = vpop.permute.xlu0 %4278
        %4280 = vrot.lane.b32.xlu0 %v3662, 64
        %v4281 = vpop.permute.xlu0 %4280
        %4282 = vrot.lane.b32.xlu0 %v3663, 64
        %v4283 = vpop.permute.xlu0 %4282
        %4284 = vrot.lane.b32.xlu0 %v3664, 64
        %v4285 = vpop.permute.xlu0 %4284
        %4286 = vrot.lane.b32.xlu0 %v3665, 64
        %v4287 = vpop.permute.xlu0 %4286
        %4288 = vrot.lane.b32.xlu0 %v3666, 64
        %v4289 = vpop.permute.xlu0 %4288
        %4290 = vrot.lane.b32.xlu0 %v3667, 64
        %v4291 = vpop.permute.xlu0 %4290
        %4292 = vrot.lane.b32.xlu0 %v3668, 64
        %v4293 = vpop.permute.xlu0 %4292
        %4294 = vrot.lane.b32.xlu0 %v3669, 64
        %v4295 = vpop.permute.xlu0 %4294
        %v4297 = vsel %vm2345, %v4233, 0
        %v4300 = vsel %vm2345, %v4235, 0
        %v4303 = vsel %vm2345, %v4237, 0
        %v4306 = vsel %vm2345, %v4239, 0
        %v4309 = vsel %vm2345, %v4241, 0
        %v4312 = vsel %vm2345, %v4243, 0
        %v4315 = vsel %vm2345, %v4245, 0
        %v4318 = vsel %vm2345, %v4247, 0
        %v4321 = vsel %vm2345, %v4265, 0
        %v4324 = vsel %vm2345, %v4267, 0
        %v4327 = vsel %vm2345, %v4269, 0
        %v4330 = vsel %vm2345, %v4271, 0
        %v4333 = vsel %vm2345, %v4273, 0
        %v4336 = vsel %vm2345, %v4275, 0
        %v4339 = vsel %vm2345, %v4277, 0
        %v4342 = vsel %vm2345, %v4279, 0
        %v4345 = vsel %vm2345, %v4281, 0
        %v4348 = vsel %vm2345, %v4283, 0
        %v4351 = vsel %vm2345, %v4285, 0
        %v4354 = vsel %vm2345, %v4287, 0
        %v4357 = vsel %vm2345, %v4289, 0
        %v4360 = vsel %vm2345, %v4291, 0
        %v4363 = vsel %vm2345, %v4293, 0
        %v4366 = vsel %vm2345, %v4295, 0
        %4368 = vmatprep.subr.bf16.mxu0 0
        %4369 = vmatpush1.bf16.xpose.msra.mxu0 %v4321
        %4370 = vmatprep.subr.bf16.mxu0 0
        %4371 = vmatpush1.bf16.xpose.msra.mxu0 %v4324
        %4372 = vmatprep.subr.bf16.mxu0 0
        %4373 = vmatpush1.bf16.xpose.msra.mxu0 %v4327
        %4374 = vmatprep.subr.bf16.mxu0 0
        %4375 = vmatpush1.bf16.xpose.msra.mxu0 %v4330
        %4376 = vmatprep.subr.bf16.mxu0 0
        %4377 = vmatpush1.bf16.xpose.msra.mxu0 %v4333
        %4378 = vmatprep.subr.bf16.mxu0 0
        %4379 = vmatpush1.bf16.xpose.msra.mxu0 %v4336
        %4380 = vmatprep.subr.bf16.mxu0 0
        %4381 = vmatpush1.bf16.xpose.msra.mxu0 %v4339
        %4382 = vmatprep.subr.bf16.mxu0 0
        %4383 = vmatpush1.bf16.xpose.msra.mxu0 %v4342
        %4384 = vmatprep.subr.bf16.mxu0 0
        %4385 = vmatpush1.bf16.xpose.msra.mxu0 %v4345
        %4386 = vmatprep.subr.bf16.mxu0 0
        %4387 = vmatpush1.bf16.xpose.msra.mxu0 %v4348
        %4388 = vmatprep.subr.bf16.mxu0 0
        %4389 = vmatpush1.bf16.xpose.msra.mxu0 %v4351
        %4390 = vmatprep.subr.bf16.mxu0 0
        %4391 = vmatpush1.bf16.xpose.msra.mxu0 %v4354
        %4392 = vmatprep.subr.bf16.mxu0 0
        %4393 = vmatpush1.bf16.xpose.msra.mxu0 %v4357
        %4394 = vmatprep.subr.bf16.mxu0 0
        %4395 = vmatpush1.bf16.xpose.msra.mxu0 %v4360
        %4396 = vmatprep.subr.bf16.mxu0 0
        %4397 = vmatpush1.bf16.xpose.msra.mxu0 %v4363
        %4398 = vmatprep.subr.bf16.mxu0 0
        %4399 = vmatpush1.bf16.xpose.msra.mxu0 %v4366
        %4400 = vmatprep.mubr.bf16.mxu0 0
        %4401 = vmatmul.mubr.bf16.gmra.mrb[0].mxu0 %v4297
        %v4402 = vpop.f32.mrb[0].mxu0
        %v4403 = vadd.f32 %v2306, %v4402
        %v4404 = vpop.f32.mrb[0].mxu0
        %v4405 = vadd.f32 %v2310, %v4404
        %v4406 = vpop.f32.mrb[0].mxu0
        %v4407 = vadd.f32 %v2306, %v4406
        %v4408 = vpop.f32.mrb[0].mxu0
        %v4409 = vadd.f32 %v2310, %v4408
        %4410 = vmatprep.mubr.bf16.mxu0 0
        %4411 = vmatmul.mubr.bf16.gmra.mrb[0].mxu0 %v4300
        %v4412 = vpop.f32.mrb[0].mxu0
        %v4413 = vadd.f32 %v2306, %v4412
        %v4414 = vpop.f32.mrb[0].mxu0
        %v4415 = vadd.f32 %v2310, %v4414
        %v4416 = vpop.f32.mrb[0].mxu0
        %v4417 = vadd.f32 %v2306, %v4416
        %v4418 = vpop.f32.mrb[0].mxu0
        %v4419 = vadd.f32 %v2310, %v4418
        %4420 = vmatprep.mubr.bf16.mxu0 0
        %4421 = vmatmul.mubr.bf16.gmra.mrb[0].mxu0 %v4303
        %v4422 = vpop.f32.mrb[0].mxu0
        %v4423 = vadd.f32 %v2306, %v4422
        %v4424 = vpop.f32.mrb[0].mxu0
        %v4425 = vadd.f32 %v2310, %v4424
        %v4426 = vpop.f32.mrb[0].mxu0
        %v4427 = vadd.f32 %v2306, %v4426
        %v4428 = vpop.f32.mrb[0].mxu0
        %v4429 = vadd.f32 %v2310, %v4428
        %4430 = vmatprep.mubr.bf16.mxu0 0
        %4431 = vmatmul.mubr.bf16.gmra.mrb[0].mxu0 %v4306
        %v4432 = vpop.f32.mrb[0].mxu0
        %v4433 = vadd.f32 %v2306, %v4432
        %v4434 = vpop.f32.mrb[0].mxu0
        %v4435 = vadd.f32 %v2310, %v4434
        %v4436 = vpop.f32.mrb[0].mxu0
        %v4437 = vadd.f32 %v2306, %v4436
        %v4438 = vpop.f32.mrb[0].mxu0
        %v4439 = vadd.f32 %v2310, %v4438
        %4440 = vmatprep.mubr.bf16.mxu0 0
        %4441 = vmatmul.mubr.bf16.gmra.mrb[0].mxu0 %v4309
        %v4442 = vpop.f32.mrb[0].mxu0
        %v4443 = vadd.f32 %v2306, %v4442
        %v4444 = vpop.f32.mrb[0].mxu0
        %v4445 = vadd.f32 %v2310, %v4444
        %v4446 = vpop.f32.mrb[0].mxu0
        %v4447 = vadd.f32 %v2306, %v4446
        %v4448 = vpop.f32.mrb[0].mxu0
        %v4449 = vadd.f32 %v2310, %v4448
        %4450 = vmatprep.mubr.bf16.mxu0 0
        %4451 = vmatmul.mubr.bf16.gmra.mrb[0].mxu0 %v4312
        %v4452 = vpop.f32.mrb[0].mxu0
        %v4453 = vadd.f32 %v2306, %v4452
        %v4454 = vpop.f32.mrb[0].mxu0
        %v4455 = vadd.f32 %v2310, %v4454
        %v4456 = vpop.f32.mrb[0].mxu0
        %v4457 = vadd.f32 %v2306, %v4456
        %v4458 = vpop.f32.mrb[0].mxu0
        %v4459 = vadd.f32 %v2310, %v4458
        %4460 = vmatprep.mubr.bf16.mxu0 0
        %4461 = vmatmul.mubr.bf16.gmra.mrb[0].mxu0 %v4315
        %v4462 = vpop.f32.mrb[0].mxu0
        %v4463 = vadd.f32 %v2306, %v4462
        %v4464 = vpop.f32.mrb[0].mxu0
        %v4465 = vadd.f32 %v2310, %v4464
        %v4466 = vpop.f32.mrb[0].mxu0
        %v4467 = vadd.f32 %v2306, %v4466
        %v4468 = vpop.f32.mrb[0].mxu0
        %v4469 = vadd.f32 %v2310, %v4468
        %4470 = vmatprep.mubr.bf16.mxu0 0
        %4471 = vmatmul.mubr.bf16.gmra.mrb[0].mxu0 %v4318
        %v4472 = vpop.f32.mrb[0].mxu0
        %v4473 = vadd.f32 %v2306, %v4472
        %v4474 = vpop.f32.mrb[0].mxu0
        %v4475 = vadd.f32 %v2310, %v4474
        %v4476 = vpop.f32.mrb[0].mxu0
        %v4477 = vadd.f32 %v2306, %v4476
        %v4478 = vpop.f32.mrb[0].mxu0
        %v4479 = vadd.f32 %v2310, %v4478
        %4480 = vdwg.mxu0
        %v4481 = vmax.f32 %v4403, %v4405
        %4482 = vmax.xlane.f32.xlu0 %v4481
        %v4483 = vpop.xlane.xlu0 %4482
        %v4484 = vmax.f32 %v4407, %v4409
        %4485 = vmax.xlane.f32.xlu0 %v4484
        %v4486 = vpop.xlane.xlu0 %4485
        %v4487 = vmax.f32 %v4413, %v4415
        %4488 = vmax.xlane.f32.xlu0 %v4487
        %v4489 = vpop.xlane.xlu0 %4488
        %v4490 = vmax.f32 %v4417, %v4419
        %4491 = vmax.xlane.f32.xlu0 %v4490
        %v4492 = vpop.xlane.xlu0 %4491
        %v4493 = vmax.f32 %v4423, %v4425
        %4494 = vmax.xlane.f32.xlu0 %v4493
        %v4495 = vpop.xlane.xlu0 %4494
        %v4496 = vmax.f32 %v4427, %v4429
        %4497 = vmax.xlane.f32.xlu0 %v4496
        %v4498 = vpop.xlane.xlu0 %4497
        %v4499 = vmax.f32 %v4433, %v4435
        %4500 = vmax.xlane.f32.xlu0 %v4499
        %v4501 = vpop.xlane.xlu0 %4500
        %v4502 = vmax.f32 %v4437, %v4439
        %4503 = vmax.xlane.f32.xlu0 %v4502
        %v4504 = vpop.xlane.xlu0 %4503
        %v4505 = vmax.f32 %v4443, %v4445
        %4506 = vmax.xlane.f32.xlu0 %v4505
        %v4507 = vpop.xlane.xlu0 %4506
        %v4508 = vmax.f32 %v4447, %v4449
        %4509 = vmax.xlane.f32.xlu0 %v4508
        %v4510 = vpop.xlane.xlu0 %4509
        %v4511 = vmax.f32 %v4453, %v4455
        %4512 = vmax.xlane.f32.xlu0 %v4511
        %v4513 = vpop.xlane.xlu0 %4512
        %v4514 = vmax.f32 %v4457, %v4459
        %4515 = vmax.xlane.f32.xlu0 %v4514
        %v4516 = vpop.xlane.xlu0 %4515
        %v4517 = vmax.f32 %v4463, %v4465
        %4518 = vmax.xlane.f32.xlu0 %v4517
        %v4519 = vpop.xlane.xlu0 %4518
        %v4520 = vmax.f32 %v4467, %v4469
        %4521 = vmax.xlane.f32.xlu0 %v4520
        %v4522 = vpop.xlane.xlu0 %4521
        %v4523 = vmax.f32 %v4473, %v4475
        %4524 = vmax.xlane.f32.xlu0 %v4523
        %v4525 = vpop.xlane.xlu0 %4524
        %v4526 = vmax.f32 %v4477, %v4479
        %4527 = vmax.xlane.f32.xlu0 %v4526
        %v4528 = vpop.xlane.xlu0 %4527
        %v4529 = vsub.f32 %v4403, %v4483
        %v4530 = vsub.f32 %v4405, %v4483
        %v4531 = vsub.f32 %v4407, %v4486
        %v4532 = vsub.f32 %v4409, %v4486
        %v4533 = vsub.f32 %v4413, %v4489
        %v4534 = vsub.f32 %v4415, %v4489
        %v4535 = vsub.f32 %v4417, %v4492
        %v4536 = vsub.f32 %v4419, %v4492
        %v4537 = vsub.f32 %v4423, %v4495
        %v4538 = vsub.f32 %v4425, %v4495
        %v4539 = vsub.f32 %v4427, %v4498
        %v4540 = vsub.f32 %v4429, %v4498
        %v4541 = vsub.f32 %v4433, %v4501
        %v4542 = vsub.f32 %v4435, %v4501
        %v4543 = vsub.f32 %v4437, %v4504
        %v4544 = vsub.f32 %v4439, %v4504
        %v4545 = vsub.f32 %v4443, %v4507
        %v4546 = vsub.f32 %v4445, %v4507
        %v4547 = vsub.f32 %v4447, %v4510
        %v4548 = vsub.f32 %v4449, %v4510
        %v4549 = vsub.f32 %v4453, %v4513
        %v4550 = vsub.f32 %v4455, %v4513
        %v4551 = vsub.f32 %v4457, %v4516
        %v4552 = vsub.f32 %v4459, %v4516
        %v4553 = vsub.f32 %v4463, %v4519
        %v4554 = vsub.f32 %v4465, %v4519
        %v4555 = vsub.f32 %v4467, %v4522
        %v4556 = vsub.f32 %v4469, %v4522
        %v4557 = vsub.f32 %v4473, %v4525
        %v4558 = vsub.f32 %v4475, %v4525
        %v4559 = vsub.f32 %v4477, %v4528
        %v4560 = vsub.f32 %v4479, %v4528
        %v4561 = vmul.f32 %v4529, 1.442695
        %v4562 = vpow.pop %v4561
        %v4563 = vmul.f32 %v4530, 1.442695
        %v4564 = vpow.pop %v4563
        %v4565 = vmul.f32 %v4531, 1.442695
        %v4566 = vpow.pop %v4565
        %v4567 = vmul.f32 %v4532, 1.442695
        %v4568 = vpow.pop %v4567
        %v4569 = vmul.f32 %v4533, 1.442695
        %v4570 = vpow.pop %v4569
        %v4571 = vmul.f32 %v4534, 1.442695
        %v4572 = vpow.pop %v4571
        %v4573 = vmul.f32 %v4535, 1.442695
        %v4574 = vpow.pop %v4573
        %v4575 = vmul.f32 %v4536, 1.442695
        %v4576 = vpow.pop %v4575
        %v4577 = vmul.f32 %v4537, 1.442695
        %v4578 = vpow.pop %v4577
        %v4579 = vmul.f32 %v4538, 1.442695
        %v4580 = vpow.pop %v4579
        %v4581 = vmul.f32 %v4539, 1.442695
        %v4582 = vpow.pop %v4581
        %v4583 = vmul.f32 %v4540, 1.442695
        %v4584 = vpow.pop %v4583
        %v4585 = vmul.f32 %v4541, 1.442695
        %v4586 = vpow.pop %v4585
        %v4587 = vmul.f32 %v4542, 1.442695
        %v4588 = vpow.pop %v4587
        %v4589 = vmul.f32 %v4543, 1.442695
        %v4590 = vpow.pop %v4589
        %v4591 = vmul.f32 %v4544, 1.442695
        %v4592 = vpow.pop %v4591
        %v4593 = vmul.f32 %v4545, 1.442695
        %v4594 = vpow.pop %v4593
        %v4595 = vmul.f32 %v4546, 1.442695
        %v4596 = vpow.pop %v4595
        %v4597 = vmul.f32 %v4547, 1.442695
        %v4598 = vpow.pop %v4597
        %v4599 = vmul.f32 %v4548, 1.442695
        %v4600 = vpow.pop %v4599
        %v4601 = vmul.f32 %v4549, 1.442695
        %v4602 = vpow.pop %v4601
        %v4603 = vmul.f32 %v4550, 1.442695
        %v4604 = vpow.pop %v4603
        %v4605 = vmul.f32 %v4551, 1.442695
        %v4606 = vpow.pop %v4605
        %v4607 = vmul.f32 %v4552, 1.442695
        %v4608 = vpow.pop %v4607
        %v4609 = vmul.f32 %v4553, 1.442695
        %v4610 = vpow.pop %v4609
        %v4611 = vmul.f32 %v4554, 1.442695
        %v4612 = vpow.pop %v4611
        %v4613 = vmul.f32 %v4555, 1.442695
        %v4614 = vpow.pop %v4613
        %v4615 = vmul.f32 %v4556, 1.442695
        %v4616 = vpow.pop %v4615
        %v4617 = vmul.f32 %v4557, 1.442695
        %v4618 = vpow.pop %v4617
        %v4619 = vmul.f32 %v4558, 1.442695
        %v4620 = vpow.pop %v4619
        %v4621 = vmul.f32 %v4559, 1.442695
        %v4622 = vpow.pop %v4621
        %v4623 = vmul.f32 %v4560, 1.442695
        %v4624 = vpow.pop %v4623
        %v4625 = vadd.f32 %v4562, %v4564
        %4626 = vadd.xlane.f32.xlu0 %v4625
        %v4627 = vpop.xlane.xlu0 %4626
        %v4628 = vadd.f32 %v4566, %v4568
        %4629 = vadd.xlane.f32.xlu0 %v4628
        %v4630 = vpop.xlane.xlu0 %4629
        %v4631 = vadd.f32 %v4570, %v4572
        %4632 = vadd.xlane.f32.xlu0 %v4631
        %v4633 = vpop.xlane.xlu0 %4632
        %v4634 = vadd.f32 %v4574, %v4576
        %4635 = vadd.xlane.f32.xlu0 %v4634
        %v4636 = vpop.xlane.xlu0 %4635
        %v4637 = vadd.f32 %v4578, %v4580
        %4638 = vadd.xlane.f32.xlu0 %v4637
        %v4639 = vpop.xlane.xlu0 %4638
        %v4640 = vadd.f32 %v4582, %v4584
        %4641 = vadd.xlane.f32.xlu0 %v4640
        %v4642 = vpop.xlane.xlu0 %4641
        %v4643 = vadd.f32 %v4586, %v4588
        %4644 = vadd.xlane.f32.xlu0 %v4643
        %v4645 = vpop.xlane.xlu0 %4644
        %v4646 = vadd.f32 %v4590, %v4592
        %4647 = vadd.xlane.f32.xlu0 %v4646
        %v4648 = vpop.xlane.xlu0 %4647
        %v4649 = vadd.f32 %v4594, %v4596
        %4650 = vadd.xlane.f32.xlu0 %v4649
        %v4651 = vpop.xlane.xlu0 %4650
        %v4652 = vadd.f32 %v4598, %v4600
        %4653 = vadd.xlane.f32.xlu0 %v4652
        %v4654 = vpop.xlane.xlu0 %4653
        %v4655 = vadd.f32 %v4602, %v4604
        %4656 = vadd.xlane.f32.xlu0 %v4655
        %v4657 = vpop.xlane.xlu0 %4656
        %v4658 = vadd.f32 %v4606, %v4608
        %4659 = vadd.xlane.f32.xlu0 %v4658
        %v4660 = vpop.xlane.xlu0 %4659
        %v4661 = vadd.f32 %v4610, %v4612
        %4662 = vadd.xlane.f32.xlu0 %v4661
        %v4663 = vpop.xlane.xlu0 %4662
        %v4664 = vadd.f32 %v4614, %v4616
        %4665 = vadd.xlane.f32.xlu0 %v4664
        %v4666 = vpop.xlane.xlu0 %4665
        %v4667 = vadd.f32 %v4618, %v4620
        %4668 = vadd.xlane.f32.xlu0 %v4667
        %v4669 = vpop.xlane.xlu0 %4668
        %v4670 = vadd.f32 %v4622, %v4624
        %4671 = vadd.xlane.f32.xlu0 %v4670
        %v4672 = vpop.xlane.xlu0 %4671
        %v4673 = vrcp.pop %v4627
        %v4674 = vrcp.pop %v4630
        %v4675 = vrcp.pop %v4633
        %v4676 = vrcp.pop %v4636
        %v4677 = vrcp.pop %v4639
        %v4678 = vrcp.pop %v4642
        %v4679 = vrcp.pop %v4645
        %v4680 = vrcp.pop %v4648
        %v4681 = vrcp.pop %v4651
        %v4682 = vrcp.pop %v4654
        %v4683 = vrcp.pop %v4657
        %v4684 = vrcp.pop %v4660
        %v4685 = vrcp.pop %v4663
        %v4686 = vrcp.pop %v4666
        %v4687 = vrcp.pop %v4669
        %v4688 = vrcp.pop %v4672
        %v4689 = vmul.f32 %v4562, %v4673
        %v4690 = vmul.f32 %v4564, %v4673
        %v4691 = vmul.f32 %v4566, %v4674
        %v4692 = vmul.f32 %v4568, %v4674
        %v4693 = vmul.f32 %v4570, %v4675
        %v4694 = vmul.f32 %v4572, %v4675
        %v4695 = vmul.f32 %v4574, %v4676
        %v4696 = vmul.f32 %v4576, %v4676
        %v4697 = vmul.f32 %v4578, %v4677
        %v4698 = vmul.f32 %v4580, %v4677
        %v4699 = vmul.f32 %v4582, %v4678
        %v4700 = vmul.f32 %v4584, %v4678
        %v4701 = vmul.f32 %v4586, %v4679
        %v4702 = vmul.f32 %v4588, %v4679
        %v4703 = vmul.f32 %v4590, %v4680
        %v4704 = vmul.f32 %v4592, %v4680
        %v4705 = vmul.f32 %v4594, %v4681
        %v4706 = vmul.f32 %v4596, %v4681
        %v4707 = vmul.f32 %v4598, %v4682
        %v4708 = vmul.f32 %v4600, %v4682
        %v4709 = vmul.f32 %v4602, %v4683
        %v4710 = vmul.f32 %v4604, %v4683
        %v4711 = vmul.f32 %v4606, %v4684
        %v4712 = vmul.f32 %v4608, %v4684
        %v4713 = vmul.f32 %v4610, %v4685
        %v4714 = vmul.f32 %v4612, %v4685
        %v4715 = vmul.f32 %v4614, %v4686
        %v4716 = vmul.f32 %v4616, %v4686
        %v4717 = vmul.f32 %v4618, %v4687
        %v4718 = vmul.f32 %v4620, %v4687
        %v4719 = vmul.f32 %v4622, %v4688
        %v4720 = vmul.f32 %v4624, %v4688
        %v4721 = vpack.c.bf16 %v4691, %v4689
        %v4722 = vpack.c.bf16 %v4692, %v4690
        %v4723 = vpack.c.bf16 %v4695, %v4693
        %v4724 = vpack.c.bf16 %v4696, %v4694
        %v4725 = vpack.c.bf16 %v4699, %v4697
        %v4726 = vpack.c.bf16 %v4700, %v4698
        %v4727 = vpack.c.bf16 %v4703, %v4701
        %v4728 = vpack.c.bf16 %v4704, %v4702
        %v4729 = vpack.c.bf16 %v4707, %v4705
        %v4730 = vpack.c.bf16 %v4708, %v4706
        %v4731 = vpack.c.bf16 %v4711, %v4709
        %v4732 = vpack.c.bf16 %v4712, %v4710
        %v4733 = vpack.c.bf16 %v4715, %v4713
        %v4734 = vpack.c.bf16 %v4716, %v4714
        %v4735 = vpack.c.bf16 %v4719, %v4717
        %v4736 = vpack.c.bf16 %v4720, %v4718
        %4753 = vrot.lane.b32.xlu0 %v3670, 64
        %v4754 = vpop.permute.xlu0 %4753
        %4755 = vrot.lane.b32.xlu0 %v3671, 64
        %v4756 = vpop.permute.xlu0 %4755
        %4757 = vrot.lane.b32.xlu0 %v3672, 64
        %v4758 = vpop.permute.xlu0 %4757
        %4759 = vrot.lane.b32.xlu0 %v3673, 64
        %v4760 = vpop.permute.xlu0 %4759
        %4761 = vrot.lane.b32.xlu0 %v3674, 64
        %v4762 = vpop.permute.xlu0 %4761
        %4763 = vrot.lane.b32.xlu0 %v3675, 64
        %v4764 = vpop.permute.xlu0 %4763
        %4765 = vrot.lane.b32.xlu0 %v3676, 64
        %v4766 = vpop.permute.xlu0 %4765
        %4767 = vrot.lane.b32.xlu0 %v3677, 64
        %v4768 = vpop.permute.xlu0 %4767
        %4769 = vrot.lane.b32.xlu0 %v3678, 64
        %v4770 = vpop.permute.xlu0 %4769
        %4771 = vrot.lane.b32.xlu0 %v3679, 64
        %v4772 = vpop.permute.xlu0 %4771
        %4773 = vrot.lane.b32.xlu0 %v3680, 64
        %v4774 = vpop.permute.xlu0 %4773
        %4775 = vrot.lane.b32.xlu0 %v3681, 64
        %v4776 = vpop.permute.xlu0 %4775
        %4777 = vrot.lane.b32.xlu0 %v3682, 64
        %v4778 = vpop.permute.xlu0 %4777
        %4779 = vrot.lane.b32.xlu0 %v3683, 64
        %v4780 = vpop.permute.xlu0 %4779
        %4781 = vrot.lane.b32.xlu0 %v3684, 64
        %v4782 = vpop.permute.xlu0 %4781
        %4783 = vrot.lane.b32.xlu0 %v3685, 64
        %v4784 = vpop.permute.xlu0 %4783
        %4801 = vmatprep.subr.bf16.mxu0 0
        %4802 = vmatpush1.bf16.msra.mxu0 %v4754
        %4803 = vmatprep.subr.bf16.mxu0 0
        %4804 = vmatpush1.bf16.msra.mxu0 %v4756
        %4805 = vmatprep.subr.bf16.mxu0 0
        %4806 = vmatpush1.bf16.msra.mxu0 %v4758
        %4807 = vmatprep.subr.bf16.mxu0 0
        %4808 = vmatpush1.bf16.msra.mxu0 %v4760
        %4809 = vmatprep.subr.bf16.mxu0 0
        %4810 = vmatpush1.bf16.msra.mxu0 %v4762
        %4811 = vmatprep.subr.bf16.mxu0 0
        %4812 = vmatpush1.bf16.msra.mxu0 %v4764
        %4813 = vmatprep.subr.bf16.mxu0 0
        %4814 = vmatpush1.bf16.msra.mxu0 %v4766
        %4815 = vmatprep.subr.bf16.mxu0 0
        %4816 = vmatpush1.bf16.msra.mxu0 %v4768
        %4817 = vmatprep.subr.bf16.mxu0 0
        %4818 = vmatpush1.bf16.msra.mxu0 %v4770
        %4819 = vmatprep.subr.bf16.mxu0 0
        %4820 = vmatpush1.bf16.msra.mxu0 %v4772
        %4821 = vmatprep.subr.bf16.mxu0 0
        %4822 = vmatpush1.bf16.msra.mxu0 %v4774
        %4823 = vmatprep.subr.bf16.mxu0 0
        %4824 = vmatpush1.bf16.msra.mxu0 %v4776
        %4825 = vmatprep.subr.bf16.mxu0 0
        %4826 = vmatpush1.bf16.msra.mxu0 %v4778
        %4827 = vmatprep.subr.bf16.mxu0 0
        %4828 = vmatpush1.bf16.msra.mxu0 %v4780
        %4829 = vmatprep.subr.bf16.mxu0 0
        %4830 = vmatpush1.bf16.msra.mxu0 %v4782
        %4831 = vmatprep.subr.bf16.mxu0 0
        %4832 = vmatpush1.bf16.msra.mxu0 %v4784
        %4833 = vmatprep.mubr.bf16.mxu0 %v4722
        %4834 = vmatmul.mubr.bf16.gmra.mrb[0].mxu0 %v4721
        %v4835 = vpop.f32.mrb[0].mxu0
        %v4836 = vadd.f32 0.0, %v4835
        %v4837 = vpop.f32.mrb[0].mxu0
        %v4838 = vpop.f32.mrb[0].mxu0
        %v4839 = vadd.f32 0.0, %v4838
        %v4840 = vpop.f32.mrb[0].mxu0
        %4841 = vmatprep.mubr.bf16.mxu0 %v4724
        %4842 = vmatmul.mubr.bf16.gmra.mrb[0].mxu0 %v4723
        %v4843 = vpop.f32.mrb[0].mxu0
        %v4844 = vadd.f32 0.0, %v4843
        %v4845 = vpop.f32.mrb[0].mxu0
        %v4846 = vpop.f32.mrb[0].mxu0
        %v4847 = vadd.f32 0.0, %v4846
        %v4848 = vpop.f32.mrb[0].mxu0
        %4849 = vmatprep.mubr.bf16.mxu0 %v4726
        %4850 = vmatmul.mubr.bf16.gmra.mrb[0].mxu0 %v4725
        %v4851 = vpop.f32.mrb[0].mxu0
        %v4852 = vadd.f32 0.0, %v4851
        %v4853 = vpop.f32.mrb[0].mxu0
        %v4854 = vpop.f32.mrb[0].mxu0
        %v4855 = vadd.f32 0.0, %v4854
        %v4856 = vpop.f32.mrb[0].mxu0
        %4857 = vmatprep.mubr.bf16.mxu0 %v4728
        %4858 = vmatmul.mubr.bf16.gmra.mrb[0].mxu0 %v4727
        %v4859 = vpop.f32.mrb[0].mxu0
        %v4860 = vadd.f32 0.0, %v4859
        %v4861 = vpop.f32.mrb[0].mxu0
        %v4862 = vpop.f32.mrb[0].mxu0
        %v4863 = vadd.f32 0.0, %v4862
        %v4864 = vpop.f32.mrb[0].mxu0
        %4865 = vmatprep.mubr.bf16.mxu0 %v4730
        %4866 = vmatmul.mubr.bf16.gmra.mrb[0].mxu0 %v4729
        %v4867 = vpop.f32.mrb[0].mxu0
        %v4868 = vadd.f32 0.0, %v4867
        %v4869 = vpop.f32.mrb[0].mxu0
        %v4870 = vpop.f32.mrb[0].mxu0
        %v4871 = vadd.f32 0.0, %v4870
        %v4872 = vpop.f32.mrb[0].mxu0
        %4873 = vmatprep.mubr.bf16.mxu0 %v4732
        %4874 = vmatmul.mubr.bf16.gmra.mrb[0].mxu0 %v4731
        %v4875 = vpop.f32.mrb[0].mxu0
        %v4876 = vadd.f32 0.0, %v4875
        %v4877 = vpop.f32.mrb[0].mxu0
        %v4878 = vpop.f32.mrb[0].mxu0
        %v4879 = vadd.f32 0.0, %v4878
        %v4880 = vpop.f32.mrb[0].mxu0
        %4881 = vmatprep.mubr.bf16.mxu0 %v4734
        %4882 = vmatmul.mubr.bf16.gmra.mrb[0].mxu0 %v4733
        %v4883 = vpop.f32.mrb[0].mxu0
        %v4884 = vadd.f32 0.0, %v4883
        %v4885 = vpop.f32.mrb[0].mxu0
        %v4886 = vpop.f32.mrb[0].mxu0
        %v4887 = vadd.f32 0.0, %v4886
        %v4888 = vpop.f32.mrb[0].mxu0
        %4889 = vmatprep.mubr.bf16.mxu0 %v4736
        %4890 = vmatmul.mubr.bf16.gmra.mrb[0].mxu0 %v4735
        %v4891 = vpop.f32.mrb[0].mxu0
        %v4892 = vadd.f32 0.0, %v4891
        %v4893 = vpop.f32.mrb[0].mxu0
        %v4894 = vpop.f32.mrb[0].mxu0
        %v4895 = vadd.f32 0.0, %v4894
        %v4896 = vpop.f32.mrb[0].mxu0
        %4897 = vdwg.mxu0
        %4914 = vrot.lane.b32.xlu0 %v4836, 64
        %v4915 = vpop.permute.xlu0 %4914
        %4916 = vrot.lane.b32.xlu0 %v4839, 64
        %v4917 = vpop.permute.xlu0 %4916
        %4918 = vrot.lane.b32.xlu0 %v4844, 64
        %v4919 = vpop.permute.xlu0 %4918
        %4920 = vrot.lane.b32.xlu0 %v4847, 64
        %v4921 = vpop.permute.xlu0 %4920
        %4922 = vrot.lane.b32.xlu0 %v4852, 64
        %v4923 = vpop.permute.xlu0 %4922
        %4924 = vrot.lane.b32.xlu0 %v4855, 64
        %v4925 = vpop.permute.xlu0 %4924
        %4926 = vrot.lane.b32.xlu0 %v4860, 64
        %v4927 = vpop.permute.xlu0 %4926
        %4928 = vrot.lane.b32.xlu0 %v4863, 64
        %v4929 = vpop.permute.xlu0 %4928
        %4930 = vrot.lane.b32.xlu0 %v4868, 64
        %v4931 = vpop.permute.xlu0 %4930
        %4932 = vrot.lane.b32.xlu0 %v4871, 64
        %v4933 = vpop.permute.xlu0 %4932
        %4934 = vrot.lane.b32.xlu0 %v4876, 64
        %v4935 = vpop.permute.xlu0 %4934
        %4936 = vrot.lane.b32.xlu0 %v4879, 64
        %v4937 = vpop.permute.xlu0 %4936
        %4938 = vrot.lane.b32.xlu0 %v4884, 64
        %v4939 = vpop.permute.xlu0 %4938
        %4940 = vrot.lane.b32.xlu0 %v4887, 64
        %v4941 = vpop.permute.xlu0 %4940
        %4942 = vrot.lane.b32.xlu0 %v4892, 64
        %v4943 = vpop.permute.xlu0 %4942
        %4944 = vrot.lane.b32.xlu0 %v4895, 64
        %v4945 = vpop.permute.xlu0 %4944
        %v4962 = vsel %vm2345, %v4162, %v4915
        %v4963 = vsel %vm2345, %v4165, %v4917
        %v4964 = vsel %vm2345, %v4170, %v4919
        %v4965 = vsel %vm2345, %v4173, %v4921
        %v4966 = vsel %vm2345, %v4178, %v4923
        %v4967 = vsel %vm2345, %v4181, %v4925
        %v4968 = vsel %vm2345, %v4186, %v4927
        %v4969 = vsel %vm2345, %v4189, %v4929
        %v4970 = vsel %vm2345, %v4194, %v4931
        %v4971 = vsel %vm2345, %v4197, %v4933
        %v4972 = vsel %vm2345, %v4202, %v4935
        %v4973 = vsel %vm2345, %v4205, %v4937
        %v4974 = vsel %vm2345, %v4210, %v4939
        %v4975 = vsel %vm2345, %v4213, %v4941
        %v4976 = vsel %vm2345, %v4218, %v4943
        %v4977 = vsel %vm2345, %v4221, %v4945
        %v4978 = vpack.c.bf16 %v4963, %v4962
        %v4979 = vpack.c.bf16 %v4965, %v4964
        %v4980 = vpack.c.bf16 %v4967, %v4966
        %v4981 = vpack.c.bf16 %v4969, %v4968
        %v4982 = vpack.c.bf16 %v4971, %v4970
        %v4983 = vpack.c.bf16 %v4973, %v4972
        %v4984 = vpack.c.bf16 %v4975, %v4974
        %v4985 = vpack.c.bf16 %v4977, %v4976
        %4986 = vst [vmem:[#allocation4 + $0x8] sm:$0xff] %v4978
        %4987 = vst [vmem:[#allocation4 + $0x18] sm:$0xff] %v4979
        %4988 = vst [vmem:[#allocation4 + $0x28] sm:$0xff] %v4980
        %4989 = vst [vmem:[#allocation4 + $0x38] sm:$0xff] %v4981
        %4990 = vst [vmem:[#allocation4 + $0x48] sm:$0xff] %v4982
        %4991 = vst [vmem:[#allocation4 + $0x58] sm:$0xff] %v4983
        %4992 = vst [vmem:[#allocation4 + $0x68] sm:$0xff] %v4984
        %4993 = vst [vmem:[#allocation4 + $0x78] sm:$0xff] %v4985
        %v4994 = vld [vmem:[#allocation4] sm:$0xff]
        %v4995 = vld [vmem:[#allocation4 + $0x8] sm:$0xff]
        %v4996 = vld [vmem:[#allocation4 + $0x10] sm:$0xff]
        %v4997 = vld [vmem:[#allocation4 + $0x18] sm:$0xff]
        %v4998 = vld [vmem:[#allocation4 + $0x20] sm:$0xff]
        %v4999 = vld [vmem:[#allocation4 + $0x28] sm:$0xff]
        %v5000 = vld [vmem:[#allocation4 + $0x30] sm:$0xff]
        %v5001 = vld [vmem:[#allocation4 + $0x38] sm:$0xff]
        %v5002 = vld [vmem:[#allocation4 + $0x40] sm:$0xff]
        %v5003 = vld [vmem:[#allocation4 + $0x48] sm:$0xff]
        %v5004 = vld [vmem:[#allocation4 + $0x50] sm:$0xff]
        %v5005 = vld [vmem:[#allocation4 + $0x58] sm:$0xff]
        %v5006 = vld [vmem:[#allocation4 + $0x60] sm:$0xff]
        %v5007 = vld [vmem:[#allocation4 + $0x68] sm:$0xff]
        %v5008 = vld [vmem:[#allocation4 + $0x70] sm:$0xff]
        %v5009 = vld [vmem:[#allocation4 + $0x78] sm:$0xff]
        %v5010 = vld [vmem:[#allocation19] sm:$0xff]
        %v5011 = vld [vmem:[#allocation19 + $0x8] sm:$0xff]
        %v5012 = vld [vmem:[#allocation19 + $0x10] sm:$0xff]
        %v5013 = vld [vmem:[#allocation19 + $0x18] sm:$0xff]
        %v5014 = vld [vmem:[#allocation19 + $0x20] sm:$0xff]
        %v5015 = vld [vmem:[#allocation19 + $0x28] sm:$0xff]
        %v5016 = vld [vmem:[#allocation19 + $0x30] sm:$0xff]
        %v5017 = vld [vmem:[#allocation19 + $0x38] sm:$0xff]
        %v5018 = vld [vmem:[#allocation19 + $0x40] sm:$0xff]
        %v5019 = vld [vmem:[#allocation19 + $0x48] sm:$0xff]
        %v5020 = vld [vmem:[#allocation19 + $0x50] sm:$0xff]
        %v5021 = vld [vmem:[#allocation19 + $0x58] sm:$0xff]
        %v5022 = vld [vmem:[#allocation19 + $0x60] sm:$0xff]
        %v5023 = vld [vmem:[#allocation19 + $0x68] sm:$0xff]
        %v5024 = vld [vmem:[#allocation19 + $0x70] sm:$0xff]
        %v5025 = vld [vmem:[#allocation19 + $0x78] sm:$0xff]
        %v5026 = vld [vmem:[#allocation19 + $0x80] sm:$0xff]
        %v5027 = vld [vmem:[#allocation19 + $0x88] sm:$0xff]
        %v5028 = vld [vmem:[#allocation19 + $0x90] sm:$0xff]
        %v5029 = vld [vmem:[#allocation19 + $0x98] sm:$0xff]
        %v5030 = vld [vmem:[#allocation19 + $0xa0] sm:$0xff]
        %v5031 = vld [vmem:[#allocation19 + $0xa8] sm:$0xff]
        %v5032 = vld [vmem:[#allocation19 + $0xb0] sm:$0xff]
        %v5033 = vld [vmem:[#allocation19 + $0xb8] sm:$0xff]
        %v5034 = vld [vmem:[#allocation19 + $0xc0] sm:$0xff]
        %v5035 = vld [vmem:[#allocation19 + $0xc8] sm:$0xff]
        %v5036 = vld [vmem:[#allocation19 + $0xd0] sm:$0xff]
        %v5037 = vld [vmem:[#allocation19 + $0xd8] sm:$0xff]
        %v5038 = vld [vmem:[#allocation19 + $0xe0] sm:$0xff]
        %v5039 = vld [vmem:[#allocation19 + $0xe8] sm:$0xff]
        %v5040 = vld [vmem:[#allocation19 + $0xf0] sm:$0xff]
        %v5041 = vld [vmem:[#allocation19 + $0xf8] sm:$0xff]
        %v5042 = vld [vmem:[#allocation20] sm:$0x3]
        %v5044 = vlaneseq
        %v5045 = vshrl.u32 %v5044, 7
        %v5046 = vsub.s32 0, %v5045
        %v5047 = vrot.slane %v5042, %v5046
        %v5048 = vlaneseq
        %v5049 = vshrl.u32 %v5048, 7
        %v5050 = vsub.s32 1, %v5049
        %v5051 = vrot.slane %v5042, %v5050
        %v5086 = vunpack.c.l.b16 %v5010
        %v5087 = vunpack.c.h.b16 %v5010
        %v5088 = vunpack.c.l.b16 %v5011
        %v5089 = vunpack.c.h.b16 %v5011
        %v5090 = vunpack.c.l.b16 %v5012
        %v5091 = vunpack.c.h.b16 %v5012
        %v5092 = vunpack.c.l.b16 %v5013
        %v5093 = vunpack.c.h.b16 %v5013
        %v5094 = vunpack.c.l.b16 %v5014
        %v5095 = vunpack.c.h.b16 %v5014
        %v5096 = vunpack.c.l.b16 %v5015
        %v5097 = vunpack.c.h.b16 %v5015
        %v5098 = vunpack.c.l.b16 %v5016
        %v5099 = vunpack.c.h.b16 %v5016
        %v5100 = vunpack.c.l.b16 %v5017
        %v5101 = vunpack.c.h.b16 %v5017
        %v5102 = vunpack.c.l.b16 %v5018
        %v5103 = vunpack.c.h.b16 %v5018
        %v5104 = vunpack.c.l.b16 %v5019
        %v5105 = vunpack.c.h.b16 %v5019
        %v5106 = vunpack.c.l.b16 %v5020
        %v5107 = vunpack.c.h.b16 %v5020
        %v5108 = vunpack.c.l.b16 %v5021
        %v5109 = vunpack.c.h.b16 %v5021
        %v5110 = vunpack.c.l.b16 %v5022
        %v5111 = vunpack.c.h.b16 %v5022
        %v5112 = vunpack.c.l.b16 %v5023
        %v5113 = vunpack.c.h.b16 %v5023
        %v5114 = vunpack.c.l.b16 %v5024
        %v5115 = vunpack.c.h.b16 %v5024
        %v5116 = vunpack.c.l.b16 %v5025
        %v5117 = vunpack.c.h.b16 %v5025
        %v5118 = vunpack.c.l.b16 %v5026
        %v5119 = vunpack.c.h.b16 %v5026
        %v5120 = vunpack.c.l.b16 %v5027
        %v5121 = vunpack.c.h.b16 %v5027
        %v5122 = vunpack.c.l.b16 %v5028
        %v5123 = vunpack.c.h.b16 %v5028
        %v5124 = vunpack.c.l.b16 %v5029
        %v5125 = vunpack.c.h.b16 %v5029
        %v5126 = vunpack.c.l.b16 %v5030
        %v5127 = vunpack.c.h.b16 %v5030
        %v5128 = vunpack.c.l.b16 %v5031
        %v5129 = vunpack.c.h.b16 %v5031
        %v5130 = vunpack.c.l.b16 %v5032
        %v5131 = vunpack.c.h.b16 %v5032
        %v5132 = vunpack.c.l.b16 %v5033
        %v5133 = vunpack.c.h.b16 %v5033
        %v5134 = vunpack.c.l.b16 %v5034
        %v5135 = vunpack.c.h.b16 %v5034
        %v5136 = vunpack.c.l.b16 %v5035
        %v5137 = vunpack.c.h.b16 %v5035
        %v5138 = vunpack.c.l.b16 %v5036
        %v5139 = vunpack.c.h.b16 %v5036
        %v5140 = vunpack.c.l.b16 %v5037
        %v5141 = vunpack.c.h.b16 %v5037
        %v5142 = vunpack.c.l.b16 %v5038
        %v5143 = vunpack.c.h.b16 %v5038
        %v5144 = vunpack.c.l.b16 %v5039
        %v5145 = vunpack.c.h.b16 %v5039
        %v5146 = vunpack.c.l.b16 %v5040
        %v5147 = vunpack.c.h.b16 %v5040
        %v5148 = vunpack.c.l.b16 %v5041
        %v5149 = vunpack.c.h.b16 %v5041
        %v5150 = vpack.c.b16 %v5088, %v5086
        %v5151 = vpack.c.b16 %v5089, %v5087
        %v5152 = vpack.c.b16 %v5092, %v5090
        %v5153 = vpack.c.b16 %v5093, %v5091
        %v5154 = vpack.c.b16 %v5096, %v5094
        %v5155 = vpack.c.b16 %v5097, %v5095
        %v5156 = vpack.c.b16 %v5100, %v5098
        %v5157 = vpack.c.b16 %v5101, %v5099
        %v5158 = vpack.c.b16 %v5104, %v5102
        %v5159 = vpack.c.b16 %v5105, %v5103
        %v5160 = vpack.c.b16 %v5108, %v5106
        %v5161 = vpack.c.b16 %v5109, %v5107
        %v5162 = vpack.c.b16 %v5112, %v5110
        %v5163 = vpack.c.b16 %v5113, %v5111
        %v5164 = vpack.c.b16 %v5116, %v5114
        %v5165 = vpack.c.b16 %v5117, %v5115
        %v5166 = vpack.c.b16 %v5120, %v5118
        %v5167 = vpack.c.b16 %v5121, %v5119
        %v5168 = vpack.c.b16 %v5124, %v5122
        %v5169 = vpack.c.b16 %v5125, %v5123
        %v5170 = vpack.c.b16 %v5128, %v5126
        %v5171 = vpack.c.b16 %v5129, %v5127
        %v5172 = vpack.c.b16 %v5132, %v5130
        %v5173 = vpack.c.b16 %v5133, %v5131
        %v5174 = vpack.c.b16 %v5136, %v5134
        %v5175 = vpack.c.b16 %v5137, %v5135
        %v5176 = vpack.c.b16 %v5140, %v5138
        %v5177 = vpack.c.b16 %v5141, %v5139
        %v5178 = vpack.c.b16 %v5144, %v5142
        %v5179 = vpack.c.b16 %v5145, %v5143
        %v5180 = vpack.c.b16 %v5148, %v5146
        %v5181 = vpack.c.b16 %v5149, %v5147
        %5214 = vmatprep.subr.bf16.mxu0 %v5151
        %5215 = vmatpush1.bf16.msra.mxu0 %v5150
        %5216 = vmatprep.subr.bf16.mxu0 %v5153
        %5217 = vmatpush1.bf16.msra.mxu0 %v5152
        %5218 = vmatprep.subr.bf16.mxu0 %v5155
        %5219 = vmatpush1.bf16.msra.mxu0 %v5154
        %5220 = vmatprep.subr.bf16.mxu0 %v5157
        %5221 = vmatpush1.bf16.msra.mxu0 %v5156
        %5222 = vmatprep.subr.bf16.mxu0 %v5159
        %5223 = vmatpush1.bf16.msra.mxu0 %v5158
        %5224 = vmatprep.subr.bf16.mxu0 %v5161
        %5225 = vmatpush1.bf16.msra.mxu0 %v5160
        %5226 = vmatprep.subr.bf16.mxu0 %v5163
        %5227 = vmatpush1.bf16.msra.mxu0 %v5162
        %5228 = vmatprep.subr.bf16.mxu0 %v5165
        %5229 = vmatpush1.bf16.msra.mxu0 %v5164
        %5230 = vmatprep.subr.bf16.mxu0 %v5167
        %5231 = vmatpush1.bf16.msra.mxu0 %v5166
        %5232 = vmatprep.subr.bf16.mxu0 %v5169
        %5233 = vmatpush1.bf16.msra.mxu0 %v5168
        %5234 = vmatprep.subr.bf16.mxu0 %v5171
        %5235 = vmatpush1.bf16.msra.mxu0 %v5170
        %5236 = vmatprep.subr.bf16.mxu0 %v5173
        %5237 = vmatpush1.bf16.msra.mxu0 %v5172
        %5238 = vmatprep.subr.bf16.mxu0 %v5175
        %5239 = vmatpush1.bf16.msra.mxu0 %v5174
        %5240 = vmatprep.subr.bf16.mxu0 %v5177
        %5241 = vmatpush1.bf16.msra.mxu0 %v5176
        %5242 = vmatprep.subr.bf16.mxu0 %v5179
        %5243 = vmatpush1.bf16.msra.mxu0 %v5178
        %5244 = vmatprep.subr.bf16.mxu0 %v5181
        %5245 = vmatpush1.bf16.msra.mxu0 %v5180
        %5246 = vmatprep.mubr.bf16.mxu0 %v4995
        %5247 = vmatmul.mubr.bf16.gmra.mrb[0].mxu0 %v4994
        %v5248 = vpop.f32.mrb[0].mxu0
        %v5249 = vadd.f32 %v5047, %v5248
        %v5250 = vpop.f32.mrb[0].mxu0
        %v5251 = vadd.f32 %v5051, %v5250
        %v5252 = vpop.f32.mrb[0].mxu0
        %v5253 = vadd.f32 %v5047, %v5252
        %v5254 = vpop.f32.mrb[0].mxu0
        %v5255 = vadd.f32 %v5051, %v5254
        %5256 = vmatprep.mubr.bf16.mxu0 %v4997
        %5257 = vmatmul.mubr.bf16.gmra.mrb[0].mxu0 %v4996
        %v5258 = vpop.f32.mrb[0].mxu0
        %v5259 = vadd.f32 %v5047, %v5258
        %v5260 = vpop.f32.mrb[0].mxu0
        %v5261 = vadd.f32 %v5051, %v5260
        %v5262 = vpop.f32.mrb[0].mxu0
        %v5263 = vadd.f32 %v5047, %v5262
        %v5264 = vpop.f32.mrb[0].mxu0
        %v5265 = vadd.f32 %v5051, %v5264
        %5266 = vmatprep.mubr.bf16.mxu0 %v4999
        %5267 = vmatmul.mubr.bf16.gmra.mrb[0].mxu0 %v4998
        %v5268 = vpop.f32.mrb[0].mxu0
        %v5269 = vadd.f32 %v5047, %v5268
        %v5270 = vpop.f32.mrb[0].mxu0
        %v5271 = vadd.f32 %v5051, %v5270
        %v5272 = vpop.f32.mrb[0].mxu0
        %v5273 = vadd.f32 %v5047, %v5272
        %v5274 = vpop.f32.mrb[0].mxu0
        %v5275 = vadd.f32 %v5051, %v5274
        %5276 = vmatprep.mubr.bf16.mxu0 %v5001
        %5277 = vmatmul.mubr.bf16.gmra.mrb[0].mxu0 %v5000
        %v5278 = vpop.f32.mrb[0].mxu0
        %v5279 = vadd.f32 %v5047, %v5278
        %v5280 = vpop.f32.mrb[0].mxu0
        %v5281 = vadd.f32 %v5051, %v5280
        %v5282 = vpop.f32.mrb[0].mxu0
        %v5283 = vadd.f32 %v5047, %v5282
        %v5284 = vpop.f32.mrb[0].mxu0
        %v5285 = vadd.f32 %v5051, %v5284
        %5286 = vmatprep.mubr.bf16.mxu0 %v5003
        %5287 = vmatmul.mubr.bf16.gmra.mrb[0].mxu0 %v5002
        %v5288 = vpop.f32.mrb[0].mxu0
        %v5289 = vadd.f32 %v5047, %v5288
        %v5290 = vpop.f32.mrb[0].mxu0
        %v5291 = vadd.f32 %v5051, %v5290
        %v5292 = vpop.f32.mrb[0].mxu0
        %v5293 = vadd.f32 %v5047, %v5292
        %v5294 = vpop.f32.mrb[0].mxu0
        %v5295 = vadd.f32 %v5051, %v5294
        %5296 = vmatprep.mubr.bf16.mxu0 %v5005
        %5297 = vmatmul.mubr.bf16.gmra.mrb[0].mxu0 %v5004
        %v5298 = vpop.f32.mrb[0].mxu0
        %v5299 = vadd.f32 %v5047, %v5298
        %v5300 = vpop.f32.mrb[0].mxu0
        %v5301 = vadd.f32 %v5051, %v5300
        %v5302 = vpop.f32.mrb[0].mxu0
        %v5303 = vadd.f32 %v5047, %v5302
        %v5304 = vpop.f32.mrb[0].mxu0
        %v5305 = vadd.f32 %v5051, %v5304
        %5306 = vmatprep.mubr.bf16.mxu0 %v5007
        %5307 = vmatmul.mubr.bf16.gmra.mrb[0].mxu0 %v5006
        %v5308 = vpop.f32.mrb[0].mxu0
        %v5309 = vadd.f32 %v5047, %v5308
        %v5310 = vpop.f32.mrb[0].mxu0
        %v5311 = vadd.f32 %v5051, %v5310
        %v5312 = vpop.f32.mrb[0].mxu0
        %v5313 = vadd.f32 %v5047, %v5312
        %v5314 = vpop.f32.mrb[0].mxu0
        %v5315 = vadd.f32 %v5051, %v5314
        %5316 = vmatprep.mubr.bf16.mxu0 %v5009
        %5317 = vmatmul.mubr.bf16.gmra.mrb[0].mxu0 %v5008
        %v5318 = vpop.f32.mrb[0].mxu0
        %v5319 = vadd.f32 %v5047, %v5318
        %v5320 = vpop.f32.mrb[0].mxu0
        %v5321 = vadd.f32 %v5051, %v5320
        %v5322 = vpop.f32.mrb[0].mxu0
        %v5323 = vadd.f32 %v5047, %v5322
        %v5324 = vpop.f32.mrb[0].mxu0
        %v5325 = vadd.f32 %v5051, %v5324
        %5326 = vdwg.mxu0
        %v5327 = vadd.f32 %v1888, %v5249
        %v5328 = vadd.f32 %v1889, %v5251
        %v5329 = vadd.f32 %v1890, %v5253
        %v5330 = vadd.f32 %v1891, %v5255
        %v5331 = vadd.f32 %v1892, %v5259
        %v5332 = vadd.f32 %v1893, %v5261
        %v5333 = vadd.f32 %v1894, %v5263
        %v5334 = vadd.f32 %v1895, %v5265
        %v5335 = vadd.f32 %v1896, %v5269
        %v5336 = vadd.f32 %v1897, %v5271
        %v5337 = vadd.f32 %v1898, %v5273
        %v5338 = vadd.f32 %v1899, %v5275
        %v5339 = vadd.f32 %v1900, %v5279
        %v5340 = vadd.f32 %v1901, %v5281
        %v5341 = vadd.f32 %v1902, %v5283
        %v5342 = vadd.f32 %v1903, %v5285
        %v5343 = vadd.f32 %v1904, %v5289
        %v5344 = vadd.f32 %v1905, %v5291
        %v5345 = vadd.f32 %v1906, %v5293
        %v5346 = vadd.f32 %v1907, %v5295
        %v5347 = vadd.f32 %v1908, %v5299
        %v5348 = vadd.f32 %v1909, %v5301
        %v5349 = vadd.f32 %v1910, %v5303
        %v5350 = vadd.f32 %v1911, %v5305
        %v5351 = vadd.f32 %v1912, %v5309
        %v5352 = vadd.f32 %v1913, %v5311
        %v5353 = vadd.f32 %v1914, %v5313
        %v5354 = vadd.f32 %v1915, %v5315
        %v5355 = vadd.f32 %v1916, %v5319
        %v5356 = vadd.f32 %v1917, %v5321
        %v5357 = vadd.f32 %v1918, %v5323
        %v5358 = vadd.f32 %v1919, %v5325
        %v5359 = vld [vmem:[#allocation22] sm:$0x3]
        %v5360 = vld [vmem:[#allocation23] sm:$0x3]
        %v5361 = vadd.f32 %v5327, %v5328
        %5362 = vadd.xlane.f32.xlu0 %v5361
        %v5363 = vpop.xlane.xlu0 %5362
        %v5364 = vadd.f32 %v5329, %v5330
        %5365 = vadd.xlane.f32.xlu0 %v5364
        %v5366 = vpop.xlane.xlu0 %5365
        %v5367 = vadd.f32 %v5331, %v5332
        %5368 = vadd.xlane.f32.xlu0 %v5367
        %v5369 = vpop.xlane.xlu0 %5368
        %v5370 = vadd.f32 %v5333, %v5334
        %5371 = vadd.xlane.f32.xlu0 %v5370
        %v5372 = vpop.xlane.xlu0 %5371
        %v5373 = vadd.f32 %v5335, %v5336
        %5374 = vadd.xlane.f32.xlu0 %v5373
        %v5375 = vpop.xlane.xlu0 %5374
        %v5376 = vadd.f32 %v5337, %v5338
        %5377 = vadd.xlane.f32.xlu0 %v5376
        %v5378 = vpop.xlane.xlu0 %5377
        %v5379 = vadd.f32 %v5339, %v5340
        %5380 = vadd.xlane.f32.xlu0 %v5379
        %v5381 = vpop.xlane.xlu0 %5380
        %v5382 = vadd.f32 %v5341, %v5342
        %5383 = vadd.xlane.f32.xlu0 %v5382
        %v5384 = vpop.xlane.xlu0 %5383
        %v5385 = vadd.f32 %v5343, %v5344
        %5386 = vadd.xlane.f32.xlu0 %v5385
        %v5387 = vpop.xlane.xlu0 %5386
        %v5388 = vadd.f32 %v5345, %v5346
        %5389 = vadd.xlane.f32.xlu0 %v5388
        %v5390 = vpop.xlane.xlu0 %5389
        %v5391 = vadd.f32 %v5347, %v5348
        %5392 = vadd.xlane.f32.xlu0 %v5391
        %v5393 = vpop.xlane.xlu0 %5392
        %v5394 = vadd.f32 %v5349, %v5350
        %5395 = vadd.xlane.f32.xlu0 %v5394
        %v5396 = vpop.xlane.xlu0 %5395
        %v5397 = vadd.f32 %v5351, %v5352
        %5398 = vadd.xlane.f32.xlu0 %v5397
        %v5399 = vpop.xlane.xlu0 %5398
        %v5400 = vadd.f32 %v5353, %v5354
        %5401 = vadd.xlane.f32.xlu0 %v5400
        %v5402 = vpop.xlane.xlu0 %5401
        %v5403 = vadd.f32 %v5355, %v5356
        %5404 = vadd.xlane.f32.xlu0 %v5403
        %v5405 = vpop.xlane.xlu0 %5404
        %v5406 = vadd.f32 %v5357, %v5358
        %5407 = vadd.xlane.f32.xlu0 %v5406
        %v5408 = vpop.xlane.xlu0 %5407
        %v5409 = vrcp.pop 256.0
        %v5410 = vmul.f32 %v5363, %v5409
        %v5411 = vmul.f32 %v5366, %v5409
        %v5412 = vmul.f32 %v5369, %v5409
        %v5413 = vmul.f32 %v5372, %v5409
        %v5414 = vmul.f32 %v5375, %v5409
        %v5415 = vmul.f32 %v5378, %v5409
        %v5416 = vmul.f32 %v5381, %v5409
        %v5417 = vmul.f32 %v5384, %v5409
        %v5418 = vmul.f32 %v5387, %v5409
        %v5419 = vmul.f32 %v5390, %v5409
        %v5420 = vmul.f32 %v5393, %v5409
        %v5421 = vmul.f32 %v5396, %v5409
        %v5422 = vmul.f32 %v5399, %v5409
        %v5423 = vmul.f32 %v5402, %v5409
        %v5424 = vmul.f32 %v5405, %v5409
        %v5425 = vmul.f32 %v5408, %v5409
        %v5426 = vsub.f32 %v5327, %v5410
        %v5427 = vsub.f32 %v5328, %v5410
        %v5428 = vsub.f32 %v5329, %v5411
        %v5429 = vsub.f32 %v5330, %v5411
        %v5430 = vsub.f32 %v5331, %v5412
        %v5431 = vsub.f32 %v5332, %v5412
        %v5432 = vsub.f32 %v5333, %v5413
        %v5433 = vsub.f32 %v5334, %v5413
        %v5434 = vsub.f32 %v5335, %v5414
        %v5435 = vsub.f32 %v5336, %v5414
        %v5436 = vsub.f32 %v5337, %v5415
        %v5437 = vsub.f32 %v5338, %v5415
        %v5438 = vsub.f32 %v5339, %v5416
        %v5439 = vsub.f32 %v5340, %v5416
        %v5440 = vsub.f32 %v5341, %v5417
        %v5441 = vsub.f32 %v5342, %v5417
        %v5442 = vsub.f32 %v5343, %v5418
        %v5443 = vsub.f32 %v5344, %v5418
        %v5444 = vsub.f32 %v5345, %v5419
        %v5445 = vsub.f32 %v5346, %v5419
        %v5446 = vsub.f32 %v5347, %v5420
        %v5447 = vsub.f32 %v5348, %v5420
        %v5448 = vsub.f32 %v5349, %v5421
        %v5449 = vsub.f32 %v5350, %v5421
        %v5450 = vsub.f32 %v5351, %v5422
        %v5451 = vsub.f32 %v5352, %v5422
        %v5452 = vsub.f32 %v5353, %v5423
        %v5453 = vsub.f32 %v5354, %v5423
        %v5454 = vsub.f32 %v5355, %v5424
        %v5455 = vsub.f32 %v5356, %v5424
        %v5456 = vsub.f32 %v5357, %v5425
        %v5457 = vsub.f32 %v5358, %v5425
        %v5458 = vmul.f32 %v5426, %v5426
        %v5459 = vmul.f32 %v5427, %v5427
        %v5460 = vmul.f32 %v5428, %v5428
        %v5461 = vmul.f32 %v5429, %v5429
        %v5462 = vmul.f32 %v5430, %v5430
        %v5463 = vmul.f32 %v5431, %v5431
        %v5464 = vmul.f32 %v5432, %v5432
        %v5465 = vmul.f32 %v5433, %v5433
        %v5466 = vmul.f32 %v5434, %v5434
        %v5467 = vmul.f32 %v5435, %v5435
        %v5468 = vmul.f32 %v5436, %v5436
        %v5469 = vmul.f32 %v5437, %v5437
        %v5470 = vmul.f32 %v5438, %v5438
        %v5471 = vmul.f32 %v5439, %v5439
        %v5472 = vmul.f32 %v5440, %v5440
        %v5473 = vmul.f32 %v5441, %v5441
        %v5474 = vmul.f32 %v5442, %v5442
        %v5475 = vmul.f32 %v5443, %v5443
        %v5476 = vmul.f32 %v5444, %v5444
        %v5477 = vmul.f32 %v5445, %v5445
        %v5478 = vmul.f32 %v5446, %v5446
        %v5479 = vmul.f32 %v5447, %v5447
        %v5480 = vmul.f32 %v5448, %v5448
        %v5481 = vmul.f32 %v5449, %v5449
        %v5482 = vmul.f32 %v5450, %v5450
        %v5483 = vmul.f32 %v5451, %v5451
        %v5484 = vmul.f32 %v5452, %v5452
        %v5485 = vmul.f32 %v5453, %v5453
        %v5486 = vmul.f32 %v5454, %v5454
        %v5487 = vmul.f32 %v5455, %v5455
        %v5488 = vmul.f32 %v5456, %v5456
        %v5489 = vmul.f32 %v5457, %v5457
        %v5490 = vadd.f32 %v5458, %v5459
        %5491 = vadd.xlane.f32.xlu0 %v5490
        %v5492 = vpop.xlane.xlu0 %5491
        %v5493 = vadd.f32 %v5460, %v5461
        %5494 = vadd.xlane.f32.xlu0 %v5493
        %v5495 = vpop.xlane.xlu0 %5494
        %v5496 = vadd.f32 %v5462, %v5463
        %5497 = vadd.xlane.f32.xlu0 %v5496
        %v5498 = vpop.xlane.xlu0 %5497
        %v5499 = vadd.f32 %v5464, %v5465
        %5500 = vadd.xlane.f32.xlu0 %v5499
        %v5501 = vpop.xlane.xlu0 %5500
        %v5502 = vadd.f32 %v5466, %v5467
        %5503 = vadd.xlane.f32.xlu0 %v5502
        %v5504 = vpop.xlane.xlu0 %5503
        %v5505 = vadd.f32 %v5468, %v5469
        %5506 = vadd.xlane.f32.xlu0 %v5505
        %v5507 = vpop.xlane.xlu0 %5506
        %v5508 = vadd.f32 %v5470, %v5471
        %5509 = vadd.xlane.f32.xlu0 %v5508
        %v5510 = vpop.xlane.xlu0 %5509
        %v5511 = vadd.f32 %v5472, %v5473
        %5512 = vadd.xlane.f32.xlu0 %v5511
        %v5513 = vpop.xlane.xlu0 %5512
        %v5514 = vadd.f32 %v5474, %v5475
        %5515 = vadd.xlane.f32.xlu0 %v5514
        %v5516 = vpop.xlane.xlu0 %5515
        %v5517 = vadd.f32 %v5476, %v5477
        %5518 = vadd.xlane.f32.xlu0 %v5517
        %v5519 = vpop.xlane.xlu0 %5518
        %v5520 = vadd.f32 %v5478, %v5479
        %5521 = vadd.xlane.f32.xlu0 %v5520
        %v5522 = vpop.xlane.xlu0 %5521
        %v5523 = vadd.f32 %v5480, %v5481
        %5524 = vadd.xlane.f32.xlu0 %v5523
        %v5525 = vpop.xlane.xlu0 %5524
        %v5526 = vadd.f32 %v5482, %v5483
        %5527 = vadd.xlane.f32.xlu0 %v5526
        %v5528 = vpop.xlane.xlu0 %5527
        %v5529 = vadd.f32 %v5484, %v5485
        %5530 = vadd.xlane.f32.xlu0 %v5529
        %v5531 = vpop.xlane.xlu0 %5530
        %v5532 = vadd.f32 %v5486, %v5487
        %5533 = vadd.xlane.f32.xlu0 %v5532
        %v5534 = vpop.xlane.xlu0 %5533
        %v5535 = vadd.f32 %v5488, %v5489
        %5536 = vadd.xlane.f32.xlu0 %v5535
        %v5537 = vpop.xlane.xlu0 %5536
        %v5538 = vmul.f32 %v5492, %v5409
        %v5539 = vmul.f32 %v5495, %v5409
        %v5540 = vmul.f32 %v5498, %v5409
        %v5541 = vmul.f32 %v5501, %v5409
        %v5542 = vmul.f32 %v5504, %v5409
        %v5543 = vmul.f32 %v5507, %v5409
        %v5544 = vmul.f32 %v5510, %v5409
        %v5545 = vmul.f32 %v5513, %v5409
        %v5546 = vmul.f32 %v5516, %v5409
        %v5547 = vmul.f32 %v5519, %v5409
        %v5548 = vmul.f32 %v5522, %v5409
        %v5549 = vmul.f32 %v5525, %v5409
        %v5550 = vmul.f32 %v5528, %v5409
        %v5551 = vmul.f32 %v5531, %v5409
        %v5552 = vmul.f32 %v5534, %v5409
        %v5553 = vmul.f32 %v5537, %v5409
        %v5554 = vadd.f32 %v5538, 1e-12
        %v5555 = vadd.f32 %v5539, 1e-12
        %v5556 = vadd.f32 %v5540, 1e-12
        %v5557 = vadd.f32 %v5541, 1e-12
        %v5558 = vadd.f32 %v5542, 1e-12
        %v5559 = vadd.f32 %v5543, 1e-12
        %v5560 = vadd.f32 %v5544, 1e-12
        %v5561 = vadd.f32 %v5545, 1e-12
        %v5562 = vadd.f32 %v5546, 1e-12
        %v5563 = vadd.f32 %v5547, 1e-12
        %v5564 = vadd.f32 %v5548, 1e-12
        %v5565 = vadd.f32 %v5549, 1e-12
        %v5566 = vadd.f32 %v5550, 1e-12
        %v5567 = vadd.f32 %v5551, 1e-12
        %v5568 = vadd.f32 %v5552, 1e-12
        %v5569 = vadd.f32 %v5553, 1e-12
        %v5570 = vrsqrt.pop %v5554
        %v5571 = vrsqrt.pop %v5555
        %v5572 = vrsqrt.pop %v5556
        %v5573 = vrsqrt.pop %v5557
        %v5574 = vrsqrt.pop %v5558
        %v5575 = vrsqrt.pop %v5559
        %v5576 = vrsqrt.pop %v5560
        %v5577 = vrsqrt.pop %v5561
        %v5578 = vrsqrt.pop %v5562
        %v5579 = vrsqrt.pop %v5563
        %v5580 = vrsqrt.pop %v5564
        %v5581 = vrsqrt.pop %v5565
        %v5582 = vrsqrt.pop %v5566
        %v5583 = vrsqrt.pop %v5567
        %v5584 = vrsqrt.pop %v5568
        %v5585 = vrsqrt.pop %v5569
        %v5586 = vmul.f32 %v5426, %v5570
        %v5587 = vmul.f32 %v5427, %v5570
        %v5588 = vmul.f32 %v5428, %v5571
        %v5589 = vmul.f32 %v5429, %v5571
        %v5590 = vmul.f32 %v5430, %v5572
        %v5591 = vmul.f32 %v5431, %v5572
        %v5592 = vmul.f32 %v5432, %v5573
        %v5593 = vmul.f32 %v5433, %v5573
        %v5594 = vmul.f32 %v5434, %v5574
        %v5595 = vmul.f32 %v5435, %v5574
        %v5596 = vmul.f32 %v5436, %v5575
        %v5597 = vmul.f32 %v5437, %v5575
        %v5598 = vmul.f32 %v5438, %v5576
        %v5599 = vmul.f32 %v5439, %v5576
        %v5600 = vmul.f32 %v5440, %v5577
        %v5601 = vmul.f32 %v5441, %v5577
        %v5602 = vmul.f32 %v5442, %v5578
        %v5603 = vmul.f32 %v5443, %v5578
        %v5604 = vmul.f32 %v5444, %v5579
        %v5605 = vmul.f32 %v5445, %v5579
        %v5606 = vmul.f32 %v5446, %v5580
        %v5607 = vmul.f32 %v5447, %v5580
        %v5608 = vmul.f32 %v5448, %v5581
        %v5609 = vmul.f32 %v5449, %v5581
        %v5610 = vmul.f32 %v5450, %v5582
        %v5611 = vmul.f32 %v5451, %v5582
        %v5612 = vmul.f32 %v5452, %v5583
        %v5613 = vmul.f32 %v5453, %v5583
        %v5614 = vmul.f32 %v5454, %v5584
        %v5615 = vmul.f32 %v5455, %v5584
        %v5616 = vmul.f32 %v5456, %v5585
        %v5617 = vmul.f32 %v5457, %v5585
        %v5619 = vlaneseq
        %v5620 = vshrl.u32 %v5619, 7
        %v5621 = vsub.s32 0, %v5620
        %v5622 = vrot.slane %v5359, %v5621
        %v5623 = vlaneseq
        %v5624 = vshrl.u32 %v5623, 7
        %v5625 = vsub.s32 1, %v5624
        %v5626 = vrot.slane %v5359, %v5625
        %v5629 = vmul.f32 %v5586, %v5622
        %v5630 = vmul.f32 %v5587, %v5626
        %v5631 = vmul.f32 %v5588, %v5622
        %v5632 = vmul.f32 %v5589, %v5626
        %v5633 = vmul.f32 %v5590, %v5622
        %v5634 = vmul.f32 %v5591, %v5626
        %v5635 = vmul.f32 %v5592, %v5622
        %v5636 = vmul.f32 %v5593, %v5626
        %v5637 = vmul.f32 %v5594, %v5622
        %v5638 = vmul.f32 %v5595, %v5626
        %v5639 = vmul.f32 %v5596, %v5622
        %v5640 = vmul.f32 %v5597, %v5626
        %v5641 = vmul.f32 %v5598, %v5622
        %v5642 = vmul.f32 %v5599, %v5626
        %v5643 = vmul.f32 %v5600, %v5622
        %v5644 = vmul.f32 %v5601, %v5626
        %v5645 = vmul.f32 %v5602, %v5622
        %v5646 = vmul.f32 %v5603, %v5626
        %v5647 = vmul.f32 %v5604, %v5622
        %v5648 = vmul.f32 %v5605, %v5626
        %v5649 = vmul.f32 %v5606, %v5622
        %v5650 = vmul.f32 %v5607, %v5626
        %v5651 = vmul.f32 %v5608, %v5622
        %v5652 = vmul.f32 %v5609, %v5626
        %v5653 = vmul.f32 %v5610, %v5622
        %v5654 = vmul.f32 %v5611, %v5626
        %v5655 = vmul.f32 %v5612, %v5622
        %v5656 = vmul.f32 %v5613, %v5626
        %v5657 = vmul.f32 %v5614, %v5622
        %v5658 = vmul.f32 %v5615, %v5626
        %v5659 = vmul.f32 %v5616, %v5622
        %v5660 = vmul.f32 %v5617, %v5626
        %v5662 = vlaneseq
        %v5663 = vshrl.u32 %v5662, 7
        %v5664 = vsub.s32 0, %v5663
        %v5665 = vrot.slane %v5360, %v5664
        %v5666 = vlaneseq
        %v5667 = vshrl.u32 %v5666, 7
        %v5668 = vsub.s32 1, %v5667
        %v5669 = vrot.slane %v5360, %v5668
        %v5672 = vadd.f32 %v5629, %v5665
        %v5673 = vadd.f32 %v5630, %v5669
        %v5674 = vadd.f32 %v5631, %v5665
        %v5675 = vadd.f32 %v5632, %v5669
        %v5676 = vadd.f32 %v5633, %v5665
        %v5677 = vadd.f32 %v5634, %v5669
        %v5678 = vadd.f32 %v5635, %v5665
        %v5679 = vadd.f32 %v5636, %v5669
        %v5680 = vadd.f32 %v5637, %v5665
        %v5681 = vadd.f32 %v5638, %v5669
        %v5682 = vadd.f32 %v5639, %v5665
        %v5683 = vadd.f32 %v5640, %v5669
        %v5684 = vadd.f32 %v5641, %v5665
        %v5685 = vadd.f32 %v5642, %v5669
        %v5686 = vadd.f32 %v5643, %v5665
        %v5687 = vadd.f32 %v5644, %v5669
        %v5688 = vadd.f32 %v5645, %v5665
        %v5689 = vadd.f32 %v5646, %v5669
        %v5690 = vadd.f32 %v5647, %v5665
        %v5691 = vadd.f32 %v5648, %v5669
        %v5692 = vadd.f32 %v5649, %v5665
        %v5693 = vadd.f32 %v5650, %v5669
        %v5694 = vadd.f32 %v5651, %v5665
        %v5695 = vadd.f32 %v5652, %v5669
        %v5696 = vadd.f32 %v5653, %v5665
        %v5697 = vadd.f32 %v5654, %v5669
        %v5698 = vadd.f32 %v5655, %v5665
        %v5699 = vadd.f32 %v5656, %v5669
        %v5700 = vadd.f32 %v5657, %v5665
        %v5701 = vadd.f32 %v5658, %v5669
        %v5702 = vadd.f32 %v5659, %v5665
        %v5703 = vadd.f32 %v5660, %v5669
        %v5704 = vpack.c.bf16 %v5674, %v5672
        %v5705 = vpack.c.bf16 %v5675, %v5673
        %v5706 = vpack.c.bf16 %v5678, %v5676
        %v5707 = vpack.c.bf16 %v5679, %v5677
        %v5708 = vpack.c.bf16 %v5682, %v5680
        %v5709 = vpack.c.bf16 %v5683, %v5681
        %v5710 = vpack.c.bf16 %v5686, %v5684
        %v5711 = vpack.c.bf16 %v5687, %v5685
        %v5712 = vpack.c.bf16 %v5690, %v5688
        %v5713 = vpack.c.bf16 %v5691, %v5689
        %v5714 = vpack.c.bf16 %v5694, %v5692
        %v5715 = vpack.c.bf16 %v5695, %v5693
        %v5716 = vpack.c.bf16 %v5698, %v5696
        %v5717 = vpack.c.bf16 %v5699, %v5697
        %v5718 = vpack.c.bf16 %v5702, %v5700
        %v5719 = vpack.c.bf16 %v5703, %v5701
        %v5720 = vld [vmem:[#allocation25] sm:$0xff]
        %v5721 = vld [vmem:[#allocation25 + $0x8] sm:$0xff]
        %v5722 = vld [vmem:[#allocation25 + $0x20] sm:$0xff]
        %v5723 = vld [vmem:[#allocation25 + $0x28] sm:$0xff]
        %v5724 = vld [vmem:[#allocation25 + $0x40] sm:$0xff]
        %v5725 = vld [vmem:[#allocation25 + $0x48] sm:$0xff]
        %v5726 = vld [vmem:[#allocation25 + $0x60] sm:$0xff]
        %v5727 = vld [vmem:[#allocation25 + $0x68] sm:$0xff]
        %v5728 = vld [vmem:[#allocation25 + $0x80] sm:$0xff]
        %v5729 = vld [vmem:[#allocation25 + $0x88] sm:$0xff]
        %v5730 = vld [vmem:[#allocation25 + $0xa0] sm:$0xff]
        %v5731 = vld [vmem:[#allocation25 + $0xa8] sm:$0xff]
        %v5732 = vld [vmem:[#allocation25 + $0xc0] sm:$0xff]
        %v5733 = vld [vmem:[#allocation25 + $0xc8] sm:$0xff]
        %v5734 = vld [vmem:[#allocation25 + $0xe0] sm:$0xff]
        %v5735 = vld [vmem:[#allocation25 + $0xe8] sm:$0xff]
        %v5736 = vld [vmem:[#allocation25 + $0x100] sm:$0xff]
        %v5737 = vld [vmem:[#allocation25 + $0x108] sm:$0xff]
        %v5738 = vld [vmem:[#allocation25 + $0x120] sm:$0xff]
        %v5739 = vld [vmem:[#allocation25 + $0x128] sm:$0xff]
        %v5740 = vld [vmem:[#allocation25 + $0x140] sm:$0xff]
        %v5741 = vld [vmem:[#allocation25 + $0x148] sm:$0xff]
        %v5742 = vld [vmem:[#allocation25 + $0x160] sm:$0xff]
        %v5743 = vld [vmem:[#allocation25 + $0x168] sm:$0xff]
        %v5744 = vld [vmem:[#allocation25 + $0x180] sm:$0xff]
        %v5745 = vld [vmem:[#allocation25 + $0x188] sm:$0xff]
        %v5746 = vld [vmem:[#allocation25 + $0x1a0] sm:$0xff]
        %v5747 = vld [vmem:[#allocation25 + $0x1a8] sm:$0xff]
        %v5748 = vld [vmem:[#allocation25 + $0x1c0] sm:$0xff]
        %v5749 = vld [vmem:[#allocation25 + $0x1c8] sm:$0xff]
        %v5750 = vld [vmem:[#allocation25 + $0x1e0] sm:$0xff]
        %v5751 = vld [vmem:[#allocation25 + $0x1e8] sm:$0xff]
        %v5752 = vld [vmem:[#allocation25 + $0x200] sm:$0xff]
        %v5753 = vld [vmem:[#allocation25 + $0x208] sm:$0xff]
        %v5754 = vld [vmem:[#allocation25 + $0x220] sm:$0xff]
        %v5755 = vld [vmem:[#allocation25 + $0x228] sm:$0xff]
        %v5756 = vld [vmem:[#allocation25 + $0x240] sm:$0xff]
        %v5757 = vld [vmem:[#allocation25 + $0x248] sm:$0xff]
        %v5758 = vld [vmem:[#allocation25 + $0x260] sm:$0xff]
        %v5759 = vld [vmem:[#allocation25 + $0x268] sm:$0xff]
        %v5760 = vld [vmem:[#allocation25 + $0x280] sm:$0xff]
        %v5761 = vld [vmem:[#allocation25 + $0x288] sm:$0xff]
        %v5762 = vld [vmem:[#allocation25 + $0x2a0] sm:$0xff]
        %v5763 = vld [vmem:[#allocation25 + $0x2a8] sm:$0xff]
        %v5764 = vld [vmem:[#allocation25 + $0x2c0] sm:$0xff]
        %v5765 = vld [vmem:[#allocation25 + $0x2c8] sm:$0xff]
        %v5766 = vld [vmem:[#allocation25 + $0x2e0] sm:$0xff]
        %v5767 = vld [vmem:[#allocation25 + $0x2e8] sm:$0xff]
        %v5768 = vld [vmem:[#allocation25 + $0x300] sm:$0xff]
        %v5769 = vld [vmem:[#allocation25 + $0x308] sm:$0xff]
        %v5770 = vld [vmem:[#allocation25 + $0x320] sm:$0xff]
        %v5771 = vld [vmem:[#allocation25 + $0x328] sm:$0xff]
        %v5772 = vld [vmem:[#allocation25 + $0x340] sm:$0xff]
        %v5773 = vld [vmem:[#allocation25 + $0x348] sm:$0xff]
        %v5774 = vld [vmem:[#allocation25 + $0x360] sm:$0xff]
        %v5775 = vld [vmem:[#allocation25 + $0x368] sm:$0xff]
        %v5776 = vld [vmem:[#allocation25 + $0x380] sm:$0xff]
        %v5777 = vld [vmem:[#allocation25 + $0x388] sm:$0xff]
        %v5778 = vld [vmem:[#allocation25 + $0x3a0] sm:$0xff]
        %v5779 = vld [vmem:[#allocation25 + $0x3a8] sm:$0xff]
        %v5780 = vld [vmem:[#allocation25 + $0x3c0] sm:$0xff]
        %v5781 = vld [vmem:[#allocation25 + $0x3c8] sm:$0xff]
        %v5782 = vld [vmem:[#allocation25 + $0x3e0] sm:$0xff]
        %v5783 = vld [vmem:[#allocation25 + $0x3e8] sm:$0xff]
        %v5784 = vld [vmem:[#allocation26] sm:$0xf]
        %v5786 = vlaneseq
        %v5787 = vshrl.u32 %v5786, 7
        %v5788 = vsub.s32 0, %v5787
        %v5789 = vrot.slane %v5784, %v5788
        %v5790 = vlaneseq
        %v5791 = vshrl.u32 %v5790, 7
        %v5792 = vsub.s32 1, %v5791
        %v5793 = vrot.slane %v5784, %v5792
        %v5794 = vlaneseq
        %v5795 = vshrl.u32 %v5794, 7
        %v5796 = vsub.s32 2, %v5795
        %v5797 = vrot.slane %v5784, %v5796
        %v5798 = vlaneseq
        %v5799 = vshrl.u32 %v5798, 7
        %v5800 = vsub.s32 3, %v5799
        %v5801 = vrot.slane %v5784, %v5800
        %v5870 = vunpack.c.l.b16 %v5720
        %v5871 = vunpack.c.h.b16 %v5720
        %v5872 = vunpack.c.l.b16 %v5721
        %v5873 = vunpack.c.h.b16 %v5721
        %v5874 = vunpack.c.l.b16 %v5722
        %v5875 = vunpack.c.h.b16 %v5722
        %v5876 = vunpack.c.l.b16 %v5723
        %v5877 = vunpack.c.h.b16 %v5723
        %v5878 = vunpack.c.l.b16 %v5724
        %v5879 = vunpack.c.h.b16 %v5724
        %v5880 = vunpack.c.l.b16 %v5725
        %v5881 = vunpack.c.h.b16 %v5725
        %v5882 = vunpack.c.l.b16 %v5726
        %v5883 = vunpack.c.h.b16 %v5726
        %v5884 = vunpack.c.l.b16 %v5727
        %v5885 = vunpack.c.h.b16 %v5727
        %v5886 = vunpack.c.l.b16 %v5728
        %v5887 = vunpack.c.h.b16 %v5728
        %v5888 = vunpack.c.l.b16 %v5729
        %v5889 = vunpack.c.h.b16 %v5729
        %v5890 = vunpack.c.l.b16 %v5730
        %v5891 = vunpack.c.h.b16 %v5730
        %v5892 = vunpack.c.l.b16 %v5731
        %v5893 = vunpack.c.h.b16 %v5731
        %v5894 = vunpack.c.l.b16 %v5732
        %v5895 = vunpack.c.h.b16 %v5732
        %v5896 = vunpack.c.l.b16 %v5733
        %v5897 = vunpack.c.h.b16 %v5733
        %v5898 = vunpack.c.l.b16 %v5734
        %v5899 = vunpack.c.h.b16 %v5734
        %v5900 = vunpack.c.l.b16 %v5735
        %v5901 = vunpack.c.h.b16 %v5735
        %v5902 = vunpack.c.l.b16 %v5736
        %v5903 = vunpack.c.h.b16 %v5736
        %v5904 = vunpack.c.l.b16 %v5737
        %v5905 = vunpack.c.h.b16 %v5737
        %v5906 = vunpack.c.l.b16 %v5738
        %v5907 = vunpack.c.h.b16 %v5738
        %v5908 = vunpack.c.l.b16 %v5739
        %v5909 = vunpack.c.h.b16 %v5739
        %v5910 = vunpack.c.l.b16 %v5740
        %v5911 = vunpack.c.h.b16 %v5740
        %v5912 = vunpack.c.l.b16 %v5741
        %v5913 = vunpack.c.h.b16 %v5741
        %v5914 = vunpack.c.l.b16 %v5742
        %v5915 = vunpack.c.h.b16 %v5742
        %v5916 = vunpack.c.l.b16 %v5743
        %v5917 = vunpack.c.h.b16 %v5743
        %v5918 = vunpack.c.l.b16 %v5744
        %v5919 = vunpack.c.h.b16 %v5744
        %v5920 = vunpack.c.l.b16 %v5745
        %v5921 = vunpack.c.h.b16 %v5745
        %v5922 = vunpack.c.l.b16 %v5746
        %v5923 = vunpack.c.h.b16 %v5746
        %v5924 = vunpack.c.l.b16 %v5747
        %v5925 = vunpack.c.h.b16 %v5747
        %v5926 = vunpack.c.l.b16 %v5748
        %v5927 = vunpack.c.h.b16 %v5748
        %v5928 = vunpack.c.l.b16 %v5749
        %v5929 = vunpack.c.h.b16 %v5749
        %v5930 = vunpack.c.l.b16 %v5750
        %v5931 = vunpack.c.h.b16 %v5750
        %v5932 = vunpack.c.l.b16 %v5751
        %v5933 = vunpack.c.h.b16 %v5751
        %v5934 = vunpack.c.l.b16 %v5752
        %v5935 = vunpack.c.h.b16 %v5752
        %v5936 = vunpack.c.l.b16 %v5753
        %v5937 = vunpack.c.h.b16 %v5753
        %v5938 = vunpack.c.l.b16 %v5754
        %v5939 = vunpack.c.h.b16 %v5754
        %v5940 = vunpack.c.l.b16 %v5755
        %v5941 = vunpack.c.h.b16 %v5755
        %v5942 = vunpack.c.l.b16 %v5756
        %v5943 = vunpack.c.h.b16 %v5756
        %v5944 = vunpack.c.l.b16 %v5757
        %v5945 = vunpack.c.h.b16 %v5757
        %v5946 = vunpack.c.l.b16 %v5758
        %v5947 = vunpack.c.h.b16 %v5758
        %v5948 = vunpack.c.l.b16 %v5759
        %v5949 = vunpack.c.h.b16 %v5759
        %v5950 = vunpack.c.l.b16 %v5760
        %v5951 = vunpack.c.h.b16 %v5760
        %v5952 = vunpack.c.l.b16 %v5761
        %v5953 = vunpack.c.h.b16 %v5761
        %v5954 = vunpack.c.l.b16 %v5762
        %v5955 = vunpack.c.h.b16 %v5762
        %v5956 = vunpack.c.l.b16 %v5763
        %v5957 = vunpack.c.h.b16 %v5763
        %v5958 = vunpack.c.l.b16 %v5764
        %v5959 = vunpack.c.h.b16 %v5764
        %v5960 = vunpack.c.l.b16 %v5765
        %v5961 = vunpack.c.h.b16 %v5765
        %v5962 = vunpack.c.l.b16 %v5766
        %v5963 = vunpack.c.h.b16 %v5766
        %v5964 = vunpack.c.l.b16 %v5767
        %v5965 = vunpack.c.h.b16 %v5767
        %v5966 = vunpack.c.l.b16 %v5768
        %v5967 = vunpack.c.h.b16 %v5768
        %v5968 = vunpack.c.l.b16 %v5769
        %v5969 = vunpack.c.h.b16 %v5769
        %v5970 = vunpack.c.l.b16 %v5770
        %v5971 = vunpack.c.h.b16 %v5770
        %v5972 = vunpack.c.l.b16 %v5771
        %v5973 = vunpack.c.h.b16 %v5771
        %v5974 = vunpack.c.l.b16 %v5772
        %v5975 = vunpack.c.h.b16 %v5772
        %v5976 = vunpack.c.l.b16 %v5773
        %v5977 = vunpack.c.h.b16 %v5773
        %v5978 = vunpack.c.l.b16 %v5774
        %v5979 = vunpack.c.h.b16 %v5774
        %v5980 = vunpack.c.l.b16 %v5775
        %v5981 = vunpack.c.h.b16 %v5775
        %v5982 = vunpack.c.l.b16 %v5776
        %v5983 = vunpack.c.h.b16 %v5776
        %v5984 = vunpack.c.l.b16 %v5777
        %v5985 = vunpack.c.h.b16 %v5777
        %v5986 = vunpack.c.l.b16 %v5778
        %v5987 = vunpack.c.h.b16 %v5778
        %v5988 = vunpack.c.l.b16 %v5779
        %v5989 = vunpack.c.h.b16 %v5779
        %v5990 = vunpack.c.l.b16 %v5780
        %v5991 = vunpack.c.h.b16 %v5780
        %v5992 = vunpack.c.l.b16 %v5781
        %v5993 = vunpack.c.h.b16 %v5781
        %v5994 = vunpack.c.l.b16 %v5782
        %v5995 = vunpack.c.h.b16 %v5782
        %v5996 = vunpack.c.l.b16 %v5783
        %v5997 = vunpack.c.h.b16 %v5783
        %v5998 = vpack.c.b16 %v5874, %v5870
        %v5999 = vpack.c.b16 %v5875, %v5871
        %v6000 = vpack.c.b16 %v5876, %v5872
        %v6001 = vpack.c.b16 %v5877, %v5873
        %v6002 = vpack.c.b16 %v5882, %v5878
        %v6003 = vpack.c.b16 %v5883, %v5879
        %v6004 = vpack.c.b16 %v5884, %v5880
        %v6005 = vpack.c.b16 %v5885, %v5881
        %v6006 = vpack.c.b16 %v5890, %v5886
        %v6007 = vpack.c.b16 %v5891, %v5887
        %v6008 = vpack.c.b16 %v5892, %v5888
        %v6009 = vpack.c.b16 %v5893, %v5889
        %v6010 = vpack.c.b16 %v5898, %v5894
        %v6011 = vpack.c.b16 %v5899, %v5895
        %v6012 = vpack.c.b16 %v5900, %v5896
        %v6013 = vpack.c.b16 %v5901, %v5897
        %v6014 = vpack.c.b16 %v5906, %v5902
        %v6015 = vpack.c.b16 %v5907, %v5903
        %v6016 = vpack.c.b16 %v5908, %v5904
        %v6017 = vpack.c.b16 %v5909, %v5905
        %v6018 = vpack.c.b16 %v5914, %v5910
        %v6019 = vpack.c.b16 %v5915, %v5911
        %v6020 = vpack.c.b16 %v5916, %v5912
        %v6021 = vpack.c.b16 %v5917, %v5913
        %v6022 = vpack.c.b16 %v5922, %v5918
        %v6023 = vpack.c.b16 %v5923, %v5919
        %v6024 = vpack.c.b16 %v5924, %v5920
        %v6025 = vpack.c.b16 %v5925, %v5921
        %v6026 = vpack.c.b16 %v5930, %v5926
        %v6027 = vpack.c.b16 %v5931, %v5927
        %v6028 = vpack.c.b16 %v5932, %v5928
        %v6029 = vpack.c.b16 %v5933, %v5929
        %v6030 = vpack.c.b16 %v5938, %v5934
        %v6031 = vpack.c.b16 %v5939, %v5935
        %v6032 = vpack.c.b16 %v5940, %v5936
        %v6033 = vpack.c.b16 %v5941, %v5937
        %v6034 = vpack.c.b16 %v5946, %v5942
        %v6035 = vpack.c.b16 %v5947, %v5943
        %v6036 = vpack.c.b16 %v5948, %v5944
        %v6037 = vpack.c.b16 %v5949, %v5945
        %v6038 = vpack.c.b16 %v5954, %v5950
        %v6039 = vpack.c.b16 %v5955, %v5951
        %v6040 = vpack.c.b16 %v5956, %v5952
        %v6041 = vpack.c.b16 %v5957, %v5953
        %v6042 = vpack.c.b16 %v5962, %v5958
        %v6043 = vpack.c.b16 %v5963, %v5959
        %v6044 = vpack.c.b16 %v5964, %v5960
        %v6045 = vpack.c.b16 %v5965, %v5961
        %v6046 = vpack.c.b16 %v5970, %v5966
        %v6047 = vpack.c.b16 %v5971, %v5967
        %v6048 = vpack.c.b16 %v5972, %v5968
        %v6049 = vpack.c.b16 %v5973, %v5969
        %v6050 = vpack.c.b16 %v5978, %v5974
        %v6051 = vpack.c.b16 %v5979, %v5975
        %v6052 = vpack.c.b16 %v5980, %v5976
        %v6053 = vpack.c.b16 %v5981, %v5977
        %v6054 = vpack.c.b16 %v5986, %v5982
        %v6055 = vpack.c.b16 %v5987, %v5983
        %v6056 = vpack.c.b16 %v5988, %v5984
        %v6057 = vpack.c.b16 %v5989, %v5985
        %v6058 = vpack.c.b16 %v5994, %v5990
        %v6059 = vpack.c.b16 %v5995, %v5991
        %v6060 = vpack.c.b16 %v5996, %v5992
        %v6061 = vpack.c.b16 %v5997, %v5993
        %6126 = vmatprep.subr.bf16.mxu0 %v5999
        %6127 = vmatpush1.bf16.msra.mxu0 %v5998
        %6128 = vmatprep.subr.bf16.mxu0 %v6003
        %6129 = vmatpush1.bf16.msra.mxu0 %v6002
        %6130 = vmatprep.subr.bf16.mxu0 %v6007
        %6131 = vmatpush1.bf16.msra.mxu0 %v6006
        %6132 = vmatprep.subr.bf16.mxu0 %v6011
        %6133 = vmatpush1.bf16.msra.mxu0 %v6010
        %6134 = vmatprep.subr.bf16.mxu0 %v6015
        %6135 = vmatpush1.bf16.msra.mxu0 %v6014
        %6136 = vmatprep.subr.bf16.mxu0 %v6019
        %6137 = vmatpush1.bf16.msra.mxu0 %v6018
        %6138 = vmatprep.subr.bf16.mxu0 %v6023
        %6139 = vmatpush1.bf16.msra.mxu0 %v6022
        %6140 = vmatprep.subr.bf16.mxu0 %v6027
        %6141 = vmatpush1.bf16.msra.mxu0 %v6026
        %6142 = vmatprep.subr.bf16.mxu0 %v6031
        %6143 = vmatpush1.bf16.msra.mxu0 %v6030
        %6144 = vmatprep.subr.bf16.mxu0 %v6035
        %6145 = vmatpush1.bf16.msra.mxu0 %v6034
        %6146 = vmatprep.subr.bf16.mxu0 %v6039
        %6147 = vmatpush1.bf16.msra.mxu0 %v6038
        %6148 = vmatprep.subr.bf16.mxu0 %v6043
        %6149 = vmatpush1.bf16.msra.mxu0 %v6042
        %6150 = vmatprep.subr.bf16.mxu0 %v6047
        %6151 = vmatpush1.bf16.msra.mxu0 %v6046
        %6152 = vmatprep.subr.bf16.mxu0 %v6051
        %6153 = vmatpush1.bf16.msra.mxu0 %v6050
        %6154 = vmatprep.subr.bf16.mxu0 %v6055
        %6155 = vmatpush1.bf16.msra.mxu0 %v6054
        %6156 = vmatprep.subr.bf16.mxu0 %v6059
        %6157 = vmatpush1.bf16.msra.mxu0 %v6058
        %6158 = vmatprep.mubr.bf16.mxu0 %v5705
        %6159 = vmatmul.mubr.bf16.gmra.mrb[0].mxu0 %v5704
        %v6160 = vpop.f32.mrb[0].mxu0
        %v6161 = vadd.f32 %v5789, %v6160
        %v6162 = vpop.f32.mrb[0].mxu0
        %v6163 = vadd.f32 %v5793, %v6162
        %v6164 = vpop.f32.mrb[0].mxu0
        %v6165 = vadd.f32 %v5789, %v6164
        %v6166 = vpop.f32.mrb[0].mxu0
        %v6167 = vadd.f32 %v5793, %v6166
        %6168 = vmatprep.mubr.bf16.mxu0 %v5707
        %6169 = vmatmul.mubr.bf16.gmra.mrb[0].mxu0 %v5706
        %v6170 = vpop.f32.mrb[0].mxu0
        %v6171 = vadd.f32 %v5789, %v6170
        %v6172 = vpop.f32.mrb[0].mxu0
        %v6173 = vadd.f32 %v5793, %v6172
        %v6174 = vpop.f32.mrb[0].mxu0
        %v6175 = vadd.f32 %v5789, %v6174
        %v6176 = vpop.f32.mrb[0].mxu0
        %v6177 = vadd.f32 %v5793, %v6176
        %6178 = vmatprep.mubr.bf16.mxu0 %v5709
        %6179 = vmatmul.mubr.bf16.gmra.mrb[0].mxu0 %v5708
        %v6180 = vpop.f32.mrb[0].mxu0
        %v6181 = vadd.f32 %v5789, %v6180
        %v6182 = vpop.f32.mrb[0].mxu0
        %v6183 = vadd.f32 %v5793, %v6182
        %v6184 = vpop.f32.mrb[0].mxu0
        %v6185 = vadd.f32 %v5789, %v6184
        %v6186 = vpop.f32.mrb[0].mxu0
        %v6187 = vadd.f32 %v5793, %v6186
        %6188 = vmatprep.mubr.bf16.mxu0 %v5711
        %6189 = vmatmul.mubr.bf16.gmra.mrb[0].mxu0 %v5710
        %v6190 = vpop.f32.mrb[0].mxu0
        %v6191 = vadd.f32 %v5789, %v6190
        %v6192 = vpop.f32.mrb[0].mxu0
        %v6193 = vadd.f32 %v5793, %v6192
        %v6194 = vpop.f32.mrb[0].mxu0
        %v6195 = vadd.f32 %v5789, %v6194
        %v6196 = vpop.f32.mrb[0].mxu0
        %v6197 = vadd.f32 %v5793, %v6196
        %6198 = vmatprep.mubr.bf16.mxu0 %v5713
        %6199 = vmatmul.mubr.bf16.gmra.mrb[0].mxu0 %v5712
        %v6200 = vpop.f32.mrb[0].mxu0
        %v6201 = vadd.f32 %v5789, %v6200
        %v6202 = vpop.f32.mrb[0].mxu0
        %v6203 = vadd.f32 %v5793, %v6202
        %v6204 = vpop.f32.mrb[0].mxu0
        %v6205 = vadd.f32 %v5789, %v6204
        %v6206 = vpop.f32.mrb[0].mxu0
        %v6207 = vadd.f32 %v5793, %v6206
        %6208 = vmatprep.mubr.bf16.mxu0 %v5715
        %6209 = vmatmul.mubr.bf16.gmra.mrb[0].mxu0 %v5714
        %v6210 = vpop.f32.mrb[0].mxu0
        %v6211 = vadd.f32 %v5789, %v6210
        %v6212 = vpop.f32.mrb[0].mxu0
        %v6213 = vadd.f32 %v5793, %v6212
        %v6214 = vpop.f32.mrb[0].mxu0
        %v6215 = vadd.f32 %v5789, %v6214
        %v6216 = vpop.f32.mrb[0].mxu0
        %v6217 = vadd.f32 %v5793, %v6216
        %6218 = vmatprep.mubr.bf16.mxu0 %v5717
        %6219 = vmatmul.mubr.bf16.gmra.mrb[0].mxu0 %v5716
        %v6220 = vpop.f32.mrb[0].mxu0
        %v6221 = vadd.f32 %v5789, %v6220
        %v6222 = vpop.f32.mrb[0].mxu0
        %v6223 = vadd.f32 %v5793, %v6222
        %v6224 = vpop.f32.mrb[0].mxu0
        %v6225 = vadd.f32 %v5789, %v6224
        %v6226 = vpop.f32.mrb[0].mxu0
        %v6227 = vadd.f32 %v5793, %v6226
        %6228 = vmatprep.mubr.bf16.mxu0 %v5719
        %6229 = vmatmul.mubr.bf16.gmra.mrb[0].mxu0 %v5718
        %v6230 = vpop.f32.mrb[0].mxu0
        %v6231 = vadd.f32 %v5789, %v6230
        %v6232 = vpop.f32.mrb[0].mxu0
        %v6233 = vadd.f32 %v5793, %v6232
        %v6234 = vpop.f32.mrb[0].mxu0
        %v6235 = vadd.f32 %v5789, %v6234
        %v6236 = vpop.f32.mrb[0].mxu0
        %v6237 = vadd.f32 %v5793, %v6236
        %6238 = vdwg.mxu0
        %6239 = vmatprep.subr.bf16.mxu0 %v6001
        %6240 = vmatpush1.bf16.msra.mxu0 %v6000
        %6241 = vmatprep.subr.bf16.mxu0 %v6005
        %6242 = vmatpush1.bf16.msra.mxu0 %v6004
        %6243 = vmatprep.subr.bf16.mxu0 %v6009
        %6244 = vmatpush1.bf16.msra.mxu0 %v6008
        %6245 = vmatprep.subr.bf16.mxu0 %v6013
        %6246 = vmatpush1.bf16.msra.mxu0 %v6012
        %6247 = vmatprep.subr.bf16.mxu0 %v6017
        %6248 = vmatpush1.bf16.msra.mxu0 %v6016
        %6249 = vmatprep.subr.bf16.mxu0 %v6021
        %6250 = vmatpush1.bf16.msra.mxu0 %v6020
        %6251 = vmatprep.subr.bf16.mxu0 %v6025
        %6252 = vmatpush1.bf16.msra.mxu0 %v6024
        %6253 = vmatprep.subr.bf16.mxu0 %v6029
        %6254 = vmatpush1.bf16.msra.mxu0 %v6028
        %6255 = vmatprep.subr.bf16.mxu0 %v6033
        %6256 = vmatpush1.bf16.msra.mxu0 %v6032
        %6257 = vmatprep.subr.bf16.mxu0 %v6037
        %6258 = vmatpush1.bf16.msra.mxu0 %v6036
        %6259 = vmatprep.subr.bf16.mxu0 %v6041
        %6260 = vmatpush1.bf16.msra.mxu0 %v6040
        %6261 = vmatprep.subr.bf16.mxu0 %v6045
        %6262 = vmatpush1.bf16.msra.mxu0 %v6044
        %6263 = vmatprep.subr.bf16.mxu0 %v6049
        %6264 = vmatpush1.bf16.msra.mxu0 %v6048
        %6265 = vmatprep.subr.bf16.mxu0 %v6053
        %6266 = vmatpush1.bf16.msra.mxu0 %v6052
        %6267 = vmatprep.subr.bf16.mxu0 %v6057
        %6268 = vmatpush1.bf16.msra.mxu0 %v6056
        %6269 = vmatprep.subr.bf16.mxu0 %v6061
        %6270 = vmatpush1.bf16.msra.mxu0 %v6060
        %6271 = vmatprep.mubr.bf16.mxu0 %v5705
        %6272 = vmatmul.mubr.bf16.gmra.mrb[0].mxu0 %v5704
        %v6273 = vpop.f32.mrb[0].mxu0
        %v6274 = vadd.f32 %v5797, %v6273
        %v6275 = vpop.f32.mrb[0].mxu0
        %v6276 = vadd.f32 %v5801, %v6275
        %v6277 = vpop.f32.mrb[0].mxu0
        %v6278 = vadd.f32 %v5797, %v6277
        %v6279 = vpop.f32.mrb[0].mxu0
        %v6280 = vadd.f32 %v5801, %v6279
        %6281 = vmatprep.mubr.bf16.mxu0 %v5707
        %6282 = vmatmul.mubr.bf16.gmra.mrb[0].mxu0 %v5706
        %v6283 = vpop.f32.mrb[0].mxu0
        %v6284 = vadd.f32 %v5797, %v6283
        %v6285 = vpop.f32.mrb[0].mxu0
        %v6286 = vadd.f32 %v5801, %v6285
        %v6287 = vpop.f32.mrb[0].mxu0
        %v6288 = vadd.f32 %v5797, %v6287
        %v6289 = vpop.f32.mrb[0].mxu0
        %v6290 = vadd.f32 %v5801, %v6289
        %6291 = vmatprep.mubr.bf16.mxu0 %v5709
        %6292 = vmatmul.mubr.bf16.gmra.mrb[0].mxu0 %v5708
        %v6293 = vpop.f32.mrb[0].mxu0
        %v6294 = vadd.f32 %v5797, %v6293
        %v6295 = vpop.f32.mrb[0].mxu0
        %v6296 = vadd.f32 %v5801, %v6295
        %v6297 = vpop.f32.mrb[0].mxu0
        %v6298 = vadd.f32 %v5797, %v6297
        %v6299 = vpop.f32.mrb[0].mxu0
        %v6300 = vadd.f32 %v5801, %v6299
        %6301 = vmatprep.mubr.bf16.mxu0 %v5711
        %6302 = vmatmul.mubr.bf16.gmra.mrb[0].mxu0 %v5710
        %v6303 = vpop.f32.mrb[0].mxu0
        %v6304 = vadd.f32 %v5797, %v6303
        %v6305 = vpop.f32.mrb[0].mxu0
        %v6306 = vadd.f32 %v5801, %v6305
        %v6307 = vpop.f32.mrb[0].mxu0
        %v6308 = vadd.f32 %v5797, %v6307
        %v6309 = vpop.f32.mrb[0].mxu0
        %v6310 = vadd.f32 %v5801, %v6309
        %6311 = vmatprep.mubr.bf16.mxu0 %v5713
        %6312 = vmatmul.mubr.bf16.gmra.mrb[0].mxu0 %v5712
        %v6313 = vpop.f32.mrb[0].mxu0
        %v6314 = vadd.f32 %v5797, %v6313
        %v6315 = vpop.f32.mrb[0].mxu0
        %v6316 = vadd.f32 %v5801, %v6315
        %v6317 = vpop.f32.mrb[0].mxu0
        %v6318 = vadd.f32 %v5797, %v6317
        %v6319 = vpop.f32.mrb[0].mxu0
        %v6320 = vadd.f32 %v5801, %v6319
        %6321 = vmatprep.mubr.bf16.mxu0 %v5715
        %6322 = vmatmul.mubr.bf16.gmra.mrb[0].mxu0 %v5714
        %v6323 = vpop.f32.mrb[0].mxu0
        %v6324 = vadd.f32 %v5797, %v6323
        %v6325 = vpop.f32.mrb[0].mxu0
        %v6326 = vadd.f32 %v5801, %v6325
        %v6327 = vpop.f32.mrb[0].mxu0
        %v6328 = vadd.f32 %v5797, %v6327
        %v6329 = vpop.f32.mrb[0].mxu0
        %v6330 = vadd.f32 %v5801, %v6329
        %6331 = vmatprep.mubr.bf16.mxu0 %v5717
        %6332 = vmatmul.mubr.bf16.gmra.mrb[0].mxu0 %v5716
        %v6333 = vpop.f32.mrb[0].mxu0
        %v6334 = vadd.f32 %v5797, %v6333
        %v6335 = vpop.f32.mrb[0].mxu0
        %v6336 = vadd.f32 %v5801, %v6335
        %v6337 = vpop.f32.mrb[0].mxu0
        %v6338 = vadd.f32 %v5797, %v6337
        %v6339 = vpop.f32.mrb[0].mxu0
        %v6340 = vadd.f32 %v5801, %v6339
        %6341 = vmatprep.mubr.bf16.mxu0 %v5719
        %6342 = vmatmul.mubr.bf16.gmra.mrb[0].mxu0 %v5718
        %v6343 = vpop.f32.mrb[0].mxu0
        %v6344 = vadd.f32 %v5797, %v6343
        %v6345 = vpop.f32.mrb[0].mxu0
        %v6346 = vadd.f32 %v5801, %v6345
        %v6347 = vpop.f32.mrb[0].mxu0
        %v6348 = vadd.f32 %v5797, %v6347
        %v6349 = vpop.f32.mrb[0].mxu0
        %v6350 = vadd.f32 %v5801, %v6349
        %6351 = vdwg.mxu0
        %v6352 = vmul.f32 %v6161, %v6161
        %v6353 = vmul.f32 %v6163, %v6163
        %v6354 = vmul.f32 %v6274, %v6274
        %v6355 = vmul.f32 %v6276, %v6276
        %v6356 = vmul.f32 %v6165, %v6165
        %v6357 = vmul.f32 %v6167, %v6167
        %v6358 = vmul.f32 %v6278, %v6278
        %v6359 = vmul.f32 %v6280, %v6280
        %v6360 = vmul.f32 %v6171, %v6171
        %v6361 = vmul.f32 %v6173, %v6173
        %v6362 = vmul.f32 %v6284, %v6284
        %v6363 = vmul.f32 %v6286, %v6286
        %v6364 = vmul.f32 %v6175, %v6175
        %v6365 = vmul.f32 %v6177, %v6177
        %v6366 = vmul.f32 %v6288, %v6288
        %v6367 = vmul.f32 %v6290, %v6290
        %v6368 = vmul.f32 %v6181, %v6181
        %v6369 = vmul.f32 %v6183, %v6183
        %v6370 = vmul.f32 %v6294, %v6294
        %v6371 = vmul.f32 %v6296, %v6296
        %v6372 = vmul.f32 %v6185, %v6185
        %v6373 = vmul.f32 %v6187, %v6187
        %v6374 = vmul.f32 %v6298, %v6298
        %v6375 = vmul.f32 %v6300, %v6300
        %v6376 = vmul.f32 %v6191, %v6191
        %v6377 = vmul.f32 %v6193, %v6193
        %v6378 = vmul.f32 %v6304, %v6304
        %v6379 = vmul.f32 %v6306, %v6306
        %v6380 = vmul.f32 %v6195, %v6195
        %v6381 = vmul.f32 %v6197, %v6197
        %v6382 = vmul.f32 %v6308, %v6308
        %v6383 = vmul.f32 %v6310, %v6310
        %v6384 = vmul.f32 %v6201, %v6201
        %v6385 = vmul.f32 %v6203, %v6203
        %v6386 = vmul.f32 %v6314, %v6314
        %v6387 = vmul.f32 %v6316, %v6316
        %v6388 = vmul.f32 %v6205, %v6205
        %v6389 = vmul.f32 %v6207, %v6207
        %v6390 = vmul.f32 %v6318, %v6318
        %v6391 = vmul.f32 %v6320, %v6320
        %v6392 = vmul.f32 %v6211, %v6211
        %v6393 = vmul.f32 %v6213, %v6213
        %v6394 = vmul.f32 %v6324, %v6324
        %v6395 = vmul.f32 %v6326, %v6326
        %v6396 = vmul.f32 %v6215, %v6215
        %v6397 = vmul.f32 %v6217, %v6217
        %v6398 = vmul.f32 %v6328, %v6328
        %v6399 = vmul.f32 %v6330, %v6330
        %v6400 = vmul.f32 %v6221, %v6221
        %v6401 = vmul.f32 %v6223, %v6223
        %v6402 = vmul.f32 %v6334, %v6334
        %v6403 = vmul.f32 %v6336, %v6336
        %v6404 = vmul.f32 %v6225, %v6225
        %v6405 = vmul.f32 %v6227, %v6227
        %v6406 = vmul.f32 %v6338, %v6338
        %v6407 = vmul.f32 %v6340, %v6340
        %v6408 = vmul.f32 %v6231, %v6231
        %v6409 = vmul.f32 %v6233, %v6233
        %v6410 = vmul.f32 %v6344, %v6344
        %v6411 = vmul.f32 %v6346, %v6346
        %v6412 = vmul.f32 %v6235, %v6235
        %v6413 = vmul.f32 %v6237, %v6237
        %v6414 = vmul.f32 %v6348, %v6348
        %v6415 = vmul.f32 %v6350, %v6350
        %v6416 = vmul.f32 %v6161, %v6352
        %v6417 = vmul.f32 %v6163, %v6353
        %v6418 = vmul.f32 %v6274, %v6354
        %v6419 = vmul.f32 %v6276, %v6355
        %v6420 = vmul.f32 %v6165, %v6356
        %v6421 = vmul.f32 %v6167, %v6357
        %v6422 = vmul.f32 %v6278, %v6358
        %v6423 = vmul.f32 %v6280, %v6359
        %v6424 = vmul.f32 %v6171, %v6360
        %v6425 = vmul.f32 %v6173, %v6361
        %v6426 = vmul.f32 %v6284, %v6362
        %v6427 = vmul.f32 %v6286, %v6363
        %v6428 = vmul.f32 %v6175, %v6364
        %v6429 = vmul.f32 %v6177, %v6365
        %v6430 = vmul.f32 %v6288, %v6366
        %v6431 = vmul.f32 %v6290, %v6367
        %v6432 = vmul.f32 %v6181, %v6368
        %v6433 = vmul.f32 %v6183, %v6369
        %v6434 = vmul.f32 %v6294, %v6370
        %v6435 = vmul.f32 %v6296, %v6371
        %v6436 = vmul.f32 %v6185, %v6372
        %v6437 = vmul.f32 %v6187, %v6373
        %v6438 = vmul.f32 %v6298, %v6374
        %v6439 = vmul.f32 %v6300, %v6375
        %v6440 = vmul.f32 %v6191, %v6376
        %v6441 = vmul.f32 %v6193, %v6377
        %v6442 = vmul.f32 %v6304, %v6378
        %v6443 = vmul.f32 %v6306, %v6379
        %v6444 = vmul.f32 %v6195, %v6380
        %v6445 = vmul.f32 %v6197, %v6381
        %v6446 = vmul.f32 %v6308, %v6382
        %v6447 = vmul.f32 %v6310, %v6383
        %v6448 = vmul.f32 %v6201, %v6384
        %v6449 = vmul.f32 %v6203, %v6385
        %v6450 = vmul.f32 %v6314, %v6386
        %v6451 = vmul.f32 %v6316, %v6387
        %v6452 = vmul.f32 %v6205, %v6388
        %v6453 = vmul.f32 %v6207, %v6389
        %v6454 = vmul.f32 %v6318, %v6390
        %v6455 = vmul.f32 %v6320, %v6391
        %v6456 = vmul.f32 %v6211, %v6392
        %v6457 = vmul.f32 %v6213, %v6393
        %v6458 = vmul.f32 %v6324, %v6394
        %v6459 = vmul.f32 %v6326, %v6395
        %v6460 = vmul.f32 %v6215, %v6396
        %v6461 = vmul.f32 %v6217, %v6397
        %v6462 = vmul.f32 %v6328, %v6398
        %v6463 = vmul.f32 %v6330, %v6399
        %v6464 = vmul.f32 %v6221, %v6400
        %v6465 = vmul.f32 %v6223, %v6401
        %v6466 = vmul.f32 %v6334, %v6402
        %v6467 = vmul.f32 %v6336, %v6403
        %v6468 = vmul.f32 %v6225, %v6404
        %v6469 = vmul.f32 %v6227, %v6405
        %v6470 = vmul.f32 %v6338, %v6406
        %v6471 = vmul.f32 %v6340, %v6407
        %v6472 = vmul.f32 %v6231, %v6408
        %v6473 = vmul.f32 %v6233, %v6409
        %v6474 = vmul.f32 %v6344, %v6410
        %v6475 = vmul.f32 %v6346, %v6411
        %v6476 = vmul.f32 %v6235, %v6412
        %v6477 = vmul.f32 %v6237, %v6413
        %v6478 = vmul.f32 %v6348, %v6414
        %v6479 = vmul.f32 %v6350, %v6415
        %v6480 = vmul.f32 %v6416, 0.044715
        %v6481 = vmul.f32 %v6417, 0.044715
        %v6482 = vmul.f32 %v6418, 0.044715
        %v6483 = vmul.f32 %v6419, 0.044715
        %v6484 = vmul.f32 %v6420, 0.044715
        %v6485 = vmul.f32 %v6421, 0.044715
        %v6486 = vmul.f32 %v6422, 0.044715
        %v6487 = vmul.f32 %v6423, 0.044715
        %v6488 = vmul.f32 %v6424, 0.044715
        %v6489 = vmul.f32 %v6425, 0.044715
        %v6490 = vmul.f32 %v6426, 0.044715
        %v6491 = vmul.f32 %v6427, 0.044715
        %v6492 = vmul.f32 %v6428, 0.044715
        %v6493 = vmul.f32 %v6429, 0.044715
        %v6494 = vmul.f32 %v6430, 0.044715
        %v6495 = vmul.f32 %v6431, 0.044715
        %v6496 = vmul.f32 %v6432, 0.044715
        %v6497 = vmul.f32 %v6433, 0.044715
        %v6498 = vmul.f32 %v6434, 0.044715
        %v6499 = vmul.f32 %v6435, 0.044715
        %v6500 = vmul.f32 %v6436, 0.044715
        %v6501 = vmul.f32 %v6437, 0.044715
        %v6502 = vmul.f32 %v6438, 0.044715
        %v6503 = vmul.f32 %v6439, 0.044715
        %v6504 = vmul.f32 %v6440, 0.044715
        %v6505 = vmul.f32 %v6441, 0.044715
        %v6506 = vmul.f32 %v6442, 0.044715
        %v6507 = vmul.f32 %v6443, 0.044715
        %v6508 = vmul.f32 %v6444, 0.044715
        %v6509 = vmul.f32 %v6445, 0.044715
        %v6510 = vmul.f32 %v6446, 0.044715
        %v6511 = vmul.f32 %v6447, 0.044715
        %v6512 = vmul.f32 %v6448, 0.044715
        %v6513 = vmul.f32 %v6449, 0.044715
        %v6514 = vmul.f32 %v6450, 0.044715
        %v6515 = vmul.f32 %v6451, 0.044715
        %v6516 = vmul.f32 %v6452, 0.044715
        %v6517 = vmul.f32 %v6453, 0.044715
        %v6518 = vmul.f32 %v6454, 0.044715
        %v6519 = vmul.f32 %v6455, 0.044715
        %v6520 = vmul.f32 %v6456, 0.044715
        %v6521 = vmul.f32 %v6457, 0.044715
        %v6522 = vmul.f32 %v6458, 0.044715
        %v6523 = vmul.f32 %v6459, 0.044715
        %v6524 = vmul.f32 %v6460, 0.044715
        %v6525 = vmul.f32 %v6461, 0.044715
        %v6526 = vmul.f32 %v6462, 0.044715
        %v6527 = vmul.f32 %v6463, 0.044715
        %v6528 = vmul.f32 %v6464, 0.044715
        %v6529 = vmul.f32 %v6465, 0.044715
        %v6530 = vmul.f32 %v6466, 0.044715
        %v6531 = vmul.f32 %v6467, 0.044715
        %v6532 = vmul.f32 %v6468, 0.044715
        %v6533 = vmul.f32 %v6469, 0.044715
        %v6534 = vmul.f32 %v6470, 0.044715
        %v6535 = vmul.f32 %v6471, 0.044715
        %v6536 = vmul.f32 %v6472, 0.044715
        %v6537 = vmul.f32 %v6473, 0.044715
        %v6538 = vmul.f32 %v6474, 0.044715
        %v6539 = vmul.f32 %v6475, 0.044715
        %v6540 = vmul.f32 %v6476, 0.044715
        %v6541 = vmul.f32 %v6477, 0.044715
        %v6542 = vmul.f32 %v6478, 0.044715
        %v6543 = vmul.f32 %v6479, 0.044715
        %v6544 = vadd.f32 %v6161, %v6480
        %v6545 = vadd.f32 %v6163, %v6481
        %v6546 = vadd.f32 %v6274, %v6482
        %v6547 = vadd.f32 %v6276, %v6483
        %v6548 = vadd.f32 %v6165, %v6484
        %v6549 = vadd.f32 %v6167, %v6485
        %v6550 = vadd.f32 %v6278, %v6486
        %v6551 = vadd.f32 %v6280, %v6487
        %v6552 = vadd.f32 %v6171, %v6488
        %v6553 = vadd.f32 %v6173, %v6489
        %v6554 = vadd.f32 %v6284, %v6490
        %v6555 = vadd.f32 %v6286, %v6491
        %v6556 = vadd.f32 %v6175, %v6492
        %v6557 = vadd.f32 %v6177, %v6493
        %v6558 = vadd.f32 %v6288, %v6494
        %v6559 = vadd.f32 %v6290, %v6495
        %v6560 = vadd.f32 %v6181, %v6496
        %v6561 = vadd.f32 %v6183, %v6497
        %v6562 = vadd.f32 %v6294, %v6498
        %v6563 = vadd.f32 %v6296, %v6499
        %v6564 = vadd.f32 %v6185, %v6500
        %v6565 = vadd.f32 %v6187, %v6501
        %v6566 = vadd.f32 %v6298, %v6502
        %v6567 = vadd.f32 %v6300, %v6503
        %v6568 = vadd.f32 %v6191, %v6504
        %v6569 = vadd.f32 %v6193, %v6505
        %v6570 = vadd.f32 %v6304, %v6506
        %v6571 = vadd.f32 %v6306, %v6507
        %v6572 = vadd.f32 %v6195, %v6508
        %v6573 = vadd.f32 %v6197, %v6509
        %v6574 = vadd.f32 %v6308, %v6510
        %v6575 = vadd.f32 %v6310, %v6511
        %v6576 = vadd.f32 %v6201, %v6512
        %v6577 = vadd.f32 %v6203, %v6513
        %v6578 = vadd.f32 %v6314, %v6514
        %v6579 = vadd.f32 %v6316, %v6515
        %v6580 = vadd.f32 %v6205, %v6516
        %v6581 = vadd.f32 %v6207, %v6517
        %v6582 = vadd.f32 %v6318, %v6518
        %v6583 = vadd.f32 %v6320, %v6519
        %v6584 = vadd.f32 %v6211, %v6520
        %v6585 = vadd.f32 %v6213, %v6521
        %v6586 = vadd.f32 %v6324, %v6522
        %v6587 = vadd.f32 %v6326, %v6523
        %v6588 = vadd.f32 %v6215, %v6524
        %v6589 = vadd.f32 %v6217, %v6525
        %v6590 = vadd.f32 %v6328, %v6526
        %v6591 = vadd.f32 %v6330, %v6527
        %v6592 = vadd.f32 %v6221, %v6528
        %v6593 = vadd.f32 %v6223, %v6529
        %v6594 = vadd.f32 %v6334, %v6530
        %v6595 = vadd.f32 %v6336, %v6531
        %v6596 = vadd.f32 %v6225, %v6532
        %v6597 = vadd.f32 %v6227, %v6533
        %v6598 = vadd.f32 %v6338, %v6534
        %v6599 = vadd.f32 %v6340, %v6535
        %v6600 = vadd.f32 %v6231, %v6536
        %v6601 = vadd.f32 %v6233, %v6537
        %v6602 = vadd.f32 %v6344, %v6538
        %v6603 = vadd.f32 %v6346, %v6539
        %v6604 = vadd.f32 %v6235, %v6540
        %v6605 = vadd.f32 %v6237, %v6541
        %v6606 = vadd.f32 %v6348, %v6542
        %v6607 = vadd.f32 %v6350, %v6543
        %v6608 = vmul.f32 %v6544, 0.7978846
        %v6609 = vmul.f32 %v6545, 0.7978846
        %v6610 = vmul.f32 %v6546, 0.7978846
        %v6611 = vmul.f32 %v6547, 0.7978846
        %v6612 = vmul.f32 %v6548, 0.7978846
        %v6613 = vmul.f32 %v6549, 0.7978846
        %v6614 = vmul.f32 %v6550, 0.7978846
        %v6615 = vmul.f32 %v6551, 0.7978846
        %v6616 = vmul.f32 %v6552, 0.7978846
        %v6617 = vmul.f32 %v6553, 0.7978846
        %v6618 = vmul.f32 %v6554, 0.7978846
        %v6619 = vmul.f32 %v6555, 0.7978846
        %v6620 = vmul.f32 %v6556, 0.7978846
        %v6621 = vmul.f32 %v6557, 0.7978846
        %v6622 = vmul.f32 %v6558, 0.7978846
        %v6623 = vmul.f32 %v6559, 0.7978846
        %v6624 = vmul.f32 %v6560, 0.7978846
        %v6625 = vmul.f32 %v6561, 0.7978846
        %v6626 = vmul.f32 %v6562, 0.7978846
        %v6627 = vmul.f32 %v6563, 0.7978846
        %v6628 = vmul.f32 %v6564, 0.7978846
        %v6629 = vmul.f32 %v6565, 0.7978846
        %v6630 = vmul.f32 %v6566, 0.7978846
        %v6631 = vmul.f32 %v6567, 0.7978846
        %v6632 = vmul.f32 %v6568, 0.7978846
        %v6633 = vmul.f32 %v6569, 0.7978846
        %v6634 = vmul.f32 %v6570, 0.7978846
        %v6635 = vmul.f32 %v6571, 0.7978846
        %v6636 = vmul.f32 %v6572, 0.7978846
        %v6637 = vmul.f32 %v6573, 0.7978846
        %v6638 = vmul.f32 %v6574, 0.7978846
        %v6639 = vmul.f32 %v6575, 0.7978846
        %v6640 = vmul.f32 %v6576, 0.7978846
        %v6641 = vmul.f32 %v6577, 0.7978846
        %v6642 = vmul.f32 %v6578, 0.7978846
        %v6643 = vmul.f32 %v6579, 0.7978846
        %v6644 = vmul.f32 %v6580, 0.7978846
        %v6645 = vmul.f32 %v6581, 0.7978846
        %v6646 = vmul.f32 %v6582, 0.7978846
        %v6647 = vmul.f32 %v6583, 0.7978846
        %v6648 = vmul.f32 %v6584, 0.7978846
        %v6649 = vmul.f32 %v6585, 0.7978846
        %v6650 = vmul.f32 %v6586, 0.7978846
        %v6651 = vmul.f32 %v6587, 0.7978846
        %v6652 = vmul.f32 %v6588, 0.7978846
        %v6653 = vmul.f32 %v6589, 0.7978846
        %v6654 = vmul.f32 %v6590, 0.7978846
        %v6655 = vmul.f32 %v6591, 0.7978846
        %v6656 = vmul.f32 %v6592, 0.7978846
        %v6657 = vmul.f32 %v6593, 0.7978846
        %v6658 = vmul.f32 %v6594, 0.7978846
        %v6659 = vmul.f32 %v6595, 0.7978846
        %v6660 = vmul.f32 %v6596, 0.7978846
        %v6661 = vmul.f32 %v6597, 0.7978846
        %v6662 = vmul.f32 %v6598, 0.7978846
        %v6663 = vmul.f32 %v6599, 0.7978846
        %v6664 = vmul.f32 %v6600, 0.7978846
        %v6665 = vmul.f32 %v6601, 0.7978846
        %v6666 = vmul.f32 %v6602, 0.7978846
        %v6667 = vmul.f32 %v6603, 0.7978846
        %v6668 = vmul.f32 %v6604, 0.7978846
        %v6669 = vmul.f32 %v6605, 0.7978846
        %v6670 = vmul.f32 %v6606, 0.7978846
        %v6671 = vmul.f32 %v6607, 0.7978846
        %v6672 = vtanh.pop %v6608
        %v6673 = vtanh.pop %v6609
        %v6674 = vtanh.pop %v6610
        %v6675 = vtanh.pop %v6611
        %v6676 = vtanh.pop %v6612
        %v6677 = vtanh.pop %v6613
        %v6678 = vtanh.pop %v6614
        %v6679 = vtanh.pop %v6615
        %v6680 = vtanh.pop %v6616
        %v6681 = vtanh.pop %v6617
        %v6682 = vtanh.pop %v6618
        %v6683 = vtanh.pop %v6619
        %v6684 = vtanh.pop %v6620
        %v6685 = vtanh.pop %v6621
        %v6686 = vtanh.pop %v6622
        %v6687 = vtanh.pop %v6623
        %v6688 = vtanh.pop %v6624
        %v6689 = vtanh.pop %v6625
        %v6690 = vtanh.pop %v6626
        %v6691 = vtanh.pop %v6627
        %v6692 = vtanh.pop %v6628
        %v6693 = vtanh.pop %v6629
        %v6694 = vtanh.pop %v6630
        %v6695 = vtanh.pop %v6631
        %v6696 = vtanh.pop %v6632
        %v6697 = vtanh.pop %v6633
        %v6698 = vtanh.pop %v6634
        %v6699 = vtanh.pop %v6635
        %v6700 = vtanh.pop %v6636
        %v6701 = vtanh.pop %v6637
        %v6702 = vtanh.pop %v6638
        %v6703 = vtanh.pop %v6639
        %v6704 = vtanh.pop %v6640
        %v6705 = vtanh.pop %v6641
        %v6706 = vtanh.pop %v6642
        %v6707 = vtanh.pop %v6643
        %v6708 = vtanh.pop %v6644
        %v6709 = vtanh.pop %v6645
        %v6710 = vtanh.pop %v6646
        %v6711 = vtanh.pop %v6647
        %v6712 = vtanh.pop %v6648
        %v6713 = vtanh.pop %v6649
        %v6714 = vtanh.pop %v6650
        %v6715 = vtanh.pop %v6651
        %v6716 = vtanh.pop %v6652
        %v6717 = vtanh.pop %v6653
        %v6718 = vtanh.pop %v6654
        %v6719 = vtanh.pop %v6655
        %v6720 = vtanh.pop %v6656
        %v6721 = vtanh.pop %v6657
        %v6722 = vtanh.pop %v6658
        %v6723 = vtanh.pop %v6659
        %v6724 = vtanh.pop %v6660
        %v6725 = vtanh.pop %v6661
        %v6726 = vtanh.pop %v6662
        %v6727 = vtanh.pop %v6663
        %v6728 = vtanh.pop %v6664
        %v6729 = vtanh.pop %v6665
        %v6730 = vtanh.pop %v6666
        %v6731 = vtanh.pop %v6667
        %v6732 = vtanh.pop %v6668
        %v6733 = vtanh.pop %v6669
        %v6734 = vtanh.pop %v6670
        %v6735 = vtanh.pop %v6671
        %v6736 = vadd.f32 %v6672, 1.0
        %v6737 = vadd.f32 %v6673, 1.0
        %v6738 = vadd.f32 %v6674, 1.0
        %v6739 = vadd.f32 %v6675, 1.0
        %v6740 = vadd.f32 %v6676, 1.0
        %v6741 = vadd.f32 %v6677, 1.0
        %v6742 = vadd.f32 %v6678, 1.0
        %v6743 = vadd.f32 %v6679, 1.0
        %v6744 = vadd.f32 %v6680, 1.0
        %v6745 = vadd.f32 %v6681, 1.0
        %v6746 = vadd.f32 %v6682, 1.0
        %v6747 = vadd.f32 %v6683, 1.0
        %v6748 = vadd.f32 %v6684, 1.0
        %v6749 = vadd.f32 %v6685, 1.0
        %v6750 = vadd.f32 %v6686, 1.0
        %v6751 = vadd.f32 %v6687, 1.0
        %v6752 = vadd.f32 %v6688, 1.0
        %v6753 = vadd.f32 %v6689, 1.0
        %v6754 = vadd.f32 %v6690, 1.0
        %v6755 = vadd.f32 %v6691, 1.0
        %v6756 = vadd.f32 %v6692, 1.0
        %v6757 = vadd.f32 %v6693, 1.0
        %v6758 = vadd.f32 %v6694, 1.0
        %v6759 = vadd.f32 %v6695, 1.0
        %v6760 = vadd.f32 %v6696, 1.0
        %v6761 = vadd.f32 %v6697, 1.0
        %v6762 = vadd.f32 %v6698, 1.0
        %v6763 = vadd.f32 %v6699, 1.0
        %v6764 = vadd.f32 %v6700, 1.0
        %v6765 = vadd.f32 %v6701, 1.0
        %v6766 = vadd.f32 %v6702, 1.0
        %v6767 = vadd.f32 %v6703, 1.0
        %v6768 = vadd.f32 %v6704, 1.0
        %v6769 = vadd.f32 %v6705, 1.0
        %v6770 = vadd.f32 %v6706, 1.0
        %v6771 = vadd.f32 %v6707, 1.0
        %v6772 = vadd.f32 %v6708, 1.0
        %v6773 = vadd.f32 %v6709, 1.0
        %v6774 = vadd.f32 %v6710, 1.0
        %v6775 = vadd.f32 %v6711, 1.0
        %v6776 = vadd.f32 %v6712, 1.0
        %v6777 = vadd.f32 %v6713, 1.0
        %v6778 = vadd.f32 %v6714, 1.0
        %v6779 = vadd.f32 %v6715, 1.0
        %v6780 = vadd.f32 %v6716, 1.0
        %v6781 = vadd.f32 %v6717, 1.0
        %v6782 = vadd.f32 %v6718, 1.0
        %v6783 = vadd.f32 %v6719, 1.0
        %v6784 = vadd.f32 %v6720, 1.0
        %v6785 = vadd.f32 %v6721, 1.0
        %v6786 = vadd.f32 %v6722, 1.0
        %v6787 = vadd.f32 %v6723, 1.0
        %v6788 = vadd.f32 %v6724, 1.0
        %v6789 = vadd.f32 %v6725, 1.0
        %v6790 = vadd.f32 %v6726, 1.0
        %v6791 = vadd.f32 %v6727, 1.0
        %v6792 = vadd.f32 %v6728, 1.0
        %v6793 = vadd.f32 %v6729, 1.0
        %v6794 = vadd.f32 %v6730, 1.0
        %v6795 = vadd.f32 %v6731, 1.0
        %v6796 = vadd.f32 %v6732, 1.0
        %v6797 = vadd.f32 %v6733, 1.0
        %v6798 = vadd.f32 %v6734, 1.0
        %v6799 = vadd.f32 %v6735, 1.0
        %v6800 = vmul.f32 %v6736, 0.5
        %v6801 = vmul.f32 %v6737, 0.5
        %v6802 = vmul.f32 %v6738, 0.5
        %v6803 = vmul.f32 %v6739, 0.5
        %v6804 = vmul.f32 %v6740, 0.5
        %v6805 = vmul.f32 %v6741, 0.5
        %v6806 = vmul.f32 %v6742, 0.5
        %v6807 = vmul.f32 %v6743, 0.5
        %v6808 = vmul.f32 %v6744, 0.5
        %v6809 = vmul.f32 %v6745, 0.5
        %v6810 = vmul.f32 %v6746, 0.5
        %v6811 = vmul.f32 %v6747, 0.5
        %v6812 = vmul.f32 %v6748, 0.5
        %v6813 = vmul.f32 %v6749, 0.5
        %v6814 = vmul.f32 %v6750, 0.5
        %v6815 = vmul.f32 %v6751, 0.5
        %v6816 = vmul.f32 %v6752, 0.5
        %v6817 = vmul.f32 %v6753, 0.5
        %v6818 = vmul.f32 %v6754, 0.5
        %v6819 = vmul.f32 %v6755, 0.5
        %v6820 = vmul.f32 %v6756, 0.5
        %v6821 = vmul.f32 %v6757, 0.5
        %v6822 = vmul.f32 %v6758, 0.5
        %v6823 = vmul.f32 %v6759, 0.5
        %v6824 = vmul.f32 %v6760, 0.5
        %v6825 = vmul.f32 %v6761, 0.5
        %v6826 = vmul.f32 %v6762, 0.5
        %v6827 = vmul.f32 %v6763, 0.5
        %v6828 = vmul.f32 %v6764, 0.5
        %v6829 = vmul.f32 %v6765, 0.5
        %v6830 = vmul.f32 %v6766, 0.5
        %v6831 = vmul.f32 %v6767, 0.5
        %v6832 = vmul.f32 %v6768, 0.5
        %v6833 = vmul.f32 %v6769, 0.5
        %v6834 = vmul.f32 %v6770, 0.5
        %v6835 = vmul.f32 %v6771, 0.5
        %v6836 = vmul.f32 %v6772, 0.5
        %v6837 = vmul.f32 %v6773, 0.5
        %v6838 = vmul.f32 %v6774, 0.5
        %v6839 = vmul.f32 %v6775, 0.5
        %v6840 = vmul.f32 %v6776, 0.5
        %v6841 = vmul.f32 %v6777, 0.5
        %v6842 = vmul.f32 %v6778, 0.5
        %v6843 = vmul.f32 %v6779, 0.5
        %v6844 = vmul.f32 %v6780, 0.5
        %v6845 = vmul.f32 %v6781, 0.5
        %v6846 = vmul.f32 %v6782, 0.5
        %v6847 = vmul.f32 %v6783, 0.5
        %v6848 = vmul.f32 %v6784, 0.5
        %v6849 = vmul.f32 %v6785, 0.5
        %v6850 = vmul.f32 %v6786, 0.5
        %v6851 = vmul.f32 %v6787, 0.5
        %v6852 = vmul.f32 %v6788, 0.5
        %v6853 = vmul.f32 %v6789, 0.5
        %v6854 = vmul.f32 %v6790, 0.5
        %v6855 = vmul.f32 %v6791, 0.5
        %v6856 = vmul.f32 %v6792, 0.5
        %v6857 = vmul.f32 %v6793, 0.5
        %v6858 = vmul.f32 %v6794, 0.5
        %v6859 = vmul.f32 %v6795, 0.5
        %v6860 = vmul.f32 %v6796, 0.5
        %v6861 = vmul.f32 %v6797, 0.5
        %v6862 = vmul.f32 %v6798, 0.5
        %v6863 = vmul.f32 %v6799, 0.5
        %v6864 = vmul.f32 %v6161, %v6800
        %v6865 = vmul.f32 %v6163, %v6801
        %v6866 = vmul.f32 %v6274, %v6802
        %v6867 = vmul.f32 %v6276, %v6803
        %v6868 = vmul.f32 %v6165, %v6804
        %v6869 = vmul.f32 %v6167, %v6805
        %v6870 = vmul.f32 %v6278, %v6806
        %v6871 = vmul.f32 %v6280, %v6807
        %v6872 = vmul.f32 %v6171, %v6808
        %v6873 = vmul.f32 %v6173, %v6809
        %v6874 = vmul.f32 %v6284, %v6810
        %v6875 = vmul.f32 %v6286, %v6811
        %v6876 = vmul.f32 %v6175, %v6812
        %v6877 = vmul.f32 %v6177, %v6813
        %v6878 = vmul.f32 %v6288, %v6814
        %v6879 = vmul.f32 %v6290, %v6815
        %v6880 = vmul.f32 %v6181, %v6816
        %v6881 = vmul.f32 %v6183, %v6817
        %v6882 = vmul.f32 %v6294, %v6818
        %v6883 = vmul.f32 %v6296, %v6819
        %v6884 = vmul.f32 %v6185, %v6820
        %v6885 = vmul.f32 %v6187, %v6821
        %v6886 = vmul.f32 %v6298, %v6822
        %v6887 = vmul.f32 %v6300, %v6823
        %v6888 = vmul.f32 %v6191, %v6824
        %v6889 = vmul.f32 %v6193, %v6825
        %v6890 = vmul.f32 %v6304, %v6826
        %v6891 = vmul.f32 %v6306, %v6827
        %v6892 = vmul.f32 %v6195, %v6828
        %v6893 = vmul.f32 %v6197, %v6829
        %v6894 = vmul.f32 %v6308, %v6830
        %v6895 = vmul.f32 %v6310, %v6831
        %v6896 = vmul.f32 %v6201, %v6832
        %v6897 = vmul.f32 %v6203, %v6833
        %v6898 = vmul.f32 %v6314, %v6834
        %v6899 = vmul.f32 %v6316, %v6835
        %v6900 = vmul.f32 %v6205, %v6836
        %v6901 = vmul.f32 %v6207, %v6837
        %v6902 = vmul.f32 %v6318, %v6838
        %v6903 = vmul.f32 %v6320, %v6839
        %v6904 = vmul.f32 %v6211, %v6840
        %v6905 = vmul.f32 %v6213, %v6841
        %v6906 = vmul.f32 %v6324, %v6842
        %v6907 = vmul.f32 %v6326, %v6843
        %v6908 = vmul.f32 %v6215, %v6844
        %v6909 = vmul.f32 %v6217, %v6845
        %v6910 = vmul.f32 %v6328, %v6846
        %v6911 = vmul.f32 %v6330, %v6847
        %v6912 = vmul.f32 %v6221, %v6848
        %v6913 = vmul.f32 %v6223, %v6849
        %v6914 = vmul.f32 %v6334, %v6850
        %v6915 = vmul.f32 %v6336, %v6851
        %v6916 = vmul.f32 %v6225, %v6852
        %v6917 = vmul.f32 %v6227, %v6853
        %v6918 = vmul.f32 %v6338, %v6854
        %v6919 = vmul.f32 %v6340, %v6855
        %v6920 = vmul.f32 %v6231, %v6856
        %v6921 = vmul.f32 %v6233, %v6857
        %v6922 = vmul.f32 %v6344, %v6858
        %v6923 = vmul.f32 %v6346, %v6859
        %v6924 = vmul.f32 %v6235, %v6860
        %v6925 = vmul.f32 %v6237, %v6861
        %v6926 = vmul.f32 %v6348, %v6862
        %v6927 = vmul.f32 %v6350, %v6863
        %v6928 = vpack.c.bf16 %v6868, %v6864
        %v6929 = vpack.c.bf16 %v6869, %v6865
        %v6930 = vpack.c.bf16 %v6870, %v6866
        %v6931 = vpack.c.bf16 %v6871, %v6867
        %v6932 = vpack.c.bf16 %v6876, %v6872
        %v6933 = vpack.c.bf16 %v6877, %v6873
        %v6934 = vpack.c.bf16 %v6878, %v6874
        %v6935 = vpack.c.bf16 %v6879, %v6875
        %v6936 = vpack.c.bf16 %v6884, %v6880
        %v6937 = vpack.c.bf16 %v6885, %v6881
        %v6938 = vpack.c.bf16 %v6886, %v6882
        %v6939 = vpack.c.bf16 %v6887, %v6883
        %v6940 = vpack.c.bf16 %v6892, %v6888
        %v6941 = vpack.c.bf16 %v6893, %v6889
        %v6942 = vpack.c.bf16 %v6894, %v6890
        %v6943 = vpack.c.bf16 %v6895, %v6891
        %v6944 = vpack.c.bf16 %v6900, %v6896
        %v6945 = vpack.c.bf16 %v6901, %v6897
        %v6946 = vpack.c.bf16 %v6902, %v6898
        %v6947 = vpack.c.bf16 %v6903, %v6899
        %v6948 = vpack.c.bf16 %v6908, %v6904
        %v6949 = vpack.c.bf16 %v6909, %v6905
        %v6950 = vpack.c.bf16 %v6910, %v6906
        %v6951 = vpack.c.bf16 %v6911, %v6907
        %v6952 = vpack.c.bf16 %v6916, %v6912
        %v6953 = vpack.c.bf16 %v6917, %v6913
        %v6954 = vpack.c.bf16 %v6918, %v6914
        %v6955 = vpack.c.bf16 %v6919, %v6915
        %v6956 = vpack.c.bf16 %v6924, %v6920
        %v6957 = vpack.c.bf16 %v6925, %v6921
        %v6958 = vpack.c.bf16 %v6926, %v6922
        %v6959 = vpack.c.bf16 %v6927, %v6923
        %v6960 = vld [vmem:[#allocation28] sm:$0xff]
        %v6961 = vld [vmem:[#allocation28 + $0x8] sm:$0xff]
        %v6962 = vld [vmem:[#allocation28 + $0x10] sm:$0xff]
        %v6963 = vld [vmem:[#allocation28 + $0x18] sm:$0xff]
        %v6964 = vld [vmem:[#allocation28 + $0x20] sm:$0xff]
        %v6965 = vld [vmem:[#allocation28 + $0x28] sm:$0xff]
        %v6966 = vld [vmem:[#allocation28 + $0x30] sm:$0xff]
        %v6967 = vld [vmem:[#allocation28 + $0x38] sm:$0xff]
        %v6968 = vld [vmem:[#allocation28 + $0x40] sm:$0xff]
        %v6969 = vld [vmem:[#allocation28 + $0x48] sm:$0xff]
        %v6970 = vld [vmem:[#allocation28 + $0x50] sm:$0xff]
        %v6971 = vld [vmem:[#allocation28 + $0x58] sm:$0xff]
        %v6972 = vld [vmem:[#allocation28 + $0x60] sm:$0xff]
        %v6973 = vld [vmem:[#allocation28 + $0x68] sm:$0xff]
        %v6974 = vld [vmem:[#allocation28 + $0x70] sm:$0xff]
        %v6975 = vld [vmem:[#allocation28 + $0x78] sm:$0xff]
        %v6976 = vld [vmem:[#allocation28 + $0x80] sm:$0xff]
        %v6977 = vld [vmem:[#allocation28 + $0x88] sm:$0xff]
        %v6978 = vld [vmem:[#allocation28 + $0x90] sm:$0xff]
        %v6979 = vld [vmem:[#allocation28 + $0x98] sm:$0xff]
        %v6980 = vld [vmem:[#allocation28 + $0xa0] sm:$0xff]
        %v6981 = vld [vmem:[#allocation28 + $0xa8] sm:$0xff]
        %v6982 = vld [vmem:[#allocation28 + $0xb0] sm:$0xff]
        %v6983 = vld [vmem:[#allocation28 + $0xb8] sm:$0xff]
        %v6984 = vld [vmem:[#allocation28 + $0xc0] sm:$0xff]
        %v6985 = vld [vmem:[#allocation28 + $0xc8] sm:$0xff]
        %v6986 = vld [vmem:[#allocation28 + $0xd0] sm:$0xff]
        %v6987 = vld [vmem:[#allocation28 + $0xd8] sm:$0xff]
        %v6988 = vld [vmem:[#allocation28 + $0xe0] sm:$0xff]
        %v6989 = vld [vmem:[#allocation28 + $0xe8] sm:$0xff]
        %v6990 = vld [vmem:[#allocation28 + $0xf0] sm:$0xff]
        %v6991 = vld [vmem:[#allocation28 + $0xf8] sm:$0xff]
        %v6992 = vld [vmem:[#allocation28 + $0x100] sm:$0xff]
        %v6993 = vld [vmem:[#allocation28 + $0x108] sm:$0xff]
        %v6994 = vld [vmem:[#allocation28 + $0x110] sm:$0xff]
        %v6995 = vld [vmem:[#allocation28 + $0x118] sm:$0xff]
        %v6996 = vld [vmem:[#allocation28 + $0x120] sm:$0xff]
        %v6997 = vld [vmem:[#allocation28 + $0x128] sm:$0xff]
        %v6998 = vld [vmem:[#allocation28 + $0x130] sm:$0xff]
        %v6999 = vld [vmem:[#allocation28 + $0x138] sm:$0xff]
        %v7000 = vld [vmem:[#allocation28 + $0x140] sm:$0xff]
        %v7001 = vld [vmem:[#allocation28 + $0x148] sm:$0xff]
        %v7002 = vld [vmem:[#allocation28 + $0x150] sm:$0xff]
        %v7003 = vld [vmem:[#allocation28 + $0x158] sm:$0xff]
        %v7004 = vld [vmem:[#allocation28 + $0x160] sm:$0xff]
        %v7005 = vld [vmem:[#allocation28 + $0x168] sm:$0xff]
        %v7006 = vld [vmem:[#allocation28 + $0x170] sm:$0xff]
        %v7007 = vld [vmem:[#allocation28 + $0x178] sm:$0xff]
        %v7008 = vld [vmem:[#allocation28 + $0x180] sm:$0xff]
        %v7009 = vld [vmem:[#allocation28 + $0x188] sm:$0xff]
        %v7010 = vld [vmem:[#allocation28 + $0x190] sm:$0xff]
        %v7011 = vld [vmem:[#allocation28 + $0x198] sm:$0xff]
        %v7012 = vld [vmem:[#allocation28 + $0x1a0] sm:$0xff]
        %v7013 = vld [vmem:[#allocation28 + $0x1a8] sm:$0xff]
        %v7014 = vld [vmem:[#allocation28 + $0x1b0] sm:$0xff]
        %v7015 = vld [vmem:[#allocation28 + $0x1b8] sm:$0xff]
        %v7016 = vld [vmem:[#allocation28 + $0x1c0] sm:$0xff]
        %v7017 = vld [vmem:[#allocation28 + $0x1c8] sm:$0xff]
        %v7018 = vld [vmem:[#allocation28 + $0x1d0] sm:$0xff]
        %v7019 = vld [vmem:[#allocation28 + $0x1d8] sm:$0xff]
        %v7020 = vld [vmem:[#allocation28 + $0x1e0] sm:$0xff]
        %v7021 = vld [vmem:[#allocation28 + $0x1e8] sm:$0xff]
        %v7022 = vld [vmem:[#allocation28 + $0x1f0] sm:$0xff]
        %v7023 = vld [vmem:[#allocation28 + $0x1f8] sm:$0xff]
        %v7024 = vld [vmem:[#allocation25 + $0x10] sm:$0xff]
        %v7025 = vld [vmem:[#allocation25 + $0x18] sm:$0xff]
        %v7026 = vld [vmem:[#allocation25 + $0x30] sm:$0xff]
        %v7027 = vld [vmem:[#allocation25 + $0x38] sm:$0xff]
        %v7028 = vld [vmem:[#allocation25 + $0x50] sm:$0xff]
        %v7029 = vld [vmem:[#allocation25 + $0x58] sm:$0xff]
        %v7030 = vld [vmem:[#allocation25 + $0x70] sm:$0xff]
        %v7031 = vld [vmem:[#allocation25 + $0x78] sm:$0xff]
        %v7032 = vld [vmem:[#allocation25 + $0x90] sm:$0xff]
        %v7033 = vld [vmem:[#allocation25 + $0x98] sm:$0xff]
        %v7034 = vld [vmem:[#allocation25 + $0xb0] sm:$0xff]
        %v7035 = vld [vmem:[#allocation25 + $0xb8] sm:$0xff]
        %v7036 = vld [vmem:[#allocation25 + $0xd0] sm:$0xff]
        %v7037 = vld [vmem:[#allocation25 + $0xd8] sm:$0xff]
        %v7038 = vld [vmem:[#allocation25 + $0xf0] sm:$0xff]
        %v7039 = vld [vmem:[#allocation25 + $0xf8] sm:$0xff]
        %v7040 = vld [vmem:[#allocation25 + $0x110] sm:$0xff]
        %v7041 = vld [vmem:[#allocation25 + $0x118] sm:$0xff]
        %v7042 = vld [vmem:[#allocation25 + $0x130] sm:$0xff]
        %v7043 = vld [vmem:[#allocation25 + $0x138] sm:$0xff]
        %v7044 = vld [vmem:[#allocation25 + $0x150] sm:$0xff]
        %v7045 = vld [vmem:[#allocation25 + $0x158] sm:$0xff]
        %v7046 = vld [vmem:[#allocation25 + $0x170] sm:$0xff]
        %v7047 = vld [vmem:[#allocation25 + $0x178] sm:$0xff]
        %v7048 = vld [vmem:[#allocation25 + $0x190] sm:$0xff]
        %v7049 = vld [vmem:[#allocation25 + $0x198] sm:$0xff]
        %v7050 = vld [vmem:[#allocation25 + $0x1b0] sm:$0xff]
        %v7051 = vld [vmem:[#allocation25 + $0x1b8] sm:$0xff]
        %v7052 = vld [vmem:[#allocation25 + $0x1d0] sm:$0xff]
        %v7053 = vld [vmem:[#allocation25 + $0x1d8] sm:$0xff]
        %v7054 = vld [vmem:[#allocation25 + $0x1f0] sm:$0xff]
        %v7055 = vld [vmem:[#allocation25 + $0x1f8] sm:$0xff]
        %v7056 = vld [vmem:[#allocation25 + $0x210] sm:$0xff]
        %v7057 = vld [vmem:[#allocation25 + $0x218] sm:$0xff]
        %v7058 = vld [vmem:[#allocation25 + $0x230] sm:$0xff]
        %v7059 = vld [vmem:[#allocation25 + $0x238] sm:$0xff]
        %v7060 = vld [vmem:[#allocation25 + $0x250] sm:$0xff]
        %v7061 = vld [vmem:[#allocation25 + $0x258] sm:$0xff]
        %v7062 = vld [vmem:[#allocation25 + $0x270] sm:$0xff]
        %v7063 = vld [vmem:[#allocation25 + $0x278] sm:$0xff]
        %v7064 = vld [vmem:[#allocation25 + $0x290] sm:$0xff]
        %v7065 = vld [vmem:[#allocation25 + $0x298] sm:$0xff]
        %v7066 = vld [vmem:[#allocation25 + $0x2b0] sm:$0xff]
        %v7067 = vld [vmem:[#allocation25 + $0x2b8] sm:$0xff]
        %v7068 = vld [vmem:[#allocation25 + $0x2d0] sm:$0xff]
        %v7069 = vld [vmem:[#allocation25 + $0x2d8] sm:$0xff]
        %v7070 = vld [vmem:[#allocation25 + $0x2f0] sm:$0xff]
        %v7071 = vld [vmem:[#allocation25 + $0x2f8] sm:$0xff]
        %v7072 = vld [vmem:[#allocation25 + $0x310] sm:$0xff]
        %v7073 = vld [vmem:[#allocation25 + $0x318] sm:$0xff]
        %v7074 = vld [vmem:[#allocation25 + $0x330] sm:$0xff]
        %v7075 = vld [vmem:[#allocation25 + $0x338] sm:$0xff]
        %v7076 = vld [vmem:[#allocation25 + $0x350] sm:$0xff]
        %v7077 = vld [vmem:[#allocation25 + $0x358] sm:$0xff]
        %v7078 = vld [vmem:[#allocation25 + $0x370] sm:$0xff]
        %v7079 = vld [vmem:[#allocation25 + $0x378] sm:$0xff]
        %v7080 = vld [vmem:[#allocation25 + $0x390] sm:$0xff]
        %v7081 = vld [vmem:[#allocation25 + $0x398] sm:$0xff]
        %v7082 = vld [vmem:[#allocation25 + $0x3b0] sm:$0xff]
        %v7083 = vld [vmem:[#allocation25 + $0x3b8] sm:$0xff]
        %v7084 = vld [vmem:[#allocation25 + $0x3d0] sm:$0xff]
        %v7085 = vld [vmem:[#allocation25 + $0x3d8] sm:$0xff]
        %v7086 = vld [vmem:[#allocation25 + $0x3f0] sm:$0xff]
        %v7087 = vld [vmem:[#allocation25 + $0x3f8] sm:$0xff]
        %v7088 = vld [vmem:[#allocation26 + $0x4] sm:$0xf]
        %v7090 = vlaneseq
        %v7091 = vshrl.u32 %v7090, 7
        %v7092 = vsub.s32 0, %v7091
        %v7093 = vrot.slane %v7088, %v7092
        %v7094 = vlaneseq
        %v7095 = vshrl.u32 %v7094, 7
        %v7096 = vsub.s32 1, %v7095
        %v7097 = vrot.slane %v7088, %v7096
        %v7098 = vlaneseq
        %v7099 = vshrl.u32 %v7098, 7
        %v7100 = vsub.s32 2, %v7099
        %v7101 = vrot.slane %v7088, %v7100
        %v7102 = vlaneseq
        %v7103 = vshrl.u32 %v7102, 7
        %v7104 = vsub.s32 3, %v7103
        %v7105 = vrot.slane %v7088, %v7104
        %v7174 = vunpack.c.l.b16 %v7024
        %v7175 = vunpack.c.h.b16 %v7024
        %v7176 = vunpack.c.l.b16 %v7025
        %v7177 = vunpack.c.h.b16 %v7025
        %v7178 = vunpack.c.l.b16 %v7026
        %v7179 = vunpack.c.h.b16 %v7026
        %v7180 = vunpack.c.l.b16 %v7027
        %v7181 = vunpack.c.h.b16 %v7027
        %v7182 = vunpack.c.l.b16 %v7028
        %v7183 = vunpack.c.h.b16 %v7028
        %v7184 = vunpack.c.l.b16 %v7029
        %v7185 = vunpack.c.h.b16 %v7029
        %v7186 = vunpack.c.l.b16 %v7030
        %v7187 = vunpack.c.h.b16 %v7030
        %v7188 = vunpack.c.l.b16 %v7031
        %v7189 = vunpack.c.h.b16 %v7031
        %v7190 = vunpack.c.l.b16 %v7032
        %v7191 = vunpack.c.h.b16 %v7032
        %v7192 = vunpack.c.l.b16 %v7033
        %v7193 = vunpack.c.h.b16 %v7033
        %v7194 = vunpack.c.l.b16 %v7034
        %v7195 = vunpack.c.h.b16 %v7034
        %v7196 = vunpack.c.l.b16 %v7035
        %v7197 = vunpack.c.h.b16 %v7035
        %v7198 = vunpack.c.l.b16 %v7036
        %v7199 = vunpack.c.h.b16 %v7036
        %v7200 = vunpack.c.l.b16 %v7037
        %v7201 = vunpack.c.h.b16 %v7037
        %v7202 = vunpack.c.l.b16 %v7038
        %v7203 = vunpack.c.h.b16 %v7038
        %v7204 = vunpack.c.l.b16 %v7039
        %v7205 = vunpack.c.h.b16 %v7039
        %v7206 = vunpack.c.l.b16 %v7040
        %v7207 = vunpack.c.h.b16 %v7040
        %v7208 = vunpack.c.l.b16 %v7041
        %v7209 = vunpack.c.h.b16 %v7041
        %v7210 = vunpack.c.l.b16 %v7042
        %v7211 = vunpack.c.h.b16 %v7042
        %v7212 = vunpack.c.l.b16 %v7043
        %v7213 = vunpack.c.h.b16 %v7043
        %v7214 = vunpack.c.l.b16 %v7044
        %v7215 = vunpack.c.h.b16 %v7044
        %v7216 = vunpack.c.l.b16 %v7045
        %v7217 = vunpack.c.h.b16 %v7045
        %v7218 = vunpack.c.l.b16 %v7046
        %v7219 = vunpack.c.h.b16 %v7046
        %v7220 = vunpack.c.l.b16 %v7047
        %v7221 = vunpack.c.h.b16 %v7047
        %v7222 = vunpack.c.l.b16 %v7048
        %v7223 = vunpack.c.h.b16 %v7048
        %v7224 = vunpack.c.l.b16 %v7049
        %v7225 = vunpack.c.h.b16 %v7049
        %v7226 = vunpack.c.l.b16 %v7050
        %v7227 = vunpack.c.h.b16 %v7050
        %v7228 = vunpack.c.l.b16 %v7051
        %v7229 = vunpack.c.h.b16 %v7051
        %v7230 = vunpack.c.l.b16 %v7052
        %v7231 = vunpack.c.h.b16 %v7052
        %v7232 = vunpack.c.l.b16 %v7053
        %v7233 = vunpack.c.h.b16 %v7053
        %v7234 = vunpack.c.l.b16 %v7054
        %v7235 = vunpack.c.h.b16 %v7054
        %v7236 = vunpack.c.l.b16 %v7055
        %v7237 = vunpack.c.h.b16 %v7055
        %v7238 = vunpack.c.l.b16 %v7056
        %v7239 = vunpack.c.h.b16 %v7056
        %v7240 = vunpack.c.l.b16 %v7057
        %v7241 = vunpack.c.h.b16 %v7057
        %v7242 = vunpack.c.l.b16 %v7058
        %v7243 = vunpack.c.h.b16 %v7058
        %v7244 = vunpack.c.l.b16 %v7059
        %v7245 = vunpack.c.h.b16 %v7059
        %v7246 = vunpack.c.l.b16 %v7060
        %v7247 = vunpack.c.h.b16 %v7060
        %v7248 = vunpack.c.l.b16 %v7061
        %v7249 = vunpack.c.h.b16 %v7061
        %v7250 = vunpack.c.l.b16 %v7062
        %v7251 = vunpack.c.h.b16 %v7062
        %v7252 = vunpack.c.l.b16 %v7063
        %v7253 = vunpack.c.h.b16 %v7063
        %v7254 = vunpack.c.l.b16 %v7064
        %v7255 = vunpack.c.h.b16 %v7064
        %v7256 = vunpack.c.l.b16 %v7065
        %v7257 = vunpack.c.h.b16 %v7065
        %v7258 = vunpack.c.l.b16 %v7066
        %v7259 = vunpack.c.h.b16 %v7066
        %v7260 = vunpack.c.l.b16 %v7067
        %v7261 = vunpack.c.h.b16 %v7067
        %v7262 = vunpack.c.l.b16 %v7068
        %v7263 = vunpack.c.h.b16 %v7068
        %v7264 = vunpack.c.l.b16 %v7069
        %v7265 = vunpack.c.h.b16 %v7069
        %v7266 = vunpack.c.l.b16 %v7070
        %v7267 = vunpack.c.h.b16 %v7070
        %v7268 = vunpack.c.l.b16 %v7071
        %v7269 = vunpack.c.h.b16 %v7071
        %v7270 = vunpack.c.l.b16 %v7072
        %v7271 = vunpack.c.h.b16 %v7072
        %v7272 = vunpack.c.l.b16 %v7073
        %v7273 = vunpack.c.h.b16 %v7073
        %v7274 = vunpack.c.l.b16 %v7074
        %v7275 = vunpack.c.h.b16 %v7074
        %v7276 = vunpack.c.l.b16 %v7075
        %v7277 = vunpack.c.h.b16 %v7075
        %v7278 = vunpack.c.l.b16 %v7076
        %v7279 = vunpack.c.h.b16 %v7076
        %v7280 = vunpack.c.l.b16 %v7077
        %v7281 = vunpack.c.h.b16 %v7077
        %v7282 = vunpack.c.l.b16 %v7078
        %v7283 = vunpack.c.h.b16 %v7078
        %v7284 = vunpack.c.l.b16 %v7079
        %v7285 = vunpack.c.h.b16 %v7079
        %v7286 = vunpack.c.l.b16 %v7080
        %v7287 = vunpack.c.h.b16 %v7080
        %v7288 = vunpack.c.l.b16 %v7081
        %v7289 = vunpack.c.h.b16 %v7081
        %v7290 = vunpack.c.l.b16 %v7082
        %v7291 = vunpack.c.h.b16 %v7082
        %v7292 = vunpack.c.l.b16 %v7083
        %v7293 = vunpack.c.h.b16 %v7083
        %v7294 = vunpack.c.l.b16 %v7084
        %v7295 = vunpack.c.h.b16 %v7084
        %v7296 = vunpack.c.l.b16 %v7085
        %v7297 = vunpack.c.h.b16 %v7085
        %v7298 = vunpack.c.l.b16 %v7086
        %v7299 = vunpack.c.h.b16 %v7086
        %v7300 = vunpack.c.l.b16 %v7087
        %v7301 = vunpack.c.h.b16 %v7087
        %v7302 = vpack.c.b16 %v7178, %v7174
        %v7303 = vpack.c.b16 %v7179, %v7175
        %v7304 = vpack.c.b16 %v7180, %v7176
        %v7305 = vpack.c.b16 %v7181, %v7177
        %v7306 = vpack.c.b16 %v7186, %v7182
        %v7307 = vpack.c.b16 %v7187, %v7183
        %v7308 = vpack.c.b16 %v7188, %v7184
        %v7309 = vpack.c.b16 %v7189, %v7185
        %v7310 = vpack.c.b16 %v7194, %v7190
        %v7311 = vpack.c.b16 %v7195, %v7191
        %v7312 = vpack.c.b16 %v7196, %v7192
        %v7313 = vpack.c.b16 %v7197, %v7193
        %v7314 = vpack.c.b16 %v7202, %v7198
        %v7315 = vpack.c.b16 %v7203, %v7199
        %v7316 = vpack.c.b16 %v7204, %v7200
        %v7317 = vpack.c.b16 %v7205, %v7201
        %v7318 = vpack.c.b16 %v7210, %v7206
        %v7319 = vpack.c.b16 %v7211, %v7207
        %v7320 = vpack.c.b16 %v7212, %v7208
        %v7321 = vpack.c.b16 %v7213, %v7209
        %v7322 = vpack.c.b16 %v7218, %v7214
        %v7323 = vpack.c.b16 %v7219, %v7215
        %v7324 = vpack.c.b16 %v7220, %v7216
        %v7325 = vpack.c.b16 %v7221, %v7217
        %v7326 = vpack.c.b16 %v7226, %v7222
        %v7327 = vpack.c.b16 %v7227, %v7223
        %v7328 = vpack.c.b16 %v7228, %v7224
        %v7329 = vpack.c.b16 %v7229, %v7225
        %v7330 = vpack.c.b16 %v7234, %v7230
        %v7331 = vpack.c.b16 %v7235, %v7231
        %v7332 = vpack.c.b16 %v7236, %v7232
        %v7333 = vpack.c.b16 %v7237, %v7233
        %v7334 = vpack.c.b16 %v7242, %v7238
        %v7335 = vpack.c.b16 %v7243, %v7239
        %v7336 = vpack.c.b16 %v7244, %v7240
        %v7337 = vpack.c.b16 %v7245, %v7241
        %v7338 = vpack.c.b16 %v7250, %v7246
        %v7339 = vpack.c.b16 %v7251, %v7247
        %v7340 = vpack.c.b16 %v7252, %v7248
        %v7341 = vpack.c.b16 %v7253, %v7249
        %v7342 = vpack.c.b16 %v7258, %v7254
        %v7343 = vpack.c.b16 %v7259, %v7255
        %v7344 = vpack.c.b16 %v7260, %v7256
        %v7345 = vpack.c.b16 %v7261, %v7257
        %v7346 = vpack.c.b16 %v7266, %v7262
        %v7347 = vpack.c.b16 %v7267, %v7263
        %v7348 = vpack.c.b16 %v7268, %v7264
        %v7349 = vpack.c.b16 %v7269, %v7265
        %v7350 = vpack.c.b16 %v7274, %v7270
        %v7351 = vpack.c.b16 %v7275, %v7271
        %v7352 = vpack.c.b16 %v7276, %v7272
        %v7353 = vpack.c.b16 %v7277, %v7273
        %v7354 = vpack.c.b16 %v7282, %v7278
        %v7355 = vpack.c.b16 %v7283, %v7279
        %v7356 = vpack.c.b16 %v7284, %v7280
        %v7357 = vpack.c.b16 %v7285, %v7281
        %v7358 = vpack.c.b16 %v7290, %v7286
        %v7359 = vpack.c.b16 %v7291, %v7287
        %v7360 = vpack.c.b16 %v7292, %v7288
        %v7361 = vpack.c.b16 %v7293, %v7289
        %v7362 = vpack.c.b16 %v7298, %v7294
        %v7363 = vpack.c.b16 %v7299, %v7295
        %v7364 = vpack.c.b16 %v7300, %v7296
        %v7365 = vpack.c.b16 %v7301, %v7297
        %7430 = vmatprep.subr.bf16.mxu0 %v7303
        %7431 = vmatpush1.bf16.msra.mxu0 %v7302
        %7432 = vmatprep.subr.bf16.mxu0 %v7307
        %7433 = vmatpush1.bf16.msra.mxu0 %v7306
        %7434 = vmatprep.subr.bf16.mxu0 %v7311
        %7435 = vmatpush1.bf16.msra.mxu0 %v7310
        %7436 = vmatprep.subr.bf16.mxu0 %v7315
        %7437 = vmatpush1.bf16.msra.mxu0 %v7314
        %7438 = vmatprep.subr.bf16.mxu0 %v7319
        %7439 = vmatpush1.bf16.msra.mxu0 %v7318
        %7440 = vmatprep.subr.bf16.mxu0 %v7323
        %7441 = vmatpush1.bf16.msra.mxu0 %v7322
        %7442 = vmatprep.subr.bf16.mxu0 %v7327
        %7443 = vmatpush1.bf16.msra.mxu0 %v7326
        %7444 = vmatprep.subr.bf16.mxu0 %v7331
        %7445 = vmatpush1.bf16.msra.mxu0 %v7330
        %7446 = vmatprep.subr.bf16.mxu0 %v7335
        %7447 = vmatpush1.bf16.msra.mxu0 %v7334
        %7448 = vmatprep.subr.bf16.mxu0 %v7339
        %7449 = vmatpush1.bf16.msra.mxu0 %v7338
        %7450 = vmatprep.subr.bf16.mxu0 %v7343
        %7451 = vmatpush1.bf16.msra.mxu0 %v7342
        %7452 = vmatprep.subr.bf16.mxu0 %v7347
        %7453 = vmatpush1.bf16.msra.mxu0 %v7346
        %7454 = vmatprep.subr.bf16.mxu0 %v7351
        %7455 = vmatpush1.bf16.msra.mxu0 %v7350
        %7456 = vmatprep.subr.bf16.mxu0 %v7355
        %7457 = vmatpush1.bf16.msra.mxu0 %v7354
        %7458 = vmatprep.subr.bf16.mxu0 %v7359
        %7459 = vmatpush1.bf16.msra.mxu0 %v7358
        %7460 = vmatprep.subr.bf16.mxu0 %v7363
        %7461 = vmatpush1.bf16.msra.mxu0 %v7362
        %7462 = vmatprep.mubr.bf16.mxu0 %v5705
        %7463 = vmatmul.mubr.bf16.gmra.mrb[0].mxu0 %v5704
        %v7464 = vpop.f32.mrb[0].mxu0
        %v7465 = vadd.f32 %v7093, %v7464
        %v7466 = vpop.f32.mrb[0].mxu0
        %v7467 = vadd.f32 %v7097, %v7466
        %v7468 = vpop.f32.mrb[0].mxu0
        %v7469 = vadd.f32 %v7093, %v7468
        %v7470 = vpop.f32.mrb[0].mxu0
        %v7471 = vadd.f32 %v7097, %v7470
        %7472 = vmatprep.mubr.bf16.mxu0 %v5707
        %7473 = vmatmul.mubr.bf16.gmra.mrb[0].mxu0 %v5706
        %v7474 = vpop.f32.mrb[0].mxu0
        %v7475 = vadd.f32 %v7093, %v7474
        %v7476 = vpop.f32.mrb[0].mxu0
        %v7477 = vadd.f32 %v7097, %v7476
        %v7478 = vpop.f32.mrb[0].mxu0
        %v7479 = vadd.f32 %v7093, %v7478
        %v7480 = vpop.f32.mrb[0].mxu0
        %v7481 = vadd.f32 %v7097, %v7480
        %7482 = vmatprep.mubr.bf16.mxu0 %v5709
        %7483 = vmatmul.mubr.bf16.gmra.mrb[0].mxu0 %v5708
        %v7484 = vpop.f32.mrb[0].mxu0
        %v7485 = vadd.f32 %v7093, %v7484
        %v7486 = vpop.f32.mrb[0].mxu0
        %v7487 = vadd.f32 %v7097, %v7486
        %v7488 = vpop.f32.mrb[0].mxu0
        %v7489 = vadd.f32 %v7093, %v7488
        %v7490 = vpop.f32.mrb[0].mxu0
        %v7491 = vadd.f32 %v7097, %v7490
        %7492 = vmatprep.mubr.bf16.mxu0 %v5711
        %7493 = vmatmul.mubr.bf16.gmra.mrb[0].mxu0 %v5710
        %v7494 = vpop.f32.mrb[0].mxu0
        %v7495 = vadd.f32 %v7093, %v7494
        %v7496 = vpop.f32.mrb[0].mxu0
        %v7497 = vadd.f32 %v7097, %v7496
        %v7498 = vpop.f32.mrb[0].mxu0
        %v7499 = vadd.f32 %v7093, %v7498
        %v7500 = vpop.f32.mrb[0].mxu0
        %v7501 = vadd.f32 %v7097, %v7500
        %7502 = vmatprep.mubr.bf16.mxu0 %v5713
        %7503 = vmatmul.mubr.bf16.gmra.mrb[0].mxu0 %v5712
        %v7504 = vpop.f32.mrb[0].mxu0
        %v7505 = vadd.f32 %v7093, %v7504
        %v7506 = vpop.f32.mrb[0].mxu0
        %v7507 = vadd.f32 %v7097, %v7506
        %v7508 = vpop.f32.mrb[0].mxu0
        %v7509 = vadd.f32 %v7093, %v7508
        %v7510 = vpop.f32.mrb[0].mxu0
        %v7511 = vadd.f32 %v7097, %v7510
        %7512 = vmatprep.mubr.bf16.mxu0 %v5715
        %7513 = vmatmul.mubr.bf16.gmra.mrb[0].mxu0 %v5714
        %v7514 = vpop.f32.mrb[0].mxu0
        %v7515 = vadd.f32 %v7093, %v7514
        %v7516 = vpop.f32.mrb[0].mxu0
        %v7517 = vadd.f32 %v7097, %v7516
        %v7518 = vpop.f32.mrb[0].mxu0
        %v7519 = vadd.f32 %v7093, %v7518
        %v7520 = vpop.f32.mrb[0].mxu0
        %v7521 = vadd.f32 %v7097, %v7520
        %7522 = vmatprep.mubr.bf16.mxu0 %v5717
        %7523 = vmatmul.mubr.bf16.gmra.mrb[0].mxu0 %v5716
        %v7524 = vpop.f32.mrb[0].mxu0
        %v7525 = vadd.f32 %v7093, %v7524
        %v7526 = vpop.f32.mrb[0].mxu0
        %v7527 = vadd.f32 %v7097, %v7526
        %v7528 = vpop.f32.mrb[0].mxu0
        %v7529 = vadd.f32 %v7093, %v7528
        %v7530 = vpop.f32.mrb[0].mxu0
        %v7531 = vadd.f32 %v7097, %v7530
        %7532 = vmatprep.mubr.bf16.mxu0 %v5719
        %7533 = vmatmul.mubr.bf16.gmra.mrb[0].mxu0 %v5718
        %v7534 = vpop.f32.mrb[0].mxu0
        %v7535 = vadd.f32 %v7093, %v7534
        %v7536 = vpop.f32.mrb[0].mxu0
        %v7537 = vadd.f32 %v7097, %v7536
        %v7538 = vpop.f32.mrb[0].mxu0
        %v7539 = vadd.f32 %v7093, %v7538
        %v7540 = vpop.f32.mrb[0].mxu0
        %v7541 = vadd.f32 %v7097, %v7540
        %7542 = vdwg.mxu0
        %7543 = vmatprep.subr.bf16.mxu0 %v7305
        %7544 = vmatpush1.bf16.msra.mxu0 %v7304
        %7545 = vmatprep.subr.bf16.mxu0 %v7309
        %7546 = vmatpush1.bf16.msra.mxu0 %v7308
        %7547 = vmatprep.subr.bf16.mxu0 %v7313
        %7548 = vmatpush1.bf16.msra.mxu0 %v7312
        %7549 = vmatprep.subr.bf16.mxu0 %v7317
        %7550 = vmatpush1.bf16.msra.mxu0 %v7316
        %7551 = vmatprep.subr.bf16.mxu0 %v7321
        %7552 = vmatpush1.bf16.msra.mxu0 %v7320
        %7553 = vmatprep.subr.bf16.mxu0 %v7325
        %7554 = vmatpush1.bf16.msra.mxu0 %v7324
        %7555 = vmatprep.subr.bf16.mxu0 %v7329
        %7556 = vmatpush1.bf16.msra.mxu0 %v7328
        %7557 = vmatprep.subr.bf16.mxu0 %v7333
        %7558 = vmatpush1.bf16.msra.mxu0 %v7332
        %7559 = vmatprep.subr.bf16.mxu0 %v7337
        %7560 = vmatpush1.bf16.msra.mxu0 %v7336
        %7561 = vmatprep.subr.bf16.mxu0 %v7341
        %7562 = vmatpush1.bf16.msra.mxu0 %v7340
        %7563 = vmatprep.subr.bf16.mxu0 %v7345
        %7564 = vmatpush1.bf16.msra.mxu0 %v7344
        %7565 = vmatprep.subr.bf16.mxu0 %v7349
        %7566 = vmatpush1.bf16.msra.mxu0 %v7348
        %7567 = vmatprep.subr.bf16.mxu0 %v7353
        %7568 = vmatpush1.bf16.msra.mxu0 %v7352
        %7569 = vmatprep.subr.bf16.mxu0 %v7357
        %7570 = vmatpush1.bf16.msra.mxu0 %v7356
        %7571 = vmatprep.subr.bf16.mxu0 %v7361
        %7572 = vmatpush1.bf16.msra.mxu0 %v7360
        %7573 = vmatprep.subr.bf16.mxu0 %v7365
        %7574 = vmatpush1.bf16.msra.mxu0 %v7364
        %7575 = vmatprep.mubr.bf16.mxu0 %v5705
        %7576 = vmatmul.mubr.bf16.gmra.mrb[0].mxu0 %v5704
        %v7577 = vpop.f32.mrb[0].mxu0
        %v7578 = vadd.f32 %v7101, %v7577
        %v7579 = vpop.f32.mrb[0].mxu0
        %v7580 = vadd.f32 %v7105, %v7579
        %v7581 = vpop.f32.mrb[0].mxu0
        %v7582 = vadd.f32 %v7101, %v7581
        %v7583 = vpop.f32.mrb[0].mxu0
        %v7584 = vadd.f32 %v7105, %v7583
        %7585 = vmatprep.mubr.bf16.mxu0 %v5707
        %7586 = vmatmul.mubr.bf16.gmra.mrb[0].mxu0 %v5706
        %v7587 = vpop.f32.mrb[0].mxu0
        %v7588 = vadd.f32 %v7101, %v7587
        %v7589 = vpop.f32.mrb[0].mxu0
        %v7590 = vadd.f32 %v7105, %v7589
        %v7591 = vpop.f32.mrb[0].mxu0
        %v7592 = vadd.f32 %v7101, %v7591
        %v7593 = vpop.f32.mrb[0].mxu0
        %v7594 = vadd.f32 %v7105, %v7593
        %7595 = vmatprep.mubr.bf16.mxu0 %v5709
        %7596 = vmatmul.mubr.bf16.gmra.mrb[0].mxu0 %v5708
        %v7597 = vpop.f32.mrb[0].mxu0
        %v7598 = vadd.f32 %v7101, %v7597
        %v7599 = vpop.f32.mrb[0].mxu0
        %v7600 = vadd.f32 %v7105, %v7599
        %v7601 = vpop.f32.mrb[0].mxu0
        %v7602 = vadd.f32 %v7101, %v7601
        %v7603 = vpop.f32.mrb[0].mxu0
        %v7604 = vadd.f32 %v7105, %v7603
        %7605 = vmatprep.mubr.bf16.mxu0 %v5711
        %7606 = vmatmul.mubr.bf16.gmra.mrb[0].mxu0 %v5710
        %v7607 = vpop.f32.mrb[0].mxu0
        %v7608 = vadd.f32 %v7101, %v7607
        %v7609 = vpop.f32.mrb[0].mxu0
        %v7610 = vadd.f32 %v7105, %v7609
        %v7611 = vpop.f32.mrb[0].mxu0
        %v7612 = vadd.f32 %v7101, %v7611
        %v7613 = vpop.f32.mrb[0].mxu0
        %v7614 = vadd.f32 %v7105, %v7613
        %7615 = vmatprep.mubr.bf16.mxu0 %v5713
        %7616 = vmatmul.mubr.bf16.gmra.mrb[0].mxu0 %v5712
        %v7617 = vpop.f32.mrb[0].mxu0
        %v7618 = vadd.f32 %v7101, %v7617
        %v7619 = vpop.f32.mrb[0].mxu0
        %v7620 = vadd.f32 %v7105, %v7619
        %v7621 = vpop.f32.mrb[0].mxu0
        %v7622 = vadd.f32 %v7101, %v7621
        %v7623 = vpop.f32.mrb[0].mxu0
        %v7624 = vadd.f32 %v7105, %v7623
        %7625 = vmatprep.mubr.bf16.mxu0 %v5715
        %7626 = vmatmul.mubr.bf16.gmra.mrb[0].mxu0 %v5714
        %v7627 = vpop.f32.mrb[0].mxu0
        %v7628 = vadd.f32 %v7101, %v7627
        %v7629 = vpop.f32.mrb[0].mxu0
        %v7630 = vadd.f32 %v7105, %v7629
        %v7631 = vpop.f32.mrb[0].mxu0
        %v7632 = vadd.f32 %v7101, %v7631
        %v7633 = vpop.f32.mrb[0].mxu0
        %v7634 = vadd.f32 %v7105, %v7633
        %7635 = vmatprep.mubr.bf16.mxu0 %v5717
        %7636 = vmatmul.mubr.bf16.gmra.mrb[0].mxu0 %v5716
        %v7637 = vpop.f32.mrb[0].mxu0
        %v7638 = vadd.f32 %v7101, %v7637
        %v7639 = vpop.f32.mrb[0].mxu0
        %v7640 = vadd.f32 %v7105, %v7639
        %v7641 = vpop.f32.mrb[0].mxu0
        %v7642 = vadd.f32 %v7101, %v7641
        %v7643 = vpop.f32.mrb[0].mxu0
        %v7644 = vadd.f32 %v7105, %v7643
        %7645 = vmatprep.mubr.bf16.mxu0 %v5719
        %7646 = vmatmul.mubr.bf16.gmra.mrb[0].mxu0 %v5718
        %v7647 = vpop.f32.mrb[0].mxu0
        %v7648 = vadd.f32 %v7101, %v7647
        %v7649 = vpop.f32.mrb[0].mxu0
        %v7650 = vadd.f32 %v7105, %v7649
        %v7651 = vpop.f32.mrb[0].mxu0
        %v7652 = vadd.f32 %v7101, %v7651
        %v7653 = vpop.f32.mrb[0].mxu0
        %v7654 = vadd.f32 %v7105, %v7653
        %7655 = vdwg.mxu0
        %v7656 = vmul.f32 %v7465, %v7465
        %v7657 = vmul.f32 %v7467, %v7467
        %v7658 = vmul.f32 %v7578, %v7578
        %v7659 = vmul.f32 %v7580, %v7580
        %v7660 = vmul.f32 %v7469, %v7469
        %v7661 = vmul.f32 %v7471, %v7471
        %v7662 = vmul.f32 %v7582, %v7582
        %v7663 = vmul.f32 %v7584, %v7584
        %v7664 = vmul.f32 %v7475, %v7475
        %v7665 = vmul.f32 %v7477, %v7477
        %v7666 = vmul.f32 %v7588, %v7588
        %v7667 = vmul.f32 %v7590, %v7590
        %v7668 = vmul.f32 %v7479, %v7479
        %v7669 = vmul.f32 %v7481, %v7481
        %v7670 = vmul.f32 %v7592, %v7592
        %v7671 = vmul.f32 %v7594, %v7594
        %v7672 = vmul.f32 %v7485, %v7485
        %v7673 = vmul.f32 %v7487, %v7487
        %v7674 = vmul.f32 %v7598, %v7598
        %v7675 = vmul.f32 %v7600, %v7600
        %v7676 = vmul.f32 %v7489, %v7489
        %v7677 = vmul.f32 %v7491, %v7491
        %v7678 = vmul.f32 %v7602, %v7602
        %v7679 = vmul.f32 %v7604, %v7604
        %v7680 = vmul.f32 %v7495, %v7495
        %v7681 = vmul.f32 %v7497, %v7497
        %v7682 = vmul.f32 %v7608, %v7608
        %v7683 = vmul.f32 %v7610, %v7610
        %v7684 = vmul.f32 %v7499, %v7499
        %v7685 = vmul.f32 %v7501, %v7501
        %v7686 = vmul.f32 %v7612, %v7612
        %v7687 = vmul.f32 %v7614, %v7614
        %v7688 = vmul.f32 %v7505, %v7505
        %v7689 = vmul.f32 %v7507, %v7507
        %v7690 = vmul.f32 %v7618, %v7618
        %v7691 = vmul.f32 %v7620, %v7620
        %v7692 = vmul.f32 %v7509, %v7509
        %v7693 = vmul.f32 %v7511, %v7511
        %v7694 = vmul.f32 %v7622, %v7622
        %v7695 = vmul.f32 %v7624, %v7624
        %v7696 = vmul.f32 %v7515, %v7515
        %v7697 = vmul.f32 %v7517, %v7517
        %v7698 = vmul.f32 %v7628, %v7628
        %v7699 = vmul.f32 %v7630, %v7630
        %v7700 = vmul.f32 %v7519, %v7519
        %v7701 = vmul.f32 %v7521, %v7521
        %v7702 = vmul.f32 %v7632, %v7632
        %v7703 = vmul.f32 %v7634, %v7634
        %v7704 = vmul.f32 %v7525, %v7525
        %v7705 = vmul.f32 %v7527, %v7527
        %v7706 = vmul.f32 %v7638, %v7638
        %v7707 = vmul.f32 %v7640, %v7640
        %v7708 = vmul.f32 %v7529, %v7529
        %v7709 = vmul.f32 %v7531, %v7531
        %v7710 = vmul.f32 %v7642, %v7642
        %v7711 = vmul.f32 %v7644, %v7644
        %v7712 = vmul.f32 %v7535, %v7535
        %v7713 = vmul.f32 %v7537, %v7537
        %v7714 = vmul.f32 %v7648, %v7648
        %v7715 = vmul.f32 %v7650, %v7650
        %v7716 = vmul.f32 %v7539, %v7539
        %v7717 = vmul.f32 %v7541, %v7541
        %v7718 = vmul.f32 %v7652, %v7652
        %v7719 = vmul.f32 %v7654, %v7654
        %v7720 = vmul.f32 %v7465, %v7656
        %v7721 = vmul.f32 %v7467, %v7657
        %v7722 = vmul.f32 %v7578, %v7658
        %v7723 = vmul.f32 %v7580, %v7659
        %v7724 = vmul.f32 %v7469, %v7660
        %v7725 = vmul.f32 %v7471, %v7661
        %v7726 = vmul.f32 %v7582, %v7662
        %v7727 = vmul.f32 %v7584, %v7663
        %v7728 = vmul.f32 %v7475, %v7664
        %v7729 = vmul.f32 %v7477, %v7665
        %v7730 = vmul.f32 %v7588, %v7666
        %v7731 = vmul.f32 %v7590, %v7667
        %v7732 = vmul.f32 %v7479, %v7668
        %v7733 = vmul.f32 %v7481, %v7669
        %v7734 = vmul.f32 %v7592, %v7670
        %v7735 = vmul.f32 %v7594, %v7671
        %v7736 = vmul.f32 %v7485, %v7672
        %v7737 = vmul.f32 %v7487, %v7673
        %v7738 = vmul.f32 %v7598, %v7674
        %v7739 = vmul.f32 %v7600, %v7675
        %v7740 = vmul.f32 %v7489, %v7676
        %v7741 = vmul.f32 %v7491, %v7677
        %v7742 = vmul.f32 %v7602, %v7678
        %v7743 = vmul.f32 %v7604, %v7679
        %v7744 = vmul.f32 %v7495, %v7680
        %v7745 = vmul.f32 %v7497, %v7681
        %v7746 = vmul.f32 %v7608, %v7682
        %v7747 = vmul.f32 %v7610, %v7683
        %v7748 = vmul.f32 %v7499, %v7684
        %v7749 = vmul.f32 %v7501, %v7685
        %v7750 = vmul.f32 %v7612, %v7686
        %v7751 = vmul.f32 %v7614, %v7687
        %v7752 = vmul.f32 %v7505, %v7688
        %v7753 = vmul.f32 %v7507, %v7689
        %v7754 = vmul.f32 %v7618, %v7690
        %v7755 = vmul.f32 %v7620, %v7691
        %v7756 = vmul.f32 %v7509, %v7692
        %v7757 = vmul.f32 %v7511, %v7693
        %v7758 = vmul.f32 %v7622, %v7694
        %v7759 = vmul.f32 %v7624, %v7695
        %v7760 = vmul.f32 %v7515, %v7696
        %v7761 = vmul.f32 %v7517, %v7697
        %v7762 = vmul.f32 %v7628, %v7698
        %v7763 = vmul.f32 %v7630, %v7699
        %v7764 = vmul.f32 %v7519, %v7700
        %v7765 = vmul.f32 %v7521, %v7701
        %v7766 = vmul.f32 %v7632, %v7702
        %v7767 = vmul.f32 %v7634, %v7703
        %v7768 = vmul.f32 %v7525, %v7704
        %v7769 = vmul.f32 %v7527, %v7705
        %v7770 = vmul.f32 %v7638, %v7706
        %v7771 = vmul.f32 %v7640, %v7707
        %v7772 = vmul.f32 %v7529, %v7708
        %v7773 = vmul.f32 %v7531, %v7709
        %v7774 = vmul.f32 %v7642, %v7710
        %v7775 = vmul.f32 %v7644, %v7711
        %v7776 = vmul.f32 %v7535, %v7712
        %v7777 = vmul.f32 %v7537, %v7713
        %v7778 = vmul.f32 %v7648, %v7714
        %v7779 = vmul.f32 %v7650, %v7715
        %v7780 = vmul.f32 %v7539, %v7716
        %v7781 = vmul.f32 %v7541, %v7717
        %v7782 = vmul.f32 %v7652, %v7718
        %v7783 = vmul.f32 %v7654, %v7719
        %v7784 = vmul.f32 %v7720, 0.044715
        %v7785 = vmul.f32 %v7721, 0.044715
        %v7786 = vmul.f32 %v7722, 0.044715
        %v7787 = vmul.f32 %v7723, 0.044715
        %v7788 = vmul.f32 %v7724, 0.044715
        %v7789 = vmul.f32 %v7725, 0.044715
        %v7790 = vmul.f32 %v7726, 0.044715
        %v7791 = vmul.f32 %v7727, 0.044715
        %v7792 = vmul.f32 %v7728, 0.044715
        %v7793 = vmul.f32 %v7729, 0.044715
        %v7794 = vmul.f32 %v7730, 0.044715
        %v7795 = vmul.f32 %v7731, 0.044715
        %v7796 = vmul.f32 %v7732, 0.044715
        %v7797 = vmul.f32 %v7733, 0.044715
        %v7798 = vmul.f32 %v7734, 0.044715
        %v7799 = vmul.f32 %v7735, 0.044715
        %v7800 = vmul.f32 %v7736, 0.044715
        %v7801 = vmul.f32 %v7737, 0.044715
        %v7802 = vmul.f32 %v7738, 0.044715
        %v7803 = vmul.f32 %v7739, 0.044715
        %v7804 = vmul.f32 %v7740, 0.044715
        %v7805 = vmul.f32 %v7741, 0.044715
        %v7806 = vmul.f32 %v7742, 0.044715
        %v7807 = vmul.f32 %v7743, 0.044715
        %v7808 = vmul.f32 %v7744, 0.044715
        %v7809 = vmul.f32 %v7745, 0.044715
        %v7810 = vmul.f32 %v7746, 0.044715
        %v7811 = vmul.f32 %v7747, 0.044715
        %v7812 = vmul.f32 %v7748, 0.044715
        %v7813 = vmul.f32 %v7749, 0.044715
        %v7814 = vmul.f32 %v7750, 0.044715
        %v7815 = vmul.f32 %v7751, 0.044715
        %v7816 = vmul.f32 %v7752, 0.044715
        %v7817 = vmul.f32 %v7753, 0.044715
        %v7818 = vmul.f32 %v7754, 0.044715
        %v7819 = vmul.f32 %v7755, 0.044715
        %v7820 = vmul.f32 %v7756, 0.044715
        %v7821 = vmul.f32 %v7757, 0.044715
        %v7822 = vmul.f32 %v7758, 0.044715
        %v7823 = vmul.f32 %v7759, 0.044715
        %v7824 = vmul.f32 %v7760, 0.044715
        %v7825 = vmul.f32 %v7761, 0.044715
        %v7826 = vmul.f32 %v7762, 0.044715
        %v7827 = vmul.f32 %v7763, 0.044715
        %v7828 = vmul.f32 %v7764, 0.044715
        %v7829 = vmul.f32 %v7765, 0.044715
        %v7830 = vmul.f32 %v7766, 0.044715
        %v7831 = vmul.f32 %v7767, 0.044715
        %v7832 = vmul.f32 %v7768, 0.044715
        %v7833 = vmul.f32 %v7769, 0.044715
        %v7834 = vmul.f32 %v7770, 0.044715
        %v7835 = vmul.f32 %v7771, 0.044715
        %v7836 = vmul.f32 %v7772, 0.044715
        %v7837 = vmul.f32 %v7773, 0.044715
        %v7838 = vmul.f32 %v7774, 0.044715
        %v7839 = vmul.f32 %v7775, 0.044715
        %v7840 = vmul.f32 %v7776, 0.044715
        %v7841 = vmul.f32 %v7777, 0.044715
        %v7842 = vmul.f32 %v7778, 0.044715
        %v7843 = vmul.f32 %v7779, 0.044715
        %v7844 = vmul.f32 %v7780, 0.044715
        %v7845 = vmul.f32 %v7781, 0.044715
        %v7846 = vmul.f32 %v7782, 0.044715
        %v7847 = vmul.f32 %v7783, 0.044715
        %v7848 = vadd.f32 %v7465, %v7784
        %v7849 = vadd.f32 %v7467, %v7785
        %v7850 = vadd.f32 %v7578, %v7786
        %v7851 = vadd.f32 %v7580, %v7787
        %v7852 = vadd.f32 %v7469, %v7788
        %v7853 = vadd.f32 %v7471, %v7789
        %v7854 = vadd.f32 %v7582, %v7790
        %v7855 = vadd.f32 %v7584, %v7791
        %v7856 = vadd.f32 %v7475, %v7792
        %v7857 = vadd.f32 %v7477, %v7793
        %v7858 = vadd.f32 %v7588, %v7794
        %v7859 = vadd.f32 %v7590, %v7795
        %v7860 = vadd.f32 %v7479, %v7796
        %v7861 = vadd.f32 %v7481, %v7797
        %v7862 = vadd.f32 %v7592, %v7798
        %v7863 = vadd.f32 %v7594, %v7799
        %v7864 = vadd.f32 %v7485, %v7800
        %v7865 = vadd.f32 %v7487, %v7801
        %v7866 = vadd.f32 %v7598, %v7802
        %v7867 = vadd.f32 %v7600, %v7803
        %v7868 = vadd.f32 %v7489, %v7804
        %v7869 = vadd.f32 %v7491, %v7805
        %v7870 = vadd.f32 %v7602, %v7806
        %v7871 = vadd.f32 %v7604, %v7807
        %v7872 = vadd.f32 %v7495, %v7808
        %v7873 = vadd.f32 %v7497, %v7809
        %v7874 = vadd.f32 %v7608, %v7810
        %v7875 = vadd.f32 %v7610, %v7811
        %v7876 = vadd.f32 %v7499, %v7812
        %v7877 = vadd.f32 %v7501, %v7813
        %v7878 = vadd.f32 %v7612, %v7814
        %v7879 = vadd.f32 %v7614, %v7815
        %v7880 = vadd.f32 %v7505, %v7816
        %v7881 = vadd.f32 %v7507, %v7817
        %v7882 = vadd.f32 %v7618, %v7818
        %v7883 = vadd.f32 %v7620, %v7819
        %v7884 = vadd.f32 %v7509, %v7820
        %v7885 = vadd.f32 %v7511, %v7821
        %v7886 = vadd.f32 %v7622, %v7822
        %v7887 = vadd.f32 %v7624, %v7823
        %v7888 = vadd.f32 %v7515, %v7824
        %v7889 = vadd.f32 %v7517, %v7825
        %v7890 = vadd.f32 %v7628, %v7826
        %v7891 = vadd.f32 %v7630, %v7827
        %v7892 = vadd.f32 %v7519, %v7828
        %v7893 = vadd.f32 %v7521, %v7829
        %v7894 = vadd.f32 %v7632, %v7830
        %v7895 = vadd.f32 %v7634, %v7831
        %v7896 = vadd.f32 %v7525, %v7832
        %v7897 = vadd.f32 %v7527, %v7833
        %v7898 = vadd.f32 %v7638, %v7834
        %v7899 = vadd.f32 %v7640, %v7835
        %v7900 = vadd.f32 %v7529, %v7836
        %v7901 = vadd.f32 %v7531, %v7837
        %v7902 = vadd.f32 %v7642, %v7838
        %v7903 = vadd.f32 %v7644, %v7839
        %v7904 = vadd.f32 %v7535, %v7840
        %v7905 = vadd.f32 %v7537, %v7841
        %v7906 = vadd.f32 %v7648, %v7842
        %v7907 = vadd.f32 %v7650, %v7843
        %v7908 = vadd.f32 %v7539, %v7844
        %v7909 = vadd.f32 %v7541, %v7845
        %v7910 = vadd.f32 %v7652, %v7846
        %v7911 = vadd.f32 %v7654, %v7847
        %v7912 = vmul.f32 %v7848, 0.7978846
        %v7913 = vmul.f32 %v7849, 0.7978846
        %v7914 = vmul.f32 %v7850, 0.7978846
        %v7915 = vmul.f32 %v7851, 0.7978846
        %v7916 = vmul.f32 %v7852, 0.7978846
        %v7917 = vmul.f32 %v7853, 0.7978846
        %v7918 = vmul.f32 %v7854, 0.7978846
        %v7919 = vmul.f32 %v7855, 0.7978846
        %v7920 = vmul.f32 %v7856, 0.7978846
        %v7921 = vmul.f32 %v7857, 0.7978846
        %v7922 = vmul.f32 %v7858, 0.7978846
        %v7923 = vmul.f32 %v7859, 0.7978846
        %v7924 = vmul.f32 %v7860, 0.7978846
        %v7925 = vmul.f32 %v7861, 0.7978846
        %v7926 = vmul.f32 %v7862, 0.7978846
        %v7927 = vmul.f32 %v7863, 0.7978846
        %v7928 = vmul.f32 %v7864, 0.7978846
        %v7929 = vmul.f32 %v7865, 0.7978846
        %v7930 = vmul.f32 %v7866, 0.7978846
        %v7931 = vmul.f32 %v7867, 0.7978846
        %v7932 = vmul.f32 %v7868, 0.7978846
        %v7933 = vmul.f32 %v7869, 0.7978846
        %v7934 = vmul.f32 %v7870, 0.7978846
        %v7935 = vmul.f32 %v7871, 0.7978846
        %v7936 = vmul.f32 %v7872, 0.7978846
        %v7937 = vmul.f32 %v7873, 0.7978846
        %v7938 = vmul.f32 %v7874, 0.7978846
        %v7939 = vmul.f32 %v7875, 0.7978846
        %v7940 = vmul.f32 %v7876, 0.7978846
        %v7941 = vmul.f32 %v7877, 0.7978846
        %v7942 = vmul.f32 %v7878, 0.7978846
        %v7943 = vmul.f32 %v7879, 0.7978846
        %v7944 = vmul.f32 %v7880, 0.7978846
        %v7945 = vmul.f32 %v7881, 0.7978846
        %v7946 = vmul.f32 %v7882, 0.7978846
        %v7947 = vmul.f32 %v7883, 0.7978846
        %v7948 = vmul.f32 %v7884, 0.7978846
        %v7949 = vmul.f32 %v7885, 0.7978846
        %v7950 = vmul.f32 %v7886, 0.7978846
        %v7951 = vmul.f32 %v7887, 0.7978846
        %v7952 = vmul.f32 %v7888, 0.7978846
        %v7953 = vmul.f32 %v7889, 0.7978846
        %v7954 = vmul.f32 %v7890, 0.7978846
        %v7955 = vmul.f32 %v7891, 0.7978846
        %v7956 = vmul.f32 %v7892, 0.7978846
        %v7957 = vmul.f32 %v7893, 0.7978846
        %v7958 = vmul.f32 %v7894, 0.7978846
        %v7959 = vmul.f32 %v7895, 0.7978846
        %v7960 = vmul.f32 %v7896, 0.7978846
        %v7961 = vmul.f32 %v7897, 0.7978846
        %v7962 = vmul.f32 %v7898, 0.7978846
        %v7963 = vmul.f32 %v7899, 0.7978846
        %v7964 = vmul.f32 %v7900, 0.7978846
        %v7965 = vmul.f32 %v7901, 0.7978846
        %v7966 = vmul.f32 %v7902, 0.7978846
        %v7967 = vmul.f32 %v7903, 0.7978846
        %v7968 = vmul.f32 %v7904, 0.7978846
        %v7969 = vmul.f32 %v7905, 0.7978846
        %v7970 = vmul.f32 %v7906, 0.7978846
        %v7971 = vmul.f32 %v7907, 0.7978846
        %v7972 = vmul.f32 %v7908, 0.7978846
        %v7973 = vmul.f32 %v7909, 0.7978846
        %v7974 = vmul.f32 %v7910, 0.7978846
        %v7975 = vmul.f32 %v7911, 0.7978846
        %v7976 = vtanh.pop %v7912
        %v7977 = vtanh.pop %v7913
        %v7978 = vtanh.pop %v7914
        %v7979 = vtanh.pop %v7915
        %v7980 = vtanh.pop %v7916
        %v7981 = vtanh.pop %v7917
        %v7982 = vtanh.pop %v7918
        %v7983 = vtanh.pop %v7919
        %v7984 = vtanh.pop %v7920
        %v7985 = vtanh.pop %v7921
        %v7986 = vtanh.pop %v7922
        %v7987 = vtanh.pop %v7923
        %v7988 = vtanh.pop %v7924
        %v7989 = vtanh.pop %v7925
        %v7990 = vtanh.pop %v7926
        %v7991 = vtanh.pop %v7927
        %v7992 = vtanh.pop %v7928
        %v7993 = vtanh.pop %v7929
        %v7994 = vtanh.pop %v7930
        %v7995 = vtanh.pop %v7931
        %v7996 = vtanh.pop %v7932
        %v7997 = vtanh.pop %v7933
        %v7998 = vtanh.pop %v7934
        %v7999 = vtanh.pop %v7935
        %v8000 = vtanh.pop %v7936
        %v8001 = vtanh.pop %v7937
        %v8002 = vtanh.pop %v7938
        %v8003 = vtanh.pop %v7939
        %v8004 = vtanh.pop %v7940
        %v8005 = vtanh.pop %v7941
        %v8006 = vtanh.pop %v7942
        %v8007 = vtanh.pop %v7943
        %v8008 = vtanh.pop %v7944
        %v8009 = vtanh.pop %v7945
        %v8010 = vtanh.pop %v7946
        %v8011 = vtanh.pop %v7947
        %v8012 = vtanh.pop %v7948
        %v8013 = vtanh.pop %v7949
        %v8014 = vtanh.pop %v7950
        %v8015 = vtanh.pop %v7951
        %v8016 = vtanh.pop %v7952
        %v8017 = vtanh.pop %v7953
        %v8018 = vtanh.pop %v7954
        %v8019 = vtanh.pop %v7955
        %v8020 = vtanh.pop %v7956
        %v8021 = vtanh.pop %v7957
        %v8022 = vtanh.pop %v7958
        %v8023 = vtanh.pop %v7959
        %v8024 = vtanh.pop %v7960
        %v8025 = vtanh.pop %v7961
        %v8026 = vtanh.pop %v7962
        %v8027 = vtanh.pop %v7963
        %v8028 = vtanh.pop %v7964
        %v8029 = vtanh.pop %v7965
        %v8030 = vtanh.pop %v7966
        %v8031 = vtanh.pop %v7967
        %v8032 = vtanh.pop %v7968
        %v8033 = vtanh.pop %v7969
        %v8034 = vtanh.pop %v7970
        %v8035 = vtanh.pop %v7971
        %v8036 = vtanh.pop %v7972
        %v8037 = vtanh.pop %v7973
        %v8038 = vtanh.pop %v7974
        %v8039 = vtanh.pop %v7975
        %v8040 = vadd.f32 %v7976, 1.0
        %v8041 = vadd.f32 %v7977, 1.0
        %v8042 = vadd.f32 %v7978, 1.0
        %v8043 = vadd.f32 %v7979, 1.0
        %v8044 = vadd.f32 %v7980, 1.0
        %v8045 = vadd.f32 %v7981, 1.0
        %v8046 = vadd.f32 %v7982, 1.0
        %v8047 = vadd.f32 %v7983, 1.0
        %v8048 = vadd.f32 %v7984, 1.0
        %v8049 = vadd.f32 %v7985, 1.0
        %v8050 = vadd.f32 %v7986, 1.0
        %v8051 = vadd.f32 %v7987, 1.0
        %v8052 = vadd.f32 %v7988, 1.0
        %v8053 = vadd.f32 %v7989, 1.0
        %v8054 = vadd.f32 %v7990, 1.0
        %v8055 = vadd.f32 %v7991, 1.0
        %v8056 = vadd.f32 %v7992, 1.0
        %v8057 = vadd.f32 %v7993, 1.0
        %v8058 = vadd.f32 %v7994, 1.0
        %v8059 = vadd.f32 %v7995, 1.0
        %v8060 = vadd.f32 %v7996, 1.0
        %v8061 = vadd.f32 %v7997, 1.0
        %v8062 = vadd.f32 %v7998, 1.0
        %v8063 = vadd.f32 %v7999, 1.0
        %v8064 = vadd.f32 %v8000, 1.0
        %v8065 = vadd.f32 %v8001, 1.0
        %v8066 = vadd.f32 %v8002, 1.0
        %v8067 = vadd.f32 %v8003, 1.0
        %v8068 = vadd.f32 %v8004, 1.0
        %v8069 = vadd.f32 %v8005, 1.0
        %v8070 = vadd.f32 %v8006, 1.0
        %v8071 = vadd.f32 %v8007, 1.0
        %v8072 = vadd.f32 %v8008, 1.0
        %v8073 = vadd.f32 %v8009, 1.0
        %v8074 = vadd.f32 %v8010, 1.0
        %v8075 = vadd.f32 %v8011, 1.0
        %v8076 = vadd.f32 %v8012, 1.0
        %v8077 = vadd.f32 %v8013, 1.0
        %v8078 = vadd.f32 %v8014, 1.0
        %v8079 = vadd.f32 %v8015, 1.0
        %v8080 = vadd.f32 %v8016, 1.0
        %v8081 = vadd.f32 %v8017, 1.0
        %v8082 = vadd.f32 %v8018, 1.0
        %v8083 = vadd.f32 %v8019, 1.0
        %v8084 = vadd.f32 %v8020, 1.0
        %v8085 = vadd.f32 %v8021, 1.0
        %v8086 = vadd.f32 %v8022, 1.0
        %v8087 = vadd.f32 %v8023, 1.0
        %v8088 = vadd.f32 %v8024, 1.0
        %v8089 = vadd.f32 %v8025, 1.0
        %v8090 = vadd.f32 %v8026, 1.0
        %v8091 = vadd.f32 %v8027, 1.0
        %v8092 = vadd.f32 %v8028, 1.0
        %v8093 = vadd.f32 %v8029, 1.0
        %v8094 = vadd.f32 %v8030, 1.0
        %v8095 = vadd.f32 %v8031, 1.0
        %v8096 = vadd.f32 %v8032, 1.0
        %v8097 = vadd.f32 %v8033, 1.0
        %v8098 = vadd.f32 %v8034, 1.0
        %v8099 = vadd.f32 %v8035, 1.0
        %v8100 = vadd.f32 %v8036, 1.0
        %v8101 = vadd.f32 %v8037, 1.0
        %v8102 = vadd.f32 %v8038, 1.0
        %v8103 = vadd.f32 %v8039, 1.0
        %v8104 = vmul.f32 %v8040, 0.5
        %v8105 = vmul.f32 %v8041, 0.5
        %v8106 = vmul.f32 %v8042, 0.5
        %v8107 = vmul.f32 %v8043, 0.5
        %v8108 = vmul.f32 %v8044, 0.5
        %v8109 = vmul.f32 %v8045, 0.5
        %v8110 = vmul.f32 %v8046, 0.5
        %v8111 = vmul.f32 %v8047, 0.5
        %v8112 = vmul.f32 %v8048, 0.5
        %v8113 = vmul.f32 %v8049, 0.5
        %v8114 = vmul.f32 %v8050, 0.5
        %v8115 = vmul.f32 %v8051, 0.5
        %v8116 = vmul.f32 %v8052, 0.5
        %v8117 = vmul.f32 %v8053, 0.5
        %v8118 = vmul.f32 %v8054, 0.5
        %v8119 = vmul.f32 %v8055, 0.5
        %v8120 = vmul.f32 %v8056, 0.5
        %v8121 = vmul.f32 %v8057, 0.5
        %v8122 = vmul.f32 %v8058, 0.5
        %v8123 = vmul.f32 %v8059, 0.5
        %v8124 = vmul.f32 %v8060, 0.5
        %v8125 = vmul.f32 %v8061, 0.5
        %v8126 = vmul.f32 %v8062, 0.5
        %v8127 = vmul.f32 %v8063, 0.5
        %v8128 = vmul.f32 %v8064, 0.5
        %v8129 = vmul.f32 %v8065, 0.5
        %v8130 = vmul.f32 %v8066, 0.5
        %v8131 = vmul.f32 %v8067, 0.5
        %v8132 = vmul.f32 %v8068, 0.5
        %v8133 = vmul.f32 %v8069, 0.5
        %v8134 = vmul.f32 %v8070, 0.5
        %v8135 = vmul.f32 %v8071, 0.5
        %v8136 = vmul.f32 %v8072, 0.5
        %v8137 = vmul.f32 %v8073, 0.5
        %v8138 = vmul.f32 %v8074, 0.5
        %v8139 = vmul.f32 %v8075, 0.5
        %v8140 = vmul.f32 %v8076, 0.5
        %v8141 = vmul.f32 %v8077, 0.5
        %v8142 = vmul.f32 %v8078, 0.5
        %v8143 = vmul.f32 %v8079, 0.5
        %v8144 = vmul.f32 %v8080, 0.5
        %v8145 = vmul.f32 %v8081, 0.5
        %v8146 = vmul.f32 %v8082, 0.5
        %v8147 = vmul.f32 %v8083, 0.5
        %v8148 = vmul.f32 %v8084, 0.5
        %v8149 = vmul.f32 %v8085, 0.5
        %v8150 = vmul.f32 %v8086, 0.5
        %v8151 = vmul.f32 %v8087, 0.5
        %v8152 = vmul.f32 %v8088, 0.5
        %v8153 = vmul.f32 %v8089, 0.5
        %v8154 = vmul.f32 %v8090, 0.5
        %v8155 = vmul.f32 %v8091, 0.5
        %v8156 = vmul.f32 %v8092, 0.5
        %v8157 = vmul.f32 %v8093, 0.5
        %v8158 = vmul.f32 %v8094, 0.5
        %v8159 = vmul.f32 %v8095, 0.5
        %v8160 = vmul.f32 %v8096, 0.5
        %v8161 = vmul.f32 %v8097, 0.5
        %v8162 = vmul.f32 %v8098, 0.5
        %v8163 = vmul.f32 %v8099, 0.5
        %v8164 = vmul.f32 %v8100, 0.5
        %v8165 = vmul.f32 %v8101, 0.5
        %v8166 = vmul.f32 %v8102, 0.5
        %v8167 = vmul.f32 %v8103, 0.5
        %v8168 = vmul.f32 %v7465, %v8104
        %v8169 = vmul.f32 %v7467, %v8105
        %v8170 = vmul.f32 %v7578, %v8106
        %v8171 = vmul.f32 %v7580, %v8107
        %v8172 = vmul.f32 %v7469, %v8108
        %v8173 = vmul.f32 %v7471, %v8109
        %v8174 = vmul.f32 %v7582, %v8110
        %v8175 = vmul.f32 %v7584, %v8111
        %v8176 = vmul.f32 %v7475, %v8112
        %v8177 = vmul.f32 %v7477, %v8113
        %v8178 = vmul.f32 %v7588, %v8114
        %v8179 = vmul.f32 %v7590, %v8115
        %v8180 = vmul.f32 %v7479, %v8116
        %v8181 = vmul.f32 %v7481, %v8117
        %v8182 = vmul.f32 %v7592, %v8118
        %v8183 = vmul.f32 %v7594, %v8119
        %v8184 = vmul.f32 %v7485, %v8120
        %v8185 = vmul.f32 %v7487, %v8121
        %v8186 = vmul.f32 %v7598, %v8122
        %v8187 = vmul.f32 %v7600, %v8123
        %v8188 = vmul.f32 %v7489, %v8124
        %v8189 = vmul.f32 %v7491, %v8125
        %v8190 = vmul.f32 %v7602, %v8126
        %v8191 = vmul.f32 %v7604, %v8127
        %v8192 = vmul.f32 %v7495, %v8128
        %v8193 = vmul.f32 %v7497, %v8129
        %v8194 = vmul.f32 %v7608, %v8130
        %v8195 = vmul.f32 %v7610, %v8131
        %v8196 = vmul.f32 %v7499, %v8132
        %v8197 = vmul.f32 %v7501, %v8133
        %v8198 = vmul.f32 %v7612, %v8134
        %v8199 = vmul.f32 %v7614, %v8135
        %v8200 = vmul.f32 %v7505, %v8136
        %v8201 = vmul.f32 %v7507, %v8137
        %v8202 = vmul.f32 %v7618, %v8138
        %v8203 = vmul.f32 %v7620, %v8139
        %v8204 = vmul.f32 %v7509, %v8140
        %v8205 = vmul.f32 %v7511, %v8141
        %v8206 = vmul.f32 %v7622, %v8142
        %v8207 = vmul.f32 %v7624, %v8143
        %v8208 = vmul.f32 %v7515, %v8144
        %v8209 = vmul.f32 %v7517, %v8145
        %v8210 = vmul.f32 %v7628, %v8146
        %v8211 = vmul.f32 %v7630, %v8147
        %v8212 = vmul.f32 %v7519, %v8148
        %v8213 = vmul.f32 %v7521, %v8149
        %v8214 = vmul.f32 %v7632, %v8150
        %v8215 = vmul.f32 %v7634, %v8151
        %v8216 = vmul.f32 %v7525, %v8152
        %v8217 = vmul.f32 %v7527, %v8153
        %v8218 = vmul.f32 %v7638, %v8154
        %v8219 = vmul.f32 %v7640, %v8155
        %v8220 = vmul.f32 %v7529, %v8156
        %v8221 = vmul.f32 %v7531, %v8157
        %v8222 = vmul.f32 %v7642, %v8158
        %v8223 = vmul.f32 %v7644, %v8159
        %v8224 = vmul.f32 %v7535, %v8160
        %v8225 = vmul.f32 %v7537, %v8161
        %v8226 = vmul.f32 %v7648, %v8162
        %v8227 = vmul.f32 %v7650, %v8163
        %v8228 = vmul.f32 %v7539, %v8164
        %v8229 = vmul.f32 %v7541, %v8165
        %v8230 = vmul.f32 %v7652, %v8166
        %v8231 = vmul.f32 %v7654, %v8167
        %v8232 = vpack.c.bf16 %v8172, %v8168
        %v8233 = vpack.c.bf16 %v8173, %v8169
        %v8234 = vpack.c.bf16 %v8174, %v8170
        %v8235 = vpack.c.bf16 %v8175, %v8171
        %v8236 = vpack.c.bf16 %v8180, %v8176
        %v8237 = vpack.c.bf16 %v8181, %v8177
        %v8238 = vpack.c.bf16 %v8182, %v8178
        %v8239 = vpack.c.bf16 %v8183, %v8179
        %v8240 = vpack.c.bf16 %v8188, %v8184
        %v8241 = vpack.c.bf16 %v8189, %v8185
        %v8242 = vpack.c.bf16 %v8190, %v8186
        %v8243 = vpack.c.bf16 %v8191, %v8187
        %v8244 = vpack.c.bf16 %v8196, %v8192
        %v8245 = vpack.c.bf16 %v8197, %v8193
        %v8246 = vpack.c.bf16 %v8198, %v8194
        %v8247 = vpack.c.bf16 %v8199, %v8195
        %v8248 = vpack.c.bf16 %v8204, %v8200
        %v8249 = vpack.c.bf16 %v8205, %v8201
        %v8250 = vpack.c.bf16 %v8206, %v8202
        %v8251 = vpack.c.bf16 %v8207, %v8203
        %v8252 = vpack.c.bf16 %v8212, %v8208
        %v8253 = vpack.c.bf16 %v8213, %v8209
        %v8254 = vpack.c.bf16 %v8214, %v8210
        %v8255 = vpack.c.bf16 %v8215, %v8211
        %v8256 = vpack.c.bf16 %v8220, %v8216
        %v8257 = vpack.c.bf16 %v8221, %v8217
        %v8258 = vpack.c.bf16 %v8222, %v8218
        %v8259 = vpack.c.bf16 %v8223, %v8219
        %v8260 = vpack.c.bf16 %v8228, %v8224
        %v8261 = vpack.c.bf16 %v8229, %v8225
        %v8262 = vpack.c.bf16 %v8230, %v8226
        %v8263 = vpack.c.bf16 %v8231, %v8227
        %v8264 = vld [vmem:[#allocation28 + $0x200] sm:$0xff]
        %v8265 = vld [vmem:[#allocation28 + $0x208] sm:$0xff]
        %v8266 = vld [vmem:[#allocation28 + $0x210] sm:$0xff]
        %v8267 = vld [vmem:[#allocation28 + $0x218] sm:$0xff]
        %v8268 = vld [vmem:[#allocation28 + $0x220] sm:$0xff]
        %v8269 = vld [vmem:[#allocation28 + $0x228] sm:$0xff]
        %v8270 = vld [vmem:[#allocation28 + $0x230] sm:$0xff]
        %v8271 = vld [vmem:[#allocation28 + $0x238] sm:$0xff]
        %v8272 = vld [vmem:[#allocation28 + $0x240] sm:$0xff]
        %v8273 = vld [vmem:[#allocation28 + $0x248] sm:$0xff]
        %v8274 = vld [vmem:[#allocation28 + $0x250] sm:$0xff]
        %v8275 = vld [vmem:[#allocation28 + $0x258] sm:$0xff]
        %v8276 = vld [vmem:[#allocation28 + $0x260] sm:$0xff]
        %v8277 = vld [vmem:[#allocation28 + $0x268] sm:$0xff]
        %v8278 = vld [vmem:[#allocation28 + $0x270] sm:$0xff]
        %v8279 = vld [vmem:[#allocation28 + $0x278] sm:$0xff]
        %v8280 = vld [vmem:[#allocation28 + $0x280] sm:$0xff]
        %v8281 = vld [vmem:[#allocation28 + $0x288] sm:$0xff]
        %v8282 = vld [vmem:[#allocation28 + $0x290] sm:$0xff]
        %v8283 = vld [vmem:[#allocation28 + $0x298] sm:$0xff]
        %v8284 = vld [vmem:[#allocation28 + $0x2a0] sm:$0xff]
        %v8285 = vld [vmem:[#allocation28 + $0x2a8] sm:$0xff]
        %v8286 = vld [vmem:[#allocation28 + $0x2b0] sm:$0xff]
        %v8287 = vld [vmem:[#allocation28 + $0x2b8] sm:$0xff]
        %v8288 = vld [vmem:[#allocation28 + $0x2c0] sm:$0xff]
        %v8289 = vld [vmem:[#allocation28 + $0x2c8] sm:$0xff]
        %v8290 = vld [vmem:[#allocation28 + $0x2d0] sm:$0xff]
        %v8291 = vld [vmem:[#allocation28 + $0x2d8] sm:$0xff]
        %v8292 = vld [vmem:[#allocation28 + $0x2e0] sm:$0xff]
        %v8293 = vld [vmem:[#allocation28 + $0x2e8] sm:$0xff]
        %v8294 = vld [vmem:[#allocation28 + $0x2f0] sm:$0xff]
        %v8295 = vld [vmem:[#allocation28 + $0x2f8] sm:$0xff]
        %v8296 = vld [vmem:[#allocation28 + $0x300] sm:$0xff]
        %v8297 = vld [vmem:[#allocation28 + $0x308] sm:$0xff]
        %v8298 = vld [vmem:[#allocation28 + $0x310] sm:$0xff]
        %v8299 = vld [vmem:[#allocation28 + $0x318] sm:$0xff]
        %v8300 = vld [vmem:[#allocation28 + $0x320] sm:$0xff]
        %v8301 = vld [vmem:[#allocation28 + $0x328] sm:$0xff]
        %v8302 = vld [vmem:[#allocation28 + $0x330] sm:$0xff]
        %v8303 = vld [vmem:[#allocation28 + $0x338] sm:$0xff]
        %v8304 = vld [vmem:[#allocation28 + $0x340] sm:$0xff]
        %v8305 = vld [vmem:[#allocation28 + $0x348] sm:$0xff]
        %v8306 = vld [vmem:[#allocation28 + $0x350] sm:$0xff]
        %v8307 = vld [vmem:[#allocation28 + $0x358] sm:$0xff]
        %v8308 = vld [vmem:[#allocation28 + $0x360] sm:$0xff]
        %v8309 = vld [vmem:[#allocation28 + $0x368] sm:$0xff]
        %v8310 = vld [vmem:[#allocation28 + $0x370] sm:$0xff]
        %v8311 = vld [vmem:[#allocation28 + $0x378] sm:$0xff]
        %v8312 = vld [vmem:[#allocation28 + $0x380] sm:$0xff]
        %v8313 = vld [vmem:[#allocation28 + $0x388] sm:$0xff]
        %v8314 = vld [vmem:[#allocation28 + $0x390] sm:$0xff]
        %v8315 = vld [vmem:[#allocation28 + $0x398] sm:$0xff]
        %v8316 = vld [vmem:[#allocation28 + $0x3a0] sm:$0xff]
        %v8317 = vld [vmem:[#allocation28 + $0x3a8] sm:$0xff]
        %v8318 = vld [vmem:[#allocation28 + $0x3b0] sm:$0xff]
        %v8319 = vld [vmem:[#allocation28 + $0x3b8] sm:$0xff]
        %v8320 = vld [vmem:[#allocation28 + $0x3c0] sm:$0xff]
        %v8321 = vld [vmem:[#allocation28 + $0x3c8] sm:$0xff]
        %v8322 = vld [vmem:[#allocation28 + $0x3d0] sm:$0xff]
        %v8323 = vld [vmem:[#allocation28 + $0x3d8] sm:$0xff]
        %v8324 = vld [vmem:[#allocation28 + $0x3e0] sm:$0xff]
        %v8325 = vld [vmem:[#allocation28 + $0x3e8] sm:$0xff]
        %v8326 = vld [vmem:[#allocation28 + $0x3f0] sm:$0xff]
        %v8327 = vld [vmem:[#allocation28 + $0x3f8] sm:$0xff]
        %v8392 = vunpack.c.l.b16 %v8264
        %v8393 = vunpack.c.h.b16 %v8264
        %v8394 = vunpack.c.l.b16 %v8265
        %v8395 = vunpack.c.h.b16 %v8265
        %v8396 = vunpack.c.l.b16 %v8266
        %v8397 = vunpack.c.h.b16 %v8266
        %v8398 = vunpack.c.l.b16 %v8267
        %v8399 = vunpack.c.h.b16 %v8267
        %v8400 = vunpack.c.l.b16 %v8268
        %v8401 = vunpack.c.h.b16 %v8268
        %v8402 = vunpack.c.l.b16 %v8269
        %v8403 = vunpack.c.h.b16 %v8269
        %v8404 = vunpack.c.l.b16 %v8270
        %v8405 = vunpack.c.h.b16 %v8270
        %v8406 = vunpack.c.l.b16 %v8271
        %v8407 = vunpack.c.h.b16 %v8271
        %v8408 = vunpack.c.l.b16 %v8272
        %v8409 = vunpack.c.h.b16 %v8272
        %v8410 = vunpack.c.l.b16 %v8273
        %v8411 = vunpack.c.h.b16 %v8273
        %v8412 = vunpack.c.l.b16 %v8274
        %v8413 = vunpack.c.h.b16 %v8274
        %v8414 = vunpack.c.l.b16 %v8275
        %v8415 = vunpack.c.h.b16 %v8275
        %v8416 = vunpack.c.l.b16 %v8276
        %v8417 = vunpack.c.h.b16 %v8276
        %v8418 = vunpack.c.l.b16 %v8277
        %v8419 = vunpack.c.h.b16 %v8277
        %v8420 = vunpack.c.l.b16 %v8278
        %v8421 = vunpack.c.h.b16 %v8278
        %v8422 = vunpack.c.l.b16 %v8279
        %v8423 = vunpack.c.h.b16 %v8279
        %v8424 = vunpack.c.l.b16 %v8280
        %v8425 = vunpack.c.h.b16 %v8280
        %v8426 = vunpack.c.l.b16 %v8281
        %v8427 = vunpack.c.h.b16 %v8281
        %v8428 = vunpack.c.l.b16 %v8282
        %v8429 = vunpack.c.h.b16 %v8282
        %v8430 = vunpack.c.l.b16 %v8283
        %v8431 = vunpack.c.h.b16 %v8283
        %v8432 = vunpack.c.l.b16 %v8284
        %v8433 = vunpack.c.h.b16 %v8284
        %v8434 = vunpack.c.l.b16 %v8285
        %v8435 = vunpack.c.h.b16 %v8285
        %v8436 = vunpack.c.l.b16 %v8286
        %v8437 = vunpack.c.h.b16 %v8286
        %v8438 = vunpack.c.l.b16 %v8287
        %v8439 = vunpack.c.h.b16 %v8287
        %v8440 = vunpack.c.l.b16 %v8288
        %v8441 = vunpack.c.h.b16 %v8288
        %v8442 = vunpack.c.l.b16 %v8289
        %v8443 = vunpack.c.h.b16 %v8289
        %v8444 = vunpack.c.l.b16 %v8290
        %v8445 = vunpack.c.h.b16 %v8290
        %v8446 = vunpack.c.l.b16 %v8291
        %v8447 = vunpack.c.h.b16 %v8291
        %v8448 = vunpack.c.l.b16 %v8292
        %v8449 = vunpack.c.h.b16 %v8292
        %v8450 = vunpack.c.l.b16 %v8293
        %v8451 = vunpack.c.h.b16 %v8293
        %v8452 = vunpack.c.l.b16 %v8294
        %v8453 = vunpack.c.h.b16 %v8294
        %v8454 = vunpack.c.l.b16 %v8295
        %v8455 = vunpack.c.h.b16 %v8295
        %v8456 = vunpack.c.l.b16 %v8296
        %v8457 = vunpack.c.h.b16 %v8296
        %v8458 = vunpack.c.l.b16 %v8297
        %v8459 = vunpack.c.h.b16 %v8297
        %v8460 = vunpack.c.l.b16 %v8298
        %v8461 = vunpack.c.h.b16 %v8298
        %v8462 = vunpack.c.l.b16 %v8299
        %v8463 = vunpack.c.h.b16 %v8299
        %v8464 = vunpack.c.l.b16 %v8300
        %v8465 = vunpack.c.h.b16 %v8300
        %v8466 = vunpack.c.l.b16 %v8301
        %v8467 = vunpack.c.h.b16 %v8301
        %v8468 = vunpack.c.l.b16 %v8302
        %v8469 = vunpack.c.h.b16 %v8302
        %v8470 = vunpack.c.l.b16 %v8303
        %v8471 = vunpack.c.h.b16 %v8303
        %v8472 = vunpack.c.l.b16 %v8304
        %v8473 = vunpack.c.h.b16 %v8304
        %v8474 = vunpack.c.l.b16 %v8305
        %v8475 = vunpack.c.h.b16 %v8305
        %v8476 = vunpack.c.l.b16 %v8306
        %v8477 = vunpack.c.h.b16 %v8306
        %v8478 = vunpack.c.l.b16 %v8307
        %v8479 = vunpack.c.h.b16 %v8307
        %v8480 = vunpack.c.l.b16 %v8308
        %v8481 = vunpack.c.h.b16 %v8308
        %v8482 = vunpack.c.l.b16 %v8309
        %v8483 = vunpack.c.h.b16 %v8309
        %v8484 = vunpack.c.l.b16 %v8310
        %v8485 = vunpack.c.h.b16 %v8310
        %v8486 = vunpack.c.l.b16 %v8311
        %v8487 = vunpack.c.h.b16 %v8311
        %v8488 = vunpack.c.l.b16 %v8312
        %v8489 = vunpack.c.h.b16 %v8312
        %v8490 = vunpack.c.l.b16 %v8313
        %v8491 = vunpack.c.h.b16 %v8313
        %v8492 = vunpack.c.l.b16 %v8314
        %v8493 = vunpack.c.h.b16 %v8314
        %v8494 = vunpack.c.l.b16 %v8315
        %v8495 = vunpack.c.h.b16 %v8315
        %v8496 = vunpack.c.l.b16 %v8316
        %v8497 = vunpack.c.h.b16 %v8316
        %v8498 = vunpack.c.l.b16 %v8317
        %v8499 = vunpack.c.h.b16 %v8317
        %v8500 = vunpack.c.l.b16 %v8318
        %v8501 = vunpack.c.h.b16 %v8318
        %v8502 = vunpack.c.l.b16 %v8319
        %v8503 = vunpack.c.h.b16 %v8319
        %v8504 = vunpack.c.l.b16 %v8320
        %v8505 = vunpack.c.h.b16 %v8320
        %v8506 = vunpack.c.l.b16 %v8321
        %v8507 = vunpack.c.h.b16 %v8321
        %v8508 = vunpack.c.l.b16 %v8322
        %v8509 = vunpack.c.h.b16 %v8322
        %v8510 = vunpack.c.l.b16 %v8323
        %v8511 = vunpack.c.h.b16 %v8323
        %v8512 = vunpack.c.l.b16 %v8324
        %v8513 = vunpack.c.h.b16 %v8324
        %v8514 = vunpack.c.l.b16 %v8325
        %v8515 = vunpack.c.h.b16 %v8325
        %v8516 = vunpack.c.l.b16 %v8326
        %v8517 = vunpack.c.h.b16 %v8326
        %v8518 = vunpack.c.l.b16 %v8327
        %v8519 = vunpack.c.h.b16 %v8327
        %v8520 = vpack.c.b16 %v8394, %v8392
        %v8521 = vpack.c.b16 %v8395, %v8393
        %v8522 = vpack.c.b16 %v8398, %v8396
        %v8523 = vpack.c.b16 %v8399, %v8397
        %v8524 = vpack.c.b16 %v8402, %v8400
        %v8525 = vpack.c.b16 %v8403, %v8401
        %v8526 = vpack.c.b16 %v8406, %v8404
        %v8527 = vpack.c.b16 %v8407, %v8405
        %v8528 = vpack.c.b16 %v8410, %v8408
        %v8529 = vpack.c.b16 %v8411, %v8409
        %v8530 = vpack.c.b16 %v8414, %v8412
        %v8531 = vpack.c.b16 %v8415, %v8413
        %v8532 = vpack.c.b16 %v8418, %v8416
        %v8533 = vpack.c.b16 %v8419, %v8417
        %v8534 = vpack.c.b16 %v8422, %v8420
        %v8535 = vpack.c.b16 %v8423, %v8421
        %v8536 = vpack.c.b16 %v8426, %v8424
        %v8537 = vpack.c.b16 %v8427, %v8425
        %v8538 = vpack.c.b16 %v8430, %v8428
        %v8539 = vpack.c.b16 %v8431, %v8429
        %v8540 = vpack.c.b16 %v8434, %v8432
        %v8541 = vpack.c.b16 %v8435, %v8433
        %v8542 = vpack.c.b16 %v8438, %v8436
        %v8543 = vpack.c.b16 %v8439, %v8437
        %v8544 = vpack.c.b16 %v8442, %v8440
        %v8545 = vpack.c.b16 %v8443, %v8441
        %v8546 = vpack.c.b16 %v8446, %v8444
        %v8547 = vpack.c.b16 %v8447, %v8445
        %v8548 = vpack.c.b16 %v8450, %v8448
        %v8549 = vpack.c.b16 %v8451, %v8449
        %v8550 = vpack.c.b16 %v8454, %v8452
        %v8551 = vpack.c.b16 %v8455, %v8453
        %v8552 = vpack.c.b16 %v8458, %v8456
        %v8553 = vpack.c.b16 %v8459, %v8457
        %v8554 = vpack.c.b16 %v8462, %v8460
        %v8555 = vpack.c.b16 %v8463, %v8461
        %v8556 = vpack.c.b16 %v8466, %v8464
        %v8557 = vpack.c.b16 %v8467, %v8465
        %v8558 = vpack.c.b16 %v8470, %v8468
        %v8559 = vpack.c.b16 %v8471, %v8469
        %v8560 = vpack.c.b16 %v8474, %v8472
        %v8561 = vpack.c.b16 %v8475, %v8473
        %v8562 = vpack.c.b16 %v8478, %v8476
        %v8563 = vpack.c.b16 %v8479, %v8477
        %v8564 = vpack.c.b16 %v8482, %v8480
        %v8565 = vpack.c.b16 %v8483, %v8481
        %v8566 = vpack.c.b16 %v8486, %v8484
        %v8567 = vpack.c.b16 %v8487, %v8485
        %v8568 = vpack.c.b16 %v8490, %v8488
        %v8569 = vpack.c.b16 %v8491, %v8489
        %v8570 = vpack.c.b16 %v8494, %v8492
        %v8571 = vpack.c.b16 %v8495, %v8493
        %v8572 = vpack.c.b16 %v8498, %v8496
        %v8573 = vpack.c.b16 %v8499, %v8497
        %v8574 = vpack.c.b16 %v8502, %v8500
        %v8575 = vpack.c.b16 %v8503, %v8501
        %v8576 = vpack.c.b16 %v8506, %v8504
        %v8577 = vpack.c.b16 %v8507, %v8505
        %v8578 = vpack.c.b16 %v8510, %v8508
        %v8579 = vpack.c.b16 %v8511, %v8509
        %v8580 = vpack.c.b16 %v8514, %v8512
        %v8581 = vpack.c.b16 %v8515, %v8513
        %v8582 = vpack.c.b16 %v8518, %v8516
        %v8583 = vpack.c.b16 %v8519, %v8517
        %8648 = vmatprep.subr.bf16.mxu0 %v8521
        %8649 = vmatpush1.bf16.msra.mxu0 %v8520
        %8650 = vmatprep.subr.bf16.mxu0 %v8523
        %8651 = vmatpush1.bf16.msra.mxu0 %v8522
        %8652 = vmatprep.subr.bf16.mxu0 %v8525
        %8653 = vmatpush1.bf16.msra.mxu0 %v8524
        %8654 = vmatprep.subr.bf16.mxu0 %v8527
        %8655 = vmatpush1.bf16.msra.mxu0 %v8526
        %8656 = vmatprep.subr.bf16.mxu0 %v8529
        %8657 = vmatpush1.bf16.msra.mxu0 %v8528
        %8658 = vmatprep.subr.bf16.mxu0 %v8531
        %8659 = vmatpush1.bf16.msra.mxu0 %v8530
        %8660 = vmatprep.subr.bf16.mxu0 %v8533
        %8661 = vmatpush1.bf16.msra.mxu0 %v8532
        %8662 = vmatprep.subr.bf16.mxu0 %v8535
        %8663 = vmatpush1.bf16.msra.mxu0 %v8534
        %8664 = vmatprep.subr.bf16.mxu0 %v8537
        %8665 = vmatpush1.bf16.msra.mxu0 %v8536
        %8666 = vmatprep.subr.bf16.mxu0 %v8539
        %8667 = vmatpush1.bf16.msra.mxu0 %v8538
        %8668 = vmatprep.subr.bf16.mxu0 %v8541
        %8669 = vmatpush1.bf16.msra.mxu0 %v8540
        %8670 = vmatprep.subr.bf16.mxu0 %v8543
        %8671 = vmatpush1.bf16.msra.mxu0 %v8542
        %8672 = vmatprep.subr.bf16.mxu0 %v8545
        %8673 = vmatpush1.bf16.msra.mxu0 %v8544
        %8674 = vmatprep.subr.bf16.mxu0 %v8547
        %8675 = vmatpush1.bf16.msra.mxu0 %v8546
        %8676 = vmatprep.subr.bf16.mxu0 %v8549
        %8677 = vmatpush1.bf16.msra.mxu0 %v8548
        %8678 = vmatprep.subr.bf16.mxu0 %v8551
        %8679 = vmatpush1.bf16.msra.mxu0 %v8550
        %8680 = vmatprep.mubr.bf16.mxu0 %v8233
        %8681 = vmatmul.mubr.bf16.gmra.mrb[0].mxu0 %v8232
        %v8682 = vpop.f32.mrb[0].mxu0
        %v8683 = vadd.f32 0.0, %v8682
        %v8684 = vpop.f32.mrb[0].mxu0
        %v8685 = vadd.f32 0.0, %v8684
        %v8686 = vpop.f32.mrb[0].mxu0
        %v8687 = vadd.f32 0.0, %v8686
        %v8688 = vpop.f32.mrb[0].mxu0
        %v8689 = vadd.f32 0.0, %v8688
        %8690 = vmatprep.mubr.bf16.mxu0 %v8237
        %8691 = vmatmul.mubr.bf16.gmra.mrb[0].mxu0 %v8236
        %v8692 = vpop.f32.mrb[0].mxu0
        %v8693 = vadd.f32 0.0, %v8692
        %v8694 = vpop.f32.mrb[0].mxu0
        %v8695 = vadd.f32 0.0, %v8694
        %v8696 = vpop.f32.mrb[0].mxu0
        %v8697 = vadd.f32 0.0, %v8696
        %v8698 = vpop.f32.mrb[0].mxu0
        %v8699 = vadd.f32 0.0, %v8698
        %8700 = vmatprep.mubr.bf16.mxu0 %v8241
        %8701 = vmatmul.mubr.bf16.gmra.mrb[0].mxu0 %v8240
        %v8702 = vpop.f32.mrb[0].mxu0
        %v8703 = vadd.f32 0.0, %v8702
        %v8704 = vpop.f32.mrb[0].mxu0
        %v8705 = vadd.f32 0.0, %v8704
        %v8706 = vpop.f32.mrb[0].mxu0
        %v8707 = vadd.f32 0.0, %v8706
        %v8708 = vpop.f32.mrb[0].mxu0
        %v8709 = vadd.f32 0.0, %v8708
        %8710 = vmatprep.mubr.bf16.mxu0 %v8245
        %8711 = vmatmul.mubr.bf16.gmra.mrb[0].mxu0 %v8244
        %v8712 = vpop.f32.mrb[0].mxu0
        %v8713 = vadd.f32 0.0, %v8712
        %v8714 = vpop.f32.mrb[0].mxu0
        %v8715 = vadd.f32 0.0, %v8714
        %v8716 = vpop.f32.mrb[0].mxu0
        %v8717 = vadd.f32 0.0, %v8716
        %v8718 = vpop.f32.mrb[0].mxu0
        %v8719 = vadd.f32 0.0, %v8718
        %8720 = vmatprep.mubr.bf16.mxu0 %v8249
        %8721 = vmatmul.mubr.bf16.gmra.mrb[0].mxu0 %v8248
        %v8722 = vpop.f32.mrb[0].mxu0
        %v8723 = vadd.f32 0.0, %v8722
        %v8724 = vpop.f32.mrb[0].mxu0
        %v8725 = vadd.f32 0.0, %v8724
        %v8726 = vpop.f32.mrb[0].mxu0
        %v8727 = vadd.f32 0.0, %v8726
        %v8728 = vpop.f32.mrb[0].mxu0
        %v8729 = vadd.f32 0.0, %v8728
        %8730 = vmatprep.mubr.bf16.mxu0 %v8253
        %8731 = vmatmul.mubr.bf16.gmra.mrb[0].mxu0 %v8252
        %v8732 = vpop.f32.mrb[0].mxu0
        %v8733 = vadd.f32 0.0, %v8732
        %v8734 = vpop.f32.mrb[0].mxu0
        %v8735 = vadd.f32 0.0, %v8734
        %v8736 = vpop.f32.mrb[0].mxu0
        %v8737 = vadd.f32 0.0, %v8736
        %v8738 = vpop.f32.mrb[0].mxu0
        %v8739 = vadd.f32 0.0, %v8738
        %8740 = vmatprep.mubr.bf16.mxu0 %v8257
        %8741 = vmatmul.mubr.bf16.gmra.mrb[0].mxu0 %v8256
        %v8742 = vpop.f32.mrb[0].mxu0
        %v8743 = vadd.f32 0.0, %v8742
        %v8744 = vpop.f32.mrb[0].mxu0
        %v8745 = vadd.f32 0.0, %v8744
        %v8746 = vpop.f32.mrb[0].mxu0
        %v8747 = vadd.f32 0.0, %v8746
        %v8748 = vpop.f32.mrb[0].mxu0
        %v8749 = vadd.f32 0.0, %v8748
        %8750 = vmatprep.mubr.bf16.mxu0 %v8261
        %8751 = vmatmul.mubr.bf16.gmra.mrb[0].mxu0 %v8260
        %v8752 = vpop.f32.mrb[0].mxu0
        %v8753 = vadd.f32 0.0, %v8752
        %v8754 = vpop.f32.mrb[0].mxu0
        %v8755 = vadd.f32 0.0, %v8754
        %v8756 = vpop.f32.mrb[0].mxu0
        %v8757 = vadd.f32 0.0, %v8756
        %v8758 = vpop.f32.mrb[0].mxu0
        %v8759 = vadd.f32 0.0, %v8758
        %8760 = vdwg.mxu0
        %8761 = vmatprep.subr.bf16.mxu0 %v8553
        %8762 = vmatpush1.bf16.msra.mxu0 %v8552
        %8763 = vmatprep.subr.bf16.mxu0 %v8555
        %8764 = vmatpush1.bf16.msra.mxu0 %v8554
        %8765 = vmatprep.subr.bf16.mxu0 %v8557
        %8766 = vmatpush1.bf16.msra.mxu0 %v8556
        %8767 = vmatprep.subr.bf16.mxu0 %v8559
        %8768 = vmatpush1.bf16.msra.mxu0 %v8558
        %8769 = vmatprep.subr.bf16.mxu0 %v8561
        %8770 = vmatpush1.bf16.msra.mxu0 %v8560
        %8771 = vmatprep.subr.bf16.mxu0 %v8563
        %8772 = vmatpush1.bf16.msra.mxu0 %v8562
        %8773 = vmatprep.subr.bf16.mxu0 %v8565
        %8774 = vmatpush1.bf16.msra.mxu0 %v8564
        %8775 = vmatprep.subr.bf16.mxu0 %v8567
        %8776 = vmatpush1.bf16.msra.mxu0 %v8566
        %8777 = vmatprep.subr.bf16.mxu0 %v8569
        %8778 = vmatpush1.bf16.msra.mxu0 %v8568
        %8779 = vmatprep.subr.bf16.mxu0 %v8571
        %8780 = vmatpush1.bf16.msra.mxu0 %v8570
        %8781 = vmatprep.subr.bf16.mxu0 %v8573
        %8782 = vmatpush1.bf16.msra.mxu0 %v8572
        %8783 = vmatprep.subr.bf16.mxu0 %v8575
        %8784 = vmatpush1.bf16.msra.mxu0 %v8574
        %8785 = vmatprep.subr.bf16.mxu0 %v8577
        %8786 = vmatpush1.bf16.msra.mxu0 %v8576
        %8787 = vmatprep.subr.bf16.mxu0 %v8579
        %8788 = vmatpush1.bf16.msra.mxu0 %v8578
        %8789 = vmatprep.subr.bf16.mxu0 %v8581
        %8790 = vmatpush1.bf16.msra.mxu0 %v8580
        %8791 = vmatprep.subr.bf16.mxu0 %v8583
        %8792 = vmatpush1.bf16.msra.mxu0 %v8582
        %8793 = vmatprep.mubr.bf16.mxu0 %v8235
        %8794 = vmatmul.mubr.bf16.gmra.mrb[0].mxu0 %v8234
        %v8795 = vpop.f32.mrb[0].mxu0
        %v8796 = vadd.f32 %v8683, %v8795
        %v8797 = vpop.f32.mrb[0].mxu0
        %v8798 = vadd.f32 %v8685, %v8797
        %v8799 = vpop.f32.mrb[0].mxu0
        %v8800 = vadd.f32 %v8687, %v8799
        %v8801 = vpop.f32.mrb[0].mxu0
        %v8802 = vadd.f32 %v8689, %v8801
        %8803 = vmatprep.mubr.bf16.mxu0 %v8239
        %8804 = vmatmul.mubr.bf16.gmra.mrb[0].mxu0 %v8238
        %v8805 = vpop.f32.mrb[0].mxu0
        %v8806 = vadd.f32 %v8693, %v8805
        %v8807 = vpop.f32.mrb[0].mxu0
        %v8808 = vadd.f32 %v8695, %v8807
        %v8809 = vpop.f32.mrb[0].mxu0
        %v8810 = vadd.f32 %v8697, %v8809
        %v8811 = vpop.f32.mrb[0].mxu0
        %v8812 = vadd.f32 %v8699, %v8811
        %8813 = vmatprep.mubr.bf16.mxu0 %v8243
        %8814 = vmatmul.mubr.bf16.gmra.mrb[0].mxu0 %v8242
        %v8815 = vpop.f32.mrb[0].mxu0
        %v8816 = vadd.f32 %v8703, %v8815
        %v8817 = vpop.f32.mrb[0].mxu0
        %v8818 = vadd.f32 %v8705, %v8817
        %v8819 = vpop.f32.mrb[0].mxu0
        %v8820 = vadd.f32 %v8707, %v8819
        %v8821 = vpop.f32.mrb[0].mxu0
        %v8822 = vadd.f32 %v8709, %v8821
        %8823 = vmatprep.mubr.bf16.mxu0 %v8247
        %8824 = vmatmul.mubr.bf16.gmra.mrb[0].mxu0 %v8246
        %v8825 = vpop.f32.mrb[0].mxu0
        %v8826 = vadd.f32 %v8713, %v8825
        %v8827 = vpop.f32.mrb[0].mxu0
        %v8828 = vadd.f32 %v8715, %v8827
        %v8829 = vpop.f32.mrb[0].mxu0
        %v8830 = vadd.f32 %v8717, %v8829
        %v8831 = vpop.f32.mrb[0].mxu0
        %v8832 = vadd.f32 %v8719, %v8831
        %8833 = vmatprep.mubr.bf16.mxu0 %v8251
        %8834 = vmatmul.mubr.bf16.gmra.mrb[0].mxu0 %v8250
        %v8835 = vpop.f32.mrb[0].mxu0
        %v8836 = vadd.f32 %v8723, %v8835
        %v8837 = vpop.f32.mrb[0].mxu0
        %v8838 = vadd.f32 %v8725, %v8837
        %v8839 = vpop.f32.mrb[0].mxu0
        %v8840 = vadd.f32 %v8727, %v8839
        %v8841 = vpop.f32.mrb[0].mxu0
        %v8842 = vadd.f32 %v8729, %v8841
        %8843 = vmatprep.mubr.bf16.mxu0 %v8255
        %8844 = vmatmul.mubr.bf16.gmra.mrb[0].mxu0 %v8254
        %v8845 = vpop.f32.mrb[0].mxu0
        %v8846 = vadd.f32 %v8733, %v8845
        %v8847 = vpop.f32.mrb[0].mxu0
        %v8848 = vadd.f32 %v8735, %v8847
        %v8849 = vpop.f32.mrb[0].mxu0
        %v8850 = vadd.f32 %v8737, %v8849
        %v8851 = vpop.f32.mrb[0].mxu0
        %v8852 = vadd.f32 %v8739, %v8851
        %8853 = vmatprep.mubr.bf16.mxu0 %v8259
        %8854 = vmatmul.mubr.bf16.gmra.mrb[0].mxu0 %v8258
        %v8855 = vpop.f32.mrb[0].mxu0
        %v8856 = vadd.f32 %v8743, %v8855
        %v8857 = vpop.f32.mrb[0].mxu0
        %v8858 = vadd.f32 %v8745, %v8857
        %v8859 = vpop.f32.mrb[0].mxu0
        %v8860 = vadd.f32 %v8747, %v8859
        %v8861 = vpop.f32.mrb[0].mxu0
        %v8862 = vadd.f32 %v8749, %v8861
        %8863 = vmatprep.mubr.bf16.mxu0 %v8263
        %8864 = vmatmul.mubr.bf16.gmra.mrb[0].mxu0 %v8262
        %v8865 = vpop.f32.mrb[0].mxu0
        %v8866 = vadd.f32 %v8753, %v8865
        %v8867 = vpop.f32.mrb[0].mxu0
        %v8868 = vadd.f32 %v8755, %v8867
        %v8869 = vpop.f32.mrb[0].mxu0
        %v8870 = vadd.f32 %v8757, %v8869
        %v8871 = vpop.f32.mrb[0].mxu0
        %v8872 = vadd.f32 %v8759, %v8871
        %8873 = vdwg.mxu0
        %v8938 = vunpack.c.l.b16 %v6960
        %v8939 = vunpack.c.h.b16 %v6960
        %v8940 = vunpack.c.l.b16 %v6961
        %v8941 = vunpack.c.h.b16 %v6961
        %v8942 = vunpack.c.l.b16 %v6962
        %v8943 = vunpack.c.h.b16 %v6962
        %v8944 = vunpack.c.l.b16 %v6963
        %v8945 = vunpack.c.h.b16 %v6963
        %v8946 = vunpack.c.l.b16 %v6964
        %v8947 = vunpack.c.h.b16 %v6964
        %v8948 = vunpack.c.l.b16 %v6965
        %v8949 = vunpack.c.h.b16 %v6965
        %v8950 = vunpack.c.l.b16 %v6966
        %v8951 = vunpack.c.h.b16 %v6966
        %v8952 = vunpack.c.l.b16 %v6967
        %v8953 = vunpack.c.h.b16 %v6967
        %v8954 = vunpack.c.l.b16 %v6968
        %v8955 = vunpack.c.h.b16 %v6968
        %v8956 = vunpack.c.l.b16 %v6969
        %v8957 = vunpack.c.h.b16 %v6969
        %v8958 = vunpack.c.l.b16 %v6970
        %v8959 = vunpack.c.h.b16 %v6970
        %v8960 = vunpack.c.l.b16 %v6971
        %v8961 = vunpack.c.h.b16 %v6971
        %v8962 = vunpack.c.l.b16 %v6972
        %v8963 = vunpack.c.h.b16 %v6972
        %v8964 = vunpack.c.l.b16 %v6973
        %v8965 = vunpack.c.h.b16 %v6973
        %v8966 = vunpack.c.l.b16 %v6974
        %v8967 = vunpack.c.h.b16 %v6974
        %v8968 = vunpack.c.l.b16 %v6975
        %v8969 = vunpack.c.h.b16 %v6975
        %v8970 = vunpack.c.l.b16 %v6976
        %v8971 = vunpack.c.h.b16 %v6976
        %v8972 = vunpack.c.l.b16 %v6977
        %v8973 = vunpack.c.h.b16 %v6977
        %v8974 = vunpack.c.l.b16 %v6978
        %v8975 = vunpack.c.h.b16 %v6978
        %v8976 = vunpack.c.l.b16 %v6979
        %v8977 = vunpack.c.h.b16 %v6979
        %v8978 = vunpack.c.l.b16 %v6980
        %v8979 = vunpack.c.h.b16 %v6980
        %v8980 = vunpack.c.l.b16 %v6981
        %v8981 = vunpack.c.h.b16 %v6981
        %v8982 = vunpack.c.l.b16 %v6982
        %v8983 = vunpack.c.h.b16 %v6982
        %v8984 = vunpack.c.l.b16 %v6983
        %v8985 = vunpack.c.h.b16 %v6983
        %v8986 = vunpack.c.l.b16 %v6984
        %v8987 = vunpack.c.h.b16 %v6984
        %v8988 = vunpack.c.l.b16 %v6985
        %v8989 = vunpack.c.h.b16 %v6985
        %v8990 = vunpack.c.l.b16 %v6986
        %v8991 = vunpack.c.h.b16 %v6986
        %v8992 = vunpack.c.l.b16 %v6987
        %v8993 = vunpack.c.h.b16 %v6987
        %v8994 = vunpack.c.l.b16 %v6988
        %v8995 = vunpack.c.h.b16 %v6988
        %v8996 = vunpack.c.l.b16 %v6989
        %v8997 = vunpack.c.h.b16 %v6989
        %v8998 = vunpack.c.l.b16 %v6990
        %v8999 = vunpack.c.h.b16 %v6990
        %v9000 = vunpack.c.l.b16 %v6991
        %v9001 = vunpack.c.h.b16 %v6991
        %v9002 = vunpack.c.l.b16 %v6992
        %v9003 = vunpack.c.h.b16 %v6992
        %v9004 = vunpack.c.l.b16 %v6993
        %v9005 = vunpack.c.h.b16 %v6993
        %v9006 = vunpack.c.l.b16 %v6994
        %v9007 = vunpack.c.h.b16 %v6994
        %v9008 = vunpack.c.l.b16 %v6995
        %v9009 = vunpack.c.h.b16 %v6995
        %v9010 = vunpack.c.l.b16 %v6996
        %v9011 = vunpack.c.h.b16 %v6996
        %v9012 = vunpack.c.l.b16 %v6997
        %v9013 = vunpack.c.h.b16 %v6997
        %v9014 = vunpack.c.l.b16 %v6998
        %v9015 = vunpack.c.h.b16 %v6998
        %v9016 = vunpack.c.l.b16 %v6999
        %v9017 = vunpack.c.h.b16 %v6999
        %v9018 = vunpack.c.l.b16 %v7000
        %v9019 = vunpack.c.h.b16 %v7000
        %v9020 = vunpack.c.l.b16 %v7001
        %v9021 = vunpack.c.h.b16 %v7001
        %v9022 = vunpack.c.l.b16 %v7002
        %v9023 = vunpack.c.h.b16 %v7002
        %v9024 = vunpack.c.l.b16 %v7003
        %v9025 = vunpack.c.h.b16 %v7003
        %v9026 = vunpack.c.l.b16 %v7004
        %v9027 = vunpack.c.h.b16 %v7004
        %v9028 = vunpack.c.l.b16 %v7005
        %v9029 = vunpack.c.h.b16 %v7005
        %v9030 = vunpack.c.l.b16 %v7006
        %v9031 = vunpack.c.h.b16 %v7006
        %v9032 = vunpack.c.l.b16 %v7007
        %v9033 = vunpack.c.h.b16 %v7007
        %v9034 = vunpack.c.l.b16 %v7008
        %v9035 = vunpack.c.h.b16 %v7008
        %v9036 = vunpack.c.l.b16 %v7009
        %v9037 = vunpack.c.h.b16 %v7009
        %v9038 = vunpack.c.l.b16 %v7010
        %v9039 = vunpack.c.h.b16 %v7010
        %v9040 = vunpack.c.l.b16 %v7011
        %v9041 = vunpack.c.h.b16 %v7011
        %v9042 = vunpack.c.l.b16 %v7012
        %v9043 = vunpack.c.h.b16 %v7012
        %v9044 = vunpack.c.l.b16 %v7013
        %v9045 = vunpack.c.h.b16 %v7013
        %v9046 = vunpack.c.l.b16 %v7014
        %v9047 = vunpack.c.h.b16 %v7014
        %v9048 = vunpack.c.l.b16 %v7015
        %v9049 = vunpack.c.h.b16 %v7015
        %v9050 = vunpack.c.l.b16 %v7016
        %v9051 = vunpack.c.h.b16 %v7016
        %v9052 = vunpack.c.l.b16 %v7017
        %v9053 = vunpack.c.h.b16 %v7017
        %v9054 = vunpack.c.l.b16 %v7018
        %v9055 = vunpack.c.h.b16 %v7018
        %v9056 = vunpack.c.l.b16 %v7019
        %v9057 = vunpack.c.h.b16 %v7019
        %v9058 = vunpack.c.l.b16 %v7020
        %v9059 = vunpack.c.h.b16 %v7020
        %v9060 = vunpack.c.l.b16 %v7021
        %v9061 = vunpack.c.h.b16 %v7021
        %v9062 = vunpack.c.l.b16 %v7022
        %v9063 = vunpack.c.h.b16 %v7022
        %v9064 = vunpack.c.l.b16 %v7023
        %v9065 = vunpack.c.h.b16 %v7023
        %v9066 = vpack.c.b16 %v8940, %v8938
        %v9067 = vpack.c.b16 %v8941, %v8939
        %v9068 = vpack.c.b16 %v8944, %v8942
        %v9069 = vpack.c.b16 %v8945, %v8943
        %v9070 = vpack.c.b16 %v8948, %v8946
        %v9071 = vpack.c.b16 %v8949, %v8947
        %v9072 = vpack.c.b16 %v8952, %v8950
        %v9073 = vpack.c.b16 %v8953, %v8951
        %v9074 = vpack.c.b16 %v8956, %v8954
        %v9075 = vpack.c.b16 %v8957, %v8955
        %v9076 = vpack.c.b16 %v8960, %v8958
        %v9077 = vpack.c.b16 %v8961, %v8959
        %v9078 = vpack.c.b16 %v8964, %v8962
        %v9079 = vpack.c.b16 %v8965, %v8963
        %v9080 = vpack.c.b16 %v8968, %v8966
        %v9081 = vpack.c.b16 %v8969, %v8967
        %v9082 = vpack.c.b16 %v8972, %v8970
        %v9083 = vpack.c.b16 %v8973, %v8971
        %v9084 = vpack.c.b16 %v8976, %v8974
        %v9085 = vpack.c.b16 %v8977, %v8975
        %v9086 = vpack.c.b16 %v8980, %v8978
        %v9087 = vpack.c.b16 %v8981, %v8979
        %v9088 = vpack.c.b16 %v8984, %v8982
        %v9089 = vpack.c.b16 %v8985, %v8983
        %v9090 = vpack.c.b16 %v8988, %v8986
        %v9091 = vpack.c.b16 %v8989, %v8987
        %v9092 = vpack.c.b16 %v8992, %v8990
        %v9093 = vpack.c.b16 %v8993, %v8991
        %v9094 = vpack.c.b16 %v8996, %v8994
        %v9095 = vpack.c.b16 %v8997, %v8995
        %v9096 = vpack.c.b16 %v9000, %v8998
        %v9097 = vpack.c.b16 %v9001, %v8999
        %v9098 = vpack.c.b16 %v9004, %v9002
        %v9099 = vpack.c.b16 %v9005, %v9003
        %v9100 = vpack.c.b16 %v9008, %v9006
        %v9101 = vpack.c.b16 %v9009, %v9007
        %v9102 = vpack.c.b16 %v9012, %v9010
        %v9103 = vpack.c.b16 %v9013, %v9011
        %v9104 = vpack.c.b16 %v9016, %v9014
        %v9105 = vpack.c.b16 %v9017, %v9015
        %v9106 = vpack.c.b16 %v9020, %v9018
        %v9107 = vpack.c.b16 %v9021, %v9019
        %v9108 = vpack.c.b16 %v9024, %v9022
        %v9109 = vpack.c.b16 %v9025, %v9023
        %v9110 = vpack.c.b16 %v9028, %v9026
        %v9111 = vpack.c.b16 %v9029, %v9027
        %v9112 = vpack.c.b16 %v9032, %v9030
        %v9113 = vpack.c.b16 %v9033, %v9031
        %v9114 = vpack.c.b16 %v9036, %v9034
        %v9115 = vpack.c.b16 %v9037, %v9035
        %v9116 = vpack.c.b16 %v9040, %v9038
        %v9117 = vpack.c.b16 %v9041, %v9039
        %v9118 = vpack.c.b16 %v9044, %v9042
        %v9119 = vpack.c.b16 %v9045, %v9043
        %v9120 = vpack.c.b16 %v9048, %v9046
        %v9121 = vpack.c.b16 %v9049, %v9047
        %v9122 = vpack.c.b16 %v9052, %v9050
        %v9123 = vpack.c.b16 %v9053, %v9051
        %v9124 = vpack.c.b16 %v9056, %v9054
        %v9125 = vpack.c.b16 %v9057, %v9055
        %v9126 = vpack.c.b16 %v9060, %v9058
        %v9127 = vpack.c.b16 %v9061, %v9059
        %v9128 = vpack.c.b16 %v9064, %v9062
        %v9129 = vpack.c.b16 %v9065, %v9063
        %9194 = vmatprep.subr.bf16.mxu0 %v9067
        %9195 = vmatpush1.bf16.msra.mxu0 %v9066
        %9196 = vmatprep.subr.bf16.mxu0 %v9069
        %9197 = vmatpush1.bf16.msra.mxu0 %v9068
        %9198 = vmatprep.subr.bf16.mxu0 %v9071
        %9199 = vmatpush1.bf16.msra.mxu0 %v9070
        %9200 = vmatprep.subr.bf16.mxu0 %v9073
        %9201 = vmatpush1.bf16.msra.mxu0 %v9072
        %9202 = vmatprep.subr.bf16.mxu0 %v9075
        %9203 = vmatpush1.bf16.msra.mxu0 %v9074
        %9204 = vmatprep.subr.bf16.mxu0 %v9077
        %9205 = vmatpush1.bf16.msra.mxu0 %v9076
        %9206 = vmatprep.subr.bf16.mxu0 %v9079
        %9207 = vmatpush1.bf16.msra.mxu0 %v9078
        %9208 = vmatprep.subr.bf16.mxu0 %v9081
        %9209 = vmatpush1.bf16.msra.mxu0 %v9080
        %9210 = vmatprep.subr.bf16.mxu0 %v9083
        %9211 = vmatpush1.bf16.msra.mxu0 %v9082
        %9212 = vmatprep.subr.bf16.mxu0 %v9085
        %9213 = vmatpush1.bf16.msra.mxu0 %v9084
        %9214 = vmatprep.subr.bf16.mxu0 %v9087
        %9215 = vmatpush1.bf16.msra.mxu0 %v9086
        %9216 = vmatprep.subr.bf16.mxu0 %v9089
        %9217 = vmatpush1.bf16.msra.mxu0 %v9088
        %9218 = vmatprep.subr.bf16.mxu0 %v9091
        %9219 = vmatpush1.bf16.msra.mxu0 %v9090
        %9220 = vmatprep.subr.bf16.mxu0 %v9093
        %9221 = vmatpush1.bf16.msra.mxu0 %v9092
        %9222 = vmatprep.subr.bf16.mxu0 %v9095
        %9223 = vmatpush1.bf16.msra.mxu0 %v9094
        %9224 = vmatprep.subr.bf16.mxu0 %v9097
        %9225 = vmatpush1.bf16.msra.mxu0 %v9096
        %9226 = vmatprep.mubr.bf16.mxu0 %v6929
        %9227 = vmatmul.mubr.bf16.gmra.mrb[0].mxu0 %v6928
        %v9228 = vpop.f32.mrb[0].mxu0
        %v9229 = vadd.f32 %v8796, %v9228
        %v9230 = vpop.f32.mrb[0].mxu0
        %v9231 = vadd.f32 %v8798, %v9230
        %v9232 = vpop.f32.mrb[0].mxu0
        %v9233 = vadd.f32 %v8800, %v9232
        %v9234 = vpop.f32.mrb[0].mxu0
        %v9235 = vadd.f32 %v8802, %v9234
        %9236 = vmatprep.mubr.bf16.mxu0 %v6933
        %9237 = vmatmul.mubr.bf16.gmra.mrb[0].mxu0 %v6932
        %v9238 = vpop.f32.mrb[0].mxu0
        %v9239 = vadd.f32 %v8806, %v9238
        %v9240 = vpop.f32.mrb[0].mxu0
        %v9241 = vadd.f32 %v8808, %v9240
        %v9242 = vpop.f32.mrb[0].mxu0
        %v9243 = vadd.f32 %v8810, %v9242
        %v9244 = vpop.f32.mrb[0].mxu0
        %v9245 = vadd.f32 %v8812, %v9244
        %9246 = vmatprep.mubr.bf16.mxu0 %v6937
        %9247 = vmatmul.mubr.bf16.gmra.mrb[0].mxu0 %v6936
        %v9248 = vpop.f32.mrb[0].mxu0
        %v9249 = vadd.f32 %v8816, %v9248
        %v9250 = vpop.f32.mrb[0].mxu0
        %v9251 = vadd.f32 %v8818, %v9250
        %v9252 = vpop.f32.mrb[0].mxu0
        %v9253 = vadd.f32 %v8820, %v9252
        %v9254 = vpop.f32.mrb[0].mxu0
        %v9255 = vadd.f32 %v8822, %v9254
        %9256 = vmatprep.mubr.bf16.mxu0 %v6941
        %9257 = vmatmul.mubr.bf16.gmra.mrb[0].mxu0 %v6940
        %v9258 = vpop.f32.mrb[0].mxu0
        %v9259 = vadd.f32 %v8826, %v9258
        %v9260 = vpop.f32.mrb[0].mxu0
        %v9261 = vadd.f32 %v8828, %v9260
        %v9262 = vpop.f32.mrb[0].mxu0
        %v9263 = vadd.f32 %v8830, %v9262
        %v9264 = vpop.f32.mrb[0].mxu0
        %v9265 = vadd.f32 %v8832, %v9264
        %9266 = vmatprep.mubr.bf16.mxu0 %v6945
        %9267 = vmatmul.mubr.bf16.gmra.mrb[0].mxu0 %v6944
        %v9268 = vpop.f32.mrb[0].mxu0
        %v9269 = vadd.f32 %v8836, %v9268
        %v9270 = vpop.f32.mrb[0].mxu0
        %v9271 = vadd.f32 %v8838, %v9270
        %v9272 = vpop.f32.mrb[0].mxu0
        %v9273 = vadd.f32 %v8840, %v9272
        %v9274 = vpop.f32.mrb[0].mxu0
        %v9275 = vadd.f32 %v8842, %v9274
        %9276 = vmatprep.mubr.bf16.mxu0 %v6949
        %9277 = vmatmul.mubr.bf16.gmra.mrb[0].mxu0 %v6948
        %v9278 = vpop.f32.mrb[0].mxu0
        %v9279 = vadd.f32 %v8846, %v9278
        %v9280 = vpop.f32.mrb[0].mxu0
        %v9281 = vadd.f32 %v8848, %v9280
        %v9282 = vpop.f32.mrb[0].mxu0
        %v9283 = vadd.f32 %v8850, %v9282
        %v9284 = vpop.f32.mrb[0].mxu0
        %v9285 = vadd.f32 %v8852, %v9284
        %9286 = vmatprep.mubr.bf16.mxu0 %v6953
        %9287 = vmatmul.mubr.bf16.gmra.mrb[0].mxu0 %v6952
        %v9288 = vpop.f32.mrb[0].mxu0
        %v9289 = vadd.f32 %v8856, %v9288
        %v9290 = vpop.f32.mrb[0].mxu0
        %v9291 = vadd.f32 %v8858, %v9290
        %v9292 = vpop.f32.mrb[0].mxu0
        %v9293 = vadd.f32 %v8860, %v9292
        %v9294 = vpop.f32.mrb[0].mxu0
        %v9295 = vadd.f32 %v8862, %v9294
        %9296 = vmatprep.mubr.bf16.mxu0 %v6957
        %9297 = vmatmul.mubr.bf16.gmra.mrb[0].mxu0 %v6956
        %v9298 = vpop.f32.mrb[0].mxu0
        %v9299 = vadd.f32 %v8866, %v9298
        %v9300 = vpop.f32.mrb[0].mxu0
        %v9301 = vadd.f32 %v8868, %v9300
        %v9302 = vpop.f32.mrb[0].mxu0
        %v9303 = vadd.f32 %v8870, %v9302
        %v9304 = vpop.f32.mrb[0].mxu0
        %v9305 = vadd.f32 %v8872, %v9304
        %9306 = vdwg.mxu0
        %9307 = vmatprep.subr.bf16.mxu0 %v9099
        %9308 = vmatpush1.bf16.msra.mxu0 %v9098
        %9309 = vmatprep.subr.bf16.mxu0 %v9101
        %9310 = vmatpush1.bf16.msra.mxu0 %v9100
        %9311 = vmatprep.subr.bf16.mxu0 %v9103
        %9312 = vmatpush1.bf16.msra.mxu0 %v9102
        %9313 = vmatprep.subr.bf16.mxu0 %v9105
        %9314 = vmatpush1.bf16.msra.mxu0 %v9104
        %9315 = vmatprep.subr.bf16.mxu0 %v9107
        %9316 = vmatpush1.bf16.msra.mxu0 %v9106
        %9317 = vmatprep.subr.bf16.mxu0 %v9109
        %9318 = vmatpush1.bf16.msra.mxu0 %v9108
        %9319 = vmatprep.subr.bf16.mxu0 %v9111
        %9320 = vmatpush1.bf16.msra.mxu0 %v9110
        %9321 = vmatprep.subr.bf16.mxu0 %v9113
        %9322 = vmatpush1.bf16.msra.mxu0 %v9112
        %9323 = vmatprep.subr.bf16.mxu0 %v9115
        %9324 = vmatpush1.bf16.msra.mxu0 %v9114
        %9325 = vmatprep.subr.bf16.mxu0 %v9117
        %9326 = vmatpush1.bf16.msra.mxu0 %v9116
        %9327 = vmatprep.subr.bf16.mxu0 %v9119
        %9328 = vmatpush1.bf16.msra.mxu0 %v9118
        %9329 = vmatprep.subr.bf16.mxu0 %v9121
        %9330 = vmatpush1.bf16.msra.mxu0 %v9120
        %9331 = vmatprep.subr.bf16.mxu0 %v9123
        %9332 = vmatpush1.bf16.msra.mxu0 %v9122
        %9333 = vmatprep.subr.bf16.mxu0 %v9125
        %9334 = vmatpush1.bf16.msra.mxu0 %v9124
        %9335 = vmatprep.subr.bf16.mxu0 %v9127
        %9336 = vmatpush1.bf16.msra.mxu0 %v9126
        %9337 = vmatprep.subr.bf16.mxu0 %v9129
        %9338 = vmatpush1.bf16.msra.mxu0 %v9128
        %9339 = vmatprep.mubr.bf16.mxu0 %v6931
        %9340 = vmatmul.mubr.bf16.gmra.mrb[0].mxu0 %v6930
        %v9341 = vpop.f32.mrb[0].mxu0
        %v9342 = vadd.f32 %v9229, %v9341
        %v9343 = vpop.f32.mrb[0].mxu0
        %v9344 = vadd.f32 %v9231, %v9343
        %v9345 = vpop.f32.mrb[0].mxu0
        %v9346 = vadd.f32 %v9233, %v9345
        %v9347 = vpop.f32.mrb[0].mxu0
        %v9348 = vadd.f32 %v9235, %v9347
        %9349 = vmatprep.mubr.bf16.mxu0 %v6935
        %9350 = vmatmul.mubr.bf16.gmra.mrb[0].mxu0 %v6934
        %v9351 = vpop.f32.mrb[0].mxu0
        %v9352 = vadd.f32 %v9239, %v9351
        %v9353 = vpop.f32.mrb[0].mxu0
        %v9354 = vadd.f32 %v9241, %v9353
        %v9355 = vpop.f32.mrb[0].mxu0
        %v9356 = vadd.f32 %v9243, %v9355
        %v9357 = vpop.f32.mrb[0].mxu0
        %v9358 = vadd.f32 %v9245, %v9357
        %9359 = vmatprep.mubr.bf16.mxu0 %v6939
        %9360 = vmatmul.mubr.bf16.gmra.mrb[0].mxu0 %v6938
        %v9361 = vpop.f32.mrb[0].mxu0
        %v9362 = vadd.f32 %v9249, %v9361
        %v9363 = vpop.f32.mrb[0].mxu0
        %v9364 = vadd.f32 %v9251, %v9363
        %v9365 = vpop.f32.mrb[0].mxu0
        %v9366 = vadd.f32 %v9253, %v9365
        %v9367 = vpop.f32.mrb[0].mxu0
        %v9368 = vadd.f32 %v9255, %v9367
        %9369 = vmatprep.mubr.bf16.mxu0 %v6943
        %9370 = vmatmul.mubr.bf16.gmra.mrb[0].mxu0 %v6942
        %v9371 = vpop.f32.mrb[0].mxu0
        %v9372 = vadd.f32 %v9259, %v9371
        %v9373 = vpop.f32.mrb[0].mxu0
        %v9374 = vadd.f32 %v9261, %v9373
        %v9375 = vpop.f32.mrb[0].mxu0
        %v9376 = vadd.f32 %v9263, %v9375
        %v9377 = vpop.f32.mrb[0].mxu0
        %v9378 = vadd.f32 %v9265, %v9377
        %9379 = vmatprep.mubr.bf16.mxu0 %v6947
        %9380 = vmatmul.mubr.bf16.gmra.mrb[0].mxu0 %v6946
        %v9381 = vpop.f32.mrb[0].mxu0
        %v9382 = vadd.f32 %v9269, %v9381
        %v9383 = vpop.f32.mrb[0].mxu0
        %v9384 = vadd.f32 %v9271, %v9383
        %v9385 = vpop.f32.mrb[0].mxu0
        %v9386 = vadd.f32 %v9273, %v9385
        %v9387 = vpop.f32.mrb[0].mxu0
        %v9388 = vadd.f32 %v9275, %v9387
        %9389 = vmatprep.mubr.bf16.mxu0 %v6951
        %9390 = vmatmul.mubr.bf16.gmra.mrb[0].mxu0 %v6950
        %v9391 = vpop.f32.mrb[0].mxu0
        %v9392 = vadd.f32 %v9279, %v9391
        %v9393 = vpop.f32.mrb[0].mxu0
        %v9394 = vadd.f32 %v9281, %v9393
        %v9395 = vpop.f32.mrb[0].mxu0
        %v9396 = vadd.f32 %v9283, %v9395
        %v9397 = vpop.f32.mrb[0].mxu0
        %v9398 = vadd.f32 %v9285, %v9397
        %9399 = vmatprep.mubr.bf16.mxu0 %v6955
        %9400 = vmatmul.mubr.bf16.gmra.mrb[0].mxu0 %v6954
        %v9401 = vpop.f32.mrb[0].mxu0
        %v9402 = vadd.f32 %v9289, %v9401
        %v9403 = vpop.f32.mrb[0].mxu0
        %v9404 = vadd.f32 %v9291, %v9403
        %v9405 = vpop.f32.mrb[0].mxu0
        %v9406 = vadd.f32 %v9293, %v9405
        %v9407 = vpop.f32.mrb[0].mxu0
        %v9408 = vadd.f32 %v9295, %v9407
        %9409 = vmatprep.mubr.bf16.mxu0 %v6959
        %9410 = vmatmul.mubr.bf16.gmra.mrb[0].mxu0 %v6958
        %v9411 = vpop.f32.mrb[0].mxu0
        %v9412 = vadd.f32 %v9299, %v9411
        %v9413 = vpop.f32.mrb[0].mxu0
        %v9414 = vadd.f32 %v9301, %v9413
        %v9415 = vpop.f32.mrb[0].mxu0
        %v9416 = vadd.f32 %v9303, %v9415
        %v9417 = vpop.f32.mrb[0].mxu0
        %v9418 = vadd.f32 %v9305, %v9417
        %9419 = vdwg.mxu0
        %v9420 = vld [vmem:[#allocation29] sm:$0x3]
        %v9422 = vlaneseq
        %v9423 = vshrl.u32 %v9422, 7
        %v9424 = vsub.s32 0, %v9423
        %v9425 = vrot.slane %v9420, %v9424
        %v9426 = vlaneseq
        %v9427 = vshrl.u32 %v9426, 7
        %v9428 = vsub.s32 1, %v9427
        %v9429 = vrot.slane %v9420, %v9428
        %v9432 = vadd.f32 %v9342, %v9425
        %v9433 = vadd.f32 %v9344, %v9429
        %v9434 = vadd.f32 %v9346, %v9425
        %v9435 = vadd.f32 %v9348, %v9429
        %v9436 = vadd.f32 %v9352, %v9425
        %v9437 = vadd.f32 %v9354, %v9429
        %v9438 = vadd.f32 %v9356, %v9425
        %v9439 = vadd.f32 %v9358, %v9429
        %v9440 = vadd.f32 %v9362, %v9425
        %v9441 = vadd.f32 %v9364, %v9429
        %v9442 = vadd.f32 %v9366, %v9425
        %v9443 = vadd.f32 %v9368, %v9429
        %v9444 = vadd.f32 %v9372, %v9425
        %v9445 = vadd.f32 %v9374, %v9429
        %v9446 = vadd.f32 %v9376, %v9425
        %v9447 = vadd.f32 %v9378, %v9429
        %v9448 = vadd.f32 %v9382, %v9425
        %v9449 = vadd.f32 %v9384, %v9429
        %v9450 = vadd.f32 %v9386, %v9425
        %v9451 = vadd.f32 %v9388, %v9429
        %v9452 = vadd.f32 %v9392, %v9425
        %v9453 = vadd.f32 %v9394, %v9429
        %v9454 = vadd.f32 %v9396, %v9425
        %v9455 = vadd.f32 %v9398, %v9429
        %v9456 = vadd.f32 %v9402, %v9425
        %v9457 = vadd.f32 %v9404, %v9429
        %v9458 = vadd.f32 %v9406, %v9425
        %v9459 = vadd.f32 %v9408, %v9429
        %v9460 = vadd.f32 %v9412, %v9425
        %v9461 = vadd.f32 %v9414, %v9429
        %v9462 = vadd.f32 %v9416, %v9425
        %v9463 = vadd.f32 %v9418, %v9429
        %v9464 = vadd.f32 %v5672, %v9432
        %v9465 = vadd.f32 %v5673, %v9433
        %v9466 = vadd.f32 %v5674, %v9434
        %v9467 = vadd.f32 %v5675, %v9435
        %v9468 = vadd.f32 %v5676, %v9436
        %v9469 = vadd.f32 %v5677, %v9437
        %v9470 = vadd.f32 %v5678, %v9438
        %v9471 = vadd.f32 %v5679, %v9439
        %v9472 = vadd.f32 %v5680, %v9440
        %v9473 = vadd.f32 %v5681, %v9441
        %v9474 = vadd.f32 %v5682, %v9442
        %v9475 = vadd.f32 %v5683, %v9443
        %v9476 = vadd.f32 %v5684, %v9444
        %v9477 = vadd.f32 %v5685, %v9445
        %v9478 = vadd.f32 %v5686, %v9446
        %v9479 = vadd.f32 %v5687, %v9447
        %v9480 = vadd.f32 %v5688, %v9448
        %v9481 = vadd.f32 %v5689, %v9449
        %v9482 = vadd.f32 %v5690, %v9450
        %v9483 = vadd.f32 %v5691, %v9451
        %v9484 = vadd.f32 %v5692, %v9452
        %v9485 = vadd.f32 %v5693, %v9453
        %v9486 = vadd.f32 %v5694, %v9454
        %v9487 = vadd.f32 %v5695, %v9455
        %v9488 = vadd.f32 %v5696, %v9456
        %v9489 = vadd.f32 %v5697, %v9457
        %v9490 = vadd.f32 %v5698, %v9458
        %v9491 = vadd.f32 %v5699, %v9459
        %v9492 = vadd.f32 %v5700, %v9460
        %v9493 = vadd.f32 %v5701, %v9461
        %v9494 = vadd.f32 %v5702, %v9462
        %v9495 = vadd.f32 %v5703, %v9463
        %v9496 = vld [vmem:[#allocation31] sm:$0x3]
        %v9497 = vld [vmem:[#allocation32] sm:$0x3]
        %v9498 = vadd.f32 %v9464, %v9465
        %9499 = vadd.xlane.f32.xlu0 %v9498
        %v9500 = vpop.xlane.xlu0 %9499
        %v9501 = vadd.f32 %v9466, %v9467
        %9502 = vadd.xlane.f32.xlu0 %v9501
        %v9503 = vpop.xlane.xlu0 %9502
        %v9504 = vadd.f32 %v9468, %v9469
        %9505 = vadd.xlane.f32.xlu0 %v9504
        %v9506 = vpop.xlane.xlu0 %9505
        %v9507 = vadd.f32 %v9470, %v9471
        %9508 = vadd.xlane.f32.xlu0 %v9507
        %v9509 = vpop.xlane.xlu0 %9508
        %v9510 = vadd.f32 %v9472, %v9473
        %9511 = vadd.xlane.f32.xlu0 %v9510
        %v9512 = vpop.xlane.xlu0 %9511
        %v9513 = vadd.f32 %v9474, %v9475
        %9514 = vadd.xlane.f32.xlu0 %v9513
        %v9515 = vpop.xlane.xlu0 %9514
        %v9516 = vadd.f32 %v9476, %v9477
        %9517 = vadd.xlane.f32.xlu0 %v9516
        %v9518 = vpop.xlane.xlu0 %9517
        %v9519 = vadd.f32 %v9478, %v9479
        %9520 = vadd.xlane.f32.xlu0 %v9519
        %v9521 = vpop.xlane.xlu0 %9520
        %v9522 = vadd.f32 %v9480, %v9481
        %9523 = vadd.xlane.f32.xlu0 %v9522
        %v9524 = vpop.xlane.xlu0 %9523
        %v9525 = vadd.f32 %v9482, %v9483
        %9526 = vadd.xlane.f32.xlu0 %v9525
        %v9527 = vpop.xlane.xlu0 %9526
        %v9528 = vadd.f32 %v9484, %v9485
        %9529 = vadd.xlane.f32.xlu0 %v9528
        %v9530 = vpop.xlane.xlu0 %9529
        %v9531 = vadd.f32 %v9486, %v9487
        %9532 = vadd.xlane.f32.xlu0 %v9531
        %v9533 = vpop.xlane.xlu0 %9532
        %v9534 = vadd.f32 %v9488, %v9489
        %9535 = vadd.xlane.f32.xlu0 %v9534
        %v9536 = vpop.xlane.xlu0 %9535
        %v9537 = vadd.f32 %v9490, %v9491
        %9538 = vadd.xlane.f32.xlu0 %v9537
        %v9539 = vpop.xlane.xlu0 %9538
        %v9540 = vadd.f32 %v9492, %v9493
        %9541 = vadd.xlane.f32.xlu0 %v9540
        %v9542 = vpop.xlane.xlu0 %9541
        %v9543 = vadd.f32 %v9494, %v9495
        %9544 = vadd.xlane.f32.xlu0 %v9543
        %v9545 = vpop.xlane.xlu0 %9544
        %v9546 = vmul.f32 %v9500, %v5409
        %v9547 = vmul.f32 %v9503, %v5409
        %v9548 = vmul.f32 %v9506, %v5409
        %v9549 = vmul.f32 %v9509, %v5409
        %v9550 = vmul.f32 %v9512, %v5409
        %v9551 = vmul.f32 %v9515, %v5409
        %v9552 = vmul.f32 %v9518, %v5409
        %v9553 = vmul.f32 %v9521, %v5409
        %v9554 = vmul.f32 %v9524, %v5409
        %v9555 = vmul.f32 %v9527, %v5409
        %v9556 = vmul.f32 %v9530, %v5409
        %v9557 = vmul.f32 %v9533, %v5409
        %v9558 = vmul.f32 %v9536, %v5409
        %v9559 = vmul.f32 %v9539, %v5409
        %v9560 = vmul.f32 %v9542, %v5409
        %v9561 = vmul.f32 %v9545, %v5409
        %v9562 = vsub.f32 %v9464, %v9546
        %v9563 = vsub.f32 %v9465, %v9546
        %v9564 = vsub.f32 %v9466, %v9547
        %v9565 = vsub.f32 %v9467, %v9547
        %v9566 = vsub.f32 %v9468, %v9548
        %v9567 = vsub.f32 %v9469, %v9548
        %v9568 = vsub.f32 %v9470, %v9549
        %v9569 = vsub.f32 %v9471, %v9549
        %v9570 = vsub.f32 %v9472, %v9550
        %v9571 = vsub.f32 %v9473, %v9550
        %v9572 = vsub.f32 %v9474, %v9551
        %v9573 = vsub.f32 %v9475, %v9551
        %v9574 = vsub.f32 %v9476, %v9552
        %v9575 = vsub.f32 %v9477, %v9552
        %v9576 = vsub.f32 %v9478, %v9553
        %v9577 = vsub.f32 %v9479, %v9553
        %v9578 = vsub.f32 %v9480, %v9554
        %v9579 = vsub.f32 %v9481, %v9554
        %v9580 = vsub.f32 %v9482, %v9555
        %v9581 = vsub.f32 %v9483, %v9555
        %v9582 = vsub.f32 %v9484, %v9556
        %v9583 = vsub.f32 %v9485, %v9556
        %v9584 = vsub.f32 %v9486, %v9557
        %v9585 = vsub.f32 %v9487, %v9557
        %v9586 = vsub.f32 %v9488, %v9558
        %v9587 = vsub.f32 %v9489, %v9558
        %v9588 = vsub.f32 %v9490, %v9559
        %v9589 = vsub.f32 %v9491, %v9559
        %v9590 = vsub.f32 %v9492, %v9560
        %v9591 = vsub.f32 %v9493, %v9560
        %v9592 = vsub.f32 %v9494, %v9561
        %v9593 = vsub.f32 %v9495, %v9561
        %v9594 = vmul.f32 %v9562, %v9562
        %v9595 = vmul.f32 %v9563, %v9563
        %v9596 = vmul.f32 %v9564, %v9564
        %v9597 = vmul.f32 %v9565, %v9565
        %v9598 = vmul.f32 %v9566, %v9566
        %v9599 = vmul.f32 %v9567, %v9567
        %v9600 = vmul.f32 %v9568, %v9568
        %v9601 = vmul.f32 %v9569, %v9569
        %v9602 = vmul.f32 %v9570, %v9570
        %v9603 = vmul.f32 %v9571, %v9571
        %v9604 = vmul.f32 %v9572, %v9572
        %v9605 = vmul.f32 %v9573, %v9573
        %v9606 = vmul.f32 %v9574, %v9574
        %v9607 = vmul.f32 %v9575, %v9575
        %v9608 = vmul.f32 %v9576, %v9576
        %v9609 = vmul.f32 %v9577, %v9577
        %v9610 = vmul.f32 %v9578, %v9578
        %v9611 = vmul.f32 %v9579, %v9579
        %v9612 = vmul.f32 %v9580, %v9580
        %v9613 = vmul.f32 %v9581, %v9581
        %v9614 = vmul.f32 %v9582, %v9582
        %v9615 = vmul.f32 %v9583, %v9583
        %v9616 = vmul.f32 %v9584, %v9584
        %v9617 = vmul.f32 %v9585, %v9585
        %v9618 = vmul.f32 %v9586, %v9586
        %v9619 = vmul.f32 %v9587, %v9587
        %v9620 = vmul.f32 %v9588, %v9588
        %v9621 = vmul.f32 %v9589, %v9589
        %v9622 = vmul.f32 %v9590, %v9590
        %v9623 = vmul.f32 %v9591, %v9591
        %v9624 = vmul.f32 %v9592, %v9592
        %v9625 = vmul.f32 %v9593, %v9593
        %v9626 = vadd.f32 %v9594, %v9595
        %9627 = vadd.xlane.f32.xlu0 %v9626
        %v9628 = vpop.xlane.xlu0 %9627
        %v9629 = vadd.f32 %v9596, %v9597
        %9630 = vadd.xlane.f32.xlu0 %v9629
        %v9631 = vpop.xlane.xlu0 %9630
        %v9632 = vadd.f32 %v9598, %v9599
        %9633 = vadd.xlane.f32.xlu0 %v9632
        %v9634 = vpop.xlane.xlu0 %9633
        %v9635 = vadd.f32 %v9600, %v9601
        %9636 = vadd.xlane.f32.xlu0 %v9635
        %v9637 = vpop.xlane.xlu0 %9636
        %v9638 = vadd.f32 %v9602, %v9603
        %9639 = vadd.xlane.f32.xlu0 %v9638
        %v9640 = vpop.xlane.xlu0 %9639
        %v9641 = vadd.f32 %v9604, %v9605
        %9642 = vadd.xlane.f32.xlu0 %v9641
        %v9643 = vpop.xlane.xlu0 %9642
        %v9644 = vadd.f32 %v9606, %v9607
        %9645 = vadd.xlane.f32.xlu0 %v9644
        %v9646 = vpop.xlane.xlu0 %9645
        %v9647 = vadd.f32 %v9608, %v9609
        %9648 = vadd.xlane.f32.xlu0 %v9647
        %v9649 = vpop.xlane.xlu0 %9648
        %v9650 = vadd.f32 %v9610, %v9611
        %9651 = vadd.xlane.f32.xlu0 %v9650
        %v9652 = vpop.xlane.xlu0 %9651
        %v9653 = vadd.f32 %v9612, %v9613
        %9654 = vadd.xlane.f32.xlu0 %v9653
        %v9655 = vpop.xlane.xlu0 %9654
        %v9656 = vadd.f32 %v9614, %v9615
        %9657 = vadd.xlane.f32.xlu0 %v9656
        %v9658 = vpop.xlane.xlu0 %9657
        %v9659 = vadd.f32 %v9616, %v9617
        %9660 = vadd.xlane.f32.xlu0 %v9659
        %v9661 = vpop.xlane.xlu0 %9660
        %v9662 = vadd.f32 %v9618, %v9619
        %9663 = vadd.xlane.f32.xlu0 %v9662
        %v9664 = vpop.xlane.xlu0 %9663
        %v9665 = vadd.f32 %v9620, %v9621
        %9666 = vadd.xlane.f32.xlu0 %v9665
        %v9667 = vpop.xlane.xlu0 %9666
        %v9668 = vadd.f32 %v9622, %v9623
        %9669 = vadd.xlane.f32.xlu0 %v9668
        %v9670 = vpop.xlane.xlu0 %9669
        %v9671 = vadd.f32 %v9624, %v9625
        %9672 = vadd.xlane.f32.xlu0 %v9671
        %v9673 = vpop.xlane.xlu0 %9672
        %v9674 = vmul.f32 %v9628, %v5409
        %v9675 = vmul.f32 %v9631, %v5409
        %v9676 = vmul.f32 %v9634, %v5409
        %v9677 = vmul.f32 %v9637, %v5409
        %v9678 = vmul.f32 %v9640, %v5409
        %v9679 = vmul.f32 %v9643, %v5409
        %v9680 = vmul.f32 %v9646, %v5409
        %v9681 = vmul.f32 %v9649, %v5409
        %v9682 = vmul.f32 %v9652, %v5409
        %v9683 = vmul.f32 %v9655, %v5409
        %v9684 = vmul.f32 %v9658, %v5409
        %v9685 = vmul.f32 %v9661, %v5409
        %v9686 = vmul.f32 %v9664, %v5409
        %v9687 = vmul.f32 %v9667, %v5409
        %v9688 = vmul.f32 %v9670, %v5409
        %v9689 = vmul.f32 %v9673, %v5409
        %v9690 = vadd.f32 %v9674, 1e-12
        %v9691 = vadd.f32 %v9675, 1e-12
        %v9692 = vadd.f32 %v9676, 1e-12
        %v9693 = vadd.f32 %v9677, 1e-12
        %v9694 = vadd.f32 %v9678, 1e-12
        %v9695 = vadd.f32 %v9679, 1e-12
        %v9696 = vadd.f32 %v9680, 1e-12
        %v9697 = vadd.f32 %v9681, 1e-12
        %v9698 = vadd.f32 %v9682, 1e-12
        %v9699 = vadd.f32 %v9683, 1e-12
        %v9700 = vadd.f32 %v9684, 1e-12
        %v9701 = vadd.f32 %v9685, 1e-12
        %v9702 = vadd.f32 %v9686, 1e-12
        %v9703 = vadd.f32 %v9687, 1e-12
        %v9704 = vadd.f32 %v9688, 1e-12
        %v9705 = vadd.f32 %v9689, 1e-12
        %v9706 = vrsqrt.pop %v9690
        %v9707 = vrsqrt.pop %v9691
        %v9708 = vrsqrt.pop %v9692
        %v9709 = vrsqrt.pop %v9693
        %v9710 = vrsqrt.pop %v9694
        %v9711 = vrsqrt.pop %v9695
        %v9712 = vrsqrt.pop %v9696
        %v9713 = vrsqrt.pop %v9697
        %v9714 = vrsqrt.pop %v9698
        %v9715 = vrsqrt.pop %v9699
        %v9716 = vrsqrt.pop %v9700
        %v9717 = vrsqrt.pop %v9701
        %v9718 = vrsqrt.pop %v9702
        %v9719 = vrsqrt.pop %v9703
        %v9720 = vrsqrt.pop %v9704
        %v9721 = vrsqrt.pop %v9705
        %v9722 = vmul.f32 %v9562, %v9706
        %v9723 = vmul.f32 %v9563, %v9706
        %v9724 = vmul.f32 %v9564, %v9707
        %v9725 = vmul.f32 %v9565, %v9707
        %v9726 = vmul.f32 %v9566, %v9708
        %v9727 = vmul.f32 %v9567, %v9708
        %v9728 = vmul.f32 %v9568, %v9709
        %v9729 = vmul.f32 %v9569, %v9709
        %v9730 = vmul.f32 %v9570, %v9710
        %v9731 = vmul.f32 %v9571, %v9710
        %v9732 = vmul.f32 %v9572, %v9711
        %v9733 = vmul.f32 %v9573, %v9711
        %v9734 = vmul.f32 %v9574, %v9712
        %v9735 = vmul.f32 %v9575, %v9712
        %v9736 = vmul.f32 %v9576, %v9713
        %v9737 = vmul.f32 %v9577, %v9713
        %v9738 = vmul.f32 %v9578, %v9714
        %v9739 = vmul.f32 %v9579, %v9714
        %v9740 = vmul.f32 %v9580, %v9715
        %v9741 = vmul.f32 %v9581, %v9715
        %v9742 = vmul.f32 %v9582, %v9716
        %v9743 = vmul.f32 %v9583, %v9716
        %v9744 = vmul.f32 %v9584, %v9717
        %v9745 = vmul.f32 %v9585, %v9717
        %v9746 = vmul.f32 %v9586, %v9718
        %v9747 = vmul.f32 %v9587, %v9718
        %v9748 = vmul.f32 %v9588, %v9719
        %v9749 = vmul.f32 %v9589, %v9719
        %v9750 = vmul.f32 %v9590, %v9720
        %v9751 = vmul.f32 %v9591, %v9720
        %v9752 = vmul.f32 %v9592, %v9721
        %v9753 = vmul.f32 %v9593, %v9721
        %v9755 = vlaneseq
        %v9756 = vshrl.u32 %v9755, 7
        %v9757 = vsub.s32 0, %v9756
        %v9758 = vrot.slane %v9496, %v9757
        %v9759 = vlaneseq
        %v9760 = vshrl.u32 %v9759, 7
        %v9761 = vsub.s32 1, %v9760
        %v9762 = vrot.slane %v9496, %v9761
        %v9765 = vmul.f32 %v9722, %v9758
        %v9766 = vmul.f32 %v9723, %v9762
        %v9767 = vmul.f32 %v9724, %v9758
        %v9768 = vmul.f32 %v9725, %v9762
        %v9769 = vmul.f32 %v9726, %v9758
        %v9770 = vmul.f32 %v9727, %v9762
        %v9771 = vmul.f32 %v9728, %v9758
        %v9772 = vmul.f32 %v9729, %v9762
        %v9773 = vmul.f32 %v9730, %v9758
        %v9774 = vmul.f32 %v9731, %v9762
        %v9775 = vmul.f32 %v9732, %v9758
        %v9776 = vmul.f32 %v9733, %v9762
        %v9777 = vmul.f32 %v9734, %v9758
        %v9778 = vmul.f32 %v9735, %v9762
        %v9779 = vmul.f32 %v9736, %v9758
        %v9780 = vmul.f32 %v9737, %v9762
        %v9781 = vmul.f32 %v9738, %v9758
        %v9782 = vmul.f32 %v9739, %v9762
        %v9783 = vmul.f32 %v9740, %v9758
        %v9784 = vmul.f32 %v9741, %v9762
        %v9785 = vmul.f32 %v9742, %v9758
        %v9786 = vmul.f32 %v9743, %v9762
        %v9787 = vmul.f32 %v9744, %v9758
        %v9788 = vmul.f32 %v9745, %v9762
        %v9789 = vmul.f32 %v9746, %v9758
        %v9790 = vmul.f32 %v9747, %v9762
        %v9791 = vmul.f32 %v9748, %v9758
        %v9792 = vmul.f32 %v9749, %v9762
        %v9793 = vmul.f32 %v9750, %v9758
        %v9794 = vmul.f32 %v9751, %v9762
        %v9795 = vmul.f32 %v9752, %v9758
        %v9796 = vmul.f32 %v9753, %v9762
        %v9798 = vlaneseq
        %v9799 = vshrl.u32 %v9798, 7
        %v9800 = vsub.s32 0, %v9799
        %v9801 = vrot.slane %v9497, %v9800
        %v9802 = vlaneseq
        %v9803 = vshrl.u32 %v9802, 7
        %v9804 = vsub.s32 1, %v9803
        %v9805 = vrot.slane %v9497, %v9804
        %v9808 = vadd.f32 %v9765, %v9801
        %v9809 = vadd.f32 %v9766, %v9805
        %v9810 = vadd.f32 %v9767, %v9801
        %v9811 = vadd.f32 %v9768, %v9805
        %v9812 = vadd.f32 %v9769, %v9801
        %v9813 = vadd.f32 %v9770, %v9805
        %v9814 = vadd.f32 %v9771, %v9801
        %v9815 = vadd.f32 %v9772, %v9805
        %v9816 = vadd.f32 %v9773, %v9801
        %v9817 = vadd.f32 %v9774, %v9805
        %v9818 = vadd.f32 %v9775, %v9801
        %v9819 = vadd.f32 %v9776, %v9805
        %v9820 = vadd.f32 %v9777, %v9801
        %v9821 = vadd.f32 %v9778, %v9805
        %v9822 = vadd.f32 %v9779, %v9801
        %v9823 = vadd.f32 %v9780, %v9805
        %v9824 = vadd.f32 %v9781, %v9801
        %v9825 = vadd.f32 %v9782, %v9805
        %v9826 = vadd.f32 %v9783, %v9801
        %v9827 = vadd.f32 %v9784, %v9805
        %v9828 = vadd.f32 %v9785, %v9801
        %v9829 = vadd.f32 %v9786, %v9805
        %v9830 = vadd.f32 %v9787, %v9801
        %v9831 = vadd.f32 %v9788, %v9805
        %v9832 = vadd.f32 %v9789, %v9801
        %v9833 = vadd.f32 %v9790, %v9805
        %v9834 = vadd.f32 %v9791, %v9801
        %v9835 = vadd.f32 %v9792, %v9805
        %v9836 = vadd.f32 %v9793, %v9801
        %v9837 = vadd.f32 %v9794, %v9805
        %v9838 = vadd.f32 %v9795, %v9801
        %v9839 = vadd.f32 %v9796, %v9805
        %9840 = vst [vmem:[%s857] sm:$0xff] %v9808
        %9841 = vst [vmem:[%s857 + $0x8] sm:$0xff] %v9809
        %9842 = vst [vmem:[%s857 + $0x10] sm:$0xff] %v9810
        %9843 = vst [vmem:[%s857 + $0x18] sm:$0xff] %v9811
        %9844 = vst [vmem:[%s857 + $0x20] sm:$0xff] %v9812
        %9845 = vst [vmem:[%s857 + $0x28] sm:$0xff] %v9813
        %9846 = vst [vmem:[%s857 + $0x30] sm:$0xff] %v9814
        %9847 = vst [vmem:[%s857 + $0x38] sm:$0xff] %v9815
        %9848 = vst [vmem:[%s857 + $0x40] sm:$0xff] %v9816
        %9849 = vst [vmem:[%s857 + $0x48] sm:$0xff] %v9817
        %9850 = vst [vmem:[%s857 + $0x50] sm:$0xff] %v9818
        %9851 = vst [vmem:[%s857 + $0x58] sm:$0xff] %v9819
        %9852 = vst [vmem:[%s857 + $0x60] sm:$0xff] %v9820
        %9853 = vst [vmem:[%s857 + $0x68] sm:$0xff] %v9821
        %9854 = vst [vmem:[%s857 + $0x70] sm:$0xff] %v9822
        %9855 = vst [vmem:[%s857 + $0x78] sm:$0xff] %v9823
        %9856 = vst [vmem:[%s857 + $0x80] sm:$0xff] %v9824
        %9857 = vst [vmem:[%s857 + $0x88] sm:$0xff] %v9825
        %9858 = vst [vmem:[%s857 + $0x90] sm:$0xff] %v9826
        %9859 = vst [vmem:[%s857 + $0x98] sm:$0xff] %v9827
        %9860 = vst [vmem:[%s857 + $0xa0] sm:$0xff] %v9828
        %9861 = vst [vmem:[%s857 + $0xa8] sm:$0xff] %v9829
        %9862 = vst [vmem:[%s857 + $0xb0] sm:$0xff] %v9830
        %9863 = vst [vmem:[%s857 + $0xb8] sm:$0xff] %v9831
        %9864 = vst [vmem:[%s857 + $0xc0] sm:$0xff] %v9832
        %9865 = vst [vmem:[%s857 + $0xc8] sm:$0xff] %v9833
        %9866 = vst [vmem:[%s857 + $0xd0] sm:$0xff] %v9834
        %9867 = vst [vmem:[%s857 + $0xd8] sm:$0xff] %v9835
        %9868 = vst [vmem:[%s857 + $0xe0] sm:$0xff] %v9836
        %9869 = vst [vmem:[%s857 + $0xe8] sm:$0xff] %v9837
        %9870 = vst [vmem:[%s857 + $0xf0] sm:$0xff] %v9838
        %9871 = vst [vmem:[%s857 + $0xf8] sm:$0xff] %v9839
        %s9872 = sand.u32 %s456, 1
        %s9873 = scalar_lea.sflag [#allocation7], %s9872
        %s9874 = sand.u32 %s456, 1
        %s9875 = smul.addr %s9874, 256
        %s9876 = scalar_lea.vmem [#allocation34], %s9875
        // Predicated region
        $region169: #{tpu_custom_call.1} parent=91 // pred_check
          %p9877 = pneg %p466
        $region170: #{tpu_custom_call.1} parent=91 // pred_check_branch
          %9879 = sbr.rel (%p9877) target = $region172
        $region171: #{tpu_custom_call.1} parent=91 // pred_region
          %s9880 = smul.u32 16, %s51
          %s9882 = ssub.s32 4096, 4096
          %9883 = vsyncadd %s9873, %s9882
          %s9884 = smul.addr %s9880, 2
          %s9885 = smul.addr %s50, 64
          %s9886 = sadd.s32 %s9884, %s9885
          %s9887 = smul.addr %s9886, 128
          %s9888 = scalar_lea.hbm %s18, %s9887
          %s9889 = sshll.u32 %s9876, 4
          %s9890 = int_to_ptr.vmem [resolvable:$true] %s9889
          %9895 = dma.vmem_to_hbm [thread:$0]  %s9890, 4096, %s9888, %s9873, 256, 256, 16
        $region172: #{tpu_custom_call.1} parent=91 // pred_fallthru
          _
      $region92: #{tpu_custom_call.1} parent=5 // pred_fallthru
        _
      %p9896 = scmp.le.s32.totalorder 2, %s41
      // Predicated region
      $region173: #{tpu_custom_call.1} parent=5 // pred_check
        %p9897 = pneg %p9896
      $region174: #{tpu_custom_call.1} parent=5 // pred_check_branch
        %9899 = sbr.rel (%p9897) target = $region176
      $region175: #{tpu_custom_call.1} parent=5 // pred_region
        %s9900 = ssub.s32 %s41, 2
        // Predicated region
        $region177: #{tpu_custom_call.1} parent=175 // pred_check
          %p9901 = pneg %p472
        $region178: #{tpu_custom_call.1} parent=175 // pred_check_branch
          %9903 = sbr.rel (%p9901) target = $region180
        $region179: #{tpu_custom_call.1} parent=175 // pred_region
          %s9904 = sand.u32 %s457, 1
          %s9905 = scalar_lea.sflag [#allocation7], %s9904
          %s9906 = sand.u32 %s457, 1
          %s9907 = smul.addr %s9906, 256
          %s9908 = scalar_lea.vmem [#allocation34], %s9907
          %9909 = dma.done %s9905, 4096
        $region180: #{tpu_custom_call.1} parent=175 // pred_fallthru
          _
      $region176: #{tpu_custom_call.1} parent=5 // pred_fallthru
        _
    $region6: #{tpu_custom_call.1} parent=1 // loop_footer
      %s45 = sadd.s32 1, %s41
    $region7: #{tpu_custom_call.1} parent=1 // loop_footer_branch
      %40 = sbr.rel target = $region3
    $region8: #{tpu_custom_call.1} parent=1 // loop_exit
      _
    %9910 = vsyncpa [#allocation6], 1
    %s9911 = scalar_lea.sflag [#allocation6], 1
    %9912 = vsyncpa %s9911, 1
    %9913 = vsyncpa [#allocation9], 1
    %s9914 = scalar_lea.sflag [#allocation9], 1
    %9915 = vsyncpa %s9914, 1
    %9916 = vsyncpa [#allocation12], 1
    %9917 = vsyncpa [#allocation15], 1
    %9918 = vsyncpa [#allocation18], 1
    %9919 = vsyncpa [#allocation21], 1
    %9920 = vsyncpa [#allocation24], 1
    %9921 = vsyncpa [#allocation27], 1
    %9922 = vsyncpa [#allocation30], 1
    %9923 = vsyncpa [#allocation33], 1
    %9924 = vsyncpa [#allocation7], 1
    %s9925 = scalar_lea.sflag [#allocation7], 1
    %9926 = vsyncpa %s9925, 1

</llo_original>
